<compile_context>
chip_gen: v7x
topology: tpu7x:2x2x1
jax: 0.10.0
libtpu: 0.0.40
codegen_flags: <defaults>
</compile_context>

<pallas_src>
import functools
import math

import jax
import jax.numpy as jnp
from jax import lax
from jax.experimental import pallas as pl
from jax.experimental.pallas import tpu as pltpu

NUM_LAYERS = 5
HEAD_LANES = 128     # linear1 output (2) padded to a full lane group for unmasked stores


# ----------------------------------------------------------------------------- kernel
def _make_fused_kernel(T, BP, H):
    """Fused 5-layer bi-LSTM + relu(linear1) head for static (T, BP, H)."""
    H2, H4, H8 = 2 * H, 4 * H, 8 * H

    def kernel(x_ref, wih0_ref, whh0_ref, b0_ref,
               wihl_ref, whhl_ref, bl_ref,
               wih4_ref, whh4_ref, b4_ref,
               w1_ref, b1_ref, out_ref):
        f32 = jnp.float32

        # Per-lane constants, hoisted once (JAX does not CSE broadcasts).
        lane8 = lax.broadcasted_iota(jnp.int32, (1, H8), 1)
        fwd_mask = (lane8 % H2) < H                                   # fwd column stripes
        scale8 = jnp.where((lane8 >= H4) & (lane8 < 6 * H), 2.0, 1.0).astype(f32)
        lane4 = lax.broadcasted_iota(jnp.int32, (1, H4), 1)
        scale4 = jnp.where((lane4 >= H2) & (lane4 < 3 * H), 2.0, 1.0).astype(f32)
        lane2 = lax.broadcasted_iota(jnp.int32, (1, H2), 1)
        out_mask = lane2 < H                                          # fwd half of output

        def fused_bilstm_layer(x_all, w_ih, w_hh, b):
            # Batched input projection for all timesteps & both directions (one MXU
            # pass, bias folded) - independent of the recurrence, off the serial path.
            xg = jnp.dot(x_all, w_ih, preferred_element_type=f32) + b     # (T*BP, 8H)
            h = jnp.zeros((BP, H2), f32)          # lanes [h_fwd | h_bwd]
            c = jnp.zeros((BP, H2), f32)
            hs = []
            for t in range(T):                    # static unroll; fwd & bwd fused per step
                tb = T - 1 - t
                xg_t = jnp.where(fwd_mask,
                                 xg[t * BP:(t + 1) * BP, :],
                                 xg[tb * BP:(tb + 1) * BP, :])
                g = xg_t + jnp.dot(h, w_hh, preferred_element_type=f32)   # one matmul
                s = jax.nn.sigmoid(g * scale8)    # single EUP pass over all fused gates
                i_g = s[:, 0:H2]
                f_g = s[:, H2:2 * H2]
                g_g = 2.0 * s[:, 2 * H2:3 * H2] - 1.0       # tanh via sigmoid identity
                o_g = s[:, 3 * H2:4 * H2]
                c = f_g * c + i_g * g_g
                h = o_g * jnp.tanh(c)
                hs.append(h)
            # Next-layer input: row-block t = [h_fwd(t) | h_bwd(t)].  Both operands
            # already hold the wanted halves at the wanted lanes -> pure lane select.
            rows = [jnp.where(out_mask, hs[t], hs[T - 1 - t]) for t in range(T)]
            return jnp.concatenate(rows, axis=0)                          # (T*BP, 2H)

        # ---- layer 0, then layers 1..3 (activations carried as values, no scratch)
        x_all = fused_bilstm_layer(x_ref[...], wih0_ref[...], whh0_ref[...], b0_ref[...])
        for l in range(NUM_LAYERS - 2):
            x_all = fused_bilstm_layer(x_all, wihl_ref[l], whhl_ref[l], bl_ref[l])

        # ---- layer 4: backward direction only (the head consumes solely the backward
        # half of x.view(-1, rep, 2, H)[:, :, -1, :]) with relu(linear1) fused per step.
        w_hh4 = whh4_ref[...]
        w1 = w1_ref[...]
        b1 = b1_ref[...]
        xg4 = jnp.dot(x_all, wih4_ref[...], preferred_element_type=f32) + b4_ref[...]
        hb = jnp.zeros((BP, H), f32)
        cb = jnp.zeros((BP, H), f32)
        heads = [None] * T
        for t in range(T):
            tb = T - 1 - t
            g = xg4[tb * BP:(tb + 1) * BP, :] + jnp.dot(
                hb, w_hh4, preferred_element_type=f32)
            s = jax.nn.sigmoid(g * scale4)
            i_g = s[:, 0:H]
            f_g = s[:, H:2 * H]
            g_g = 2.0 * s[:, 2 * H:3 * H] - 1.0
            o_g = s[:, 3 * H:4 * H]
            cb = f_g * cb + i_g * g_g
            hb = o_g * jnp.tanh(cb)
            heads[tb] = jnp.maximum(
                jnp.dot(hb, w1, preferred_element_type=f32) + b1, 0.0)    # (BP, 128)
        # Single lane-dense, unmasked store of the whole output.
        out_ref[...] = jnp.concatenate(heads, axis=1)                     # (BP, T*128)

    return kernel


# ----------------------------------------------------------------------------- wrapper
@functools.partial(jax.jit, static_argnames=("repetition_size", "hidden_size"))
def curve_trace_forward(x, params, repetition_size, hidden_size):
    """x: (B, T, input_size) f32 -> (B*T // repetition_size, repetition_size, 2)."""
    B, T, D_in = x.shape
    H = hidden_size
    BP = ((B + 7) // 8) * 8                                   # pad batch to sublane group

    x_tm = jnp.transpose(x, (1, 0, 2))                        # (T, B, D) time-major
    x_tm = jnp.pad(x_tm, ((0, 0), (0, BP - B), (0, 0)))       # zero-pad batch rows
    x_tm = x_tm.reshape(T * BP, D_in)

    vmem = pl.BlockSpec(memory_space=pltpu.MemorySpace.VMEM)
    out = pl.pallas_call(
        _make_fused_kernel(T, BP, H),
        out_shape=jax.ShapeDtypeStruct((BP, T * HEAD_LANES), jnp.float32),
        in_specs=[vmem] * 12,
        out_specs=vmem,
    )(x_tm, params["wih0"], params["whh0"], params["b0"],
      params["wihl"], params["whhl"], params["bl"],
      params["wih4"], params["whh4"], params["b4"],
      params["w1p"], params["b1p"])

    out = out.reshape(BP, T, HEAD_LANES)[:B, :, :2]           # (B, T, 2)
    return out.reshape(-1, repetition_size, 2)


# --------------------------------------------------------------------- pure-JAX reference
def _lstm_dir_ref(seq_tm, w_ih_t, w_hh_t, b):
    H = w_hh_t.shape[0]
    Bt = seq_tm.shape[1]

    def step(carry, x_t):
        h, c = carry
        gates = x_t @ w_ih_t + h @ w_hh_t + b
        i = jax.nn.sigmoid(gates[:, :H])
        f = jax.nn.sigmoid(gates[:, H:2 * H])
        g = jnp.tanh(gates[:, 2 * H:3 * H])
        o = jax.nn.sigmoid(gates[:, 3 * H:])
        c_new = f * c + i * g
        h_new = o * jnp.tanh(c_new)
        return (h_new, c_new), h_new

    init = (jnp.zeros((Bt, H), jnp.float32), jnp.zeros((Bt, H), jnp.float32))
    _, out = lax.scan(step, init, seq_tm)
    return out


def curve_trace_forward_ref(x, params, repetition_size, hidden_size):
    """Full 5-layer bidirectional LSTM (both directions of every layer) + head.
    Verifies the kernel's layer-5 forward-direction skip and the fused gate packing."""
    H = hidden_size
    h = x
    for l in range(NUM_LAYERS):
        outs = []
        for d in range(2):                        # 0 = forward, 1 = backward
            if l == 0:
                w_ih, w_hh, b = params["wih0"][d], params["whh0"][d], params["b0"][d]
            else:
                idx = 2 * (l - 1) + d
                w_ih, w_hh, b = params["wihl"][idx], params["whhl"][idx], params["bl"][idx]
            inp = h if d == 0 else h[:, ::-1, :]
            seq_tm = jnp.transpose(inp, (1, 0, 2))
            out = _lstm_dir_ref(seq_tm, w_ih, w_hh, b)
            out = jnp.transpose(out, (1, 0, 2))
            if d == 1:
                out = out[:, ::-1, :]
            outs.append(out)
        h = jnp.concatenate(outs, axis=-1)        # (B, T, 2H)

    h = h.reshape(-1, repetition_size, 2, H)[:, :, -1, :]     # backward half
    n = h.shape[0]
    flat = h.reshape(n * repetition_size, H)
    out = jnp.maximum(flat @ params["w1"] + params["b1"], 0.0)
    return out.reshape(n, repetition_size, 2)


# ------------------------------------------------------------------------------ params
def init_params(key, input_size, hidden_size):
    """Synthetic parameters matching nn.LSTM / nn.Linear shapes.

    Returns (kernel_params, ref_params, key):
      * ref_params: per-direction transposed weights for the pure-JAX reference.
      * kernel_params: fused packing for the Pallas kernel -
          layers 0..3: W_ih (d_in, 8H) with interleaved gate columns
                       [i_f,i_b,f_f,f_b,g_f,g_b,o_f,o_b], W_hh (2H, 8H) block-diagonal
                       (rows 0:H -> fwd columns, rows H:2H -> bwd columns), bias (1, 8H);
          layer 4: backward direction only, standard (2H,4H)/(H,4H)/(1,4H);
          head: w1 padded to (H, 128), b1 to (1, 128).
    """
    H = hidden_size
    bound = 1.0 / math.sqrt(H)
    f32 = jnp.float32

    def uni(k, shape):
        return jax.random.uniform(k, shape, f32, -bound, bound)

    raw = []                                 # raw[layer][dir] = (w_ih.T, w_hh.T, b_ih+b_hh)
    for layer in range(NUM_LAYERS):
        d_in = input_size if layer == 0 else 2 * H
        dirs = []
        for _ in range(2):                   # forward, backward
            key, k1, k2, k3, k4 = jax.random.split(key, 5)
            w_ih = uni(k1, (4 * H, d_in))
            w_hh = uni(k2, (4 * H, H))
            b_ih = uni(k3, (4 * H,))
            b_hh = uni(k4, (4 * H,))
            dirs.append((w_ih.T, w_hh.T, b_ih + b_hh))
        raw.append(dirs)

    key, k1, k2 = jax.random.split(key, 3)
    w1 = uni(k1, (2, H))
    b1 = uni(k2, (2,))

    # ---- reference params (per-direction, PyTorch gate order i,f,g,o)
    ref_params = {
        "wih0": jnp.stack([raw[0][d][0] for d in range(2)]),
        "whh0": jnp.stack([raw[0][d][1] for d in range(2)]),
        "b0":   jnp.stack([raw[0][d][2].reshape(1, 4 * H) for d in range(2)]),
        "wihl": jnp.stack([raw[l][d][0] for l in range(1, NUM_LAYERS) for d in range(2)]),
        "whhl": jnp.stack([raw[l][d][1] for l in range(1, NUM_LAYERS) for d in range(2)]),
        "bl":   jnp.stack([raw[l][d][2].reshape(1, 4 * H) for l in range(1, NUM_LAYERS)
                           for d in range(2)]),
        "w1": w1.T, "b1": b1.reshape(1, 2),
    }

    # ---- fused packing for layers 0..3
    def pack_fused(layer):
        wif, whf, bf = raw[layer][0]
        wib, whb, bb = raw[layer][1]
        zH = jnp.zeros((H, H), f32)
        ih_cols, hh_cols, b_cols = [], [], []
        for gate in range(4):
            sl = slice(gate * H, (gate + 1) * H)
            ih_cols += [wif[:, sl], wib[:, sl]]
            hh_cols += [jnp.concatenate([whf[:, sl], zH], axis=0),
                        jnp.concatenate([zH, whb[:, sl]], axis=0)]
            b_cols += [bf[sl], bb[sl]]
        return (jnp.concatenate(ih_cols, axis=1),              # (d_in, 8H)
                jnp.concatenate(hh_cols, axis=1),              # (2H, 8H)
                jnp.concatenate(b_cols).reshape(1, 8 * H))     # (1, 8H)

    wih0, whh0, b0 = pack_fused(0)
    packed = [pack_fused(l) for l in range(1, NUM_LAYERS - 1)]

    # ---- layer 4: backward direction only
    wib4, whb4, bb4 = raw[NUM_LAYERS - 1][1]

    kernel_params = {
        "wih0": wih0, "whh0": whh0, "b0": b0,
        "wihl": jnp.stack([p[0] for p in packed]),
        "whhl": jnp.stack([p[1] for p in packed]),
        "bl":   jnp.stack([p[2] for p in packed]),
        "wih4": wib4, "whh4": whb4, "b4": bb4.reshape(1, 4 * H),
        "w1p": jnp.zeros((H, HEAD_LANES), f32).at[:, :2].set(w1.T),
        "b1p": jnp.zeros((1, HEAD_LANES), f32).at[0, :2].set(b1),
    }
    # TODO(synk): linear2 (nn.Linear(8, output_size)) exists in __init__ but is unused
    # in forward, so it is intentionally not implemented.
    return kernel_params, ref_params, key


# -------------------------------------------------------------------------------- main
if __name__ == "__main__":
    INPUT_SIZE = 4
    HIDDEN_SIZE = 32
    REPETITION_SIZE = 8
    BATCH = 2
    SEQ = REPETITION_SIZE      # T == repetition_size so view(-1, rep, 2, H) keeps batch

    key = jax.random.PRNGKey(0)
    kernel_params, ref_params, key = init_params(key, INPUT_SIZE, HIDDEN_SIZE)
    key, xk = jax.random.split(key)
    x = jax.random.normal(xk, (BATCH, SEQ, INPUT_SIZE), jnp.float32)

    y = curve_trace_forward(x, kernel_params, REPETITION_SIZE, HIDDEN_SIZE)
    y = jax.block_until_ready(y)

    y_ref = curve_trace_forward_ref(x, ref_params, REPETITION_SIZE, HIDDEN_SIZE)
    y_ref = jax.block_until_ready(y_ref)

    assert y.shape == (BATCH, REPETITION_SIZE, 2), y.shape
    assert jnp.allclose(y, y_ref, atol=2e-4, rtol=2e-4), \
        "Pallas output mismatch vs JAX reference"

    print("KERNEL_OK")
</pallas_src>

<mosaic_0001>
module attributes {stable_mosaic.version = 11 : i64} {
  func.func @kernel(%arg0: memref<64x4xf32, #tpu.memory_space<vmem>>, %arg1: memref<4x256xf32, #tpu.memory_space<vmem>>, %arg2: memref<64x256xf32, #tpu.memory_space<vmem>>, %arg3: memref<1x256xf32, #tpu.memory_space<vmem>>, %arg4: memref<3x64x256xf32, #tpu.memory_space<vmem>>, %arg5: memref<3x64x256xf32, #tpu.memory_space<vmem>>, %arg6: memref<3x1x256xf32, #tpu.memory_space<vmem>>, %arg7: memref<64x128xf32, #tpu.memory_space<vmem>>, %arg8: memref<32x128xf32, #tpu.memory_space<vmem>>, %arg9: memref<1x128xf32, #tpu.memory_space<vmem>>, %arg10: memref<32x128xf32, #tpu.memory_space<vmem>>, %arg11: memref<1x128xf32, #tpu.memory_space<vmem>>, %arg12: memref<8x1024xf32, #tpu.memory_space<vmem>>) attributes {dimension_semantics = [], scalar_prefetch = 0 : i64, scratch_operands = 0 : i64, tpu.core_type = #tpu.core_type<tc>} {
    %0 = tpu.iota {dimensions = array<i32: 1>} : vector<1x256xi32>
    %c64_i32 = arith.constant 64 : i32
    %c0_i32 = arith.constant 0 : i32
    %1 = arith.cmpi eq, %c64_i32, %c0_i32 : i32
    %c1_i32 = arith.constant 1 : i32
    %2 = arith.select %1, %c1_i32, %c64_i32 : i32
    %3 = vector.broadcast %2 : i32 to vector<1x256xi32>
    %4 = arith.remsi %0, %3 : vector<1x256xi32>
    %c0_i32_0 = arith.constant 0 : i32
    %5 = vector.broadcast %c0_i32_0 : i32 to vector<1x256xi32>
    %6 = arith.cmpi ne, %4, %5 : vector<1x256xi32>
    %c0_i32_1 = arith.constant 0 : i32
    %7 = vector.broadcast %c0_i32_1 : i32 to vector<1x256xi32>
    %8 = arith.cmpi slt, %4, %7 : vector<1x256xi32>
    %c0_i32_2 = arith.constant 0 : i32
    %9 = arith.cmpi slt, %2, %c0_i32_2 : i32
    %10 = vector.broadcast %9 : i1 to vector<1x256xi1>
    %11 = vector.broadcast %10 : vector<1x256xi1> to vector<1x256xi1>
    %12 = arith.xori %8, %11 : vector<1x256xi1>
    %13 = arith.andi %12, %6 : vector<1x256xi1>
    %14 = vector.broadcast %2 : i32 to vector<1x256xi32>
    %15 = arith.addi %4, %14 : vector<1x256xi32>
    %16 = arith.select %13, %15, %4 : vector<1x256xi1>, vector<1x256xi32>
    %c32_i32 = arith.constant 32 : i32
    %17 = vector.broadcast %c32_i32 : i32 to vector<1x256xi32>
    %18 = arith.cmpi slt, %16, %17 : vector<1x256xi32>
    %c128_i32 = arith.constant 128 : i32
    %19 = vector.broadcast %c128_i32 : i32 to vector<1x256xi32>
    %20 = arith.cmpi sge, %0, %19 : vector<1x256xi32>
    %c192_i32 = arith.constant 192 : i32
    %21 = vector.broadcast %c192_i32 : i32 to vector<1x256xi32>
    %22 = arith.cmpi slt, %0, %21 : vector<1x256xi32>
    %23 = arith.andi %20, %22 : vector<1x256xi1>
    %cst = arith.constant 2.000000e+00 : f32
    %cst_3 = arith.constant 1.000000e+00 : f32
    %24 = vector.broadcast %cst : f32 to vector<1x256xf32>
    %25 = vector.broadcast %cst_3 : f32 to vector<1x256xf32>
    %26 = arith.select %23, %24, %25 : vector<1x256xi1>, vector<1x256xf32>
    %27 = tpu.iota {dimensions = array<i32: 1>} : vector<1x128xi32>
    %c64_i32_4 = arith.constant 64 : i32
    %28 = vector.broadcast %c64_i32_4 : i32 to vector<1x128xi32>
    %29 = arith.cmpi sge, %27, %28 : vector<1x128xi32>
    %c96_i32 = arith.constant 96 : i32
    %30 = vector.broadcast %c96_i32 : i32 to vector<1x128xi32>
    %31 = arith.cmpi slt, %27, %30 : vector<1x128xi32>
    %32 = arith.andi %29, %31 : vector<1x128xi1>
    %cst_5 = arith.constant 2.000000e+00 : f32
    %cst_6 = arith.constant 1.000000e+00 : f32
    %33 = vector.broadcast %cst_5 : f32 to vector<1x128xf32>
    %34 = vector.broadcast %cst_6 : f32 to vector<1x128xf32>
    %35 = arith.select %32, %33, %34 : vector<1x128xi1>, vector<1x128xf32>
    %36 = tpu.iota {dimensions = array<i32: 1>} : vector<1x64xi32>
    %c32_i32_7 = arith.constant 32 : i32
    %37 = vector.broadcast %c32_i32_7 : i32 to vector<1x64xi32>
    %38 = arith.cmpi slt, %36, %37 : vector<1x64xi32>
    %c0 = arith.constant 0 : index
    %c0_8 = arith.constant 0 : index
    %39 = vector.load %arg0[%c0, %c0_8] : memref<64x4xf32, #tpu.memory_space<vmem>>, vector<64x4xf32>
    %c0_9 = arith.constant 0 : index
    %c0_10 = arith.constant 0 : index
    %40 = vector.load %arg1[%c0_9, %c0_10] : memref<4x256xf32, #tpu.memory_space<vmem>>, vector<4x256xf32>
    %c0_11 = arith.constant 0 : index
    %c0_12 = arith.constant 0 : index
    %41 = vector.load %arg2[%c0_11, %c0_12] : memref<64x256xf32, #tpu.memory_space<vmem>>, vector<64x256xf32>
    %c0_13 = arith.constant 0 : index
    %c0_14 = arith.constant 0 : index
    %42 = vector.load %arg3[%c0_13, %c0_14] : memref<1x256xf32, #tpu.memory_space<vmem>>, vector<1x256xf32>
    %cst_15 = arith.constant dense<0.000000e+00> : vector<64x256xf32>
    %43 = tpu.matmul %39, %40, %cst_15 {dimension_numbers = #tpu.dot_dimension_numbers<[1], [0], [0], [1], [0, 0, 1, 1], [], []>} : vector<64x4xf32>, vector<4x256xf32>, vector<64x256xf32> -> vector<64x256xf32>
    %44 = vector.broadcast %42 : vector<1x256xf32> to vector<64x256xf32>
    %45 = arith.addf %43, %44 : vector<64x256xf32>
    %cst_16 = arith.constant 0.000000e+00 : f32
    %46 = vector.broadcast %cst_16 : f32 to vector<8x64xf32>
    %cst_17 = arith.constant 0.000000e+00 : f32
    %47 = vector.broadcast %cst_17 : f32 to vector<8x64xf32>
    %48 = vector.extract_strided_slice %45 {offsets = [0, 0], sizes = [8, 256], strides = [1, 1]} : vector<64x256xf32> to vector<8x256xf32>
    %49 = vector.extract_strided_slice %45 {offsets = [56, 0], sizes = [8, 256], strides = [1, 1]} : vector<64x256xf32> to vector<8x256xf32>
    %50 = vector.shape_cast %18 : vector<1x256xi1> to vector<1x256xi1>
    %51 = vector.broadcast %50 : vector<1x256xi1> to vector<8x256xi1>
    %52 = arith.select %51, %48, %49 : vector<8x256xi1>, vector<8x256xf32>
    %cst_18 = arith.constant dense<0.000000e+00> : vector<8x256xf32>
    %53 = tpu.matmul %46, %41, %cst_18 {dimension_numbers = #tpu.dot_dimension_numbers<[1], [0], [0], [1], [0, 0, 1, 1], [], []>} : vector<8x64xf32>, vector<64x256xf32>, vector<8x256xf32> -> vector<8x256xf32>
    %54 = arith.addf %52, %53 : vector<8x256xf32>
    %55 = vector.broadcast %26 : vector<1x256xf32> to vector<8x256xf32>
    %56 = arith.mulf %54, %55 : vector<8x256xf32>
    %57 = arith.negf %56 : vector<8x256xf32>
    %58 = math.exp %57 : vector<8x256xf32>
    %cst_19 = arith.constant 1.000000e+00 : f32
    %59 = vector.broadcast %cst_19 : f32 to vector<8x256xf32>
    %60 = arith.addf %59, %58 : vector<8x256xf32>
    %61 = arith.divf %59, %60 : vector<8x256xf32>
    %62 = vector.extract_strided_slice %61 {offsets = [0, 0], sizes = [8, 64], strides = [1, 1]} : vector<8x256xf32> to vector<8x64xf32>
    %63 = vector.extract_strided_slice %61 {offsets = [0, 64], sizes = [8, 64], strides = [1, 1]} : vector<8x256xf32> to vector<8x64xf32>
    %64 = vector.extract_strided_slice %61 {offsets = [0, 128], sizes = [8, 64], strides = [1, 1]} : vector<8x256xf32> to vector<8x64xf32>
    %cst_20 = arith.constant 2.000000e+00 : f32
    %65 = vector.broadcast %cst_20 : f32 to vector<8x64xf32>
    %66 = arith.mulf %65, %64 : vector<8x64xf32>
    %cst_21 = arith.constant 1.000000e+00 : f32
    %67 = vector.broadcast %cst_21 : f32 to vector<8x64xf32>
    %68 = arith.subf %66, %67 : vector<8x64xf32>
    %69 = vector.extract_strided_slice %61 {offsets = [0, 192], sizes = [8, 64], strides = [1, 1]} : vector<8x256xf32> to vector<8x64xf32>
    %70 = arith.mulf %63, %47 : vector<8x64xf32>
    %71 = arith.mulf %62, %68 : vector<8x64xf32>
    %72 = arith.addf %70, %71 : vector<8x64xf32>
    %73 = math.tanh %72 : vector<8x64xf32>
    %74 = arith.mulf %69, %73 : vector<8x64xf32>
    %75 = vector.extract_strided_slice %45 {offsets = [8, 0], sizes = [8, 256], strides = [1, 1]} : vector<64x256xf32> to vector<8x256xf32>
    %76 = vector.extract_strided_slice %45 {offsets = [48, 0], sizes = [8, 256], strides = [1, 1]} : vector<64x256xf32> to vector<8x256xf32>
    %77 = vector.shape_cast %18 : vector<1x256xi1> to vector<1x256xi1>
    %78 = vector.broadcast %77 : vector<1x256xi1> to vector<8x256xi1>
    %79 = arith.select %78, %75, %76 : vector<8x256xi1>, vector<8x256xf32>
    %cst_22 = arith.constant dense<0.000000e+00> : vector<8x256xf32>
    %80 = tpu.matmul %74, %41, %cst_22 {dimension_numbers = #tpu.dot_dimension_numbers<[1], [0], [0], [1], [0, 0, 1, 1], [], []>} : vector<8x64xf32>, vector<64x256xf32>, vector<8x256xf32> -> vector<8x256xf32>
    %81 = arith.addf %79, %80 : vector<8x256xf32>
    %82 = vector.broadcast %26 : vector<1x256xf32> to vector<8x256xf32>
    %83 = arith.mulf %81, %82 : vector<8x256xf32>
    %84 = arith.negf %83 : vector<8x256xf32>
    %85 = math.exp %84 : vector<8x256xf32>
    %cst_23 = arith.constant 1.000000e+00 : f32
    %86 = vector.broadcast %cst_23 : f32 to vector<8x256xf32>
    %87 = arith.addf %86, %85 : vector<8x256xf32>
    %88 = arith.divf %86, %87 : vector<8x256xf32>
    %89 = vector.extract_strided_slice %88 {offsets = [0, 0], sizes = [8, 64], strides = [1, 1]} : vector<8x256xf32> to vector<8x64xf32>
    %90 = vector.extract_strided_slice %88 {offsets = [0, 64], sizes = [8, 64], strides = [1, 1]} : vector<8x256xf32> to vector<8x64xf32>
    %91 = vector.extract_strided_slice %88 {offsets = [0, 128], sizes = [8, 64], strides = [1, 1]} : vector<8x256xf32> to vector<8x64xf32>
    %cst_24 = arith.constant 2.000000e+00 : f32
    %92 = vector.broadcast %cst_24 : f32 to vector<8x64xf32>
    %93 = arith.mulf %92, %91 : vector<8x64xf32>
    %cst_25 = arith.constant 1.000000e+00 : f32
    %94 = vector.broadcast %cst_25 : f32 to vector<8x64xf32>
    %95 = arith.subf %93, %94 : vector<8x64xf32>
    %96 = vector.extract_strided_slice %88 {offsets = [0, 192], sizes = [8, 64], strides = [1, 1]} : vector<8x256xf32> to vector<8x64xf32>
    %97 = arith.mulf %90, %72 : vector<8x64xf32>
    %98 = arith.mulf %89, %95 : vector<8x64xf32>
    %99 = arith.addf %97, %98 : vector<8x64xf32>
    %100 = math.tanh %99 : vector<8x64xf32>
    %101 = arith.mulf %96, %100 : vector<8x64xf32>
    %102 = vector.extract_strided_slice %45 {offsets = [16, 0], sizes = [8, 256], strides = [1, 1]} : vector<64x256xf32> to vector<8x256xf32>
    %103 = vector.extract_strided_slice %45 {offsets = [40, 0], sizes = [8, 256], strides = [1, 1]} : vector<64x256xf32> to vector<8x256xf32>
    %104 = vector.shape_cast %18 : vector<1x256xi1> to vector<1x256xi1>
    %105 = vector.broadcast %104 : vector<1x256xi1> to vector<8x256xi1>
    %106 = arith.select %105, %102, %103 : vector<8x256xi1>, vector<8x256xf32>
    %cst_26 = arith.constant dense<0.000000e+00> : vector<8x256xf32>
    %107 = tpu.matmul %101, %41, %cst_26 {dimension_numbers = #tpu.dot_dimension_numbers<[1], [0], [0], [1], [0, 0, 1, 1], [], []>} : vector<8x64xf32>, vector<64x256xf32>, vector<8x256xf32> -> vector<8x256xf32>
    %108 = arith.addf %106, %107 : vector<8x256xf32>
    %109 = vector.broadcast %26 : vector<1x256xf32> to vector<8x256xf32>
    %110 = arith.mulf %108, %109 : vector<8x256xf32>
    %111 = arith.negf %110 : vector<8x256xf32>
    %112 = math.exp %111 : vector<8x256xf32>
    %cst_27 = arith.constant 1.000000e+00 : f32
    %113 = vector.broadcast %cst_27 : f32 to vector<8x256xf32>
    %114 = arith.addf %113, %112 : vector<8x256xf32>
    %115 = arith.divf %113, %114 : vector<8x256xf32>
    %116 = vector.extract_strided_slice %115 {offsets = [0, 0], sizes = [8, 64], strides = [1, 1]} : vector<8x256xf32> to vector<8x64xf32>
    %117 = vector.extract_strided_slice %115 {offsets = [0, 64], sizes = [8, 64], strides = [1, 1]} : vector<8x256xf32> to vector<8x64xf32>
    %118 = vector.extract_strided_slice %115 {offsets = [0, 128], sizes = [8, 64], strides = [1, 1]} : vector<8x256xf32> to vector<8x64xf32>
    %cst_28 = arith.constant 2.000000e+00 : f32
    %119 = vector.broadcast %cst_28 : f32 to vector<8x64xf32>
    %120 = arith.mulf %119, %118 : vector<8x64xf32>
    %cst_29 = arith.constant 1.000000e+00 : f32
    %121 = vector.broadcast %cst_29 : f32 to vector<8x64xf32>
    %122 = arith.subf %120, %121 : vector<8x64xf32>
    %123 = vector.extract_strided_slice %115 {offsets = [0, 192], sizes = [8, 64], strides = [1, 1]} : vector<8x256xf32> to vector<8x64xf32>
    %124 = arith.mulf %117, %99 : vector<8x64xf32>
    %125 = arith.mulf %116, %122 : vector<8x64xf32>
    %126 = arith.addf %124, %125 : vector<8x64xf32>
    %127 = math.tanh %126 : vector<8x64xf32>
    %128 = arith.mulf %123, %127 : vector<8x64xf32>
    %129 = vector.extract_strided_slice %45 {offsets = [24, 0], sizes = [8, 256], strides = [1, 1]} : vector<64x256xf32> to vector<8x256xf32>
    %130 = vector.extract_strided_slice %45 {offsets = [32, 0], sizes = [8, 256], strides = [1, 1]} : vector<64x256xf32> to vector<8x256xf32>
    %131 = vector.shape_cast %18 : vector<1x256xi1> to vector<1x256xi1>
    %132 = vector.broadcast %131 : vector<1x256xi1> to vector<8x256xi1>
    %133 = arith.select %132, %129, %130 : vector<8x256xi1>, vector<8x256xf32>
    %cst_30 = arith.constant dense<0.000000e+00> : vector<8x256xf32>
    %134 = tpu.matmul %128, %41, %cst_30 {dimension_numbers = #tpu.dot_dimension_numbers<[1], [0], [0], [1], [0, 0, 1, 1], [], []>} : vector<8x64xf32>, vector<64x256xf32>, vector<8x256xf32> -> vector<8x256xf32>
    %135 = arith.addf %133, %134 : vector<8x256xf32>
    %136 = vector.broadcast %26 : vector<1x256xf32> to vector<8x256xf32>
    %137 = arith.mulf %135, %136 : vector<8x256xf32>
    %138 = arith.negf %137 : vector<8x256xf32>
    %139 = math.exp %138 : vector<8x256xf32>
    %cst_31 = arith.constant 1.000000e+00 : f32
    %140 = vector.broadcast %cst_31 : f32 to vector<8x256xf32>
    %141 = arith.addf %140, %139 : vector<8x256xf32>
    %142 = arith.divf %140, %141 : vector<8x256xf32>
    %143 = vector.extract_strided_slice %142 {offsets = [0, 0], sizes = [8, 64], strides = [1, 1]} : vector<8x256xf32> to vector<8x64xf32>
    %144 = vector.extract_strided_slice %142 {offsets = [0, 64], sizes = [8, 64], strides = [1, 1]} : vector<8x256xf32> to vector<8x64xf32>
    %145 = vector.extract_strided_slice %142 {offsets = [0, 128], sizes = [8, 64], strides = [1, 1]} : vector<8x256xf32> to vector<8x64xf32>
    %cst_32 = arith.constant 2.000000e+00 : f32
    %146 = vector.broadcast %cst_32 : f32 to vector<8x64xf32>
    %147 = arith.mulf %146, %145 : vector<8x64xf32>
    %cst_33 = arith.constant 1.000000e+00 : f32
    %148 = vector.broadcast %cst_33 : f32 to vector<8x64xf32>
    %149 = arith.subf %147, %148 : vector<8x64xf32>
    %150 = vector.extract_strided_slice %142 {offsets = [0, 192], sizes = [8, 64], strides = [1, 1]} : vector<8x256xf32> to vector<8x64xf32>
    %151 = arith.mulf %144, %126 : vector<8x64xf32>
    %152 = arith.mulf %143, %149 : vector<8x64xf32>
    %153 = arith.addf %151, %152 : vector<8x64xf32>
    %154 = math.tanh %153 : vector<8x64xf32>
    %155 = arith.mulf %150, %154 : vector<8x64xf32>
    %156 = vector.extract_strided_slice %45 {offsets = [32, 0], sizes = [8, 256], strides = [1, 1]} : vector<64x256xf32> to vector<8x256xf32>
    %157 = vector.extract_strided_slice %45 {offsets = [24, 0], sizes = [8, 256], strides = [1, 1]} : vector<64x256xf32> to vector<8x256xf32>
    %158 = vector.shape_cast %18 : vector<1x256xi1> to vector<1x256xi1>
    %159 = vector.broadcast %158 : vector<1x256xi1> to vector<8x256xi1>
    %160 = arith.select %159, %156, %157 : vector<8x256xi1>, vector<8x256xf32>
    %cst_34 = arith.constant dense<0.000000e+00> : vector<8x256xf32>
    %161 = tpu.matmul %155, %41, %cst_34 {dimension_numbers = #tpu.dot_dimension_numbers<[1], [0], [0], [1], [0, 0, 1, 1], [], []>} : vector<8x64xf32>, vector<64x256xf32>, vector<8x256xf32> -> vector<8x256xf32>
    %162 = arith.addf %160, %161 : vector<8x256xf32>
    %163 = vector.broadcast %26 : vector<1x256xf32> to vector<8x256xf32>
    %164 = arith.mulf %162, %163 : vector<8x256xf32>
    %165 = arith.negf %164 : vector<8x256xf32>
    %166 = math.exp %165 : vector<8x256xf32>
    %cst_35 = arith.constant 1.000000e+00 : f32
    %167 = vector.broadcast %cst_35 : f32 to vector<8x256xf32>
    %168 = arith.addf %167, %166 : vector<8x256xf32>
    %169 = arith.divf %167, %168 : vector<8x256xf32>
    %170 = vector.extract_strided_slice %169 {offsets = [0, 0], sizes = [8, 64], strides = [1, 1]} : vector<8x256xf32> to vector<8x64xf32>
    %171 = vector.extract_strided_slice %169 {offsets = [0, 64], sizes = [8, 64], strides = [1, 1]} : vector<8x256xf32> to vector<8x64xf32>
    %172 = vector.extract_strided_slice %169 {offsets = [0, 128], sizes = [8, 64], strides = [1, 1]} : vector<8x256xf32> to vector<8x64xf32>
    %cst_36 = arith.constant 2.000000e+00 : f32
    %173 = vector.broadcast %cst_36 : f32 to vector<8x64xf32>
    %174 = arith.mulf %173, %172 : vector<8x64xf32>
    %cst_37 = arith.constant 1.000000e+00 : f32
    %175 = vector.broadcast %cst_37 : f32 to vector<8x64xf32>
    %176 = arith.subf %174, %175 : vector<8x64xf32>
    %177 = vector.extract_strided_slice %169 {offsets = [0, 192], sizes = [8, 64], strides = [1, 1]} : vector<8x256xf32> to vector<8x64xf32>
    %178 = arith.mulf %171, %153 : vector<8x64xf32>
    %179 = arith.mulf %170, %176 : vector<8x64xf32>
    %180 = arith.addf %178, %179 : vector<8x64xf32>
    %181 = math.tanh %180 : vector<8x64xf32>
    %182 = arith.mulf %177, %181 : vector<8x64xf32>
    %183 = vector.extract_strided_slice %45 {offsets = [40, 0], sizes = [8, 256], strides = [1, 1]} : vector<64x256xf32> to vector<8x256xf32>
    %184 = vector.extract_strided_slice %45 {offsets = [16, 0], sizes = [8, 256], strides = [1, 1]} : vector<64x256xf32> to vector<8x256xf32>
    %185 = vector.shape_cast %18 : vector<1x256xi1> to vector<1x256xi1>
    %186 = vector.broadcast %185 : vector<1x256xi1> to vector<8x256xi1>
    %187 = arith.select %186, %183, %184 : vector<8x256xi1>, vector<8x256xf32>
    %cst_38 = arith.constant dense<0.000000e+00> : vector<8x256xf32>
    %188 = tpu.matmul %182, %41, %cst_38 {dimension_numbers = #tpu.dot_dimension_numbers<[1], [0], [0], [1], [0, 0, 1, 1], [], []>} : vector<8x64xf32>, vector<64x256xf32>, vector<8x256xf32> -> vector<8x256xf32>
    %189 = arith.addf %187, %188 : vector<8x256xf32>
    %190 = vector.broadcast %26 : vector<1x256xf32> to vector<8x256xf32>
    %191 = arith.mulf %189, %190 : vector<8x256xf32>
    %192 = arith.negf %191 : vector<8x256xf32>
    %193 = math.exp %192 : vector<8x256xf32>
    %cst_39 = arith.constant 1.000000e+00 : f32
    %194 = vector.broadcast %cst_39 : f32 to vector<8x256xf32>
    %195 = arith.addf %194, %193 : vector<8x256xf32>
    %196 = arith.divf %194, %195 : vector<8x256xf32>
    %197 = vector.extract_strided_slice %196 {offsets = [0, 0], sizes = [8, 64], strides = [1, 1]} : vector<8x256xf32> to vector<8x64xf32>
    %198 = vector.extract_strided_slice %196 {offsets = [0, 64], sizes = [8, 64], strides = [1, 1]} : vector<8x256xf32> to vector<8x64xf32>
    %199 = vector.extract_strided_slice %196 {offsets = [0, 128], sizes = [8, 64], strides = [1, 1]} : vector<8x256xf32> to vector<8x64xf32>
    %cst_40 = arith.constant 2.000000e+00 : f32
    %200 = vector.broadcast %cst_40 : f32 to vector<8x64xf32>
    %201 = arith.mulf %200, %199 : vector<8x64xf32>
    %cst_41 = arith.constant 1.000000e+00 : f32
    %202 = vector.broadcast %cst_41 : f32 to vector<8x64xf32>
    %203 = arith.subf %201, %202 : vector<8x64xf32>
    %204 = vector.extract_strided_slice %196 {offsets = [0, 192], sizes = [8, 64], strides = [1, 1]} : vector<8x256xf32> to vector<8x64xf32>
    %205 = arith.mulf %198, %180 : vector<8x64xf32>
    %206 = arith.mulf %197, %203 : vector<8x64xf32>
    %207 = arith.addf %205, %206 : vector<8x64xf32>
    %208 = math.tanh %207 : vector<8x64xf32>
    %209 = arith.mulf %204, %208 : vector<8x64xf32>
    %210 = vector.extract_strided_slice %45 {offsets = [48, 0], sizes = [8, 256], strides = [1, 1]} : vector<64x256xf32> to vector<8x256xf32>
    %211 = vector.extract_strided_slice %45 {offsets = [8, 0], sizes = [8, 256], strides = [1, 1]} : vector<64x256xf32> to vector<8x256xf32>
    %212 = vector.shape_cast %18 : vector<1x256xi1> to vector<1x256xi1>
    %213 = vector.broadcast %212 : vector<1x256xi1> to vector<8x256xi1>
    %214 = arith.select %213, %210, %211 : vector<8x256xi1>, vector<8x256xf32>
    %cst_42 = arith.constant dense<0.000000e+00> : vector<8x256xf32>
    %215 = tpu.matmul %209, %41, %cst_42 {dimension_numbers = #tpu.dot_dimension_numbers<[1], [0], [0], [1], [0, 0, 1, 1], [], []>} : vector<8x64xf32>, vector<64x256xf32>, vector<8x256xf32> -> vector<8x256xf32>
    %216 = arith.addf %214, %215 : vector<8x256xf32>
    %217 = vector.broadcast %26 : vector<1x256xf32> to vector<8x256xf32>
    %218 = arith.mulf %216, %217 : vector<8x256xf32>
    %219 = arith.negf %218 : vector<8x256xf32>
    %220 = math.exp %219 : vector<8x256xf32>
    %cst_43 = arith.constant 1.000000e+00 : f32
    %221 = vector.broadcast %cst_43 : f32 to vector<8x256xf32>
    %222 = arith.addf %221, %220 : vector<8x256xf32>
    %223 = arith.divf %221, %222 : vector<8x256xf32>
    %224 = vector.extract_strided_slice %223 {offsets = [0, 0], sizes = [8, 64], strides = [1, 1]} : vector<8x256xf32> to vector<8x64xf32>
    %225 = vector.extract_strided_slice %223 {offsets = [0, 64], sizes = [8, 64], strides = [1, 1]} : vector<8x256xf32> to vector<8x64xf32>
    %226 = vector.extract_strided_slice %223 {offsets = [0, 128], sizes = [8, 64], strides = [1, 1]} : vector<8x256xf32> to vector<8x64xf32>
    %cst_44 = arith.constant 2.000000e+00 : f32
    %227 = vector.broadcast %cst_44 : f32 to vector<8x64xf32>
    %228 = arith.mulf %227, %226 : vector<8x64xf32>
    %cst_45 = arith.constant 1.000000e+00 : f32
    %229 = vector.broadcast %cst_45 : f32 to vector<8x64xf32>
    %230 = arith.subf %228, %229 : vector<8x64xf32>
    %231 = vector.extract_strided_slice %223 {offsets = [0, 192], sizes = [8, 64], strides = [1, 1]} : vector<8x256xf32> to vector<8x64xf32>
    %232 = arith.mulf %225, %207 : vector<8x64xf32>
    %233 = arith.mulf %224, %230 : vector<8x64xf32>
    %234 = arith.addf %232, %233 : vector<8x64xf32>
    %235 = math.tanh %234 : vector<8x64xf32>
    %236 = arith.mulf %231, %235 : vector<8x64xf32>
    %237 = vector.extract_strided_slice %45 {offsets = [56, 0], sizes = [8, 256], strides = [1, 1]} : vector<64x256xf32> to vector<8x256xf32>
    %238 = vector.extract_strided_slice %45 {offsets = [0, 0], sizes = [8, 256], strides = [1, 1]} : vector<64x256xf32> to vector<8x256xf32>
    %239 = vector.shape_cast %18 : vector<1x256xi1> to vector<1x256xi1>
    %240 = vector.broadcast %239 : vector<1x256xi1> to vector<8x256xi1>
    %241 = arith.select %240, %237, %238 : vector<8x256xi1>, vector<8x256xf32>
    %cst_46 = arith.constant dense<0.000000e+00> : vector<8x256xf32>
    %242 = tpu.matmul %236, %41, %cst_46 {dimension_numbers = #tpu.dot_dimension_numbers<[1], [0], [0], [1], [0, 0, 1, 1], [], []>} : vector<8x64xf32>, vector<64x256xf32>, vector<8x256xf32> -> vector<8x256xf32>
    %243 = arith.addf %241, %242 : vector<8x256xf32>
    %244 = vector.broadcast %26 : vector<1x256xf32> to vector<8x256xf32>
    %245 = arith.mulf %243, %244 : vector<8x256xf32>
    %246 = arith.negf %245 : vector<8x256xf32>
    %247 = math.exp %246 : vector<8x256xf32>
    %cst_47 = arith.constant 1.000000e+00 : f32
    %248 = vector.broadcast %cst_47 : f32 to vector<8x256xf32>
    %249 = arith.addf %248, %247 : vector<8x256xf32>
    %250 = arith.divf %248, %249 : vector<8x256xf32>
    %251 = vector.extract_strided_slice %250 {offsets = [0, 0], sizes = [8, 64], strides = [1, 1]} : vector<8x256xf32> to vector<8x64xf32>
    %252 = vector.extract_strided_slice %250 {offsets = [0, 64], sizes = [8, 64], strides = [1, 1]} : vector<8x256xf32> to vector<8x64xf32>
    %253 = vector.extract_strided_slice %250 {offsets = [0, 128], sizes = [8, 64], strides = [1, 1]} : vector<8x256xf32> to vector<8x64xf32>
    %cst_48 = arith.constant 2.000000e+00 : f32
    %254 = vector.broadcast %cst_48 : f32 to vector<8x64xf32>
    %255 = arith.mulf %254, %253 : vector<8x64xf32>
    %cst_49 = arith.constant 1.000000e+00 : f32
    %256 = vector.broadcast %cst_49 : f32 to vector<8x64xf32>
    %257 = arith.subf %255, %256 : vector<8x64xf32>
    %258 = vector.extract_strided_slice %250 {offsets = [0, 192], sizes = [8, 64], strides = [1, 1]} : vector<8x256xf32> to vector<8x64xf32>
    %259 = arith.mulf %252, %234 : vector<8x64xf32>
    %260 = arith.mulf %251, %257 : vector<8x64xf32>
    %261 = arith.addf %259, %260 : vector<8x64xf32>
    %262 = math.tanh %261 : vector<8x64xf32>
    %263 = arith.mulf %258, %262 : vector<8x64xf32>
    %264 = vector.shape_cast %38 : vector<1x64xi1> to vector<1x64xi1>
    %265 = vector.broadcast %264 : vector<1x64xi1> to vector<8x64xi1>
    %266 = arith.select %265, %74, %263 : vector<8x64xi1>, vector<8x64xf32>
    %267 = vector.shape_cast %38 : vector<1x64xi1> to vector<1x64xi1>
    %268 = vector.broadcast %267 : vector<1x64xi1> to vector<8x64xi1>
    %269 = arith.select %268, %101, %236 : vector<8x64xi1>, vector<8x64xf32>
    %270 = vector.shape_cast %38 : vector<1x64xi1> to vector<1x64xi1>
    %271 = vector.broadcast %270 : vector<1x64xi1> to vector<8x64xi1>
    %272 = arith.select %271, %128, %209 : vector<8x64xi1>, vector<8x64xf32>
    %273 = vector.shape_cast %38 : vector<1x64xi1> to vector<1x64xi1>
    %274 = vector.broadcast %273 : vector<1x64xi1> to vector<8x64xi1>
    %275 = arith.select %274, %155, %182 : vector<8x64xi1>, vector<8x64xf32>
    %276 = vector.shape_cast %38 : vector<1x64xi1> to vector<1x64xi1>
    %277 = vector.broadcast %276 : vector<1x64xi1> to vector<8x64xi1>
    %278 = arith.select %277, %182, %155 : vector<8x64xi1>, vector<8x64xf32>
    %279 = vector.shape_cast %38 : vector<1x64xi1> to vector<1x64xi1>
    %280 = vector.broadcast %279 : vector<1x64xi1> to vector<8x64xi1>
    %281 = arith.select %280, %209, %128 : vector<8x64xi1>, vector<8x64xf32>
    %282 = vector.shape_cast %38 : vector<1x64xi1> to vector<1x64xi1>
    %283 = vector.broadcast %282 : vector<1x64xi1> to vector<8x64xi1>
    %284 = arith.select %283, %236, %101 : vector<8x64xi1>, vector<8x64xf32>
    %285 = vector.shape_cast %38 : vector<1x64xi1> to vector<1x64xi1>
    %286 = vector.broadcast %285 : vector<1x64xi1> to vector<8x64xi1>
    %287 = arith.select %286, %263, %74 : vector<8x64xi1>, vector<8x64xf32>
    %288 = tpu.concatenate %266, %269, %272, %275, %278, %281, %284, %287 in 0 : vector<8x64xf32>, vector<8x64xf32>, vector<8x64xf32>, vector<8x64xf32>, vector<8x64xf32>, vector<8x64xf32>, vector<8x64xf32>, vector<8x64xf32> -> vector<64x64xf32>
    %c0_50 = arith.constant 0 : index
    %c0_51 = arith.constant 0 : index
    %c0_52 = arith.constant 0 : index
    %289 = vector.load %arg4[%c0_50, %c0_51, %c0_52] : memref<3x64x256xf32, #tpu.memory_space<vmem>>, vector<1x64x256xf32>
    %290 = vector.shape_cast %289 : vector<1x64x256xf32> to vector<64x256xf32>
    %c0_53 = arith.constant 0 : index
    %c0_54 = arith.constant 0 : index
    %c0_55 = arith.constant 0 : index
    %291 = vector.load %arg5[%c0_53, %c0_54, %c0_55] : memref<3x64x256xf32, #tpu.memory_space<vmem>>, vector<1x64x256xf32>
    %292 = vector.shape_cast %291 : vector<1x64x256xf32> to vector<64x256xf32>
    %c0_56 = arith.constant 0 : index
    %c0_57 = arith.constant 0 : index
    %c0_58 = arith.constant 0 : index
    %293 = vector.load %arg6[%c0_56, %c0_57, %c0_58] : memref<3x1x256xf32, #tpu.memory_space<vmem>>, vector<1x1x256xf32>
    %294 = vector.shape_cast %293 : vector<1x1x256xf32> to vector<1x256xf32>
    %cst_59 = arith.constant dense<0.000000e+00> : vector<64x256xf32>
    %295 = tpu.matmul %288, %290, %cst_59 {dimension_numbers = #tpu.dot_dimension_numbers<[1], [0], [0], [1], [0, 0, 1, 1], [], []>} : vector<64x64xf32>, vector<64x256xf32>, vector<64x256xf32> -> vector<64x256xf32>
    %296 = vector.broadcast %294 : vector<1x256xf32> to vector<64x256xf32>
    %297 = arith.addf %295, %296 : vector<64x256xf32>
    %cst_60 = arith.constant 0.000000e+00 : f32
    %298 = vector.broadcast %cst_60 : f32 to vector<8x64xf32>
    %cst_61 = arith.constant 0.000000e+00 : f32
    %299 = vector.broadcast %cst_61 : f32 to vector<8x64xf32>
    %300 = vector.extract_strided_slice %297 {offsets = [0, 0], sizes = [8, 256], strides = [1, 1]} : vector<64x256xf32> to vector<8x256xf32>
    %301 = vector.extract_strided_slice %297 {offsets = [56, 0], sizes = [8, 256], strides = [1, 1]} : vector<64x256xf32> to vector<8x256xf32>
    %302 = vector.shape_cast %18 : vector<1x256xi1> to vector<1x256xi1>
    %303 = vector.broadcast %302 : vector<1x256xi1> to vector<8x256xi1>
    %304 = arith.select %303, %300, %301 : vector<8x256xi1>, vector<8x256xf32>
    %cst_62 = arith.constant dense<0.000000e+00> : vector<8x256xf32>
    %305 = tpu.matmul %298, %292, %cst_62 {dimension_numbers = #tpu.dot_dimension_numbers<[1], [0], [0], [1], [0, 0, 1, 1], [], []>} : vector<8x64xf32>, vector<64x256xf32>, vector<8x256xf32> -> vector<8x256xf32>
    %306 = arith.addf %304, %305 : vector<8x256xf32>
    %307 = vector.broadcast %26 : vector<1x256xf32> to vector<8x256xf32>
    %308 = arith.mulf %306, %307 : vector<8x256xf32>
    %309 = arith.negf %308 : vector<8x256xf32>
    %310 = math.exp %309 : vector<8x256xf32>
    %cst_63 = arith.constant 1.000000e+00 : f32
    %311 = vector.broadcast %cst_63 : f32 to vector<8x256xf32>
    %312 = arith.addf %311, %310 : vector<8x256xf32>
    %313 = arith.divf %311, %312 : vector<8x256xf32>
    %314 = vector.extract_strided_slice %313 {offsets = [0, 0], sizes = [8, 64], strides = [1, 1]} : vector<8x256xf32> to vector<8x64xf32>
    %315 = vector.extract_strided_slice %313 {offsets = [0, 64], sizes = [8, 64], strides = [1, 1]} : vector<8x256xf32> to vector<8x64xf32>
    %316 = vector.extract_strided_slice %313 {offsets = [0, 128], sizes = [8, 64], strides = [1, 1]} : vector<8x256xf32> to vector<8x64xf32>
    %cst_64 = arith.constant 2.000000e+00 : f32
    %317 = vector.broadcast %cst_64 : f32 to vector<8x64xf32>
    %318 = arith.mulf %317, %316 : vector<8x64xf32>
    %cst_65 = arith.constant 1.000000e+00 : f32
    %319 = vector.broadcast %cst_65 : f32 to vector<8x64xf32>
    %320 = arith.subf %318, %319 : vector<8x64xf32>
    %321 = vector.extract_strided_slice %313 {offsets = [0, 192], sizes = [8, 64], strides = [1, 1]} : vector<8x256xf32> to vector<8x64xf32>
    %322 = arith.mulf %315, %299 : vector<8x64xf32>
    %323 = arith.mulf %314, %320 : vector<8x64xf32>
    %324 = arith.addf %322, %323 : vector<8x64xf32>
    %325 = math.tanh %324 : vector<8x64xf32>
    %326 = arith.mulf %321, %325 : vector<8x64xf32>
    %327 = vector.extract_strided_slice %297 {offsets = [8, 0], sizes = [8, 256], strides = [1, 1]} : vector<64x256xf32> to vector<8x256xf32>
    %328 = vector.extract_strided_slice %297 {offsets = [48, 0], sizes = [8, 256], strides = [1, 1]} : vector<64x256xf32> to vector<8x256xf32>
    %329 = vector.shape_cast %18 : vector<1x256xi1> to vector<1x256xi1>
    %330 = vector.broadcast %329 : vector<1x256xi1> to vector<8x256xi1>
    %331 = arith.select %330, %327, %328 : vector<8x256xi1>, vector<8x256xf32>
    %cst_66 = arith.constant dense<0.000000e+00> : vector<8x256xf32>
    %332 = tpu.matmul %326, %292, %cst_66 {dimension_numbers = #tpu.dot_dimension_numbers<[1], [0], [0], [1], [0, 0, 1, 1], [], []>} : vector<8x64xf32>, vector<64x256xf32>, vector<8x256xf32> -> vector<8x256xf32>
    %333 = arith.addf %331, %332 : vector<8x256xf32>
    %334 = vector.broadcast %26 : vector<1x256xf32> to vector<8x256xf32>
    %335 = arith.mulf %333, %334 : vector<8x256xf32>
    %336 = arith.negf %335 : vector<8x256xf32>
    %337 = math.exp %336 : vector<8x256xf32>
    %cst_67 = arith.constant 1.000000e+00 : f32
    %338 = vector.broadcast %cst_67 : f32 to vector<8x256xf32>
    %339 = arith.addf %338, %337 : vector<8x256xf32>
    %340 = arith.divf %338, %339 : vector<8x256xf32>
    %341 = vector.extract_strided_slice %340 {offsets = [0, 0], sizes = [8, 64], strides = [1, 1]} : vector<8x256xf32> to vector<8x64xf32>
    %342 = vector.extract_strided_slice %340 {offsets = [0, 64], sizes = [8, 64], strides = [1, 1]} : vector<8x256xf32> to vector<8x64xf32>
    %343 = vector.extract_strided_slice %340 {offsets = [0, 128], sizes = [8, 64], strides = [1, 1]} : vector<8x256xf32> to vector<8x64xf32>
    %cst_68 = arith.constant 2.000000e+00 : f32
    %344 = vector.broadcast %cst_68 : f32 to vector<8x64xf32>
    %345 = arith.mulf %344, %343 : vector<8x64xf32>
    %cst_69 = arith.constant 1.000000e+00 : f32
    %346 = vector.broadcast %cst_69 : f32 to vector<8x64xf32>
    %347 = arith.subf %345, %346 : vector<8x64xf32>
    %348 = vector.extract_strided_slice %340 {offsets = [0, 192], sizes = [8, 64], strides = [1, 1]} : vector<8x256xf32> to vector<8x64xf32>
    %349 = arith.mulf %342, %324 : vector<8x64xf32>
    %350 = arith.mulf %341, %347 : vector<8x64xf32>
    %351 = arith.addf %349, %350 : vector<8x64xf32>
    %352 = math.tanh %351 : vector<8x64xf32>
    %353 = arith.mulf %348, %352 : vector<8x64xf32>
    %354 = vector.extract_strided_slice %297 {offsets = [16, 0], sizes = [8, 256], strides = [1, 1]} : vector<64x256xf32> to vector<8x256xf32>
    %355 = vector.extract_strided_slice %297 {offsets = [40, 0], sizes = [8, 256], strides = [1, 1]} : vector<64x256xf32> to vector<8x256xf32>
    %356 = vector.shape_cast %18 : vector<1x256xi1> to vector<1x256xi1>
    %357 = vector.broadcast %356 : vector<1x256xi1> to vector<8x256xi1>
    %358 = arith.select %357, %354, %355 : vector<8x256xi1>, vector<8x256xf32>
    %cst_70 = arith.constant dense<0.000000e+00> : vector<8x256xf32>
    %359 = tpu.matmul %353, %292, %cst_70 {dimension_numbers = #tpu.dot_dimension_numbers<[1], [0], [0], [1], [0, 0, 1, 1], [], []>} : vector<8x64xf32>, vector<64x256xf32>, vector<8x256xf32> -> vector<8x256xf32>
    %360 = arith.addf %358, %359 : vector<8x256xf32>
    %361 = vector.broadcast %26 : vector<1x256xf32> to vector<8x256xf32>
    %362 = arith.mulf %360, %361 : vector<8x256xf32>
    %363 = arith.negf %362 : vector<8x256xf32>
    %364 = math.exp %363 : vector<8x256xf32>
    %cst_71 = arith.constant 1.000000e+00 : f32
    %365 = vector.broadcast %cst_71 : f32 to vector<8x256xf32>
    %366 = arith.addf %365, %364 : vector<8x256xf32>
    %367 = arith.divf %365, %366 : vector<8x256xf32>
    %368 = vector.extract_strided_slice %367 {offsets = [0, 0], sizes = [8, 64], strides = [1, 1]} : vector<8x256xf32> to vector<8x64xf32>
    %369 = vector.extract_strided_slice %367 {offsets = [0, 64], sizes = [8, 64], strides = [1, 1]} : vector<8x256xf32> to vector<8x64xf32>
    %370 = vector.extract_strided_slice %367 {offsets = [0, 128], sizes = [8, 64], strides = [1, 1]} : vector<8x256xf32> to vector<8x64xf32>
    %cst_72 = arith.constant 2.000000e+00 : f32
    %371 = vector.broadcast %cst_72 : f32 to vector<8x64xf32>
    %372 = arith.mulf %371, %370 : vector<8x64xf32>
    %cst_73 = arith.constant 1.000000e+00 : f32
    %373 = vector.broadcast %cst_73 : f32 to vector<8x64xf32>
    %374 = arith.subf %372, %373 : vector<8x64xf32>
    %375 = vector.extract_strided_slice %367 {offsets = [0, 192], sizes = [8, 64], strides = [1, 1]} : vector<8x256xf32> to vector<8x64xf32>
    %376 = arith.mulf %369, %351 : vector<8x64xf32>
    %377 = arith.mulf %368, %374 : vector<8x64xf32>
    %378 = arith.addf %376, %377 : vector<8x64xf32>
    %379 = math.tanh %378 : vector<8x64xf32>
    %380 = arith.mulf %375, %379 : vector<8x64xf32>
    %381 = vector.extract_strided_slice %297 {offsets = [24, 0], sizes = [8, 256], strides = [1, 1]} : vector<64x256xf32> to vector<8x256xf32>
    %382 = vector.extract_strided_slice %297 {offsets = [32, 0], sizes = [8, 256], strides = [1, 1]} : vector<64x256xf32> to vector<8x256xf32>
    %383 = vector.shape_cast %18 : vector<1x256xi1> to vector<1x256xi1>
    %384 = vector.broadcast %383 : vector<1x256xi1> to vector<8x256xi1>
    %385 = arith.select %384, %381, %382 : vector<8x256xi1>, vector<8x256xf32>
    %cst_74 = arith.constant dense<0.000000e+00> : vector<8x256xf32>
    %386 = tpu.matmul %380, %292, %cst_74 {dimension_numbers = #tpu.dot_dimension_numbers<[1], [0], [0], [1], [0, 0, 1, 1], [], []>} : vector<8x64xf32>, vector<64x256xf32>, vector<8x256xf32> -> vector<8x256xf32>
    %387 = arith.addf %385, %386 : vector<8x256xf32>
    %388 = vector.broadcast %26 : vector<1x256xf32> to vector<8x256xf32>
    %389 = arith.mulf %387, %388 : vector<8x256xf32>
    %390 = arith.negf %389 : vector<8x256xf32>
    %391 = math.exp %390 : vector<8x256xf32>
    %cst_75 = arith.constant 1.000000e+00 : f32
    %392 = vector.broadcast %cst_75 : f32 to vector<8x256xf32>
    %393 = arith.addf %392, %391 : vector<8x256xf32>
    %394 = arith.divf %392, %393 : vector<8x256xf32>
    %395 = vector.extract_strided_slice %394 {offsets = [0, 0], sizes = [8, 64], strides = [1, 1]} : vector<8x256xf32> to vector<8x64xf32>
    %396 = vector.extract_strided_slice %394 {offsets = [0, 64], sizes = [8, 64], strides = [1, 1]} : vector<8x256xf32> to vector<8x64xf32>
    %397 = vector.extract_strided_slice %394 {offsets = [0, 128], sizes = [8, 64], strides = [1, 1]} : vector<8x256xf32> to vector<8x64xf32>
    %cst_76 = arith.constant 2.000000e+00 : f32
    %398 = vector.broadcast %cst_76 : f32 to vector<8x64xf32>
    %399 = arith.mulf %398, %397 : vector<8x64xf32>
    %cst_77 = arith.constant 1.000000e+00 : f32
    %400 = vector.broadcast %cst_77 : f32 to vector<8x64xf32>
    %401 = arith.subf %399, %400 : vector<8x64xf32>
    %402 = vector.extract_strided_slice %394 {offsets = [0, 192], sizes = [8, 64], strides = [1, 1]} : vector<8x256xf32> to vector<8x64xf32>
    %403 = arith.mulf %396, %378 : vector<8x64xf32>
    %404 = arith.mulf %395, %401 : vector<8x64xf32>
    %405 = arith.addf %403, %404 : vector<8x64xf32>
    %406 = math.tanh %405 : vector<8x64xf32>
    %407 = arith.mulf %402, %406 : vector<8x64xf32>
    %408 = vector.extract_strided_slice %297 {offsets = [32, 0], sizes = [8, 256], strides = [1, 1]} : vector<64x256xf32> to vector<8x256xf32>
    %409 = vector.extract_strided_slice %297 {offsets = [24, 0], sizes = [8, 256], strides = [1, 1]} : vector<64x256xf32> to vector<8x256xf32>
    %410 = vector.shape_cast %18 : vector<1x256xi1> to vector<1x256xi1>
    %411 = vector.broadcast %410 : vector<1x256xi1> to vector<8x256xi1>
    %412 = arith.select %411, %408, %409 : vector<8x256xi1>, vector<8x256xf32>
    %cst_78 = arith.constant dense<0.000000e+00> : vector<8x256xf32>
    %413 = tpu.matmul %407, %292, %cst_78 {dimension_numbers = #tpu.dot_dimension_numbers<[1], [0], [0], [1], [0, 0, 1, 1], [], []>} : vector<8x64xf32>, vector<64x256xf32>, vector<8x256xf32> -> vector<8x256xf32>
    %414 = arith.addf %412, %413 : vector<8x256xf32>
    %415 = vector.broadcast %26 : vector<1x256xf32> to vector<8x256xf32>
    %416 = arith.mulf %414, %415 : vector<8x256xf32>
    %417 = arith.negf %416 : vector<8x256xf32>
    %418 = math.exp %417 : vector<8x256xf32>
    %cst_79 = arith.constant 1.000000e+00 : f32
    %419 = vector.broadcast %cst_79 : f32 to vector<8x256xf32>
    %420 = arith.addf %419, %418 : vector<8x256xf32>
    %421 = arith.divf %419, %420 : vector<8x256xf32>
    %422 = vector.extract_strided_slice %421 {offsets = [0, 0], sizes = [8, 64], strides = [1, 1]} : vector<8x256xf32> to vector<8x64xf32>
    %423 = vector.extract_strided_slice %421 {offsets = [0, 64], sizes = [8, 64], strides = [1, 1]} : vector<8x256xf32> to vector<8x64xf32>
    %424 = vector.extract_strided_slice %421 {offsets = [0, 128], sizes = [8, 64], strides = [1, 1]} : vector<8x256xf32> to vector<8x64xf32>
    %cst_80 = arith.constant 2.000000e+00 : f32
    %425 = vector.broadcast %cst_80 : f32 to vector<8x64xf32>
    %426 = arith.mulf %425, %424 : vector<8x64xf32>
    %cst_81 = arith.constant 1.000000e+00 : f32
    %427 = vector.broadcast %cst_81 : f32 to vector<8x64xf32>
    %428 = arith.subf %426, %427 : vector<8x64xf32>
    %429 = vector.extract_strided_slice %421 {offsets = [0, 192], sizes = [8, 64], strides = [1, 1]} : vector<8x256xf32> to vector<8x64xf32>
    %430 = arith.mulf %423, %405 : vector<8x64xf32>
    %431 = arith.mulf %422, %428 : vector<8x64xf32>
    %432 = arith.addf %430, %431 : vector<8x64xf32>
    %433 = math.tanh %432 : vector<8x64xf32>
    %434 = arith.mulf %429, %433 : vector<8x64xf32>
    %435 = vector.extract_strided_slice %297 {offsets = [40, 0], sizes = [8, 256], strides = [1, 1]} : vector<64x256xf32> to vector<8x256xf32>
    %436 = vector.extract_strided_slice %297 {offsets = [16, 0], sizes = [8, 256], strides = [1, 1]} : vector<64x256xf32> to vector<8x256xf32>
    %437 = vector.shape_cast %18 : vector<1x256xi1> to vector<1x256xi1>
    %438 = vector.broadcast %437 : vector<1x256xi1> to vector<8x256xi1>
    %439 = arith.select %438, %435, %436 : vector<8x256xi1>, vector<8x256xf32>
    %cst_82 = arith.constant dense<0.000000e+00> : vector<8x256xf32>
    %440 = tpu.matmul %434, %292, %cst_82 {dimension_numbers = #tpu.dot_dimension_numbers<[1], [0], [0], [1], [0, 0, 1, 1], [], []>} : vector<8x64xf32>, vector<64x256xf32>, vector<8x256xf32> -> vector<8x256xf32>
    %441 = arith.addf %439, %440 : vector<8x256xf32>
    %442 = vector.broadcast %26 : vector<1x256xf32> to vector<8x256xf32>
    %443 = arith.mulf %441, %442 : vector<8x256xf32>
    %444 = arith.negf %443 : vector<8x256xf32>
    %445 = math.exp %444 : vector<8x256xf32>
    %cst_83 = arith.constant 1.000000e+00 : f32
    %446 = vector.broadcast %cst_83 : f32 to vector<8x256xf32>
    %447 = arith.addf %446, %445 : vector<8x256xf32>
    %448 = arith.divf %446, %447 : vector<8x256xf32>
    %449 = vector.extract_strided_slice %448 {offsets = [0, 0], sizes = [8, 64], strides = [1, 1]} : vector<8x256xf32> to vector<8x64xf32>
    %450 = vector.extract_strided_slice %448 {offsets = [0, 64], sizes = [8, 64], strides = [1, 1]} : vector<8x256xf32> to vector<8x64xf32>
    %451 = vector.extract_strided_slice %448 {offsets = [0, 128], sizes = [8, 64], strides = [1, 1]} : vector<8x256xf32> to vector<8x64xf32>
    %cst_84 = arith.constant 2.000000e+00 : f32
    %452 = vector.broadcast %cst_84 : f32 to vector<8x64xf32>
    %453 = arith.mulf %452, %451 : vector<8x64xf32>
    %cst_85 = arith.constant 1.000000e+00 : f32
    %454 = vector.broadcast %cst_85 : f32 to vector<8x64xf32>
    %455 = arith.subf %453, %454 : vector<8x64xf32>
    %456 = vector.extract_strided_slice %448 {offsets = [0, 192], sizes = [8, 64], strides = [1, 1]} : vector<8x256xf32> to vector<8x64xf32>
    %457 = arith.mulf %450, %432 : vector<8x64xf32>
    %458 = arith.mulf %449, %455 : vector<8x64xf32>
    %459 = arith.addf %457, %458 : vector<8x64xf32>
    %460 = math.tanh %459 : vector<8x64xf32>
    %461 = arith.mulf %456, %460 : vector<8x64xf32>
    %462 = vector.extract_strided_slice %297 {offsets = [48, 0], sizes = [8, 256], strides = [1, 1]} : vector<64x256xf32> to vector<8x256xf32>
    %463 = vector.extract_strided_slice %297 {offsets = [8, 0], sizes = [8, 256], strides = [1, 1]} : vector<64x256xf32> to vector<8x256xf32>
    %464 = vector.shape_cast %18 : vector<1x256xi1> to vector<1x256xi1>
    %465 = vector.broadcast %464 : vector<1x256xi1> to vector<8x256xi1>
    %466 = arith.select %465, %462, %463 : vector<8x256xi1>, vector<8x256xf32>
    %cst_86 = arith.constant dense<0.000000e+00> : vector<8x256xf32>
    %467 = tpu.matmul %461, %292, %cst_86 {dimension_numbers = #tpu.dot_dimension_numbers<[1], [0], [0], [1], [0, 0, 1, 1], [], []>} : vector<8x64xf32>, vector<64x256xf32>, vector<8x256xf32> -> vector<8x256xf32>
    %468 = arith.addf %466, %467 : vector<8x256xf32>
    %469 = vector.broadcast %26 : vector<1x256xf32> to vector<8x256xf32>
    %470 = arith.mulf %468, %469 : vector<8x256xf32>
    %471 = arith.negf %470 : vector<8x256xf32>
    %472 = math.exp %471 : vector<8x256xf32>
    %cst_87 = arith.constant 1.000000e+00 : f32
    %473 = vector.broadcast %cst_87 : f32 to vector<8x256xf32>
    %474 = arith.addf %473, %472 : vector<8x256xf32>
    %475 = arith.divf %473, %474 : vector<8x256xf32>
    %476 = vector.extract_strided_slice %475 {offsets = [0, 0], sizes = [8, 64], strides = [1, 1]} : vector<8x256xf32> to vector<8x64xf32>
    %477 = vector.extract_strided_slice %475 {offsets = [0, 64], sizes = [8, 64], strides = [1, 1]} : vector<8x256xf32> to vector<8x64xf32>
    %478 = vector.extract_strided_slice %475 {offsets = [0, 128], sizes = [8, 64], strides = [1, 1]} : vector<8x256xf32> to vector<8x64xf32>
    %cst_88 = arith.constant 2.000000e+00 : f32
    %479 = vector.broadcast %cst_88 : f32 to vector<8x64xf32>
    %480 = arith.mulf %479, %478 : vector<8x64xf32>
    %cst_89 = arith.constant 1.000000e+00 : f32
    %481 = vector.broadcast %cst_89 : f32 to vector<8x64xf32>
    %482 = arith.subf %480, %481 : vector<8x64xf32>
    %483 = vector.extract_strided_slice %475 {offsets = [0, 192], sizes = [8, 64], strides = [1, 1]} : vector<8x256xf32> to vector<8x64xf32>
    %484 = arith.mulf %477, %459 : vector<8x64xf32>
    %485 = arith.mulf %476, %482 : vector<8x64xf32>
    %486 = arith.addf %484, %485 : vector<8x64xf32>
    %487 = math.tanh %486 : vector<8x64xf32>
    %488 = arith.mulf %483, %487 : vector<8x64xf32>
    %489 = vector.extract_strided_slice %297 {offsets = [56, 0], sizes = [8, 256], strides = [1, 1]} : vector<64x256xf32> to vector<8x256xf32>
    %490 = vector.extract_strided_slice %297 {offsets = [0, 0], sizes = [8, 256], strides = [1, 1]} : vector<64x256xf32> to vector<8x256xf32>
    %491 = vector.shape_cast %18 : vector<1x256xi1> to vector<1x256xi1>
    %492 = vector.broadcast %491 : vector<1x256xi1> to vector<8x256xi1>
    %493 = arith.select %492, %489, %490 : vector<8x256xi1>, vector<8x256xf32>
    %cst_90 = arith.constant dense<0.000000e+00> : vector<8x256xf32>
    %494 = tpu.matmul %488, %292, %cst_90 {dimension_numbers = #tpu.dot_dimension_numbers<[1], [0], [0], [1], [0, 0, 1, 1], [], []>} : vector<8x64xf32>, vector<64x256xf32>, vector<8x256xf32> -> vector<8x256xf32>
    %495 = arith.addf %493, %494 : vector<8x256xf32>
    %496 = vector.broadcast %26 : vector<1x256xf32> to vector<8x256xf32>
    %497 = arith.mulf %495, %496 : vector<8x256xf32>
    %498 = arith.negf %497 : vector<8x256xf32>
    %499 = math.exp %498 : vector<8x256xf32>
    %cst_91 = arith.constant 1.000000e+00 : f32
    %500 = vector.broadcast %cst_91 : f32 to vector<8x256xf32>
    %501 = arith.addf %500, %499 : vector<8x256xf32>
    %502 = arith.divf %500, %501 : vector<8x256xf32>
    %503 = vector.extract_strided_slice %502 {offsets = [0, 0], sizes = [8, 64], strides = [1, 1]} : vector<8x256xf32> to vector<8x64xf32>
    %504 = vector.extract_strided_slice %502 {offsets = [0, 64], sizes = [8, 64], strides = [1, 1]} : vector<8x256xf32> to vector<8x64xf32>
    %505 = vector.extract_strided_slice %502 {offsets = [0, 128], sizes = [8, 64], strides = [1, 1]} : vector<8x256xf32> to vector<8x64xf32>
    %cst_92 = arith.constant 2.000000e+00 : f32
    %506 = vector.broadcast %cst_92 : f32 to vector<8x64xf32>
    %507 = arith.mulf %506, %505 : vector<8x64xf32>
    %cst_93 = arith.constant 1.000000e+00 : f32
    %508 = vector.broadcast %cst_93 : f32 to vector<8x64xf32>
    %509 = arith.subf %507, %508 : vector<8x64xf32>
    %510 = vector.extract_strided_slice %502 {offsets = [0, 192], sizes = [8, 64], strides = [1, 1]} : vector<8x256xf32> to vector<8x64xf32>
    %511 = arith.mulf %504, %486 : vector<8x64xf32>
    %512 = arith.mulf %503, %509 : vector<8x64xf32>
    %513 = arith.addf %511, %512 : vector<8x64xf32>
    %514 = math.tanh %513 : vector<8x64xf32>
    %515 = arith.mulf %510, %514 : vector<8x64xf32>
    %516 = vector.shape_cast %38 : vector<1x64xi1> to vector<1x64xi1>
    %517 = vector.broadcast %516 : vector<1x64xi1> to vector<8x64xi1>
    %518 = arith.select %517, %326, %515 : vector<8x64xi1>, vector<8x64xf32>
    %519 = vector.shape_cast %38 : vector<1x64xi1> to vector<1x64xi1>
    %520 = vector.broadcast %519 : vector<1x64xi1> to vector<8x64xi1>
    %521 = arith.select %520, %353, %488 : vector<8x64xi1>, vector<8x64xf32>
    %522 = vector.shape_cast %38 : vector<1x64xi1> to vector<1x64xi1>
    %523 = vector.broadcast %522 : vector<1x64xi1> to vector<8x64xi1>
    %524 = arith.select %523, %380, %461 : vector<8x64xi1>, vector<8x64xf32>
    %525 = vector.shape_cast %38 : vector<1x64xi1> to vector<1x64xi1>
    %526 = vector.broadcast %525 : vector<1x64xi1> to vector<8x64xi1>
    %527 = arith.select %526, %407, %434 : vector<8x64xi1>, vector<8x64xf32>
    %528 = vector.shape_cast %38 : vector<1x64xi1> to vector<1x64xi1>
    %529 = vector.broadcast %528 : vector<1x64xi1> to vector<8x64xi1>
    %530 = arith.select %529, %434, %407 : vector<8x64xi1>, vector<8x64xf32>
    %531 = vector.shape_cast %38 : vector<1x64xi1> to vector<1x64xi1>
    %532 = vector.broadcast %531 : vector<1x64xi1> to vector<8x64xi1>
    %533 = arith.select %532, %461, %380 : vector<8x64xi1>, vector<8x64xf32>
    %534 = vector.shape_cast %38 : vector<1x64xi1> to vector<1x64xi1>
    %535 = vector.broadcast %534 : vector<1x64xi1> to vector<8x64xi1>
    %536 = arith.select %535, %488, %353 : vector<8x64xi1>, vector<8x64xf32>
    %537 = vector.shape_cast %38 : vector<1x64xi1> to vector<1x64xi1>
    %538 = vector.broadcast %537 : vector<1x64xi1> to vector<8x64xi1>
    %539 = arith.select %538, %515, %326 : vector<8x64xi1>, vector<8x64xf32>
    %540 = tpu.concatenate %518, %521, %524, %527, %530, %533, %536, %539 in 0 : vector<8x64xf32>, vector<8x64xf32>, vector<8x64xf32>, vector<8x64xf32>, vector<8x64xf32>, vector<8x64xf32>, vector<8x64xf32>, vector<8x64xf32> -> vector<64x64xf32>
    %c1 = arith.constant 1 : index
    %c0_94 = arith.constant 0 : index
    %c0_95 = arith.constant 0 : index
    %541 = vector.load %arg4[%c1, %c0_94, %c0_95] : memref<3x64x256xf32, #tpu.memory_space<vmem>>, vector<1x64x256xf32>
    %542 = vector.shape_cast %541 : vector<1x64x256xf32> to vector<64x256xf32>
    %c1_96 = arith.constant 1 : index
    %c0_97 = arith.constant 0 : index
    %c0_98 = arith.constant 0 : index
    %543 = vector.load %arg5[%c1_96, %c0_97, %c0_98] : memref<3x64x256xf32, #tpu.memory_space<vmem>>, vector<1x64x256xf32>
    %544 = vector.shape_cast %543 : vector<1x64x256xf32> to vector<64x256xf32>
    %c1_99 = arith.constant 1 : index
    %c0_100 = arith.constant 0 : index
    %c0_101 = arith.constant 0 : index
    %545 = vector.load %arg6[%c1_99, %c0_100, %c0_101] : memref<3x1x256xf32, #tpu.memory_space<vmem>>, vector<1x1x256xf32>
    %546 = vector.shape_cast %545 : vector<1x1x256xf32> to vector<1x256xf32>
    %cst_102 = arith.constant dense<0.000000e+00> : vector<64x256xf32>
    %547 = tpu.matmul %540, %542, %cst_102 {dimension_numbers = #tpu.dot_dimension_numbers<[1], [0], [0], [1], [0, 0, 1, 1], [], []>} : vector<64x64xf32>, vector<64x256xf32>, vector<64x256xf32> -> vector<64x256xf32>
    %548 = vector.broadcast %546 : vector<1x256xf32> to vector<64x256xf32>
    %549 = arith.addf %547, %548 : vector<64x256xf32>
    %cst_103 = arith.constant 0.000000e+00 : f32
    %550 = vector.broadcast %cst_103 : f32 to vector<8x64xf32>
    %cst_104 = arith.constant 0.000000e+00 : f32
    %551 = vector.broadcast %cst_104 : f32 to vector<8x64xf32>
    %552 = vector.extract_strided_slice %549 {offsets = [0, 0], sizes = [8, 256], strides = [1, 1]} : vector<64x256xf32> to vector<8x256xf32>
    %553 = vector.extract_strided_slice %549 {offsets = [56, 0], sizes = [8, 256], strides = [1, 1]} : vector<64x256xf32> to vector<8x256xf32>
    %554 = vector.shape_cast %18 : vector<1x256xi1> to vector<1x256xi1>
    %555 = vector.broadcast %554 : vector<1x256xi1> to vector<8x256xi1>
    %556 = arith.select %555, %552, %553 : vector<8x256xi1>, vector<8x256xf32>
    %cst_105 = arith.constant dense<0.000000e+00> : vector<8x256xf32>
    %557 = tpu.matmul %550, %544, %cst_105 {dimension_numbers = #tpu.dot_dimension_numbers<[1], [0], [0], [1], [0, 0, 1, 1], [], []>} : vector<8x64xf32>, vector<64x256xf32>, vector<8x256xf32> -> vector<8x256xf32>
    %558 = arith.addf %556, %557 : vector<8x256xf32>
    %559 = vector.broadcast %26 : vector<1x256xf32> to vector<8x256xf32>
    %560 = arith.mulf %558, %559 : vector<8x256xf32>
    %561 = arith.negf %560 : vector<8x256xf32>
    %562 = math.exp %561 : vector<8x256xf32>
    %cst_106 = arith.constant 1.000000e+00 : f32
    %563 = vector.broadcast %cst_106 : f32 to vector<8x256xf32>
    %564 = arith.addf %563, %562 : vector<8x256xf32>
    %565 = arith.divf %563, %564 : vector<8x256xf32>
    %566 = vector.extract_strided_slice %565 {offsets = [0, 0], sizes = [8, 64], strides = [1, 1]} : vector<8x256xf32> to vector<8x64xf32>
    %567 = vector.extract_strided_slice %565 {offsets = [0, 64], sizes = [8, 64], strides = [1, 1]} : vector<8x256xf32> to vector<8x64xf32>
    %568 = vector.extract_strided_slice %565 {offsets = [0, 128], sizes = [8, 64], strides = [1, 1]} : vector<8x256xf32> to vector<8x64xf32>
    %cst_107 = arith.constant 2.000000e+00 : f32
    %569 = vector.broadcast %cst_107 : f32 to vector<8x64xf32>
    %570 = arith.mulf %569, %568 : vector<8x64xf32>
    %cst_108 = arith.constant 1.000000e+00 : f32
    %571 = vector.broadcast %cst_108 : f32 to vector<8x64xf32>
    %572 = arith.subf %570, %571 : vector<8x64xf32>
    %573 = vector.extract_strided_slice %565 {offsets = [0, 192], sizes = [8, 64], strides = [1, 1]} : vector<8x256xf32> to vector<8x64xf32>
    %574 = arith.mulf %567, %551 : vector<8x64xf32>
    %575 = arith.mulf %566, %572 : vector<8x64xf32>
    %576 = arith.addf %574, %575 : vector<8x64xf32>
    %577 = math.tanh %576 : vector<8x64xf32>
    %578 = arith.mulf %573, %577 : vector<8x64xf32>
    %579 = vector.extract_strided_slice %549 {offsets = [8, 0], sizes = [8, 256], strides = [1, 1]} : vector<64x256xf32> to vector<8x256xf32>
    %580 = vector.extract_strided_slice %549 {offsets = [48, 0], sizes = [8, 256], strides = [1, 1]} : vector<64x256xf32> to vector<8x256xf32>
    %581 = vector.shape_cast %18 : vector<1x256xi1> to vector<1x256xi1>
    %582 = vector.broadcast %581 : vector<1x256xi1> to vector<8x256xi1>
    %583 = arith.select %582, %579, %580 : vector<8x256xi1>, vector<8x256xf32>
    %cst_109 = arith.constant dense<0.000000e+00> : vector<8x256xf32>
    %584 = tpu.matmul %578, %544, %cst_109 {dimension_numbers = #tpu.dot_dimension_numbers<[1], [0], [0], [1], [0, 0, 1, 1], [], []>} : vector<8x64xf32>, vector<64x256xf32>, vector<8x256xf32> -> vector<8x256xf32>
    %585 = arith.addf %583, %584 : vector<8x256xf32>
    %586 = vector.broadcast %26 : vector<1x256xf32> to vector<8x256xf32>
    %587 = arith.mulf %585, %586 : vector<8x256xf32>
    %588 = arith.negf %587 : vector<8x256xf32>
    %589 = math.exp %588 : vector<8x256xf32>
    %cst_110 = arith.constant 1.000000e+00 : f32
    %590 = vector.broadcast %cst_110 : f32 to vector<8x256xf32>
    %591 = arith.addf %590, %589 : vector<8x256xf32>
    %592 = arith.divf %590, %591 : vector<8x256xf32>
    %593 = vector.extract_strided_slice %592 {offsets = [0, 0], sizes = [8, 64], strides = [1, 1]} : vector<8x256xf32> to vector<8x64xf32>
    %594 = vector.extract_strided_slice %592 {offsets = [0, 64], sizes = [8, 64], strides = [1, 1]} : vector<8x256xf32> to vector<8x64xf32>
    %595 = vector.extract_strided_slice %592 {offsets = [0, 128], sizes = [8, 64], strides = [1, 1]} : vector<8x256xf32> to vector<8x64xf32>
    %cst_111 = arith.constant 2.000000e+00 : f32
    %596 = vector.broadcast %cst_111 : f32 to vector<8x64xf32>
    %597 = arith.mulf %596, %595 : vector<8x64xf32>
    %cst_112 = arith.constant 1.000000e+00 : f32
    %598 = vector.broadcast %cst_112 : f32 to vector<8x64xf32>
    %599 = arith.subf %597, %598 : vector<8x64xf32>
    %600 = vector.extract_strided_slice %592 {offsets = [0, 192], sizes = [8, 64], strides = [1, 1]} : vector<8x256xf32> to vector<8x64xf32>
    %601 = arith.mulf %594, %576 : vector<8x64xf32>
    %602 = arith.mulf %593, %599 : vector<8x64xf32>
    %603 = arith.addf %601, %602 : vector<8x64xf32>
    %604 = math.tanh %603 : vector<8x64xf32>
    %605 = arith.mulf %600, %604 : vector<8x64xf32>
    %606 = vector.extract_strided_slice %549 {offsets = [16, 0], sizes = [8, 256], strides = [1, 1]} : vector<64x256xf32> to vector<8x256xf32>
    %607 = vector.extract_strided_slice %549 {offsets = [40, 0], sizes = [8, 256], strides = [1, 1]} : vector<64x256xf32> to vector<8x256xf32>
    %608 = vector.shape_cast %18 : vector<1x256xi1> to vector<1x256xi1>
    %609 = vector.broadcast %608 : vector<1x256xi1> to vector<8x256xi1>
    %610 = arith.select %609, %606, %607 : vector<8x256xi1>, vector<8x256xf32>
    %cst_113 = arith.constant dense<0.000000e+00> : vector<8x256xf32>
    %611 = tpu.matmul %605, %544, %cst_113 {dimension_numbers = #tpu.dot_dimension_numbers<[1], [0], [0], [1], [0, 0, 1, 1], [], []>} : vector<8x64xf32>, vector<64x256xf32>, vector<8x256xf32> -> vector<8x256xf32>
    %612 = arith.addf %610, %611 : vector<8x256xf32>
    %613 = vector.broadcast %26 : vector<1x256xf32> to vector<8x256xf32>
    %614 = arith.mulf %612, %613 : vector<8x256xf32>
    %615 = arith.negf %614 : vector<8x256xf32>
    %616 = math.exp %615 : vector<8x256xf32>
    %cst_114 = arith.constant 1.000000e+00 : f32
    %617 = vector.broadcast %cst_114 : f32 to vector<8x256xf32>
    %618 = arith.addf %617, %616 : vector<8x256xf32>
    %619 = arith.divf %617, %618 : vector<8x256xf32>
    %620 = vector.extract_strided_slice %619 {offsets = [0, 0], sizes = [8, 64], strides = [1, 1]} : vector<8x256xf32> to vector<8x64xf32>
    %621 = vector.extract_strided_slice %619 {offsets = [0, 64], sizes = [8, 64], strides = [1, 1]} : vector<8x256xf32> to vector<8x64xf32>
    %622 = vector.extract_strided_slice %619 {offsets = [0, 128], sizes = [8, 64], strides = [1, 1]} : vector<8x256xf32> to vector<8x64xf32>
    %cst_115 = arith.constant 2.000000e+00 : f32
    %623 = vector.broadcast %cst_115 : f32 to vector<8x64xf32>
    %624 = arith.mulf %623, %622 : vector<8x64xf32>
    %cst_116 = arith.constant 1.000000e+00 : f32
    %625 = vector.broadcast %cst_116 : f32 to vector<8x64xf32>
    %626 = arith.subf %624, %625 : vector<8x64xf32>
    %627 = vector.extract_strided_slice %619 {offsets = [0, 192], sizes = [8, 64], strides = [1, 1]} : vector<8x256xf32> to vector<8x64xf32>
    %628 = arith.mulf %621, %603 : vector<8x64xf32>
    %629 = arith.mulf %620, %626 : vector<8x64xf32>
    %630 = arith.addf %628, %629 : vector<8x64xf32>
    %631 = math.tanh %630 : vector<8x64xf32>
    %632 = arith.mulf %627, %631 : vector<8x64xf32>
    %633 = vector.extract_strided_slice %549 {offsets = [24, 0], sizes = [8, 256], strides = [1, 1]} : vector<64x256xf32> to vector<8x256xf32>
    %634 = vector.extract_strided_slice %549 {offsets = [32, 0], sizes = [8, 256], strides = [1, 1]} : vector<64x256xf32> to vector<8x256xf32>
    %635 = vector.shape_cast %18 : vector<1x256xi1> to vector<1x256xi1>
    %636 = vector.broadcast %635 : vector<1x256xi1> to vector<8x256xi1>
    %637 = arith.select %636, %633, %634 : vector<8x256xi1>, vector<8x256xf32>
    %cst_117 = arith.constant dense<0.000000e+00> : vector<8x256xf32>
    %638 = tpu.matmul %632, %544, %cst_117 {dimension_numbers = #tpu.dot_dimension_numbers<[1], [0], [0], [1], [0, 0, 1, 1], [], []>} : vector<8x64xf32>, vector<64x256xf32>, vector<8x256xf32> -> vector<8x256xf32>
    %639 = arith.addf %637, %638 : vector<8x256xf32>
    %640 = vector.broadcast %26 : vector<1x256xf32> to vector<8x256xf32>
    %641 = arith.mulf %639, %640 : vector<8x256xf32>
    %642 = arith.negf %641 : vector<8x256xf32>
    %643 = math.exp %642 : vector<8x256xf32>
    %cst_118 = arith.constant 1.000000e+00 : f32
    %644 = vector.broadcast %cst_118 : f32 to vector<8x256xf32>
    %645 = arith.addf %644, %643 : vector<8x256xf32>
    %646 = arith.divf %644, %645 : vector<8x256xf32>
    %647 = vector.extract_strided_slice %646 {offsets = [0, 0], sizes = [8, 64], strides = [1, 1]} : vector<8x256xf32> to vector<8x64xf32>
    %648 = vector.extract_strided_slice %646 {offsets = [0, 64], sizes = [8, 64], strides = [1, 1]} : vector<8x256xf32> to vector<8x64xf32>
    %649 = vector.extract_strided_slice %646 {offsets = [0, 128], sizes = [8, 64], strides = [1, 1]} : vector<8x256xf32> to vector<8x64xf32>
    %cst_119 = arith.constant 2.000000e+00 : f32
    %650 = vector.broadcast %cst_119 : f32 to vector<8x64xf32>
    %651 = arith.mulf %650, %649 : vector<8x64xf32>
    %cst_120 = arith.constant 1.000000e+00 : f32
    %652 = vector.broadcast %cst_120 : f32 to vector<8x64xf32>
    %653 = arith.subf %651, %652 : vector<8x64xf32>
    %654 = vector.extract_strided_slice %646 {offsets = [0, 192], sizes = [8, 64], strides = [1, 1]} : vector<8x256xf32> to vector<8x64xf32>
    %655 = arith.mulf %648, %630 : vector<8x64xf32>
    %656 = arith.mulf %647, %653 : vector<8x64xf32>
    %657 = arith.addf %655, %656 : vector<8x64xf32>
    %658 = math.tanh %657 : vector<8x64xf32>
    %659 = arith.mulf %654, %658 : vector<8x64xf32>
    %660 = vector.extract_strided_slice %549 {offsets = [32, 0], sizes = [8, 256], strides = [1, 1]} : vector<64x256xf32> to vector<8x256xf32>
    %661 = vector.extract_strided_slice %549 {offsets = [24, 0], sizes = [8, 256], strides = [1, 1]} : vector<64x256xf32> to vector<8x256xf32>
    %662 = vector.shape_cast %18 : vector<1x256xi1> to vector<1x256xi1>
    %663 = vector.broadcast %662 : vector<1x256xi1> to vector<8x256xi1>
    %664 = arith.select %663, %660, %661 : vector<8x256xi1>, vector<8x256xf32>
    %cst_121 = arith.constant dense<0.000000e+00> : vector<8x256xf32>
    %665 = tpu.matmul %659, %544, %cst_121 {dimension_numbers = #tpu.dot_dimension_numbers<[1], [0], [0], [1], [0, 0, 1, 1], [], []>} : vector<8x64xf32>, vector<64x256xf32>, vector<8x256xf32> -> vector<8x256xf32>
    %666 = arith.addf %664, %665 : vector<8x256xf32>
    %667 = vector.broadcast %26 : vector<1x256xf32> to vector<8x256xf32>
    %668 = arith.mulf %666, %667 : vector<8x256xf32>
    %669 = arith.negf %668 : vector<8x256xf32>
    %670 = math.exp %669 : vector<8x256xf32>
    %cst_122 = arith.constant 1.000000e+00 : f32
    %671 = vector.broadcast %cst_122 : f32 to vector<8x256xf32>
    %672 = arith.addf %671, %670 : vector<8x256xf32>
    %673 = arith.divf %671, %672 : vector<8x256xf32>
    %674 = vector.extract_strided_slice %673 {offsets = [0, 0], sizes = [8, 64], strides = [1, 1]} : vector<8x256xf32> to vector<8x64xf32>
    %675 = vector.extract_strided_slice %673 {offsets = [0, 64], sizes = [8, 64], strides = [1, 1]} : vector<8x256xf32> to vector<8x64xf32>
    %676 = vector.extract_strided_slice %673 {offsets = [0, 128], sizes = [8, 64], strides = [1, 1]} : vector<8x256xf32> to vector<8x64xf32>
    %cst_123 = arith.constant 2.000000e+00 : f32
    %677 = vector.broadcast %cst_123 : f32 to vector<8x64xf32>
    %678 = arith.mulf %677, %676 : vector<8x64xf32>
    %cst_124 = arith.constant 1.000000e+00 : f32
    %679 = vector.broadcast %cst_124 : f32 to vector<8x64xf32>
    %680 = arith.subf %678, %679 : vector<8x64xf32>
    %681 = vector.extract_strided_slice %673 {offsets = [0, 192], sizes = [8, 64], strides = [1, 1]} : vector<8x256xf32> to vector<8x64xf32>
    %682 = arith.mulf %675, %657 : vector<8x64xf32>
    %683 = arith.mulf %674, %680 : vector<8x64xf32>
    %684 = arith.addf %682, %683 : vector<8x64xf32>
    %685 = math.tanh %684 : vector<8x64xf32>
    %686 = arith.mulf %681, %685 : vector<8x64xf32>
    %687 = vector.extract_strided_slice %549 {offsets = [40, 0], sizes = [8, 256], strides = [1, 1]} : vector<64x256xf32> to vector<8x256xf32>
    %688 = vector.extract_strided_slice %549 {offsets = [16, 0], sizes = [8, 256], strides = [1, 1]} : vector<64x256xf32> to vector<8x256xf32>
    %689 = vector.shape_cast %18 : vector<1x256xi1> to vector<1x256xi1>
    %690 = vector.broadcast %689 : vector<1x256xi1> to vector<8x256xi1>
    %691 = arith.select %690, %687, %688 : vector<8x256xi1>, vector<8x256xf32>
    %cst_125 = arith.constant dense<0.000000e+00> : vector<8x256xf32>
    %692 = tpu.matmul %686, %544, %cst_125 {dimension_numbers = #tpu.dot_dimension_numbers<[1], [0], [0], [1], [0, 0, 1, 1], [], []>} : vector<8x64xf32>, vector<64x256xf32>, vector<8x256xf32> -> vector<8x256xf32>
    %693 = arith.addf %691, %692 : vector<8x256xf32>
    %694 = vector.broadcast %26 : vector<1x256xf32> to vector<8x256xf32>
    %695 = arith.mulf %693, %694 : vector<8x256xf32>
    %696 = arith.negf %695 : vector<8x256xf32>
    %697 = math.exp %696 : vector<8x256xf32>
    %cst_126 = arith.constant 1.000000e+00 : f32
    %698 = vector.broadcast %cst_126 : f32 to vector<8x256xf32>
    %699 = arith.addf %698, %697 : vector<8x256xf32>
    %700 = arith.divf %698, %699 : vector<8x256xf32>
    %701 = vector.extract_strided_slice %700 {offsets = [0, 0], sizes = [8, 64], strides = [1, 1]} : vector<8x256xf32> to vector<8x64xf32>
    %702 = vector.extract_strided_slice %700 {offsets = [0, 64], sizes = [8, 64], strides = [1, 1]} : vector<8x256xf32> to vector<8x64xf32>
    %703 = vector.extract_strided_slice %700 {offsets = [0, 128], sizes = [8, 64], strides = [1, 1]} : vector<8x256xf32> to vector<8x64xf32>
    %cst_127 = arith.constant 2.000000e+00 : f32
    %704 = vector.broadcast %cst_127 : f32 to vector<8x64xf32>
    %705 = arith.mulf %704, %703 : vector<8x64xf32>
    %cst_128 = arith.constant 1.000000e+00 : f32
    %706 = vector.broadcast %cst_128 : f32 to vector<8x64xf32>
    %707 = arith.subf %705, %706 : vector<8x64xf32>
    %708 = vector.extract_strided_slice %700 {offsets = [0, 192], sizes = [8, 64], strides = [1, 1]} : vector<8x256xf32> to vector<8x64xf32>
    %709 = arith.mulf %702, %684 : vector<8x64xf32>
    %710 = arith.mulf %701, %707 : vector<8x64xf32>
    %711 = arith.addf %709, %710 : vector<8x64xf32>
    %712 = math.tanh %711 : vector<8x64xf32>
    %713 = arith.mulf %708, %712 : vector<8x64xf32>
    %714 = vector.extract_strided_slice %549 {offsets = [48, 0], sizes = [8, 256], strides = [1, 1]} : vector<64x256xf32> to vector<8x256xf32>
    %715 = vector.extract_strided_slice %549 {offsets = [8, 0], sizes = [8, 256], strides = [1, 1]} : vector<64x256xf32> to vector<8x256xf32>
    %716 = vector.shape_cast %18 : vector<1x256xi1> to vector<1x256xi1>
    %717 = vector.broadcast %716 : vector<1x256xi1> to vector<8x256xi1>
    %718 = arith.select %717, %714, %715 : vector<8x256xi1>, vector<8x256xf32>
    %cst_129 = arith.constant dense<0.000000e+00> : vector<8x256xf32>
    %719 = tpu.matmul %713, %544, %cst_129 {dimension_numbers = #tpu.dot_dimension_numbers<[1], [0], [0], [1], [0, 0, 1, 1], [], []>} : vector<8x64xf32>, vector<64x256xf32>, vector<8x256xf32> -> vector<8x256xf32>
    %720 = arith.addf %718, %719 : vector<8x256xf32>
    %721 = vector.broadcast %26 : vector<1x256xf32> to vector<8x256xf32>
    %722 = arith.mulf %720, %721 : vector<8x256xf32>
    %723 = arith.negf %722 : vector<8x256xf32>
    %724 = math.exp %723 : vector<8x256xf32>
    %cst_130 = arith.constant 1.000000e+00 : f32
    %725 = vector.broadcast %cst_130 : f32 to vector<8x256xf32>
    %726 = arith.addf %725, %724 : vector<8x256xf32>
    %727 = arith.divf %725, %726 : vector<8x256xf32>
    %728 = vector.extract_strided_slice %727 {offsets = [0, 0], sizes = [8, 64], strides = [1, 1]} : vector<8x256xf32> to vector<8x64xf32>
    %729 = vector.extract_strided_slice %727 {offsets = [0, 64], sizes = [8, 64], strides = [1, 1]} : vector<8x256xf32> to vector<8x64xf32>
    %730 = vector.extract_strided_slice %727 {offsets = [0, 128], sizes = [8, 64], strides = [1, 1]} : vector<8x256xf32> to vector<8x64xf32>
    %cst_131 = arith.constant 2.000000e+00 : f32
    %731 = vector.broadcast %cst_131 : f32 to vector<8x64xf32>
    %732 = arith.mulf %731, %730 : vector<8x64xf32>
    %cst_132 = arith.constant 1.000000e+00 : f32
    %733 = vector.broadcast %cst_132 : f32 to vector<8x64xf32>
    %734 = arith.subf %732, %733 : vector<8x64xf32>
    %735 = vector.extract_strided_slice %727 {offsets = [0, 192], sizes = [8, 64], strides = [1, 1]} : vector<8x256xf32> to vector<8x64xf32>
    %736 = arith.mulf %729, %711 : vector<8x64xf32>
    %737 = arith.mulf %728, %734 : vector<8x64xf32>
    %738 = arith.addf %736, %737 : vector<8x64xf32>
    %739 = math.tanh %738 : vector<8x64xf32>
    %740 = arith.mulf %735, %739 : vector<8x64xf32>
    %741 = vector.extract_strided_slice %549 {offsets = [56, 0], sizes = [8, 256], strides = [1, 1]} : vector<64x256xf32> to vector<8x256xf32>
    %742 = vector.extract_strided_slice %549 {offsets = [0, 0], sizes = [8, 256], strides = [1, 1]} : vector<64x256xf32> to vector<8x256xf32>
    %743 = vector.shape_cast %18 : vector<1x256xi1> to vector<1x256xi1>
    %744 = vector.broadcast %743 : vector<1x256xi1> to vector<8x256xi1>
    %745 = arith.select %744, %741, %742 : vector<8x256xi1>, vector<8x256xf32>
    %cst_133 = arith.constant dense<0.000000e+00> : vector<8x256xf32>
    %746 = tpu.matmul %740, %544, %cst_133 {dimension_numbers = #tpu.dot_dimension_numbers<[1], [0], [0], [1], [0, 0, 1, 1], [], []>} : vector<8x64xf32>, vector<64x256xf32>, vector<8x256xf32> -> vector<8x256xf32>
    %747 = arith.addf %745, %746 : vector<8x256xf32>
    %748 = vector.broadcast %26 : vector<1x256xf32> to vector<8x256xf32>
    %749 = arith.mulf %747, %748 : vector<8x256xf32>
    %750 = arith.negf %749 : vector<8x256xf32>
    %751 = math.exp %750 : vector<8x256xf32>
    %cst_134 = arith.constant 1.000000e+00 : f32
    %752 = vector.broadcast %cst_134 : f32 to vector<8x256xf32>
    %753 = arith.addf %752, %751 : vector<8x256xf32>
    %754 = arith.divf %752, %753 : vector<8x256xf32>
    %755 = vector.extract_strided_slice %754 {offsets = [0, 0], sizes = [8, 64], strides = [1, 1]} : vector<8x256xf32> to vector<8x64xf32>
    %756 = vector.extract_strided_slice %754 {offsets = [0, 64], sizes = [8, 64], strides = [1, 1]} : vector<8x256xf32> to vector<8x64xf32>
    %757 = vector.extract_strided_slice %754 {offsets = [0, 128], sizes = [8, 64], strides = [1, 1]} : vector<8x256xf32> to vector<8x64xf32>
    %cst_135 = arith.constant 2.000000e+00 : f32
    %758 = vector.broadcast %cst_135 : f32 to vector<8x64xf32>
    %759 = arith.mulf %758, %757 : vector<8x64xf32>
    %cst_136 = arith.constant 1.000000e+00 : f32
    %760 = vector.broadcast %cst_136 : f32 to vector<8x64xf32>
    %761 = arith.subf %759, %760 : vector<8x64xf32>
    %762 = vector.extract_strided_slice %754 {offsets = [0, 192], sizes = [8, 64], strides = [1, 1]} : vector<8x256xf32> to vector<8x64xf32>
    %763 = arith.mulf %756, %738 : vector<8x64xf32>
    %764 = arith.mulf %755, %761 : vector<8x64xf32>
    %765 = arith.addf %763, %764 : vector<8x64xf32>
    %766 = math.tanh %765 : vector<8x64xf32>
    %767 = arith.mulf %762, %766 : vector<8x64xf32>
    %768 = vector.shape_cast %38 : vector<1x64xi1> to vector<1x64xi1>
    %769 = vector.broadcast %768 : vector<1x64xi1> to vector<8x64xi1>
    %770 = arith.select %769, %578, %767 : vector<8x64xi1>, vector<8x64xf32>
    %771 = vector.shape_cast %38 : vector<1x64xi1> to vector<1x64xi1>
    %772 = vector.broadcast %771 : vector<1x64xi1> to vector<8x64xi1>
    %773 = arith.select %772, %605, %740 : vector<8x64xi1>, vector<8x64xf32>
    %774 = vector.shape_cast %38 : vector<1x64xi1> to vector<1x64xi1>
    %775 = vector.broadcast %774 : vector<1x64xi1> to vector<8x64xi1>
    %776 = arith.select %775, %632, %713 : vector<8x64xi1>, vector<8x64xf32>
    %777 = vector.shape_cast %38 : vector<1x64xi1> to vector<1x64xi1>
    %778 = vector.broadcast %777 : vector<1x64xi1> to vector<8x64xi1>
    %779 = arith.select %778, %659, %686 : vector<8x64xi1>, vector<8x64xf32>
    %780 = vector.shape_cast %38 : vector<1x64xi1> to vector<1x64xi1>
    %781 = vector.broadcast %780 : vector<1x64xi1> to vector<8x64xi1>
    %782 = arith.select %781, %686, %659 : vector<8x64xi1>, vector<8x64xf32>
    %783 = vector.shape_cast %38 : vector<1x64xi1> to vector<1x64xi1>
    %784 = vector.broadcast %783 : vector<1x64xi1> to vector<8x64xi1>
    %785 = arith.select %784, %713, %632 : vector<8x64xi1>, vector<8x64xf32>
    %786 = vector.shape_cast %38 : vector<1x64xi1> to vector<1x64xi1>
    %787 = vector.broadcast %786 : vector<1x64xi1> to vector<8x64xi1>
    %788 = arith.select %787, %740, %605 : vector<8x64xi1>, vector<8x64xf32>
    %789 = vector.shape_cast %38 : vector<1x64xi1> to vector<1x64xi1>
    %790 = vector.broadcast %789 : vector<1x64xi1> to vector<8x64xi1>
    %791 = arith.select %790, %767, %578 : vector<8x64xi1>, vector<8x64xf32>
    %792 = tpu.concatenate %770, %773, %776, %779, %782, %785, %788, %791 in 0 : vector<8x64xf32>, vector<8x64xf32>, vector<8x64xf32>, vector<8x64xf32>, vector<8x64xf32>, vector<8x64xf32>, vector<8x64xf32>, vector<8x64xf32> -> vector<64x64xf32>
    %c2 = arith.constant 2 : index
    %c0_137 = arith.constant 0 : index
    %c0_138 = arith.constant 0 : index
    %793 = vector.load %arg4[%c2, %c0_137, %c0_138] : memref<3x64x256xf32, #tpu.memory_space<vmem>>, vector<1x64x256xf32>
    %794 = vector.shape_cast %793 : vector<1x64x256xf32> to vector<64x256xf32>
    %c2_139 = arith.constant 2 : index
    %c0_140 = arith.constant 0 : index
    %c0_141 = arith.constant 0 : index
    %795 = vector.load %arg5[%c2_139, %c0_140, %c0_141] : memref<3x64x256xf32, #tpu.memory_space<vmem>>, vector<1x64x256xf32>
    %796 = vector.shape_cast %795 : vector<1x64x256xf32> to vector<64x256xf32>
    %c2_142 = arith.constant 2 : index
    %c0_143 = arith.constant 0 : index
    %c0_144 = arith.constant 0 : index
    %797 = vector.load %arg6[%c2_142, %c0_143, %c0_144] : memref<3x1x256xf32, #tpu.memory_space<vmem>>, vector<1x1x256xf32>
    %798 = vector.shape_cast %797 : vector<1x1x256xf32> to vector<1x256xf32>
    %cst_145 = arith.constant dense<0.000000e+00> : vector<64x256xf32>
    %799 = tpu.matmul %792, %794, %cst_145 {dimension_numbers = #tpu.dot_dimension_numbers<[1], [0], [0], [1], [0, 0, 1, 1], [], []>} : vector<64x64xf32>, vector<64x256xf32>, vector<64x256xf32> -> vector<64x256xf32>
    %800 = vector.broadcast %798 : vector<1x256xf32> to vector<64x256xf32>
    %801 = arith.addf %799, %800 : vector<64x256xf32>
    %cst_146 = arith.constant 0.000000e+00 : f32
    %802 = vector.broadcast %cst_146 : f32 to vector<8x64xf32>
    %cst_147 = arith.constant 0.000000e+00 : f32
    %803 = vector.broadcast %cst_147 : f32 to vector<8x64xf32>
    %804 = vector.extract_strided_slice %801 {offsets = [0, 0], sizes = [8, 256], strides = [1, 1]} : vector<64x256xf32> to vector<8x256xf32>
    %805 = vector.extract_strided_slice %801 {offsets = [56, 0], sizes = [8, 256], strides = [1, 1]} : vector<64x256xf32> to vector<8x256xf32>
    %806 = vector.shape_cast %18 : vector<1x256xi1> to vector<1x256xi1>
    %807 = vector.broadcast %806 : vector<1x256xi1> to vector<8x256xi1>
    %808 = arith.select %807, %804, %805 : vector<8x256xi1>, vector<8x256xf32>
    %cst_148 = arith.constant dense<0.000000e+00> : vector<8x256xf32>
    %809 = tpu.matmul %802, %796, %cst_148 {dimension_numbers = #tpu.dot_dimension_numbers<[1], [0], [0], [1], [0, 0, 1, 1], [], []>} : vector<8x64xf32>, vector<64x256xf32>, vector<8x256xf32> -> vector<8x256xf32>
    %810 = arith.addf %808, %809 : vector<8x256xf32>
    %811 = vector.broadcast %26 : vector<1x256xf32> to vector<8x256xf32>
    %812 = arith.mulf %810, %811 : vector<8x256xf32>
    %813 = arith.negf %812 : vector<8x256xf32>
    %814 = math.exp %813 : vector<8x256xf32>
    %cst_149 = arith.constant 1.000000e+00 : f32
    %815 = vector.broadcast %cst_149 : f32 to vector<8x256xf32>
    %816 = arith.addf %815, %814 : vector<8x256xf32>
    %817 = arith.divf %815, %816 : vector<8x256xf32>
    %818 = vector.extract_strided_slice %817 {offsets = [0, 0], sizes = [8, 64], strides = [1, 1]} : vector<8x256xf32> to vector<8x64xf32>
    %819 = vector.extract_strided_slice %817 {offsets = [0, 64], sizes = [8, 64], strides = [1, 1]} : vector<8x256xf32> to vector<8x64xf32>
    %820 = vector.extract_strided_slice %817 {offsets = [0, 128], sizes = [8, 64], strides = [1, 1]} : vector<8x256xf32> to vector<8x64xf32>
    %cst_150 = arith.constant 2.000000e+00 : f32
    %821 = vector.broadcast %cst_150 : f32 to vector<8x64xf32>
    %822 = arith.mulf %821, %820 : vector<8x64xf32>
    %cst_151 = arith.constant 1.000000e+00 : f32
    %823 = vector.broadcast %cst_151 : f32 to vector<8x64xf32>
    %824 = arith.subf %822, %823 : vector<8x64xf32>
    %825 = vector.extract_strided_slice %817 {offsets = [0, 192], sizes = [8, 64], strides = [1, 1]} : vector<8x256xf32> to vector<8x64xf32>
    %826 = arith.mulf %819, %803 : vector<8x64xf32>
    %827 = arith.mulf %818, %824 : vector<8x64xf32>
    %828 = arith.addf %826, %827 : vector<8x64xf32>
    %829 = math.tanh %828 : vector<8x64xf32>
    %830 = arith.mulf %825, %829 : vector<8x64xf32>
    %831 = vector.extract_strided_slice %801 {offsets = [8, 0], sizes = [8, 256], strides = [1, 1]} : vector<64x256xf32> to vector<8x256xf32>
    %832 = vector.extract_strided_slice %801 {offsets = [48, 0], sizes = [8, 256], strides = [1, 1]} : vector<64x256xf32> to vector<8x256xf32>
    %833 = vector.shape_cast %18 : vector<1x256xi1> to vector<1x256xi1>
    %834 = vector.broadcast %833 : vector<1x256xi1> to vector<8x256xi1>
    %835 = arith.select %834, %831, %832 : vector<8x256xi1>, vector<8x256xf32>
    %cst_152 = arith.constant dense<0.000000e+00> : vector<8x256xf32>
    %836 = tpu.matmul %830, %796, %cst_152 {dimension_numbers = #tpu.dot_dimension_numbers<[1], [0], [0], [1], [0, 0, 1, 1], [], []>} : vector<8x64xf32>, vector<64x256xf32>, vector<8x256xf32> -> vector<8x256xf32>
    %837 = arith.addf %835, %836 : vector<8x256xf32>
    %838 = vector.broadcast %26 : vector<1x256xf32> to vector<8x256xf32>
    %839 = arith.mulf %837, %838 : vector<8x256xf32>
    %840 = arith.negf %839 : vector<8x256xf32>
    %841 = math.exp %840 : vector<8x256xf32>
    %cst_153 = arith.constant 1.000000e+00 : f32
    %842 = vector.broadcast %cst_153 : f32 to vector<8x256xf32>
    %843 = arith.addf %842, %841 : vector<8x256xf32>
    %844 = arith.divf %842, %843 : vector<8x256xf32>
    %845 = vector.extract_strided_slice %844 {offsets = [0, 0], sizes = [8, 64], strides = [1, 1]} : vector<8x256xf32> to vector<8x64xf32>
    %846 = vector.extract_strided_slice %844 {offsets = [0, 64], sizes = [8, 64], strides = [1, 1]} : vector<8x256xf32> to vector<8x64xf32>
    %847 = vector.extract_strided_slice %844 {offsets = [0, 128], sizes = [8, 64], strides = [1, 1]} : vector<8x256xf32> to vector<8x64xf32>
    %cst_154 = arith.constant 2.000000e+00 : f32
    %848 = vector.broadcast %cst_154 : f32 to vector<8x64xf32>
    %849 = arith.mulf %848, %847 : vector<8x64xf32>
    %cst_155 = arith.constant 1.000000e+00 : f32
    %850 = vector.broadcast %cst_155 : f32 to vector<8x64xf32>
    %851 = arith.subf %849, %850 : vector<8x64xf32>
    %852 = vector.extract_strided_slice %844 {offsets = [0, 192], sizes = [8, 64], strides = [1, 1]} : vector<8x256xf32> to vector<8x64xf32>
    %853 = arith.mulf %846, %828 : vector<8x64xf32>
    %854 = arith.mulf %845, %851 : vector<8x64xf32>
    %855 = arith.addf %853, %854 : vector<8x64xf32>
    %856 = math.tanh %855 : vector<8x64xf32>
    %857 = arith.mulf %852, %856 : vector<8x64xf32>
    %858 = vector.extract_strided_slice %801 {offsets = [16, 0], sizes = [8, 256], strides = [1, 1]} : vector<64x256xf32> to vector<8x256xf32>
    %859 = vector.extract_strided_slice %801 {offsets = [40, 0], sizes = [8, 256], strides = [1, 1]} : vector<64x256xf32> to vector<8x256xf32>
    %860 = vector.shape_cast %18 : vector<1x256xi1> to vector<1x256xi1>
    %861 = vector.broadcast %860 : vector<1x256xi1> to vector<8x256xi1>
    %862 = arith.select %861, %858, %859 : vector<8x256xi1>, vector<8x256xf32>
    %cst_156 = arith.constant dense<0.000000e+00> : vector<8x256xf32>
    %863 = tpu.matmul %857, %796, %cst_156 {dimension_numbers = #tpu.dot_dimension_numbers<[1], [0], [0], [1], [0, 0, 1, 1], [], []>} : vector<8x64xf32>, vector<64x256xf32>, vector<8x256xf32> -> vector<8x256xf32>
    %864 = arith.addf %862, %863 : vector<8x256xf32>
    %865 = vector.broadcast %26 : vector<1x256xf32> to vector<8x256xf32>
    %866 = arith.mulf %864, %865 : vector<8x256xf32>
    %867 = arith.negf %866 : vector<8x256xf32>
    %868 = math.exp %867 : vector<8x256xf32>
    %cst_157 = arith.constant 1.000000e+00 : f32
    %869 = vector.broadcast %cst_157 : f32 to vector<8x256xf32>
    %870 = arith.addf %869, %868 : vector<8x256xf32>
    %871 = arith.divf %869, %870 : vector<8x256xf32>
    %872 = vector.extract_strided_slice %871 {offsets = [0, 0], sizes = [8, 64], strides = [1, 1]} : vector<8x256xf32> to vector<8x64xf32>
    %873 = vector.extract_strided_slice %871 {offsets = [0, 64], sizes = [8, 64], strides = [1, 1]} : vector<8x256xf32> to vector<8x64xf32>
    %874 = vector.extract_strided_slice %871 {offsets = [0, 128], sizes = [8, 64], strides = [1, 1]} : vector<8x256xf32> to vector<8x64xf32>
    %cst_158 = arith.constant 2.000000e+00 : f32
    %875 = vector.broadcast %cst_158 : f32 to vector<8x64xf32>
    %876 = arith.mulf %875, %874 : vector<8x64xf32>
    %cst_159 = arith.constant 1.000000e+00 : f32
    %877 = vector.broadcast %cst_159 : f32 to vector<8x64xf32>
    %878 = arith.subf %876, %877 : vector<8x64xf32>
    %879 = vector.extract_strided_slice %871 {offsets = [0, 192], sizes = [8, 64], strides = [1, 1]} : vector<8x256xf32> to vector<8x64xf32>
    %880 = arith.mulf %873, %855 : vector<8x64xf32>
    %881 = arith.mulf %872, %878 : vector<8x64xf32>
    %882 = arith.addf %880, %881 : vector<8x64xf32>
    %883 = math.tanh %882 : vector<8x64xf32>
    %884 = arith.mulf %879, %883 : vector<8x64xf32>
    %885 = vector.extract_strided_slice %801 {offsets = [24, 0], sizes = [8, 256], strides = [1, 1]} : vector<64x256xf32> to vector<8x256xf32>
    %886 = vector.extract_strided_slice %801 {offsets = [32, 0], sizes = [8, 256], strides = [1, 1]} : vector<64x256xf32> to vector<8x256xf32>
    %887 = vector.shape_cast %18 : vector<1x256xi1> to vector<1x256xi1>
    %888 = vector.broadcast %887 : vector<1x256xi1> to vector<8x256xi1>
    %889 = arith.select %888, %885, %886 : vector<8x256xi1>, vector<8x256xf32>
    %cst_160 = arith.constant dense<0.000000e+00> : vector<8x256xf32>
    %890 = tpu.matmul %884, %796, %cst_160 {dimension_numbers = #tpu.dot_dimension_numbers<[1], [0], [0], [1], [0, 0, 1, 1], [], []>} : vector<8x64xf32>, vector<64x256xf32>, vector<8x256xf32> -> vector<8x256xf32>
    %891 = arith.addf %889, %890 : vector<8x256xf32>
    %892 = vector.broadcast %26 : vector<1x256xf32> to vector<8x256xf32>
    %893 = arith.mulf %891, %892 : vector<8x256xf32>
    %894 = arith.negf %893 : vector<8x256xf32>
    %895 = math.exp %894 : vector<8x256xf32>
    %cst_161 = arith.constant 1.000000e+00 : f32
    %896 = vector.broadcast %cst_161 : f32 to vector<8x256xf32>
    %897 = arith.addf %896, %895 : vector<8x256xf32>
    %898 = arith.divf %896, %897 : vector<8x256xf32>
    %899 = vector.extract_strided_slice %898 {offsets = [0, 0], sizes = [8, 64], strides = [1, 1]} : vector<8x256xf32> to vector<8x64xf32>
    %900 = vector.extract_strided_slice %898 {offsets = [0, 64], sizes = [8, 64], strides = [1, 1]} : vector<8x256xf32> to vector<8x64xf32>
    %901 = vector.extract_strided_slice %898 {offsets = [0, 128], sizes = [8, 64], strides = [1, 1]} : vector<8x256xf32> to vector<8x64xf32>
    %cst_162 = arith.constant 2.000000e+00 : f32
    %902 = vector.broadcast %cst_162 : f32 to vector<8x64xf32>
    %903 = arith.mulf %902, %901 : vector<8x64xf32>
    %cst_163 = arith.constant 1.000000e+00 : f32
    %904 = vector.broadcast %cst_163 : f32 to vector<8x64xf32>
    %905 = arith.subf %903, %904 : vector<8x64xf32>
    %906 = vector.extract_strided_slice %898 {offsets = [0, 192], sizes = [8, 64], strides = [1, 1]} : vector<8x256xf32> to vector<8x64xf32>
    %907 = arith.mulf %900, %882 : vector<8x64xf32>
    %908 = arith.mulf %899, %905 : vector<8x64xf32>
    %909 = arith.addf %907, %908 : vector<8x64xf32>
    %910 = math.tanh %909 : vector<8x64xf32>
    %911 = arith.mulf %906, %910 : vector<8x64xf32>
    %912 = vector.extract_strided_slice %801 {offsets = [32, 0], sizes = [8, 256], strides = [1, 1]} : vector<64x256xf32> to vector<8x256xf32>
    %913 = vector.extract_strided_slice %801 {offsets = [24, 0], sizes = [8, 256], strides = [1, 1]} : vector<64x256xf32> to vector<8x256xf32>
    %914 = vector.shape_cast %18 : vector<1x256xi1> to vector<1x256xi1>
    %915 = vector.broadcast %914 : vector<1x256xi1> to vector<8x256xi1>
    %916 = arith.select %915, %912, %913 : vector<8x256xi1>, vector<8x256xf32>
    %cst_164 = arith.constant dense<0.000000e+00> : vector<8x256xf32>
    %917 = tpu.matmul %911, %796, %cst_164 {dimension_numbers = #tpu.dot_dimension_numbers<[1], [0], [0], [1], [0, 0, 1, 1], [], []>} : vector<8x64xf32>, vector<64x256xf32>, vector<8x256xf32> -> vector<8x256xf32>
    %918 = arith.addf %916, %917 : vector<8x256xf32>
    %919 = vector.broadcast %26 : vector<1x256xf32> to vector<8x256xf32>
    %920 = arith.mulf %918, %919 : vector<8x256xf32>
    %921 = arith.negf %920 : vector<8x256xf32>
    %922 = math.exp %921 : vector<8x256xf32>
    %cst_165 = arith.constant 1.000000e+00 : f32
    %923 = vector.broadcast %cst_165 : f32 to vector<8x256xf32>
    %924 = arith.addf %923, %922 : vector<8x256xf32>
    %925 = arith.divf %923, %924 : vector<8x256xf32>
    %926 = vector.extract_strided_slice %925 {offsets = [0, 0], sizes = [8, 64], strides = [1, 1]} : vector<8x256xf32> to vector<8x64xf32>
    %927 = vector.extract_strided_slice %925 {offsets = [0, 64], sizes = [8, 64], strides = [1, 1]} : vector<8x256xf32> to vector<8x64xf32>
    %928 = vector.extract_strided_slice %925 {offsets = [0, 128], sizes = [8, 64], strides = [1, 1]} : vector<8x256xf32> to vector<8x64xf32>
    %cst_166 = arith.constant 2.000000e+00 : f32
    %929 = vector.broadcast %cst_166 : f32 to vector<8x64xf32>
    %930 = arith.mulf %929, %928 : vector<8x64xf32>
    %cst_167 = arith.constant 1.000000e+00 : f32
    %931 = vector.broadcast %cst_167 : f32 to vector<8x64xf32>
    %932 = arith.subf %930, %931 : vector<8x64xf32>
    %933 = vector.extract_strided_slice %925 {offsets = [0, 192], sizes = [8, 64], strides = [1, 1]} : vector<8x256xf32> to vector<8x64xf32>
    %934 = arith.mulf %927, %909 : vector<8x64xf32>
    %935 = arith.mulf %926, %932 : vector<8x64xf32>
    %936 = arith.addf %934, %935 : vector<8x64xf32>
    %937 = math.tanh %936 : vector<8x64xf32>
    %938 = arith.mulf %933, %937 : vector<8x64xf32>
    %939 = vector.extract_strided_slice %801 {offsets = [40, 0], sizes = [8, 256], strides = [1, 1]} : vector<64x256xf32> to vector<8x256xf32>
    %940 = vector.extract_strided_slice %801 {offsets = [16, 0], sizes = [8, 256], strides = [1, 1]} : vector<64x256xf32> to vector<8x256xf32>
    %941 = vector.shape_cast %18 : vector<1x256xi1> to vector<1x256xi1>
    %942 = vector.broadcast %941 : vector<1x256xi1> to vector<8x256xi1>
    %943 = arith.select %942, %939, %940 : vector<8x256xi1>, vector<8x256xf32>
    %cst_168 = arith.constant dense<0.000000e+00> : vector<8x256xf32>
    %944 = tpu.matmul %938, %796, %cst_168 {dimension_numbers = #tpu.dot_dimension_numbers<[1], [0], [0], [1], [0, 0, 1, 1], [], []>} : vector<8x64xf32>, vector<64x256xf32>, vector<8x256xf32> -> vector<8x256xf32>
    %945 = arith.addf %943, %944 : vector<8x256xf32>
    %946 = vector.broadcast %26 : vector<1x256xf32> to vector<8x256xf32>
    %947 = arith.mulf %945, %946 : vector<8x256xf32>
    %948 = arith.negf %947 : vector<8x256xf32>
    %949 = math.exp %948 : vector<8x256xf32>
    %cst_169 = arith.constant 1.000000e+00 : f32
    %950 = vector.broadcast %cst_169 : f32 to vector<8x256xf32>
    %951 = arith.addf %950, %949 : vector<8x256xf32>
    %952 = arith.divf %950, %951 : vector<8x256xf32>
    %953 = vector.extract_strided_slice %952 {offsets = [0, 0], sizes = [8, 64], strides = [1, 1]} : vector<8x256xf32> to vector<8x64xf32>
    %954 = vector.extract_strided_slice %952 {offsets = [0, 64], sizes = [8, 64], strides = [1, 1]} : vector<8x256xf32> to vector<8x64xf32>
    %955 = vector.extract_strided_slice %952 {offsets = [0, 128], sizes = [8, 64], strides = [1, 1]} : vector<8x256xf32> to vector<8x64xf32>
    %cst_170 = arith.constant 2.000000e+00 : f32
    %956 = vector.broadcast %cst_170 : f32 to vector<8x64xf32>
    %957 = arith.mulf %956, %955 : vector<8x64xf32>
    %cst_171 = arith.constant 1.000000e+00 : f32
    %958 = vector.broadcast %cst_171 : f32 to vector<8x64xf32>
    %959 = arith.subf %957, %958 : vector<8x64xf32>
    %960 = vector.extract_strided_slice %952 {offsets = [0, 192], sizes = [8, 64], strides = [1, 1]} : vector<8x256xf32> to vector<8x64xf32>
    %961 = arith.mulf %954, %936 : vector<8x64xf32>
    %962 = arith.mulf %953, %959 : vector<8x64xf32>
    %963 = arith.addf %961, %962 : vector<8x64xf32>
    %964 = math.tanh %963 : vector<8x64xf32>
    %965 = arith.mulf %960, %964 : vector<8x64xf32>
    %966 = vector.extract_strided_slice %801 {offsets = [48, 0], sizes = [8, 256], strides = [1, 1]} : vector<64x256xf32> to vector<8x256xf32>
    %967 = vector.extract_strided_slice %801 {offsets = [8, 0], sizes = [8, 256], strides = [1, 1]} : vector<64x256xf32> to vector<8x256xf32>
    %968 = vector.shape_cast %18 : vector<1x256xi1> to vector<1x256xi1>
    %969 = vector.broadcast %968 : vector<1x256xi1> to vector<8x256xi1>
    %970 = arith.select %969, %966, %967 : vector<8x256xi1>, vector<8x256xf32>
    %cst_172 = arith.constant dense<0.000000e+00> : vector<8x256xf32>
    %971 = tpu.matmul %965, %796, %cst_172 {dimension_numbers = #tpu.dot_dimension_numbers<[1], [0], [0], [1], [0, 0, 1, 1], [], []>} : vector<8x64xf32>, vector<64x256xf32>, vector<8x256xf32> -> vector<8x256xf32>
    %972 = arith.addf %970, %971 : vector<8x256xf32>
    %973 = vector.broadcast %26 : vector<1x256xf32> to vector<8x256xf32>
    %974 = arith.mulf %972, %973 : vector<8x256xf32>
    %975 = arith.negf %974 : vector<8x256xf32>
    %976 = math.exp %975 : vector<8x256xf32>
    %cst_173 = arith.constant 1.000000e+00 : f32
    %977 = vector.broadcast %cst_173 : f32 to vector<8x256xf32>
    %978 = arith.addf %977, %976 : vector<8x256xf32>
    %979 = arith.divf %977, %978 : vector<8x256xf32>
    %980 = vector.extract_strided_slice %979 {offsets = [0, 0], sizes = [8, 64], strides = [1, 1]} : vector<8x256xf32> to vector<8x64xf32>
    %981 = vector.extract_strided_slice %979 {offsets = [0, 64], sizes = [8, 64], strides = [1, 1]} : vector<8x256xf32> to vector<8x64xf32>
    %982 = vector.extract_strided_slice %979 {offsets = [0, 128], sizes = [8, 64], strides = [1, 1]} : vector<8x256xf32> to vector<8x64xf32>
    %cst_174 = arith.constant 2.000000e+00 : f32
    %983 = vector.broadcast %cst_174 : f32 to vector<8x64xf32>
    %984 = arith.mulf %983, %982 : vector<8x64xf32>
    %cst_175 = arith.constant 1.000000e+00 : f32
    %985 = vector.broadcast %cst_175 : f32 to vector<8x64xf32>
    %986 = arith.subf %984, %985 : vector<8x64xf32>
    %987 = vector.extract_strided_slice %979 {offsets = [0, 192], sizes = [8, 64], strides = [1, 1]} : vector<8x256xf32> to vector<8x64xf32>
    %988 = arith.mulf %981, %963 : vector<8x64xf32>
    %989 = arith.mulf %980, %986 : vector<8x64xf32>
    %990 = arith.addf %988, %989 : vector<8x64xf32>
    %991 = math.tanh %990 : vector<8x64xf32>
    %992 = arith.mulf %987, %991 : vector<8x64xf32>
    %993 = vector.extract_strided_slice %801 {offsets = [56, 0], sizes = [8, 256], strides = [1, 1]} : vector<64x256xf32> to vector<8x256xf32>
    %994 = vector.extract_strided_slice %801 {offsets = [0, 0], sizes = [8, 256], strides = [1, 1]} : vector<64x256xf32> to vector<8x256xf32>
    %995 = vector.shape_cast %18 : vector<1x256xi1> to vector<1x256xi1>
    %996 = vector.broadcast %995 : vector<1x256xi1> to vector<8x256xi1>
    %997 = arith.select %996, %993, %994 : vector<8x256xi1>, vector<8x256xf32>
    %cst_176 = arith.constant dense<0.000000e+00> : vector<8x256xf32>
    %998 = tpu.matmul %992, %796, %cst_176 {dimension_numbers = #tpu.dot_dimension_numbers<[1], [0], [0], [1], [0, 0, 1, 1], [], []>} : vector<8x64xf32>, vector<64x256xf32>, vector<8x256xf32> -> vector<8x256xf32>
    %999 = arith.addf %997, %998 : vector<8x256xf32>
    %1000 = vector.broadcast %26 : vector<1x256xf32> to vector<8x256xf32>
    %1001 = arith.mulf %999, %1000 : vector<8x256xf32>
    %1002 = arith.negf %1001 : vector<8x256xf32>
    %1003 = math.exp %1002 : vector<8x256xf32>
    %cst_177 = arith.constant 1.000000e+00 : f32
    %1004 = vector.broadcast %cst_177 : f32 to vector<8x256xf32>
    %1005 = arith.addf %1004, %1003 : vector<8x256xf32>
    %1006 = arith.divf %1004, %1005 : vector<8x256xf32>
    %1007 = vector.extract_strided_slice %1006 {offsets = [0, 0], sizes = [8, 64], strides = [1, 1]} : vector<8x256xf32> to vector<8x64xf32>
    %1008 = vector.extract_strided_slice %1006 {offsets = [0, 64], sizes = [8, 64], strides = [1, 1]} : vector<8x256xf32> to vector<8x64xf32>
    %1009 = vector.extract_strided_slice %1006 {offsets = [0, 128], sizes = [8, 64], strides = [1, 1]} : vector<8x256xf32> to vector<8x64xf32>
    %cst_178 = arith.constant 2.000000e+00 : f32
    %1010 = vector.broadcast %cst_178 : f32 to vector<8x64xf32>
    %1011 = arith.mulf %1010, %1009 : vector<8x64xf32>
    %cst_179 = arith.constant 1.000000e+00 : f32
    %1012 = vector.broadcast %cst_179 : f32 to vector<8x64xf32>
    %1013 = arith.subf %1011, %1012 : vector<8x64xf32>
    %1014 = vector.extract_strided_slice %1006 {offsets = [0, 192], sizes = [8, 64], strides = [1, 1]} : vector<8x256xf32> to vector<8x64xf32>
    %1015 = arith.mulf %1008, %990 : vector<8x64xf32>
    %1016 = arith.mulf %1007, %1013 : vector<8x64xf32>
    %1017 = arith.addf %1015, %1016 : vector<8x64xf32>
    %1018 = math.tanh %1017 : vector<8x64xf32>
    %1019 = arith.mulf %1014, %1018 : vector<8x64xf32>
    %1020 = vector.shape_cast %38 : vector<1x64xi1> to vector<1x64xi1>
    %1021 = vector.broadcast %1020 : vector<1x64xi1> to vector<8x64xi1>
    %1022 = arith.select %1021, %830, %1019 : vector<8x64xi1>, vector<8x64xf32>
    %1023 = vector.shape_cast %38 : vector<1x64xi1> to vector<1x64xi1>
    %1024 = vector.broadcast %1023 : vector<1x64xi1> to vector<8x64xi1>
    %1025 = arith.select %1024, %857, %992 : vector<8x64xi1>, vector<8x64xf32>
    %1026 = vector.shape_cast %38 : vector<1x64xi1> to vector<1x64xi1>
    %1027 = vector.broadcast %1026 : vector<1x64xi1> to vector<8x64xi1>
    %1028 = arith.select %1027, %884, %965 : vector<8x64xi1>, vector<8x64xf32>
    %1029 = vector.shape_cast %38 : vector<1x64xi1> to vector<1x64xi1>
    %1030 = vector.broadcast %1029 : vector<1x64xi1> to vector<8x64xi1>
    %1031 = arith.select %1030, %911, %938 : vector<8x64xi1>, vector<8x64xf32>
    %1032 = vector.shape_cast %38 : vector<1x64xi1> to vector<1x64xi1>
    %1033 = vector.broadcast %1032 : vector<1x64xi1> to vector<8x64xi1>
    %1034 = arith.select %1033, %938, %911 : vector<8x64xi1>, vector<8x64xf32>
    %1035 = vector.shape_cast %38 : vector<1x64xi1> to vector<1x64xi1>
    %1036 = vector.broadcast %1035 : vector<1x64xi1> to vector<8x64xi1>
    %1037 = arith.select %1036, %965, %884 : vector<8x64xi1>, vector<8x64xf32>
    %1038 = vector.shape_cast %38 : vector<1x64xi1> to vector<1x64xi1>
    %1039 = vector.broadcast %1038 : vector<1x64xi1> to vector<8x64xi1>
    %1040 = arith.select %1039, %992, %857 : vector<8x64xi1>, vector<8x64xf32>
    %1041 = vector.shape_cast %38 : vector<1x64xi1> to vector<1x64xi1>
    %1042 = vector.broadcast %1041 : vector<1x64xi1> to vector<8x64xi1>
    %1043 = arith.select %1042, %1019, %830 : vector<8x64xi1>, vector<8x64xf32>
    %1044 = tpu.concatenate %1022, %1025, %1028, %1031, %1034, %1037, %1040, %1043 in 0 : vector<8x64xf32>, vector<8x64xf32>, vector<8x64xf32>, vector<8x64xf32>, vector<8x64xf32>, vector<8x64xf32>, vector<8x64xf32>, vector<8x64xf32> -> vector<64x64xf32>
    %c0_180 = arith.constant 0 : index
    %c0_181 = arith.constant 0 : index
    %1045 = vector.load %arg8[%c0_180, %c0_181] : memref<32x128xf32, #tpu.memory_space<vmem>>, vector<32x128xf32>
    %c0_182 = arith.constant 0 : index
    %c0_183 = arith.constant 0 : index
    %1046 = vector.load %arg10[%c0_182, %c0_183] : memref<32x128xf32, #tpu.memory_space<vmem>>, vector<32x128xf32>
    %c0_184 = arith.constant 0 : index
    %c0_185 = arith.constant 0 : index
    %1047 = vector.load %arg11[%c0_184, %c0_185] : memref<1x128xf32, #tpu.memory_space<vmem>>, vector<1x128xf32>
    %c0_186 = arith.constant 0 : index
    %c0_187 = arith.constant 0 : index
    %1048 = vector.load %arg7[%c0_186, %c0_187] : memref<64x128xf32, #tpu.memory_space<vmem>>, vector<64x128xf32>
    %cst_188 = arith.constant dense<0.000000e+00> : vector<64x128xf32>
    %1049 = tpu.matmul %1044, %1048, %cst_188 {dimension_numbers = #tpu.dot_dimension_numbers<[1], [0], [0], [1], [0, 0, 1, 1], [], []>} : vector<64x64xf32>, vector<64x128xf32>, vector<64x128xf32> -> vector<64x128xf32>
    %c0_189 = arith.constant 0 : index
    %c0_190 = arith.constant 0 : index
    %1050 = vector.load %arg9[%c0_189, %c0_190] : memref<1x128xf32, #tpu.memory_space<vmem>>, vector<1x128xf32>
    %1051 = vector.broadcast %1050 : vector<1x128xf32> to vector<64x128xf32>
    %1052 = arith.addf %1049, %1051 : vector<64x128xf32>
    %cst_191 = arith.constant 0.000000e+00 : f32
    %1053 = vector.broadcast %cst_191 : f32 to vector<8x32xf32>
    %cst_192 = arith.constant 0.000000e+00 : f32
    %1054 = vector.broadcast %cst_192 : f32 to vector<8x32xf32>
    %1055 = vector.extract_strided_slice %1052 {offsets = [56, 0], sizes = [8, 128], strides = [1, 1]} : vector<64x128xf32> to vector<8x128xf32>
    %cst_193 = arith.constant dense<0.000000e+00> : vector<8x128xf32>
    %1056 = tpu.matmul %1053, %1045, %cst_193 {dimension_numbers = #tpu.dot_dimension_numbers<[1], [0], [0], [1], [0, 0, 1, 1], [], []>} : vector<8x32xf32>, vector<32x128xf32>, vector<8x128xf32> -> vector<8x128xf32>
    %1057 = arith.addf %1055, %1056 : vector<8x128xf32>
    %1058 = vector.broadcast %35 : vector<1x128xf32> to vector<8x128xf32>
    %1059 = arith.mulf %1057, %1058 : vector<8x128xf32>
    %1060 = arith.negf %1059 : vector<8x128xf32>
    %1061 = math.exp %1060 : vector<8x128xf32>
    %cst_194 = arith.constant 1.000000e+00 : f32
    %1062 = vector.broadcast %cst_194 : f32 to vector<8x128xf32>
    %1063 = arith.addf %1062, %1061 : vector<8x128xf32>
    %1064 = arith.divf %1062, %1063 : vector<8x128xf32>
    %1065 = vector.extract_strided_slice %1064 {offsets = [0, 0], sizes = [8, 32], strides = [1, 1]} : vector<8x128xf32> to vector<8x32xf32>
    %1066 = vector.extract_strided_slice %1064 {offsets = [0, 32], sizes = [8, 32], strides = [1, 1]} : vector<8x128xf32> to vector<8x32xf32>
    %1067 = vector.extract_strided_slice %1064 {offsets = [0, 64], sizes = [8, 32], strides = [1, 1]} : vector<8x128xf32> to vector<8x32xf32>
    %cst_195 = arith.constant 2.000000e+00 : f32
    %1068 = vector.broadcast %cst_195 : f32 to vector<8x32xf32>
    %1069 = arith.mulf %1068, %1067 : vector<8x32xf32>
    %cst_196 = arith.constant 1.000000e+00 : f32
    %1070 = vector.broadcast %cst_196 : f32 to vector<8x32xf32>
    %1071 = arith.subf %1069, %1070 : vector<8x32xf32>
    %1072 = vector.extract_strided_slice %1064 {offsets = [0, 96], sizes = [8, 32], strides = [1, 1]} : vector<8x128xf32> to vector<8x32xf32>
    %1073 = arith.mulf %1066, %1054 : vector<8x32xf32>
    %1074 = arith.mulf %1065, %1071 : vector<8x32xf32>
    %1075 = arith.addf %1073, %1074 : vector<8x32xf32>
    %1076 = math.tanh %1075 : vector<8x32xf32>
    %1077 = arith.mulf %1072, %1076 : vector<8x32xf32>
    %cst_197 = arith.constant dense<0.000000e+00> : vector<8x128xf32>
    %1078 = tpu.matmul %1077, %1046, %cst_197 {dimension_numbers = #tpu.dot_dimension_numbers<[1], [0], [0], [1], [0, 0, 1, 1], [], []>} : vector<8x32xf32>, vector<32x128xf32>, vector<8x128xf32> -> vector<8x128xf32>
    %1079 = vector.broadcast %1047 : vector<1x128xf32> to vector<8x128xf32>
    %1080 = arith.addf %1078, %1079 : vector<8x128xf32>
    %cst_198 = arith.constant 0.000000e+00 : f32
    %1081 = vector.broadcast %cst_198 : f32 to vector<8x128xf32>
    %1082 = arith.maximumf %1080, %1081 : vector<8x128xf32>
    %1083 = vector.extract_strided_slice %1052 {offsets = [48, 0], sizes = [8, 128], strides = [1, 1]} : vector<64x128xf32> to vector<8x128xf32>
    %cst_199 = arith.constant dense<0.000000e+00> : vector<8x128xf32>
    %1084 = tpu.matmul %1077, %1045, %cst_199 {dimension_numbers = #tpu.dot_dimension_numbers<[1], [0], [0], [1], [0, 0, 1, 1], [], []>} : vector<8x32xf32>, vector<32x128xf32>, vector<8x128xf32> -> vector<8x128xf32>
    %1085 = arith.addf %1083, %1084 : vector<8x128xf32>
    %1086 = vector.broadcast %35 : vector<1x128xf32> to vector<8x128xf32>
    %1087 = arith.mulf %1085, %1086 : vector<8x128xf32>
    %1088 = arith.negf %1087 : vector<8x128xf32>
    %1089 = math.exp %1088 : vector<8x128xf32>
    %cst_200 = arith.constant 1.000000e+00 : f32
    %1090 = vector.broadcast %cst_200 : f32 to vector<8x128xf32>
    %1091 = arith.addf %1090, %1089 : vector<8x128xf32>
    %1092 = arith.divf %1090, %1091 : vector<8x128xf32>
    %1093 = vector.extract_strided_slice %1092 {offsets = [0, 0], sizes = [8, 32], strides = [1, 1]} : vector<8x128xf32> to vector<8x32xf32>
    %1094 = vector.extract_strided_slice %1092 {offsets = [0, 32], sizes = [8, 32], strides = [1, 1]} : vector<8x128xf32> to vector<8x32xf32>
    %1095 = vector.extract_strided_slice %1092 {offsets = [0, 64], sizes = [8, 32], strides = [1, 1]} : vector<8x128xf32> to vector<8x32xf32>
    %cst_201 = arith.constant 2.000000e+00 : f32
    %1096 = vector.broadcast %cst_201 : f32 to vector<8x32xf32>
    %1097 = arith.mulf %1096, %1095 : vector<8x32xf32>
    %cst_202 = arith.constant 1.000000e+00 : f32
    %1098 = vector.broadcast %cst_202 : f32 to vector<8x32xf32>
    %1099 = arith.subf %1097, %1098 : vector<8x32xf32>
    %1100 = vector.extract_strided_slice %1092 {offsets = [0, 96], sizes = [8, 32], strides = [1, 1]} : vector<8x128xf32> to vector<8x32xf32>
    %1101 = arith.mulf %1094, %1075 : vector<8x32xf32>
    %1102 = arith.mulf %1093, %1099 : vector<8x32xf32>
    %1103 = arith.addf %1101, %1102 : vector<8x32xf32>
    %1104 = math.tanh %1103 : vector<8x32xf32>
    %1105 = arith.mulf %1100, %1104 : vector<8x32xf32>
    %cst_203 = arith.constant dense<0.000000e+00> : vector<8x128xf32>
    %1106 = tpu.matmul %1105, %1046, %cst_203 {dimension_numbers = #tpu.dot_dimension_numbers<[1], [0], [0], [1], [0, 0, 1, 1], [], []>} : vector<8x32xf32>, vector<32x128xf32>, vector<8x128xf32> -> vector<8x128xf32>
    %1107 = vector.broadcast %1047 : vector<1x128xf32> to vector<8x128xf32>
    %1108 = arith.addf %1106, %1107 : vector<8x128xf32>
    %cst_204 = arith.constant 0.000000e+00 : f32
    %1109 = vector.broadcast %cst_204 : f32 to vector<8x128xf32>
    %1110 = arith.maximumf %1108, %1109 : vector<8x128xf32>
    %1111 = vector.extract_strided_slice %1052 {offsets = [40, 0], sizes = [8, 128], strides = [1, 1]} : vector<64x128xf32> to vector<8x128xf32>
    %cst_205 = arith.constant dense<0.000000e+00> : vector<8x128xf32>
    %1112 = tpu.matmul %1105, %1045, %cst_205 {dimension_numbers = #tpu.dot_dimension_numbers<[1], [0], [0], [1], [0, 0, 1, 1], [], []>} : vector<8x32xf32>, vector<32x128xf32>, vector<8x128xf32> -> vector<8x128xf32>
    %1113 = arith.addf %1111, %1112 : vector<8x128xf32>
    %1114 = vector.broadcast %35 : vector<1x128xf32> to vector<8x128xf32>
    %1115 = arith.mulf %1113, %1114 : vector<8x128xf32>
    %1116 = arith.negf %1115 : vector<8x128xf32>
    %1117 = math.exp %1116 : vector<8x128xf32>
    %cst_206 = arith.constant 1.000000e+00 : f32
    %1118 = vector.broadcast %cst_206 : f32 to vector<8x128xf32>
    %1119 = arith.addf %1118, %1117 : vector<8x128xf32>
    %1120 = arith.divf %1118, %1119 : vector<8x128xf32>
    %1121 = vector.extract_strided_slice %1120 {offsets = [0, 0], sizes = [8, 32], strides = [1, 1]} : vector<8x128xf32> to vector<8x32xf32>
    %1122 = vector.extract_strided_slice %1120 {offsets = [0, 32], sizes = [8, 32], strides = [1, 1]} : vector<8x128xf32> to vector<8x32xf32>
    %1123 = vector.extract_strided_slice %1120 {offsets = [0, 64], sizes = [8, 32], strides = [1, 1]} : vector<8x128xf32> to vector<8x32xf32>
    %cst_207 = arith.constant 2.000000e+00 : f32
    %1124 = vector.broadcast %cst_207 : f32 to vector<8x32xf32>
    %1125 = arith.mulf %1124, %1123 : vector<8x32xf32>
    %cst_208 = arith.constant 1.000000e+00 : f32
    %1126 = vector.broadcast %cst_208 : f32 to vector<8x32xf32>
    %1127 = arith.subf %1125, %1126 : vector<8x32xf32>
    %1128 = vector.extract_strided_slice %1120 {offsets = [0, 96], sizes = [8, 32], strides = [1, 1]} : vector<8x128xf32> to vector<8x32xf32>
    %1129 = arith.mulf %1122, %1103 : vector<8x32xf32>
    %1130 = arith.mulf %1121, %1127 : vector<8x32xf32>
    %1131 = arith.addf %1129, %1130 : vector<8x32xf32>
    %1132 = math.tanh %1131 : vector<8x32xf32>
    %1133 = arith.mulf %1128, %1132 : vector<8x32xf32>
    %cst_209 = arith.constant dense<0.000000e+00> : vector<8x128xf32>
    %1134 = tpu.matmul %1133, %1046, %cst_209 {dimension_numbers = #tpu.dot_dimension_numbers<[1], [0], [0], [1], [0, 0, 1, 1], [], []>} : vector<8x32xf32>, vector<32x128xf32>, vector<8x128xf32> -> vector<8x128xf32>
    %1135 = vector.broadcast %1047 : vector<1x128xf32> to vector<8x128xf32>
    %1136 = arith.addf %1134, %1135 : vector<8x128xf32>
    %cst_210 = arith.constant 0.000000e+00 : f32
    %1137 = vector.broadcast %cst_210 : f32 to vector<8x128xf32>
    %1138 = arith.maximumf %1136, %1137 : vector<8x128xf32>
    %1139 = vector.extract_strided_slice %1052 {offsets = [32, 0], sizes = [8, 128], strides = [1, 1]} : vector<64x128xf32> to vector<8x128xf32>
    %cst_211 = arith.constant dense<0.000000e+00> : vector<8x128xf32>
    %1140 = tpu.matmul %1133, %1045, %cst_211 {dimension_numbers = #tpu.dot_dimension_numbers<[1], [0], [0], [1], [0, 0, 1, 1], [], []>} : vector<8x32xf32>, vector<32x128xf32>, vector<8x128xf32> -> vector<8x128xf32>
    %1141 = arith.addf %1139, %1140 : vector<8x128xf32>
    %1142 = vector.broadcast %35 : vector<1x128xf32> to vector<8x128xf32>
    %1143 = arith.mulf %1141, %1142 : vector<8x128xf32>
    %1144 = arith.negf %1143 : vector<8x128xf32>
    %1145 = math.exp %1144 : vector<8x128xf32>
    %cst_212 = arith.constant 1.000000e+00 : f32
    %1146 = vector.broadcast %cst_212 : f32 to vector<8x128xf32>
    %1147 = arith.addf %1146, %1145 : vector<8x128xf32>
    %1148 = arith.divf %1146, %1147 : vector<8x128xf32>
    %1149 = vector.extract_strided_slice %1148 {offsets = [0, 0], sizes = [8, 32], strides = [1, 1]} : vector<8x128xf32> to vector<8x32xf32>
    %1150 = vector.extract_strided_slice %1148 {offsets = [0, 32], sizes = [8, 32], strides = [1, 1]} : vector<8x128xf32> to vector<8x32xf32>
    %1151 = vector.extract_strided_slice %1148 {offsets = [0, 64], sizes = [8, 32], strides = [1, 1]} : vector<8x128xf32> to vector<8x32xf32>
    %cst_213 = arith.constant 2.000000e+00 : f32
    %1152 = vector.broadcast %cst_213 : f32 to vector<8x32xf32>
    %1153 = arith.mulf %1152, %1151 : vector<8x32xf32>
    %cst_214 = arith.constant 1.000000e+00 : f32
    %1154 = vector.broadcast %cst_214 : f32 to vector<8x32xf32>
    %1155 = arith.subf %1153, %1154 : vector<8x32xf32>
    %1156 = vector.extract_strided_slice %1148 {offsets = [0, 96], sizes = [8, 32], strides = [1, 1]} : vector<8x128xf32> to vector<8x32xf32>
    %1157 = arith.mulf %1150, %1131 : vector<8x32xf32>
    %1158 = arith.mulf %1149, %1155 : vector<8x32xf32>
    %1159 = arith.addf %1157, %1158 : vector<8x32xf32>
    %1160 = math.tanh %1159 : vector<8x32xf32>
    %1161 = arith.mulf %1156, %1160 : vector<8x32xf32>
    %cst_215 = arith.constant dense<0.000000e+00> : vector<8x128xf32>
    %1162 = tpu.matmul %1161, %1046, %cst_215 {dimension_numbers = #tpu.dot_dimension_numbers<[1], [0], [0], [1], [0, 0, 1, 1], [], []>} : vector<8x32xf32>, vector<32x128xf32>, vector<8x128xf32> -> vector<8x128xf32>
    %1163 = vector.broadcast %1047 : vector<1x128xf32> to vector<8x128xf32>
    %1164 = arith.addf %1162, %1163 : vector<8x128xf32>
    %cst_216 = arith.constant 0.000000e+00 : f32
    %1165 = vector.broadcast %cst_216 : f32 to vector<8x128xf32>
    %1166 = arith.maximumf %1164, %1165 : vector<8x128xf32>
    %1167 = vector.extract_strided_slice %1052 {offsets = [24, 0], sizes = [8, 128], strides = [1, 1]} : vector<64x128xf32> to vector<8x128xf32>
    %cst_217 = arith.constant dense<0.000000e+00> : vector<8x128xf32>
    %1168 = tpu.matmul %1161, %1045, %cst_217 {dimension_numbers = #tpu.dot_dimension_numbers<[1], [0], [0], [1], [0, 0, 1, 1], [], []>} : vector<8x32xf32>, vector<32x128xf32>, vector<8x128xf32> -> vector<8x128xf32>
    %1169 = arith.addf %1167, %1168 : vector<8x128xf32>
    %1170 = vector.broadcast %35 : vector<1x128xf32> to vector<8x128xf32>
    %1171 = arith.mulf %1169, %1170 : vector<8x128xf32>
    %1172 = arith.negf %1171 : vector<8x128xf32>
    %1173 = math.exp %1172 : vector<8x128xf32>
    %cst_218 = arith.constant 1.000000e+00 : f32
    %1174 = vector.broadcast %cst_218 : f32 to vector<8x128xf32>
    %1175 = arith.addf %1174, %1173 : vector<8x128xf32>
    %1176 = arith.divf %1174, %1175 : vector<8x128xf32>
    %1177 = vector.extract_strided_slice %1176 {offsets = [0, 0], sizes = [8, 32], strides = [1, 1]} : vector<8x128xf32> to vector<8x32xf32>
    %1178 = vector.extract_strided_slice %1176 {offsets = [0, 32], sizes = [8, 32], strides = [1, 1]} : vector<8x128xf32> to vector<8x32xf32>
    %1179 = vector.extract_strided_slice %1176 {offsets = [0, 64], sizes = [8, 32], strides = [1, 1]} : vector<8x128xf32> to vector<8x32xf32>
    %cst_219 = arith.constant 2.000000e+00 : f32
    %1180 = vector.broadcast %cst_219 : f32 to vector<8x32xf32>
    %1181 = arith.mulf %1180, %1179 : vector<8x32xf32>
    %cst_220 = arith.constant 1.000000e+00 : f32
    %1182 = vector.broadcast %cst_220 : f32 to vector<8x32xf32>
    %1183 = arith.subf %1181, %1182 : vector<8x32xf32>
    %1184 = vector.extract_strided_slice %1176 {offsets = [0, 96], sizes = [8, 32], strides = [1, 1]} : vector<8x128xf32> to vector<8x32xf32>
    %1185 = arith.mulf %1178, %1159 : vector<8x32xf32>
    %1186 = arith.mulf %1177, %1183 : vector<8x32xf32>
    %1187 = arith.addf %1185, %1186 : vector<8x32xf32>
    %1188 = math.tanh %1187 : vector<8x32xf32>
    %1189 = arith.mulf %1184, %1188 : vector<8x32xf32>
    %cst_221 = arith.constant dense<0.000000e+00> : vector<8x128xf32>
    %1190 = tpu.matmul %1189, %1046, %cst_221 {dimension_numbers = #tpu.dot_dimension_numbers<[1], [0], [0], [1], [0, 0, 1, 1], [], []>} : vector<8x32xf32>, vector<32x128xf32>, vector<8x128xf32> -> vector<8x128xf32>
    %1191 = vector.broadcast %1047 : vector<1x128xf32> to vector<8x128xf32>
    %1192 = arith.addf %1190, %1191 : vector<8x128xf32>
    %cst_222 = arith.constant 0.000000e+00 : f32
    %1193 = vector.broadcast %cst_222 : f32 to vector<8x128xf32>
    %1194 = arith.maximumf %1192, %1193 : vector<8x128xf32>
    %1195 = vector.extract_strided_slice %1052 {offsets = [16, 0], sizes = [8, 128], strides = [1, 1]} : vector<64x128xf32> to vector<8x128xf32>
    %cst_223 = arith.constant dense<0.000000e+00> : vector<8x128xf32>
    %1196 = tpu.matmul %1189, %1045, %cst_223 {dimension_numbers = #tpu.dot_dimension_numbers<[1], [0], [0], [1], [0, 0, 1, 1], [], []>} : vector<8x32xf32>, vector<32x128xf32>, vector<8x128xf32> -> vector<8x128xf32>
    %1197 = arith.addf %1195, %1196 : vector<8x128xf32>
    %1198 = vector.broadcast %35 : vector<1x128xf32> to vector<8x128xf32>
    %1199 = arith.mulf %1197, %1198 : vector<8x128xf32>
    %1200 = arith.negf %1199 : vector<8x128xf32>
    %1201 = math.exp %1200 : vector<8x128xf32>
    %cst_224 = arith.constant 1.000000e+00 : f32
    %1202 = vector.broadcast %cst_224 : f32 to vector<8x128xf32>
    %1203 = arith.addf %1202, %1201 : vector<8x128xf32>
    %1204 = arith.divf %1202, %1203 : vector<8x128xf32>
    %1205 = vector.extract_strided_slice %1204 {offsets = [0, 0], sizes = [8, 32], strides = [1, 1]} : vector<8x128xf32> to vector<8x32xf32>
    %1206 = vector.extract_strided_slice %1204 {offsets = [0, 32], sizes = [8, 32], strides = [1, 1]} : vector<8x128xf32> to vector<8x32xf32>
    %1207 = vector.extract_strided_slice %1204 {offsets = [0, 64], sizes = [8, 32], strides = [1, 1]} : vector<8x128xf32> to vector<8x32xf32>
    %cst_225 = arith.constant 2.000000e+00 : f32
    %1208 = vector.broadcast %cst_225 : f32 to vector<8x32xf32>
    %1209 = arith.mulf %1208, %1207 : vector<8x32xf32>
    %cst_226 = arith.constant 1.000000e+00 : f32
    %1210 = vector.broadcast %cst_226 : f32 to vector<8x32xf32>
    %1211 = arith.subf %1209, %1210 : vector<8x32xf32>
    %1212 = vector.extract_strided_slice %1204 {offsets = [0, 96], sizes = [8, 32], strides = [1, 1]} : vector<8x128xf32> to vector<8x32xf32>
    %1213 = arith.mulf %1206, %1187 : vector<8x32xf32>
    %1214 = arith.mulf %1205, %1211 : vector<8x32xf32>
    %1215 = arith.addf %1213, %1214 : vector<8x32xf32>
    %1216 = math.tanh %1215 : vector<8x32xf32>
    %1217 = arith.mulf %1212, %1216 : vector<8x32xf32>
    %cst_227 = arith.constant dense<0.000000e+00> : vector<8x128xf32>
    %1218 = tpu.matmul %1217, %1046, %cst_227 {dimension_numbers = #tpu.dot_dimension_numbers<[1], [0], [0], [1], [0, 0, 1, 1], [], []>} : vector<8x32xf32>, vector<32x128xf32>, vector<8x128xf32> -> vector<8x128xf32>
    %1219 = vector.broadcast %1047 : vector<1x128xf32> to vector<8x128xf32>
    %1220 = arith.addf %1218, %1219 : vector<8x128xf32>
    %cst_228 = arith.constant 0.000000e+00 : f32
    %1221 = vector.broadcast %cst_228 : f32 to vector<8x128xf32>
    %1222 = arith.maximumf %1220, %1221 : vector<8x128xf32>
    %1223 = vector.extract_strided_slice %1052 {offsets = [8, 0], sizes = [8, 128], strides = [1, 1]} : vector<64x128xf32> to vector<8x128xf32>
    %cst_229 = arith.constant dense<0.000000e+00> : vector<8x128xf32>
    %1224 = tpu.matmul %1217, %1045, %cst_229 {dimension_numbers = #tpu.dot_dimension_numbers<[1], [0], [0], [1], [0, 0, 1, 1], [], []>} : vector<8x32xf32>, vector<32x128xf32>, vector<8x128xf32> -> vector<8x128xf32>
    %1225 = arith.addf %1223, %1224 : vector<8x128xf32>
    %1226 = vector.broadcast %35 : vector<1x128xf32> to vector<8x128xf32>
    %1227 = arith.mulf %1225, %1226 : vector<8x128xf32>
    %1228 = arith.negf %1227 : vector<8x128xf32>
    %1229 = math.exp %1228 : vector<8x128xf32>
    %cst_230 = arith.constant 1.000000e+00 : f32
    %1230 = vector.broadcast %cst_230 : f32 to vector<8x128xf32>
    %1231 = arith.addf %1230, %1229 : vector<8x128xf32>
    %1232 = arith.divf %1230, %1231 : vector<8x128xf32>
    %1233 = vector.extract_strided_slice %1232 {offsets = [0, 0], sizes = [8, 32], strides = [1, 1]} : vector<8x128xf32> to vector<8x32xf32>
    %1234 = vector.extract_strided_slice %1232 {offsets = [0, 32], sizes = [8, 32], strides = [1, 1]} : vector<8x128xf32> to vector<8x32xf32>
    %1235 = vector.extract_strided_slice %1232 {offsets = [0, 64], sizes = [8, 32], strides = [1, 1]} : vector<8x128xf32> to vector<8x32xf32>
    %cst_231 = arith.constant 2.000000e+00 : f32
    %1236 = vector.broadcast %cst_231 : f32 to vector<8x32xf32>
    %1237 = arith.mulf %1236, %1235 : vector<8x32xf32>
    %cst_232 = arith.constant 1.000000e+00 : f32
    %1238 = vector.broadcast %cst_232 : f32 to vector<8x32xf32>
    %1239 = arith.subf %1237, %1238 : vector<8x32xf32>
    %1240 = vector.extract_strided_slice %1232 {offsets = [0, 96], sizes = [8, 32], strides = [1, 1]} : vector<8x128xf32> to vector<8x32xf32>
    %1241 = arith.mulf %1234, %1215 : vector<8x32xf32>
    %1242 = arith.mulf %1233, %1239 : vector<8x32xf32>
    %1243 = arith.addf %1241, %1242 : vector<8x32xf32>
    %1244 = math.tanh %1243 : vector<8x32xf32>
    %1245 = arith.mulf %1240, %1244 : vector<8x32xf32>
    %cst_233 = arith.constant dense<0.000000e+00> : vector<8x128xf32>
    %1246 = tpu.matmul %1245, %1046, %cst_233 {dimension_numbers = #tpu.dot_dimension_numbers<[1], [0], [0], [1], [0, 0, 1, 1], [], []>} : vector<8x32xf32>, vector<32x128xf32>, vector<8x128xf32> -> vector<8x128xf32>
    %1247 = vector.broadcast %1047 : vector<1x128xf32> to vector<8x128xf32>
    %1248 = arith.addf %1246, %1247 : vector<8x128xf32>
    %cst_234 = arith.constant 0.000000e+00 : f32
    %1249 = vector.broadcast %cst_234 : f32 to vector<8x128xf32>
    %1250 = arith.maximumf %1248, %1249 : vector<8x128xf32>
    %1251 = vector.extract_strided_slice %1052 {offsets = [0, 0], sizes = [8, 128], strides = [1, 1]} : vector<64x128xf32> to vector<8x128xf32>
    %cst_235 = arith.constant dense<0.000000e+00> : vector<8x128xf32>
    %1252 = tpu.matmul %1245, %1045, %cst_235 {dimension_numbers = #tpu.dot_dimension_numbers<[1], [0], [0], [1], [0, 0, 1, 1], [], []>} : vector<8x32xf32>, vector<32x128xf32>, vector<8x128xf32> -> vector<8x128xf32>
    %1253 = arith.addf %1251, %1252 : vector<8x128xf32>
    %1254 = vector.broadcast %35 : vector<1x128xf32> to vector<8x128xf32>
    %1255 = arith.mulf %1253, %1254 : vector<8x128xf32>
    %1256 = arith.negf %1255 : vector<8x128xf32>
    %1257 = math.exp %1256 : vector<8x128xf32>
    %cst_236 = arith.constant 1.000000e+00 : f32
    %1258 = vector.broadcast %cst_236 : f32 to vector<8x128xf32>
    %1259 = arith.addf %1258, %1257 : vector<8x128xf32>
    %1260 = arith.divf %1258, %1259 : vector<8x128xf32>
    %1261 = vector.extract_strided_slice %1260 {offsets = [0, 0], sizes = [8, 32], strides = [1, 1]} : vector<8x128xf32> to vector<8x32xf32>
    %1262 = vector.extract_strided_slice %1260 {offsets = [0, 32], sizes = [8, 32], strides = [1, 1]} : vector<8x128xf32> to vector<8x32xf32>
    %1263 = vector.extract_strided_slice %1260 {offsets = [0, 64], sizes = [8, 32], strides = [1, 1]} : vector<8x128xf32> to vector<8x32xf32>
    %cst_237 = arith.constant 2.000000e+00 : f32
    %1264 = vector.broadcast %cst_237 : f32 to vector<8x32xf32>
    %1265 = arith.mulf %1264, %1263 : vector<8x32xf32>
    %cst_238 = arith.constant 1.000000e+00 : f32
    %1266 = vector.broadcast %cst_238 : f32 to vector<8x32xf32>
    %1267 = arith.subf %1265, %1266 : vector<8x32xf32>
    %1268 = vector.extract_strided_slice %1260 {offsets = [0, 96], sizes = [8, 32], strides = [1, 1]} : vector<8x128xf32> to vector<8x32xf32>
    %1269 = arith.mulf %1262, %1243 : vector<8x32xf32>
    %1270 = arith.mulf %1261, %1267 : vector<8x32xf32>
    %1271 = arith.addf %1269, %1270 : vector<8x32xf32>
    %1272 = math.tanh %1271 : vector<8x32xf32>
    %1273 = arith.mulf %1268, %1272 : vector<8x32xf32>
    %cst_239 = arith.constant dense<0.000000e+00> : vector<8x128xf32>
    %1274 = tpu.matmul %1273, %1046, %cst_239 {dimension_numbers = #tpu.dot_dimension_numbers<[1], [0], [0], [1], [0, 0, 1, 1], [], []>} : vector<8x32xf32>, vector<32x128xf32>, vector<8x128xf32> -> vector<8x128xf32>
    %1275 = vector.broadcast %1047 : vector<1x128xf32> to vector<8x128xf32>
    %1276 = arith.addf %1274, %1275 : vector<8x128xf32>
    %cst_240 = arith.constant 0.000000e+00 : f32
    %1277 = vector.broadcast %cst_240 : f32 to vector<8x128xf32>
    %1278 = arith.maximumf %1276, %1277 : vector<8x128xf32>
    %1279 = tpu.concatenate %1278, %1250, %1222, %1194, %1166, %1138, %1110, %1082 in 1 : vector<8x128xf32>, vector<8x128xf32>, vector<8x128xf32>, vector<8x128xf32>, vector<8x128xf32>, vector<8x128xf32>, vector<8x128xf32>, vector<8x128xf32> -> vector<8x1024xf32>
    %c0_241 = arith.constant 0 : index
    %c0_242 = arith.constant 0 : index
    %1280 = vector.load %arg12[%c0_241, %c0_242] : memref<8x1024xf32, #tpu.memory_space<vmem>>, vector<8x1024xf32>
    tpu.vector_store %arg12[%c0_241, %c0_242], %1279 {strides = array<i32>} : memref<8x1024xf32, #tpu.memory_space<vmem>>, vector<8x1024xf32>,
    return
  }
}

</mosaic_0001>

<llo_original>
// kernel: curve_trace_forward.1
$region0: #{curve_trace_forward.1}
  #allocation0 [shape = 'u32[]', space=smem, size = 0x4, offset = 0x4, fixed_abs, tag = 'smem constant byte address 0x4 - core index']
  #allocation1 [shape = 'u32[144,128]{1,0:T(1,128)}', space=vmem, size = 0x12000, scoped, tag = 'internal scratch']
  %s0 = inlined_call_operand.vmem [shape: f32[64,4], index: 0, kind: input, shape index: {}]
  %s1 = inlined_call_operand.vmem [shape: f32[4,256], index: 1, kind: input, shape index: {}]
  %s2 = inlined_call_operand.vmem [shape: f32[64,256], index: 2, kind: input, shape index: {}]
  %s3 = inlined_call_operand.vmem [shape: f32[1,256], index: 3, kind: input, shape index: {}]
  %s4 = inlined_call_operand.hbm [shape: f32[3,64,256], index: 4, kind: input, shape index: {}]
  %s5 = inlined_call_operand.hbm [shape: f32[3,64,256], index: 5, kind: input, shape index: {}]
  %s6 = inlined_call_operand.hbm [shape: f32[3,1,256], index: 6, kind: input, shape index: {}]
  %s7 = inlined_call_operand.hbm [shape: f32[64,128], index: 7, kind: input, shape index: {}]
  %s8 = inlined_call_operand.hbm [shape: f32[32,128], index: 8, kind: input, shape index: {}]
  %s9 = inlined_call_operand.hbm [shape: f32[1,128], index: 9, kind: input, shape index: {}]
  %s10 = inlined_call_operand.hbm [shape: f32[32,128], index: 10, kind: input, shape index: {}]
  %s11 = inlined_call_operand.hbm [shape: f32[1,128], index: 11, kind: input, shape index: {}]
  %s12 = inlined_call_operand.vmem [shape: f32[8,1024], index: 12, kind: output, shape index: {}]
  %s13 = sld [smem:[#allocation0]]
  $region90: #{curve_trace_forward.1} parent=0
    _
  %s15 = ssub.s32 1, %s13
  %s16 = scalar_select 0, %s15, %s13
  $region1: #{curve_trace_forward.1} parent=0
    #allocation2 [shape = 'u8[196608]{0}', space=vmem, size = 0x30000, scoped, tag = 'input window, operand 4, single buffered']
    #allocation3 [shape = 's32[1]{0}', space=sflag, size = 0x4, scoped, tag = 'scoped memory for curve_trace_forward.1']
    #allocation4 [shape = 'u8[196608]{0}', space=vmem, size = 0x30000, scoped, tag = 'input window, operand 5, single buffered']
    #allocation5 [shape = 's32[1]{0}', space=sflag, size = 0x4, scoped, tag = 'scoped memory for curve_trace_forward.1']
    #allocation6 [shape = 'u8[3072]{0}', space=vmem, size = 0xc00, scoped, tag = 'input window, operand 6, single buffered']
    #allocation7 [shape = 'u8[32768]{0}', space=vmem, size = 0x8000, scoped, tag = 'input window, operand 7, single buffered']
    #allocation8 [shape = 's32[1]{0}', space=sflag, size = 0x4, scoped, tag = 'scoped memory for curve_trace_forward.1']
    #allocation9 [shape = 'u8[16384]{0}', space=vmem, size = 0x4000, scoped, tag = 'input window, operand 8, single buffered']
    #allocation10 [shape = 'u8[512]{0}', space=vmem, size = 0x400, scoped, tag = 'input window, operand 9, single buffered']
    #allocation11 [shape = 's32[1]{0}', space=sflag, size = 0x4, scoped, tag = 'scoped memory for curve_trace_forward.1']
    #allocation12 [shape = 'u8[16384]{0}', space=vmem, size = 0x4000, scoped, tag = 'input window, operand 10, single buffered']
    #allocation13 [shape = 'u8[512]{0}', space=vmem, size = 0x400, scoped, tag = 'input window, operand 11, single buffered']
    #allocation14 [shape = 's32[1]{0}', space=sflag, size = 0x4, scoped, tag = 'scoped memory for curve_trace_forward.1']
    %17 = vsyncpa [#allocation3], 0
    %18 = vsyncpa [#allocation5], 0
    %19 = vsyncpa [#allocation8], 0
    %20 = vsyncpa [#allocation11], 0
    %21 = vsyncpa [#allocation14], 0
    // Predicated region
    $region2: #{curve_trace_forward.1} parent=1 // pred_check
      _
    $region3: #{curve_trace_forward.1} parent=1 // pred_check_branch
      %23 = sbr.rel (0) target = $region5
    $region4: #{curve_trace_forward.1} parent=1 // pred_region
      _
    $region5: #{curve_trace_forward.1} parent=1 // pred_fallthru
      _
    // Predicated region
    $region6: #{curve_trace_forward.1} parent=1 // pred_check
      _
    $region7: #{curve_trace_forward.1} parent=1 // pred_check_branch
      %25 = sbr.rel (0) target = $region9
    $region8: #{curve_trace_forward.1} parent=1 // pred_region
      _
    $region9: #{curve_trace_forward.1} parent=1 // pred_fallthru
      _
    // Predicated region
    $region10: #{curve_trace_forward.1} parent=1 // pred_check
      _
    $region11: #{curve_trace_forward.1} parent=1 // pred_check_branch
      %27 = sbr.rel (0) target = $region13
    $region12: #{curve_trace_forward.1} parent=1 // pred_region
      _
    $region13: #{curve_trace_forward.1} parent=1 // pred_fallthru
      _
    // Predicated region
    $region14: #{curve_trace_forward.1} parent=1 // pred_check
      _
    $region15: #{curve_trace_forward.1} parent=1 // pred_check_branch
      %29 = sbr.rel (0) target = $region17
    $region16: #{curve_trace_forward.1} parent=1 // pred_region
      _
    $region17: #{curve_trace_forward.1} parent=1 // pred_fallthru
      _
    // Predicated region
    $region18: #{curve_trace_forward.1} parent=1 // pred_check
      _
    $region19: #{curve_trace_forward.1} parent=1 // pred_check_branch
      %31 = sbr.rel (0) target = $region21
    $region20: #{curve_trace_forward.1} parent=1 // pred_region
      %s33 = ssub.s32 6144, 6144
      %34 = vsyncadd [#allocation3], %s33
      %s35 = sshll.u32 [#allocation2], 4
      %s36 = int_to_ptr.vmem [resolvable:$true] %s35
      %41 = dma.hbm_to_vmem [thread:$0]  %s4, 6144, %s36, [#allocation3], 256, 256, 16
    $region21: #{curve_trace_forward.1} parent=1 // pred_fallthru
      _
    // Predicated region
    $region22: #{curve_trace_forward.1} parent=1 // pred_check
      _
    $region23: #{curve_trace_forward.1} parent=1 // pred_check_branch
      %43 = sbr.rel (0) target = $region25
    $region24: #{curve_trace_forward.1} parent=1 // pred_region
      %s45 = ssub.s32 6144, 6144
      %46 = vsyncadd [#allocation5], %s45
      %s47 = sshll.u32 [#allocation4], 4
      %s48 = int_to_ptr.vmem [resolvable:$true] %s47
      %53 = dma.hbm_to_vmem [thread:$0]  %s5, 6144, %s48, [#allocation5], 256, 256, 16
    $region25: #{curve_trace_forward.1} parent=1 // pred_fallthru
      _
    // Predicated region
    $region26: #{curve_trace_forward.1} parent=1 // pred_check
      _
    $region27: #{curve_trace_forward.1} parent=1 // pred_check_branch
      %55 = sbr.rel (0) target = $region29
    $region28: #{curve_trace_forward.1} parent=1 // pred_region
      %s57 = ssub.s32 96, 96
      %58 = vsyncadd [#allocation5], %s57
      %s59 = sshll.u32 [#allocation6], 4
      %s60 = int_to_ptr.vmem [resolvable:$true] %s59
      %65 = dma.hbm_to_vmem [thread:$0]  %s6, 96, %s60, [#allocation5], 32, 32, 2
    $region29: #{curve_trace_forward.1} parent=1 // pred_fallthru
      _
    // Predicated region
    $region30: #{curve_trace_forward.1} parent=1 // pred_check
      _
    $region31: #{curve_trace_forward.1} parent=1 // pred_check_branch
      %67 = sbr.rel (0) target = $region33
    $region32: #{curve_trace_forward.1} parent=1 // pred_region
      %s69 = ssub.s32 1024, 1024
      %70 = vsyncadd [#allocation8], %s69
      %s71 = sshll.u32 [#allocation7], 4
      %s72 = int_to_ptr.vmem [resolvable:$true] %s71
      %77 = dma.hbm_to_vmem [thread:$0]  %s7, 1024, %s72, [#allocation8], 128, 128, 8
    $region33: #{curve_trace_forward.1} parent=1 // pred_fallthru
      _
    // Predicated region
    $region34: #{curve_trace_forward.1} parent=1 // pred_check
      _
    $region35: #{curve_trace_forward.1} parent=1 // pred_check_branch
      %79 = sbr.rel (0) target = $region37
    $region36: #{curve_trace_forward.1} parent=1 // pred_region
      %s81 = ssub.s32 512, 512
      %82 = vsyncadd [#allocation8], %s81
      %s83 = sshll.u32 [#allocation9], 4
      %s84 = int_to_ptr.vmem [resolvable:$true] %s83
      %89 = dma.hbm_to_vmem [thread:$0]  %s8, 512, %s84, [#allocation8], 128, 128, 8
    $region37: #{curve_trace_forward.1} parent=1 // pred_fallthru
      _
    // Predicated region
    $region38: #{curve_trace_forward.1} parent=1 // pred_check
      _
    $region39: #{curve_trace_forward.1} parent=1 // pred_check_branch
      %91 = sbr.rel (0) target = $region41
    $region40: #{curve_trace_forward.1} parent=1 // pred_region
      %s93 = ssub.s32 16, 16
      %94 = vsyncadd [#allocation11], %s93
      %s96 = sshll.u32 [#allocation10], 4
      %s97 = int_to_ptr.vmem [resolvable:$true] %s96
      %99 = dma.hbm_to_vmem [thread:$0]  %s9, 16, %s97, [#allocation11]
    $region41: #{curve_trace_forward.1} parent=1 // pred_fallthru
      _
    // Predicated region
    $region42: #{curve_trace_forward.1} parent=1 // pred_check
      _
    $region43: #{curve_trace_forward.1} parent=1 // pred_check_branch
      %101 = sbr.rel (0) target = $region45
    $region44: #{curve_trace_forward.1} parent=1 // pred_region
      %s103 = ssub.s32 512, 512
      %104 = vsyncadd [#allocation11], %s103
      %s105 = sshll.u32 [#allocation12], 4
      %s106 = int_to_ptr.vmem [resolvable:$true] %s105
      %111 = dma.hbm_to_vmem [thread:$0]  %s10, 512, %s106, [#allocation11], 128, 128, 8
    $region45: #{curve_trace_forward.1} parent=1 // pred_fallthru
      _
    // Predicated region
    $region46: #{curve_trace_forward.1} parent=1 // pred_check
      _
    $region47: #{curve_trace_forward.1} parent=1 // pred_check_branch
      %113 = sbr.rel (0) target = $region49
    $region48: #{curve_trace_forward.1} parent=1 // pred_region
      %s115 = ssub.s32 16, 16
      %116 = vsyncadd [#allocation14], %s115
      %s118 = sshll.u32 [#allocation13], 4
      %s119 = int_to_ptr.vmem [resolvable:$true] %s118
      %121 = dma.hbm_to_vmem [thread:$0]  %s11, 16, %s119, [#allocation14]
    $region49: #{curve_trace_forward.1} parent=1 // pred_fallthru
      _
    // Predicated region
    $region50: #{curve_trace_forward.1} parent=1 // pred_check
      _
    $region51: #{curve_trace_forward.1} parent=1 // pred_check_branch
      %123 = sbr.rel (0) target = $region53
    $region52: #{curve_trace_forward.1} parent=1 // pred_region
      %124 = dma.done [#allocation3], 6144
    $region53: #{curve_trace_forward.1} parent=1 // pred_fallthru
      _
    // Predicated region
    $region54: #{curve_trace_forward.1} parent=1 // pred_check
      _
    $region55: #{curve_trace_forward.1} parent=1 // pred_check_branch
      %126 = sbr.rel (0) target = $region57
    $region56: #{curve_trace_forward.1} parent=1 // pred_region
      %127 = dma.done [#allocation5], 6144
    $region57: #{curve_trace_forward.1} parent=1 // pred_fallthru
      _
    // Predicated region
    $region58: #{curve_trace_forward.1} parent=1 // pred_check
      _
    $region59: #{curve_trace_forward.1} parent=1 // pred_check_branch
      %129 = sbr.rel (0) target = $region61
    $region60: #{curve_trace_forward.1} parent=1 // pred_region
      %130 = dma.done [#allocation5], 96
    $region61: #{curve_trace_forward.1} parent=1 // pred_fallthru
      _
    // Predicated region
    $region62: #{curve_trace_forward.1} parent=1 // pred_check
      _
    $region63: #{curve_trace_forward.1} parent=1 // pred_check_branch
      %132 = sbr.rel (0) target = $region65
    $region64: #{curve_trace_forward.1} parent=1 // pred_region
      %133 = dma.done [#allocation8], 1024
    $region65: #{curve_trace_forward.1} parent=1 // pred_fallthru
      _
    // Predicated region
    $region66: #{curve_trace_forward.1} parent=1 // pred_check
      _
    $region67: #{curve_trace_forward.1} parent=1 // pred_check_branch
      %135 = sbr.rel (0) target = $region69
    $region68: #{curve_trace_forward.1} parent=1 // pred_region
      %136 = dma.done [#allocation8], 512
    $region69: #{curve_trace_forward.1} parent=1 // pred_fallthru
      _
    // Predicated region
    $region70: #{curve_trace_forward.1} parent=1 // pred_check
      _
    $region71: #{curve_trace_forward.1} parent=1 // pred_check_branch
      %138 = sbr.rel (0) target = $region73
    $region72: #{curve_trace_forward.1} parent=1 // pred_region
      %139 = dma.done [#allocation11], 16
    $region73: #{curve_trace_forward.1} parent=1 // pred_fallthru
      _
    // Predicated region
    $region74: #{curve_trace_forward.1} parent=1 // pred_check
      _
    $region75: #{curve_trace_forward.1} parent=1 // pred_check_branch
      %141 = sbr.rel (0) target = $region77
    $region76: #{curve_trace_forward.1} parent=1 // pred_region
      %142 = dma.done [#allocation11], 512
    $region77: #{curve_trace_forward.1} parent=1 // pred_fallthru
      _
    // Predicated region
    $region78: #{curve_trace_forward.1} parent=1 // pred_check
      _
    $region79: #{curve_trace_forward.1} parent=1 // pred_check_branch
      %144 = sbr.rel (0) target = $region81
    $region80: #{curve_trace_forward.1} parent=1 // pred_region
      %145 = dma.done [#allocation14], 16
    $region81: #{curve_trace_forward.1} parent=1 // pred_fallthru
      _
    %v146 = vlaneseq
    %v147 = vand.u32 %v146, 127
    %v148 = vadd.s32 %v147, 128
    %vm149 = vcmp.lt.s32.totalorder %v147, 0
    %v150 = vsub.s32 0, %v147
    %v151 = vsel %vm149, %v150, %v147
    %v152 = vshrl.u32 %v151, 6
    %v153 = vand.u32 %v151, 63
    %v154 = vsub.s32 0, %v153
    %v155 = vsel %vm149, %v154, %v153
    %vm156 = vcmp.lt.s32.totalorder %v148, 0
    %v157 = vsub.s32 0, %v148
    %v158 = vsel %vm156, %v157, %v148
    %v159 = vshrl.u32 %v158, 6
    %v160 = vand.u32 %v158, 63
    %v161 = vsub.s32 0, %v160
    %v162 = vsel %vm156, %v161, %v160
    %vm163 = vcmp.ne.s32.totalorder %v155, 0
    %vm164 = vcmp.ne.s32.totalorder %v162, 0
    %vm165 = vcmp.lt.s32.totalorder %v155, 0
    %vm166 = vcmp.lt.s32.totalorder %v162, 0
    %vm167 = vmand %vm165, %vm163
    %vm168 = vmand %vm166, %vm164
    %v169 = vadd.s32 %v155, 64
    %v170 = vadd.s32 %v162, 64
    %v171 = vsel %vm167, %v169, %v155
    %v172 = vsel %vm168, %v170, %v162
    %vm173 = vcmp.lt.s32.totalorder %v171, 32
    %vm174 = vcmp.lt.s32.totalorder %v172, 32
    %vm175 = vcmp.ge.s32.totalorder %v147, 128
    %vm176 = vcmp.ge.s32.totalorder %v148, 128
    %vm177 = vcmp.lt.s32.totalorder %v147, 192
    %vm178 = vcmp.lt.s32.totalorder %v148, 192
    %vm179 = vmand %vm175, %vm177
    %vm180 = vmand %vm176, %vm178
    %v181 = vsel %vm179, 2.0, 1.0
    %v182 = vsel %vm180, 2.0, 1.0
    %vm183 = vcmp.ge.s32.totalorder %v147, 64
    %vm184 = vcmp.lt.s32.totalorder %v147, 96
    %vm185 = vmand %vm183, %vm184
    %v186 = vsel %vm185, 2.0, 1.0
    %vm187 = vcmp.lt.s32.totalorder %v147, 32
    %v188 = vld [vmem:[%s0] sm:$0xff]
    %v189 = vld [vmem:[%s0 + $0x8] sm:$0xff]
    %v190 = vld [vmem:[%s0 + $0x10] sm:$0xff]
    %v191 = vld [vmem:[%s0 + $0x18] sm:$0xff]
    %v192 = vld [vmem:[%s0 + $0x20] sm:$0xff]
    %v193 = vld [vmem:[%s0 + $0x28] sm:$0xff]
    %v194 = vld [vmem:[%s0 + $0x30] sm:$0xff]
    %v195 = vld [vmem:[%s0 + $0x38] sm:$0xff]
    %v196 = vld [vmem:[%s1] sm:$0xff]
    %v197 = vld [vmem:[%s2] sm:$0xff]
    %v198 = vld [vmem:[%s2 + $0x8] sm:$0xff]
    %v199 = vld [vmem:[%s2 + $0x10] sm:$0xff]
    %v200 = vld [vmem:[%s2 + $0x18] sm:$0xff]
    %v201 = vld [vmem:[%s2 + $0x20] sm:$0xff]
    %v202 = vld [vmem:[%s2 + $0x28] sm:$0xff]
    %v203 = vld [vmem:[%s2 + $0x30] sm:$0xff]
    %v204 = vld [vmem:[%s2 + $0x38] sm:$0xff]
    %v205 = vld [vmem:[%s2 + $0x40] sm:$0xff]
    %v206 = vld [vmem:[%s2 + $0x48] sm:$0xff]
    %v207 = vld [vmem:[%s2 + $0x50] sm:$0xff]
    %v208 = vld [vmem:[%s2 + $0x58] sm:$0xff]
    %v209 = vld [vmem:[%s2 + $0x60] sm:$0xff]
    %v210 = vld [vmem:[%s2 + $0x68] sm:$0xff]
    %v211 = vld [vmem:[%s2 + $0x70] sm:$0xff]
    %v212 = vld [vmem:[%s2 + $0x78] sm:$0xff]
    %v213 = vld [vmem:[%s3] sm:$0x3]
    %v215 = vlaneseq
    %v216 = vshrl.u32 %v215, 7
    %v217 = vsub.s32 0, %v216
    %v218 = vrot.slane %v213, %v217
    %v219 = vlaneseq
    %v220 = vshrl.u32 %v219, 7
    %v221 = vsub.s32 1, %v220
    %v222 = vrot.slane %v213, %v221
    %v226 = vcombine.high %v196, %v196
    %vm227 = vcmask 31744
    %v229 = vsel %vm227, %v188, 0
    %v232 = vsel %vm227, %v189, 0
    %v235 = vsel %vm227, %v190, 0
    %v238 = vsel %vm227, %v191, 0
    %v241 = vsel %vm227, %v192, 0
    %v244 = vsel %vm227, %v193, 0
    %v247 = vsel %vm227, %v194, 0
    %v250 = vsel %vm227, %v195, 0
    %vm252 = vcmask 1043456
    %v253 = vsel %vm252, %v196, 0
    %v255 = vsel %vm252, %v226, 0
    %257 = vmatprep.subr.mxu0 %v255
    %258 = vmatpush1.msra.mxu0 %v253
    %259 = vmatprep.subr.mxu0 0.0
    %260 = vmatpush1.msra.mxu0 0.0
    %261 = vmatprep.subr.mxu0 0.0
    %262 = vmatpush1.msra.mxu0 0.0
    %263 = vmatprep.subr.mxu0 0.0
    %264 = vmatpush1.msra.mxu0 0.0
    %265 = vmatprep.subr.mxu0 0.0
    %266 = vmatpush1.msra.mxu0 0.0
    %267 = vmatprep.subr.mxu0 0.0
    %268 = vmatpush1.msra.mxu0 0.0
    %269 = vmatprep.subr.mxu0 0.0
    %270 = vmatpush1.msra.mxu0 0.0
    %271 = vmatprep.subr.mxu0 0.0
    %272 = vmatpush1.msra.mxu0 0.0
    %273 = vmatprep.subr.mxu0 0.0
    %274 = vmatpush1.msra.mxu0 0.0
    %275 = vmatprep.subr.mxu0 0.0
    %276 = vmatpush1.msra.mxu0 0.0
    %277 = vmatprep.subr.mxu0 0.0
    %278 = vmatpush1.msra.mxu0 0.0
    %279 = vmatprep.subr.mxu0 0.0
    %280 = vmatpush1.msra.mxu0 0.0
    %281 = vmatprep.subr.mxu0 0.0
    %282 = vmatpush1.msra.mxu0 0.0
    %283 = vmatprep.subr.mxu0 0.0
    %284 = vmatpush1.msra.mxu0 0.0
    %285 = vmatprep.subr.mxu0 0.0
    %286 = vmatpush1.msra.mxu0 0.0
    %287 = vmatprep.subr.mxu0 0.0
    %288 = vmatpush1.msra.mxu0 0.0
    %289 = vmatprep.subr.mxu0 0.0
    %290 = vmatpush1.msra.mxu0 0.0
    %291 = vmatprep.subr.mxu0 0.0
    %292 = vmatpush1.msra.mxu0 0.0
    %293 = vmatprep.subr.mxu0 0.0
    %294 = vmatpush1.msra.mxu0 0.0
    %295 = vmatprep.subr.mxu0 0.0
    %296 = vmatpush1.msra.mxu0 0.0
    %297 = vmatprep.subr.mxu0 0.0
    %298 = vmatpush1.msra.mxu0 0.0
    %299 = vmatprep.subr.mxu0 0.0
    %300 = vmatpush1.msra.mxu0 0.0
    %301 = vmatprep.subr.mxu0 0.0
    %302 = vmatpush1.msra.mxu0 0.0
    %303 = vmatprep.subr.mxu0 0.0
    %304 = vmatpush1.msra.mxu0 0.0
    %305 = vmatprep.subr.mxu0 0.0
    %306 = vmatpush1.msra.mxu0 0.0
    %307 = vmatprep.subr.mxu0 0.0
    %308 = vmatpush1.msra.mxu0 0.0
    %309 = vmatprep.subr.mxu0 0.0
    %310 = vmatpush1.msra.mxu0 0.0
    %311 = vmatprep.subr.mxu0 0.0
    %312 = vmatpush1.msra.mxu0 0.0
    %313 = vmatprep.subr.mxu0 0.0
    %314 = vmatpush1.msra.mxu0 0.0
    %315 = vmatprep.subr.mxu0 0.0
    %316 = vmatpush1.msra.mxu0 0.0
    %317 = vmatprep.subr.mxu0 0.0
    %318 = vmatpush1.msra.mxu0 0.0
    %319 = vmatprep.subr.mxu0 0.0
    %320 = vmatpush1.msra.mxu0 0.0
    %321 = vmatprep.mubr.f32.mxu0 0.0
    %322 = vmatmul.mubr.f32.gmra.mrb[0].mxu0 %v229
    %v323 = vpop.f32.mrb[0].mxu0
    %v324 = vadd.f32 %v218, %v323
    %v325 = vpop.f32.mrb[0].mxu0
    %v326 = vadd.f32 %v222, %v325
    %327 = vmatprep.mubr.f32.mxu0 0.0
    %328 = vmatmul.mubr.f32.gmra.mrb[0].mxu0 %v232
    %v329 = vpop.f32.mrb[0].mxu0
    %v330 = vadd.f32 %v218, %v329
    %v331 = vpop.f32.mrb[0].mxu0
    %v332 = vadd.f32 %v222, %v331
    %333 = vmatprep.mubr.f32.mxu0 0.0
    %334 = vmatmul.mubr.f32.gmra.mrb[0].mxu0 %v235
    %v335 = vpop.f32.mrb[0].mxu0
    %v336 = vadd.f32 %v218, %v335
    %v337 = vpop.f32.mrb[0].mxu0
    %v338 = vadd.f32 %v222, %v337
    %339 = vmatprep.mubr.f32.mxu0 0.0
    %340 = vmatmul.mubr.f32.gmra.mrb[0].mxu0 %v238
    %v341 = vpop.f32.mrb[0].mxu0
    %v342 = vadd.f32 %v218, %v341
    %v343 = vpop.f32.mrb[0].mxu0
    %v344 = vadd.f32 %v222, %v343
    %345 = vmatprep.mubr.f32.mxu0 0.0
    %346 = vmatmul.mubr.f32.gmra.mrb[0].mxu0 %v241
    %v347 = vpop.f32.mrb[0].mxu0
    %v348 = vadd.f32 %v218, %v347
    %v349 = vpop.f32.mrb[0].mxu0
    %v350 = vadd.f32 %v222, %v349
    %351 = vmatprep.mubr.f32.mxu0 0.0
    %352 = vmatmul.mubr.f32.gmra.mrb[0].mxu0 %v244
    %v353 = vpop.f32.mrb[0].mxu0
    %v354 = vadd.f32 %v218, %v353
    %v355 = vpop.f32.mrb[0].mxu0
    %v356 = vadd.f32 %v222, %v355
    %357 = vmatprep.mubr.f32.mxu0 0.0
    %358 = vmatmul.mubr.f32.gmra.mrb[0].mxu0 %v247
    %v359 = vpop.f32.mrb[0].mxu0
    %v360 = vadd.f32 %v218, %v359
    %v361 = vpop.f32.mrb[0].mxu0
    %v362 = vadd.f32 %v222, %v361
    %363 = vmatprep.mubr.f32.mxu0 0.0
    %364 = vmatmul.mubr.f32.gmra.mrb[0].mxu0 %v250
    %v365 = vpop.f32.mrb[0].mxu0
    %v366 = vadd.f32 %v218, %v365
    %v367 = vpop.f32.mrb[0].mxu0
    %v368 = vadd.f32 %v222, %v367
    %369 = vdwg.mxu0
    %v370 = vsel %vm173, 1, 0
    %v371 = vsel %vm174, 1, 0
    %vm372 = vcmp.eq.s32.totalorder %v370, 1
    %vm373 = vcmp.eq.s32.totalorder %v371, 1
    %v374 = vsel %vm372, %v324, %v366
    %v375 = vsel %vm373, %v326, %v368
    %vm376 = vcmask 523264
    %v378 = vsel %vm376, 0.0, 0
    %380 = vmatprep.subr.mxu0 %v198
    %381 = vmatpush1.msra.mxu0 %v197
    %382 = vmatprep.subr.mxu0 %v200
    %383 = vmatpush1.msra.mxu0 %v199
    %384 = vmatprep.subr.mxu0 %v202
    %385 = vmatpush1.msra.mxu0 %v201
    %386 = vmatprep.subr.mxu0 %v204
    %387 = vmatpush1.msra.mxu0 %v203
    %388 = vmatprep.subr.mxu0 %v206
    %389 = vmatpush1.msra.mxu0 %v205
    %390 = vmatprep.subr.mxu0 %v208
    %391 = vmatpush1.msra.mxu0 %v207
    %392 = vmatprep.subr.mxu0 %v210
    %393 = vmatpush1.msra.mxu0 %v209
    %394 = vmatprep.subr.mxu0 %v212
    %395 = vmatpush1.msra.mxu0 %v211
    %396 = vmatprep.subr.mxu0 0.0
    %397 = vmatpush1.msra.mxu0 0.0
    %398 = vmatprep.subr.mxu0 0.0
    %399 = vmatpush1.msra.mxu0 0.0
    %400 = vmatprep.subr.mxu0 0.0
    %401 = vmatpush1.msra.mxu0 0.0
    %402 = vmatprep.subr.mxu0 0.0
    %403 = vmatpush1.msra.mxu0 0.0
    %404 = vmatprep.subr.mxu0 0.0
    %405 = vmatpush1.msra.mxu0 0.0
    %406 = vmatprep.subr.mxu0 0.0
    %407 = vmatpush1.msra.mxu0 0.0
    %408 = vmatprep.subr.mxu0 0.0
    %409 = vmatpush1.msra.mxu0 0.0
    %410 = vmatprep.subr.mxu0 0.0
    %411 = vmatpush1.msra.mxu0 0.0
    %412 = vmatprep.subr.mxu0 0.0
    %413 = vmatpush1.msra.mxu0 0.0
    %414 = vmatprep.subr.mxu0 0.0
    %415 = vmatpush1.msra.mxu0 0.0
    %416 = vmatprep.subr.mxu0 0.0
    %417 = vmatpush1.msra.mxu0 0.0
    %418 = vmatprep.subr.mxu0 0.0
    %419 = vmatpush1.msra.mxu0 0.0
    %420 = vmatprep.subr.mxu0 0.0
    %421 = vmatpush1.msra.mxu0 0.0
    %422 = vmatprep.subr.mxu0 0.0
    %423 = vmatpush1.msra.mxu0 0.0
    %424 = vmatprep.subr.mxu0 0.0
    %425 = vmatpush1.msra.mxu0 0.0
    %426 = vmatprep.subr.mxu0 0.0
    %427 = vmatpush1.msra.mxu0 0.0
    %428 = vmatprep.subr.mxu0 0.0
    %429 = vmatpush1.msra.mxu0 0.0
    %430 = vmatprep.subr.mxu0 0.0
    %431 = vmatpush1.msra.mxu0 0.0
    %432 = vmatprep.subr.mxu0 0.0
    %433 = vmatpush1.msra.mxu0 0.0
    %434 = vmatprep.subr.mxu0 0.0
    %435 = vmatpush1.msra.mxu0 0.0
    %436 = vmatprep.subr.mxu0 0.0
    %437 = vmatpush1.msra.mxu0 0.0
    %438 = vmatprep.subr.mxu0 0.0
    %439 = vmatpush1.msra.mxu0 0.0
    %440 = vmatprep.subr.mxu0 0.0
    %441 = vmatpush1.msra.mxu0 0.0
    %442 = vmatprep.subr.mxu0 0.0
    %443 = vmatpush1.msra.mxu0 0.0
    %444 = vmatprep.mubr.f32.mxu0 0.0
    %445 = vmatmul.mubr.f32.gmra.mrb[0].mxu0 %v378
    %v446 = vpop.f32.mrb[0].mxu0
    %v447 = vadd.f32 0.0, %v446
    %v448 = vpop.f32.mrb[0].mxu0
    %v449 = vadd.f32 0.0, %v448
    %450 = vdwg.mxu0
    %v451 = vadd.f32 %v374, %v447
    %v452 = vadd.f32 %v375, %v449
    %v453 = vmul.f32 %v451, %v181
    %v454 = vmul.f32 %v452, %v182
    %v455 = vxor.u32 %v453, 2147483648
    %v456 = vxor.u32 %v454, 2147483648
    %v457 = vmul.f32 %v455, 1.442695
    %v458 = vpow.pop %v457
    %v459 = vmul.f32 %v456, 1.442695
    %v460 = vpow.pop %v459
    %v461 = vadd.f32 %v458, 1.0
    %v462 = vadd.f32 %v460, 1.0
    %v463 = vrcp.pop %v461
    %v464 = vmul.f32 1.0, %v463
    %v465 = vrcp.pop %v462
    %v466 = vmul.f32 1.0, %v465
    %v467 = vmul.f32 %v466, 2.0
    %v468 = vsub.f32 %v467, 1.0
    %v469 = vmul.f32 %v464, 0.0
    %v470 = vmul.f32 %v464, %v468
    %472 = vrot.lane.b32.xlu0 %v470, 64
    %v473 = vpop.permute.xlu0 %472
    %v475 = vadd.f32 %v469, %v473
    %v476 = vtanh.pop %v475
    %v477 = vmul.f32 %v466, %v476
    %v478 = vsel %vm372, %v330, %v360
    %v479 = vsel %vm373, %v332, %v362
    %481 = vrot.lane.b32.xlu0 %v477, 64
    %v482 = vpop.permute.xlu0 %481
    %v483 = vsel %vm376, %v482, 0
    %485 = vmatprep.subr.mxu0 %v198
    %486 = vmatpush1.msra.mxu0 %v197
    %487 = vmatprep.subr.mxu0 %v200
    %488 = vmatpush1.msra.mxu0 %v199
    %489 = vmatprep.subr.mxu0 %v202
    %490 = vmatpush1.msra.mxu0 %v201
    %491 = vmatprep.subr.mxu0 %v204
    %492 = vmatpush1.msra.mxu0 %v203
    %493 = vmatprep.subr.mxu0 %v206
    %494 = vmatpush1.msra.mxu0 %v205
    %495 = vmatprep.subr.mxu0 %v208
    %496 = vmatpush1.msra.mxu0 %v207
    %497 = vmatprep.subr.mxu0 %v210
    %498 = vmatpush1.msra.mxu0 %v209
    %499 = vmatprep.subr.mxu0 %v212
    %500 = vmatpush1.msra.mxu0 %v211
    %501 = vmatprep.subr.mxu0 0.0
    %502 = vmatpush1.msra.mxu0 0.0
    %503 = vmatprep.subr.mxu0 0.0
    %504 = vmatpush1.msra.mxu0 0.0
    %505 = vmatprep.subr.mxu0 0.0
    %506 = vmatpush1.msra.mxu0 0.0
    %507 = vmatprep.subr.mxu0 0.0
    %508 = vmatpush1.msra.mxu0 0.0
    %509 = vmatprep.subr.mxu0 0.0
    %510 = vmatpush1.msra.mxu0 0.0
    %511 = vmatprep.subr.mxu0 0.0
    %512 = vmatpush1.msra.mxu0 0.0
    %513 = vmatprep.subr.mxu0 0.0
    %514 = vmatpush1.msra.mxu0 0.0
    %515 = vmatprep.subr.mxu0 0.0
    %516 = vmatpush1.msra.mxu0 0.0
    %517 = vmatprep.subr.mxu0 0.0
    %518 = vmatpush1.msra.mxu0 0.0
    %519 = vmatprep.subr.mxu0 0.0
    %520 = vmatpush1.msra.mxu0 0.0
    %521 = vmatprep.subr.mxu0 0.0
    %522 = vmatpush1.msra.mxu0 0.0
    %523 = vmatprep.subr.mxu0 0.0
    %524 = vmatpush1.msra.mxu0 0.0
    %525 = vmatprep.subr.mxu0 0.0
    %526 = vmatpush1.msra.mxu0 0.0
    %527 = vmatprep.subr.mxu0 0.0
    %528 = vmatpush1.msra.mxu0 0.0
    %529 = vmatprep.subr.mxu0 0.0
    %530 = vmatpush1.msra.mxu0 0.0
    %531 = vmatprep.subr.mxu0 0.0
    %532 = vmatpush1.msra.mxu0 0.0
    %533 = vmatprep.subr.mxu0 0.0
    %534 = vmatpush1.msra.mxu0 0.0
    %535 = vmatprep.subr.mxu0 0.0
    %536 = vmatpush1.msra.mxu0 0.0
    %537 = vmatprep.subr.mxu0 0.0
    %538 = vmatpush1.msra.mxu0 0.0
    %539 = vmatprep.subr.mxu0 0.0
    %540 = vmatpush1.msra.mxu0 0.0
    %541 = vmatprep.subr.mxu0 0.0
    %542 = vmatpush1.msra.mxu0 0.0
    %543 = vmatprep.subr.mxu0 0.0
    %544 = vmatpush1.msra.mxu0 0.0
    %545 = vmatprep.subr.mxu0 0.0
    %546 = vmatpush1.msra.mxu0 0.0
    %547 = vmatprep.subr.mxu0 0.0
    %548 = vmatpush1.msra.mxu0 0.0
    %549 = vmatprep.mubr.f32.mxu0 0.0
    %550 = vmatmul.mubr.f32.gmra.mrb[0].mxu0 %v483
    %v551 = vpop.f32.mrb[0].mxu0
    %v552 = vadd.f32 0.0, %v551
    %v553 = vpop.f32.mrb[0].mxu0
    %v554 = vadd.f32 0.0, %v553
    %555 = vdwg.mxu0
    %v556 = vadd.f32 %v478, %v552
    %v557 = vadd.f32 %v479, %v554
    %v558 = vmul.f32 %v556, %v181
    %v559 = vmul.f32 %v557, %v182
    %v560 = vxor.u32 %v558, 2147483648
    %v561 = vxor.u32 %v559, 2147483648
    %v562 = vmul.f32 %v560, 1.442695
    %v563 = vpow.pop %v562
    %v564 = vmul.f32 %v561, 1.442695
    %v565 = vpow.pop %v564
    %v566 = vadd.f32 %v563, 1.0
    %v567 = vadd.f32 %v565, 1.0
    %v568 = vrcp.pop %v566
    %v569 = vmul.f32 1.0, %v568
    %v570 = vrcp.pop %v567
    %v571 = vmul.f32 1.0, %v570
    %v572 = vmul.f32 %v571, 2.0
    %v573 = vsub.f32 %v572, 1.0
    %v574 = vmul.f32 %v569, %v475
    %v575 = vmul.f32 %v569, %v573
    %577 = vrot.lane.b32.xlu0 %v575, 64
    %v578 = vpop.permute.xlu0 %577
    %v580 = vadd.f32 %v574, %v578
    %v581 = vtanh.pop %v580
    %v582 = vmul.f32 %v571, %v581
    %v583 = vsel %vm372, %v336, %v354
    %v584 = vsel %vm373, %v338, %v356
    %586 = vrot.lane.b32.xlu0 %v582, 64
    %v587 = vpop.permute.xlu0 %586
    %v588 = vsel %vm376, %v587, 0
    %590 = vmatprep.subr.mxu0 %v198
    %591 = vmatpush1.msra.mxu0 %v197
    %592 = vmatprep.subr.mxu0 %v200
    %593 = vmatpush1.msra.mxu0 %v199
    %594 = vmatprep.subr.mxu0 %v202
    %595 = vmatpush1.msra.mxu0 %v201
    %596 = vmatprep.subr.mxu0 %v204
    %597 = vmatpush1.msra.mxu0 %v203
    %598 = vmatprep.subr.mxu0 %v206
    %599 = vmatpush1.msra.mxu0 %v205
    %600 = vmatprep.subr.mxu0 %v208
    %601 = vmatpush1.msra.mxu0 %v207
    %602 = vmatprep.subr.mxu0 %v210
    %603 = vmatpush1.msra.mxu0 %v209
    %604 = vmatprep.subr.mxu0 %v212
    %605 = vmatpush1.msra.mxu0 %v211
    %606 = vmatprep.subr.mxu0 0.0
    %607 = vmatpush1.msra.mxu0 0.0
    %608 = vmatprep.subr.mxu0 0.0
    %609 = vmatpush1.msra.mxu0 0.0
    %610 = vmatprep.subr.mxu0 0.0
    %611 = vmatpush1.msra.mxu0 0.0
    %612 = vmatprep.subr.mxu0 0.0
    %613 = vmatpush1.msra.mxu0 0.0
    %614 = vmatprep.subr.mxu0 0.0
    %615 = vmatpush1.msra.mxu0 0.0
    %616 = vmatprep.subr.mxu0 0.0
    %617 = vmatpush1.msra.mxu0 0.0
    %618 = vmatprep.subr.mxu0 0.0
    %619 = vmatpush1.msra.mxu0 0.0
    %620 = vmatprep.subr.mxu0 0.0
    %621 = vmatpush1.msra.mxu0 0.0
    %622 = vmatprep.subr.mxu0 0.0
    %623 = vmatpush1.msra.mxu0 0.0
    %624 = vmatprep.subr.mxu0 0.0
    %625 = vmatpush1.msra.mxu0 0.0
    %626 = vmatprep.subr.mxu0 0.0
    %627 = vmatpush1.msra.mxu0 0.0
    %628 = vmatprep.subr.mxu0 0.0
    %629 = vmatpush1.msra.mxu0 0.0
    %630 = vmatprep.subr.mxu0 0.0
    %631 = vmatpush1.msra.mxu0 0.0
    %632 = vmatprep.subr.mxu0 0.0
    %633 = vmatpush1.msra.mxu0 0.0
    %634 = vmatprep.subr.mxu0 0.0
    %635 = vmatpush1.msra.mxu0 0.0
    %636 = vmatprep.subr.mxu0 0.0
    %637 = vmatpush1.msra.mxu0 0.0
    %638 = vmatprep.subr.mxu0 0.0
    %639 = vmatpush1.msra.mxu0 0.0
    %640 = vmatprep.subr.mxu0 0.0
    %641 = vmatpush1.msra.mxu0 0.0
    %642 = vmatprep.subr.mxu0 0.0
    %643 = vmatpush1.msra.mxu0 0.0
    %644 = vmatprep.subr.mxu0 0.0
    %645 = vmatpush1.msra.mxu0 0.0
    %646 = vmatprep.subr.mxu0 0.0
    %647 = vmatpush1.msra.mxu0 0.0
    %648 = vmatprep.subr.mxu0 0.0
    %649 = vmatpush1.msra.mxu0 0.0
    %650 = vmatprep.subr.mxu0 0.0
    %651 = vmatpush1.msra.mxu0 0.0
    %652 = vmatprep.subr.mxu0 0.0
    %653 = vmatpush1.msra.mxu0 0.0
    %654 = vmatprep.mubr.f32.mxu0 0.0
    %655 = vmatmul.mubr.f32.gmra.mrb[0].mxu0 %v588
    %v656 = vpop.f32.mrb[0].mxu0
    %v657 = vadd.f32 0.0, %v656
    %v658 = vpop.f32.mrb[0].mxu0
    %v659 = vadd.f32 0.0, %v658
    %660 = vdwg.mxu0
    %v661 = vadd.f32 %v583, %v657
    %v662 = vadd.f32 %v584, %v659
    %v663 = vmul.f32 %v661, %v181
    %v664 = vmul.f32 %v662, %v182
    %v665 = vxor.u32 %v663, 2147483648
    %v666 = vxor.u32 %v664, 2147483648
    %v667 = vmul.f32 %v665, 1.442695
    %v668 = vpow.pop %v667
    %v669 = vmul.f32 %v666, 1.442695
    %v670 = vpow.pop %v669
    %v671 = vadd.f32 %v668, 1.0
    %v672 = vadd.f32 %v670, 1.0
    %v673 = vrcp.pop %v671
    %v674 = vmul.f32 1.0, %v673
    %v675 = vrcp.pop %v672
    %v676 = vmul.f32 1.0, %v675
    %v677 = vmul.f32 %v676, 2.0
    %v678 = vsub.f32 %v677, 1.0
    %v679 = vmul.f32 %v674, %v580
    %v680 = vmul.f32 %v674, %v678
    %682 = vrot.lane.b32.xlu0 %v680, 64
    %v683 = vpop.permute.xlu0 %682
    %v685 = vadd.f32 %v679, %v683
    %v686 = vtanh.pop %v685
    %v687 = vmul.f32 %v676, %v686
    %v688 = vsel %vm372, %v342, %v348
    %v689 = vsel %vm373, %v344, %v350
    %691 = vrot.lane.b32.xlu0 %v687, 64
    %v692 = vpop.permute.xlu0 %691
    %v693 = vsel %vm376, %v692, 0
    %695 = vmatprep.subr.mxu0 %v198
    %696 = vmatpush1.msra.mxu0 %v197
    %697 = vmatprep.subr.mxu0 %v200
    %698 = vmatpush1.msra.mxu0 %v199
    %699 = vmatprep.subr.mxu0 %v202
    %700 = vmatpush1.msra.mxu0 %v201
    %701 = vmatprep.subr.mxu0 %v204
    %702 = vmatpush1.msra.mxu0 %v203
    %703 = vmatprep.subr.mxu0 %v206
    %704 = vmatpush1.msra.mxu0 %v205
    %705 = vmatprep.subr.mxu0 %v208
    %706 = vmatpush1.msra.mxu0 %v207
    %707 = vmatprep.subr.mxu0 %v210
    %708 = vmatpush1.msra.mxu0 %v209
    %709 = vmatprep.subr.mxu0 %v212
    %710 = vmatpush1.msra.mxu0 %v211
    %711 = vmatprep.subr.mxu0 0.0
    %712 = vmatpush1.msra.mxu0 0.0
    %713 = vmatprep.subr.mxu0 0.0
    %714 = vmatpush1.msra.mxu0 0.0
    %715 = vmatprep.subr.mxu0 0.0
    %716 = vmatpush1.msra.mxu0 0.0
    %717 = vmatprep.subr.mxu0 0.0
    %718 = vmatpush1.msra.mxu0 0.0
    %719 = vmatprep.subr.mxu0 0.0
    %720 = vmatpush1.msra.mxu0 0.0
    %721 = vmatprep.subr.mxu0 0.0
    %722 = vmatpush1.msra.mxu0 0.0
    %723 = vmatprep.subr.mxu0 0.0
    %724 = vmatpush1.msra.mxu0 0.0
    %725 = vmatprep.subr.mxu0 0.0
    %726 = vmatpush1.msra.mxu0 0.0
    %727 = vmatprep.subr.mxu0 0.0
    %728 = vmatpush1.msra.mxu0 0.0
    %729 = vmatprep.subr.mxu0 0.0
    %730 = vmatpush1.msra.mxu0 0.0
    %731 = vmatprep.subr.mxu0 0.0
    %732 = vmatpush1.msra.mxu0 0.0
    %733 = vmatprep.subr.mxu0 0.0
    %734 = vmatpush1.msra.mxu0 0.0
    %735 = vmatprep.subr.mxu0 0.0
    %736 = vmatpush1.msra.mxu0 0.0
    %737 = vmatprep.subr.mxu0 0.0
    %738 = vmatpush1.msra.mxu0 0.0
    %739 = vmatprep.subr.mxu0 0.0
    %740 = vmatpush1.msra.mxu0 0.0
    %741 = vmatprep.subr.mxu0 0.0
    %742 = vmatpush1.msra.mxu0 0.0
    %743 = vmatprep.subr.mxu0 0.0
    %744 = vmatpush1.msra.mxu0 0.0
    %745 = vmatprep.subr.mxu0 0.0
    %746 = vmatpush1.msra.mxu0 0.0
    %747 = vmatprep.subr.mxu0 0.0
    %748 = vmatpush1.msra.mxu0 0.0
    %749 = vmatprep.subr.mxu0 0.0
    %750 = vmatpush1.msra.mxu0 0.0
    %751 = vmatprep.subr.mxu0 0.0
    %752 = vmatpush1.msra.mxu0 0.0
    %753 = vmatprep.subr.mxu0 0.0
    %754 = vmatpush1.msra.mxu0 0.0
    %755 = vmatprep.subr.mxu0 0.0
    %756 = vmatpush1.msra.mxu0 0.0
    %757 = vmatprep.subr.mxu0 0.0
    %758 = vmatpush1.msra.mxu0 0.0
    %759 = vmatprep.mubr.f32.mxu0 0.0
    %760 = vmatmul.mubr.f32.gmra.mrb[0].mxu0 %v693
    %v761 = vpop.f32.mrb[0].mxu0
    %v762 = vadd.f32 0.0, %v761
    %v763 = vpop.f32.mrb[0].mxu0
    %v764 = vadd.f32 0.0, %v763
    %765 = vdwg.mxu0
    %v766 = vadd.f32 %v688, %v762
    %v767 = vadd.f32 %v689, %v764
    %v768 = vmul.f32 %v766, %v181
    %v769 = vmul.f32 %v767, %v182
    %v770 = vxor.u32 %v768, 2147483648
    %v771 = vxor.u32 %v769, 2147483648
    %v772 = vmul.f32 %v770, 1.442695
    %v773 = vpow.pop %v772
    %v774 = vmul.f32 %v771, 1.442695
    %v775 = vpow.pop %v774
    %v776 = vadd.f32 %v773, 1.0
    %v777 = vadd.f32 %v775, 1.0
    %v778 = vrcp.pop %v776
    %v779 = vmul.f32 1.0, %v778
    %v780 = vrcp.pop %v777
    %v781 = vmul.f32 1.0, %v780
    %v782 = vmul.f32 %v781, 2.0
    %v783 = vsub.f32 %v782, 1.0
    %v784 = vmul.f32 %v779, %v685
    %v785 = vmul.f32 %v779, %v783
    %787 = vrot.lane.b32.xlu0 %v785, 64
    %v788 = vpop.permute.xlu0 %787
    %v790 = vadd.f32 %v784, %v788
    %v791 = vtanh.pop %v790
    %v792 = vmul.f32 %v781, %v791
    %v793 = vsel %vm372, %v348, %v342
    %v794 = vsel %vm373, %v350, %v344
    %796 = vrot.lane.b32.xlu0 %v792, 64
    %v797 = vpop.permute.xlu0 %796
    %v798 = vsel %vm376, %v797, 0
    %800 = vmatprep.subr.mxu0 %v198
    %801 = vmatpush1.msra.mxu0 %v197
    %802 = vmatprep.subr.mxu0 %v200
    %803 = vmatpush1.msra.mxu0 %v199
    %804 = vmatprep.subr.mxu0 %v202
    %805 = vmatpush1.msra.mxu0 %v201
    %806 = vmatprep.subr.mxu0 %v204
    %807 = vmatpush1.msra.mxu0 %v203
    %808 = vmatprep.subr.mxu0 %v206
    %809 = vmatpush1.msra.mxu0 %v205
    %810 = vmatprep.subr.mxu0 %v208
    %811 = vmatpush1.msra.mxu0 %v207
    %812 = vmatprep.subr.mxu0 %v210
    %813 = vmatpush1.msra.mxu0 %v209
    %814 = vmatprep.subr.mxu0 %v212
    %815 = vmatpush1.msra.mxu0 %v211
    %816 = vmatprep.subr.mxu0 0.0
    %817 = vmatpush1.msra.mxu0 0.0
    %818 = vmatprep.subr.mxu0 0.0
    %819 = vmatpush1.msra.mxu0 0.0
    %820 = vmatprep.subr.mxu0 0.0
    %821 = vmatpush1.msra.mxu0 0.0
    %822 = vmatprep.subr.mxu0 0.0
    %823 = vmatpush1.msra.mxu0 0.0
    %824 = vmatprep.subr.mxu0 0.0
    %825 = vmatpush1.msra.mxu0 0.0
    %826 = vmatprep.subr.mxu0 0.0
    %827 = vmatpush1.msra.mxu0 0.0
    %828 = vmatprep.subr.mxu0 0.0
    %829 = vmatpush1.msra.mxu0 0.0
    %830 = vmatprep.subr.mxu0 0.0
    %831 = vmatpush1.msra.mxu0 0.0
    %832 = vmatprep.subr.mxu0 0.0
    %833 = vmatpush1.msra.mxu0 0.0
    %834 = vmatprep.subr.mxu0 0.0
    %835 = vmatpush1.msra.mxu0 0.0
    %836 = vmatprep.subr.mxu0 0.0
    %837 = vmatpush1.msra.mxu0 0.0
    %838 = vmatprep.subr.mxu0 0.0
    %839 = vmatpush1.msra.mxu0 0.0
    %840 = vmatprep.subr.mxu0 0.0
    %841 = vmatpush1.msra.mxu0 0.0
    %842 = vmatprep.subr.mxu0 0.0
    %843 = vmatpush1.msra.mxu0 0.0
    %844 = vmatprep.subr.mxu0 0.0
    %845 = vmatpush1.msra.mxu0 0.0
    %846 = vmatprep.subr.mxu0 0.0
    %847 = vmatpush1.msra.mxu0 0.0
    %848 = vmatprep.subr.mxu0 0.0
    %849 = vmatpush1.msra.mxu0 0.0
    %850 = vmatprep.subr.mxu0 0.0
    %851 = vmatpush1.msra.mxu0 0.0
    %852 = vmatprep.subr.mxu0 0.0
    %853 = vmatpush1.msra.mxu0 0.0
    %854 = vmatprep.subr.mxu0 0.0
    %855 = vmatpush1.msra.mxu0 0.0
    %856 = vmatprep.subr.mxu0 0.0
    %857 = vmatpush1.msra.mxu0 0.0
    %858 = vmatprep.subr.mxu0 0.0
    %859 = vmatpush1.msra.mxu0 0.0
    %860 = vmatprep.subr.mxu0 0.0
    %861 = vmatpush1.msra.mxu0 0.0
    %862 = vmatprep.subr.mxu0 0.0
    %863 = vmatpush1.msra.mxu0 0.0
    %864 = vmatprep.mubr.f32.mxu0 0.0
    %865 = vmatmul.mubr.f32.gmra.mrb[0].mxu0 %v798
    %v866 = vpop.f32.mrb[0].mxu0
    %v867 = vadd.f32 0.0, %v866
    %v868 = vpop.f32.mrb[0].mxu0
    %v869 = vadd.f32 0.0, %v868
    %870 = vdwg.mxu0
    %v871 = vadd.f32 %v793, %v867
    %v872 = vadd.f32 %v794, %v869
    %v873 = vmul.f32 %v871, %v181
    %v874 = vmul.f32 %v872, %v182
    %v875 = vxor.u32 %v873, 2147483648
    %v876 = vxor.u32 %v874, 2147483648
    %v877 = vmul.f32 %v875, 1.442695
    %v878 = vpow.pop %v877
    %v879 = vmul.f32 %v876, 1.442695
    %v880 = vpow.pop %v879
    %v881 = vadd.f32 %v878, 1.0
    %v882 = vadd.f32 %v880, 1.0
    %v883 = vrcp.pop %v881
    %v884 = vmul.f32 1.0, %v883
    %v885 = vrcp.pop %v882
    %v886 = vmul.f32 1.0, %v885
    %v887 = vmul.f32 %v886, 2.0
    %v888 = vsub.f32 %v887, 1.0
    %v889 = vmul.f32 %v884, %v790
    %v890 = vmul.f32 %v884, %v888
    %892 = vrot.lane.b32.xlu0 %v890, 64
    %v893 = vpop.permute.xlu0 %892
    %v895 = vadd.f32 %v889, %v893
    %v896 = vtanh.pop %v895
    %v897 = vmul.f32 %v886, %v896
    %v898 = vsel %vm372, %v354, %v336
    %v899 = vsel %vm373, %v356, %v338
    %901 = vrot.lane.b32.xlu0 %v897, 64
    %v902 = vpop.permute.xlu0 %901
    %v903 = vsel %vm376, %v902, 0
    %905 = vmatprep.subr.mxu0 %v198
    %906 = vmatpush1.msra.mxu0 %v197
    %907 = vmatprep.subr.mxu0 %v200
    %908 = vmatpush1.msra.mxu0 %v199
    %909 = vmatprep.subr.mxu0 %v202
    %910 = vmatpush1.msra.mxu0 %v201
    %911 = vmatprep.subr.mxu0 %v204
    %912 = vmatpush1.msra.mxu0 %v203
    %913 = vmatprep.subr.mxu0 %v206
    %914 = vmatpush1.msra.mxu0 %v205
    %915 = vmatprep.subr.mxu0 %v208
    %916 = vmatpush1.msra.mxu0 %v207
    %917 = vmatprep.subr.mxu0 %v210
    %918 = vmatpush1.msra.mxu0 %v209
    %919 = vmatprep.subr.mxu0 %v212
    %920 = vmatpush1.msra.mxu0 %v211
    %921 = vmatprep.subr.mxu0 0.0
    %922 = vmatpush1.msra.mxu0 0.0
    %923 = vmatprep.subr.mxu0 0.0
    %924 = vmatpush1.msra.mxu0 0.0
    %925 = vmatprep.subr.mxu0 0.0
    %926 = vmatpush1.msra.mxu0 0.0
    %927 = vmatprep.subr.mxu0 0.0
    %928 = vmatpush1.msra.mxu0 0.0
    %929 = vmatprep.subr.mxu0 0.0
    %930 = vmatpush1.msra.mxu0 0.0
    %931 = vmatprep.subr.mxu0 0.0
    %932 = vmatpush1.msra.mxu0 0.0
    %933 = vmatprep.subr.mxu0 0.0
    %934 = vmatpush1.msra.mxu0 0.0
    %935 = vmatprep.subr.mxu0 0.0
    %936 = vmatpush1.msra.mxu0 0.0
    %937 = vmatprep.subr.mxu0 0.0
    %938 = vmatpush1.msra.mxu0 0.0
    %939 = vmatprep.subr.mxu0 0.0
    %940 = vmatpush1.msra.mxu0 0.0
    %941 = vmatprep.subr.mxu0 0.0
    %942 = vmatpush1.msra.mxu0 0.0
    %943 = vmatprep.subr.mxu0 0.0
    %944 = vmatpush1.msra.mxu0 0.0
    %945 = vmatprep.subr.mxu0 0.0
    %946 = vmatpush1.msra.mxu0 0.0
    %947 = vmatprep.subr.mxu0 0.0
    %948 = vmatpush1.msra.mxu0 0.0
    %949 = vmatprep.subr.mxu0 0.0
    %950 = vmatpush1.msra.mxu0 0.0
    %951 = vmatprep.subr.mxu0 0.0
    %952 = vmatpush1.msra.mxu0 0.0
    %953 = vmatprep.subr.mxu0 0.0
    %954 = vmatpush1.msra.mxu0 0.0
    %955 = vmatprep.subr.mxu0 0.0
    %956 = vmatpush1.msra.mxu0 0.0
    %957 = vmatprep.subr.mxu0 0.0
    %958 = vmatpush1.msra.mxu0 0.0
    %959 = vmatprep.subr.mxu0 0.0
    %960 = vmatpush1.msra.mxu0 0.0
    %961 = vmatprep.subr.mxu0 0.0
    %962 = vmatpush1.msra.mxu0 0.0
    %963 = vmatprep.subr.mxu0 0.0
    %964 = vmatpush1.msra.mxu0 0.0
    %965 = vmatprep.subr.mxu0 0.0
    %966 = vmatpush1.msra.mxu0 0.0
    %967 = vmatprep.subr.mxu0 0.0
    %968 = vmatpush1.msra.mxu0 0.0
    %969 = vmatprep.mubr.f32.mxu0 0.0
    %970 = vmatmul.mubr.f32.gmra.mrb[0].mxu0 %v903
    %v971 = vpop.f32.mrb[0].mxu0
    %v972 = vadd.f32 0.0, %v971
    %v973 = vpop.f32.mrb[0].mxu0
    %v974 = vadd.f32 0.0, %v973
    %975 = vdwg.mxu0
    %v976 = vadd.f32 %v898, %v972
    %v977 = vadd.f32 %v899, %v974
    %v978 = vmul.f32 %v976, %v181
    %v979 = vmul.f32 %v977, %v182
    %v980 = vxor.u32 %v978, 2147483648
    %v981 = vxor.u32 %v979, 2147483648
    %v982 = vmul.f32 %v980, 1.442695
    %v983 = vpow.pop %v982
    %v984 = vmul.f32 %v981, 1.442695
    %v985 = vpow.pop %v984
    %v986 = vadd.f32 %v983, 1.0
    %v987 = vadd.f32 %v985, 1.0
    %v988 = vrcp.pop %v986
    %v989 = vmul.f32 1.0, %v988
    %v990 = vrcp.pop %v987
    %v991 = vmul.f32 1.0, %v990
    %v992 = vmul.f32 %v991, 2.0
    %v993 = vsub.f32 %v992, 1.0
    %v994 = vmul.f32 %v989, %v895
    %v995 = vmul.f32 %v989, %v993
    %997 = vrot.lane.b32.xlu0 %v995, 64
    %v998 = vpop.permute.xlu0 %997
    %v1000 = vadd.f32 %v994, %v998
    %v1001 = vtanh.pop %v1000
    %v1002 = vmul.f32 %v991, %v1001
    %v1003 = vsel %vm372, %v360, %v330
    %v1004 = vsel %vm373, %v362, %v332
    %1006 = vrot.lane.b32.xlu0 %v1002, 64
    %v1007 = vpop.permute.xlu0 %1006
    %v1008 = vsel %vm376, %v1007, 0
    %1010 = vmatprep.subr.mxu0 %v198
    %1011 = vmatpush1.msra.mxu0 %v197
    %1012 = vmatprep.subr.mxu0 %v200
    %1013 = vmatpush1.msra.mxu0 %v199
    %1014 = vmatprep.subr.mxu0 %v202
    %1015 = vmatpush1.msra.mxu0 %v201
    %1016 = vmatprep.subr.mxu0 %v204
    %1017 = vmatpush1.msra.mxu0 %v203
    %1018 = vmatprep.subr.mxu0 %v206
    %1019 = vmatpush1.msra.mxu0 %v205
    %1020 = vmatprep.subr.mxu0 %v208
    %1021 = vmatpush1.msra.mxu0 %v207
    %1022 = vmatprep.subr.mxu0 %v210
    %1023 = vmatpush1.msra.mxu0 %v209
    %1024 = vmatprep.subr.mxu0 %v212
    %1025 = vmatpush1.msra.mxu0 %v211
    %1026 = vmatprep.subr.mxu0 0.0
    %1027 = vmatpush1.msra.mxu0 0.0
    %1028 = vmatprep.subr.mxu0 0.0
    %1029 = vmatpush1.msra.mxu0 0.0
    %1030 = vmatprep.subr.mxu0 0.0
    %1031 = vmatpush1.msra.mxu0 0.0
    %1032 = vmatprep.subr.mxu0 0.0
    %1033 = vmatpush1.msra.mxu0 0.0
    %1034 = vmatprep.subr.mxu0 0.0
    %1035 = vmatpush1.msra.mxu0 0.0
    %1036 = vmatprep.subr.mxu0 0.0
    %1037 = vmatpush1.msra.mxu0 0.0
    %1038 = vmatprep.subr.mxu0 0.0
    %1039 = vmatpush1.msra.mxu0 0.0
    %1040 = vmatprep.subr.mxu0 0.0
    %1041 = vmatpush1.msra.mxu0 0.0
    %1042 = vmatprep.subr.mxu0 0.0
    %1043 = vmatpush1.msra.mxu0 0.0
    %1044 = vmatprep.subr.mxu0 0.0
    %1045 = vmatpush1.msra.mxu0 0.0
    %1046 = vmatprep.subr.mxu0 0.0
    %1047 = vmatpush1.msra.mxu0 0.0
    %1048 = vmatprep.subr.mxu0 0.0
    %1049 = vmatpush1.msra.mxu0 0.0
    %1050 = vmatprep.subr.mxu0 0.0
    %1051 = vmatpush1.msra.mxu0 0.0
    %1052 = vmatprep.subr.mxu0 0.0
    %1053 = vmatpush1.msra.mxu0 0.0
    %1054 = vmatprep.subr.mxu0 0.0
    %1055 = vmatpush1.msra.mxu0 0.0
    %1056 = vmatprep.subr.mxu0 0.0
    %1057 = vmatpush1.msra.mxu0 0.0
    %1058 = vmatprep.subr.mxu0 0.0
    %1059 = vmatpush1.msra.mxu0 0.0
    %1060 = vmatprep.subr.mxu0 0.0
    %1061 = vmatpush1.msra.mxu0 0.0
    %1062 = vmatprep.subr.mxu0 0.0
    %1063 = vmatpush1.msra.mxu0 0.0
    %1064 = vmatprep.subr.mxu0 0.0
    %1065 = vmatpush1.msra.mxu0 0.0
    %1066 = vmatprep.subr.mxu0 0.0
    %1067 = vmatpush1.msra.mxu0 0.0
    %1068 = vmatprep.subr.mxu0 0.0
    %1069 = vmatpush1.msra.mxu0 0.0
    %1070 = vmatprep.subr.mxu0 0.0
    %1071 = vmatpush1.msra.mxu0 0.0
    %1072 = vmatprep.subr.mxu0 0.0
    %1073 = vmatpush1.msra.mxu0 0.0
    %1074 = vmatprep.mubr.f32.mxu0 0.0
    %1075 = vmatmul.mubr.f32.gmra.mrb[0].mxu0 %v1008
    %v1076 = vpop.f32.mrb[0].mxu0
    %v1077 = vadd.f32 0.0, %v1076
    %v1078 = vpop.f32.mrb[0].mxu0
    %v1079 = vadd.f32 0.0, %v1078
    %1080 = vdwg.mxu0
    %v1081 = vadd.f32 %v1003, %v1077
    %v1082 = vadd.f32 %v1004, %v1079
    %v1083 = vmul.f32 %v1081, %v181
    %v1084 = vmul.f32 %v1082, %v182
    %v1085 = vxor.u32 %v1083, 2147483648
    %v1086 = vxor.u32 %v1084, 2147483648
    %v1087 = vmul.f32 %v1085, 1.442695
    %v1088 = vpow.pop %v1087
    %v1089 = vmul.f32 %v1086, 1.442695
    %v1090 = vpow.pop %v1089
    %v1091 = vadd.f32 %v1088, 1.0
    %v1092 = vadd.f32 %v1090, 1.0
    %v1093 = vrcp.pop %v1091
    %v1094 = vmul.f32 1.0, %v1093
    %v1095 = vrcp.pop %v1092
    %v1096 = vmul.f32 1.0, %v1095
    %v1097 = vmul.f32 %v1096, 2.0
    %v1098 = vsub.f32 %v1097, 1.0
    %v1099 = vmul.f32 %v1094, %v1000
    %v1100 = vmul.f32 %v1094, %v1098
    %1102 = vrot.lane.b32.xlu0 %v1100, 64
    %v1103 = vpop.permute.xlu0 %1102
    %v1105 = vadd.f32 %v1099, %v1103
    %v1106 = vtanh.pop %v1105
    %v1107 = vmul.f32 %v1096, %v1106
    %v1108 = vsel %vm372, %v366, %v324
    %v1109 = vsel %vm373, %v368, %v326
    %1111 = vrot.lane.b32.xlu0 %v1107, 64
    %v1112 = vpop.permute.xlu0 %1111
    %v1113 = vsel %vm376, %v1112, 0
    %1115 = vmatprep.subr.mxu0 %v198
    %1116 = vmatpush1.msra.mxu0 %v197
    %1117 = vmatprep.subr.mxu0 %v200
    %1118 = vmatpush1.msra.mxu0 %v199
    %1119 = vmatprep.subr.mxu0 %v202
    %1120 = vmatpush1.msra.mxu0 %v201
    %1121 = vmatprep.subr.mxu0 %v204
    %1122 = vmatpush1.msra.mxu0 %v203
    %1123 = vmatprep.subr.mxu0 %v206
    %1124 = vmatpush1.msra.mxu0 %v205
    %1125 = vmatprep.subr.mxu0 %v208
    %1126 = vmatpush1.msra.mxu0 %v207
    %1127 = vmatprep.subr.mxu0 %v210
    %1128 = vmatpush1.msra.mxu0 %v209
    %1129 = vmatprep.subr.mxu0 %v212
    %1130 = vmatpush1.msra.mxu0 %v211
    %1131 = vmatprep.subr.mxu0 0.0
    %1132 = vmatpush1.msra.mxu0 0.0
    %1133 = vmatprep.subr.mxu0 0.0
    %1134 = vmatpush1.msra.mxu0 0.0
    %1135 = vmatprep.subr.mxu0 0.0
    %1136 = vmatpush1.msra.mxu0 0.0
    %1137 = vmatprep.subr.mxu0 0.0
    %1138 = vmatpush1.msra.mxu0 0.0
    %1139 = vmatprep.subr.mxu0 0.0
    %1140 = vmatpush1.msra.mxu0 0.0
    %1141 = vmatprep.subr.mxu0 0.0
    %1142 = vmatpush1.msra.mxu0 0.0
    %1143 = vmatprep.subr.mxu0 0.0
    %1144 = vmatpush1.msra.mxu0 0.0
    %1145 = vmatprep.subr.mxu0 0.0
    %1146 = vmatpush1.msra.mxu0 0.0
    %1147 = vmatprep.subr.mxu0 0.0
    %1148 = vmatpush1.msra.mxu0 0.0
    %1149 = vmatprep.subr.mxu0 0.0
    %1150 = vmatpush1.msra.mxu0 0.0
    %1151 = vmatprep.subr.mxu0 0.0
    %1152 = vmatpush1.msra.mxu0 0.0
    %1153 = vmatprep.subr.mxu0 0.0
    %1154 = vmatpush1.msra.mxu0 0.0
    %1155 = vmatprep.subr.mxu0 0.0
    %1156 = vmatpush1.msra.mxu0 0.0
    %1157 = vmatprep.subr.mxu0 0.0
    %1158 = vmatpush1.msra.mxu0 0.0
    %1159 = vmatprep.subr.mxu0 0.0
    %1160 = vmatpush1.msra.mxu0 0.0
    %1161 = vmatprep.subr.mxu0 0.0
    %1162 = vmatpush1.msra.mxu0 0.0
    %1163 = vmatprep.subr.mxu0 0.0
    %1164 = vmatpush1.msra.mxu0 0.0
    %1165 = vmatprep.subr.mxu0 0.0
    %1166 = vmatpush1.msra.mxu0 0.0
    %1167 = vmatprep.subr.mxu0 0.0
    %1168 = vmatpush1.msra.mxu0 0.0
    %1169 = vmatprep.subr.mxu0 0.0
    %1170 = vmatpush1.msra.mxu0 0.0
    %1171 = vmatprep.subr.mxu0 0.0
    %1172 = vmatpush1.msra.mxu0 0.0
    %1173 = vmatprep.subr.mxu0 0.0
    %1174 = vmatpush1.msra.mxu0 0.0
    %1175 = vmatprep.subr.mxu0 0.0
    %1176 = vmatpush1.msra.mxu0 0.0
    %1177 = vmatprep.subr.mxu0 0.0
    %1178 = vmatpush1.msra.mxu0 0.0
    %1179 = vmatprep.mubr.f32.mxu0 0.0
    %1180 = vmatmul.mubr.f32.gmra.mrb[0].mxu0 %v1113
    %v1181 = vpop.f32.mrb[0].mxu0
    %v1182 = vadd.f32 0.0, %v1181
    %v1183 = vpop.f32.mrb[0].mxu0
    %v1184 = vadd.f32 0.0, %v1183
    %1185 = vdwg.mxu0
    %v1186 = vadd.f32 %v1108, %v1182
    %v1187 = vadd.f32 %v1109, %v1184
    %v1188 = vmul.f32 %v1186, %v181
    %v1189 = vmul.f32 %v1187, %v182
    %v1190 = vxor.u32 %v1188, 2147483648
    %v1191 = vxor.u32 %v1189, 2147483648
    %v1192 = vmul.f32 %v1190, 1.442695
    %v1193 = vpow.pop %v1192
    %v1194 = vmul.f32 %v1191, 1.442695
    %v1195 = vpow.pop %v1194
    %v1196 = vadd.f32 %v1193, 1.0
    %v1197 = vadd.f32 %v1195, 1.0
    %v1198 = vrcp.pop %v1196
    %v1199 = vmul.f32 1.0, %v1198
    %v1200 = vrcp.pop %v1197
    %v1201 = vmul.f32 1.0, %v1200
    %v1202 = vmul.f32 %v1201, 2.0
    %v1203 = vsub.f32 %v1202, 1.0
    %v1204 = vmul.f32 %v1199, %v1105
    %v1205 = vmul.f32 %v1199, %v1203
    %1207 = vrot.lane.b32.xlu0 %v1205, 64
    %v1208 = vpop.permute.xlu0 %1207
    %v1210 = vadd.f32 %v1204, %v1208
    %v1211 = vtanh.pop %v1210
    %v1212 = vmul.f32 %v1201, %v1211
    %v1213 = vsel %vm187, 1, 0
    %vm1214 = vcmp.eq.s32.totalorder %v1213, 1
    %1217 = vrot.lane.b32.xlu0 %v1212, 64
    %v1218 = vpop.permute.xlu0 %1217
    %v1220 = vsel %vm1214, %v482, %v1218
    %v1223 = vsel %vm1214, %v587, %v1112
    %v1226 = vsel %vm1214, %v692, %v1007
    %v1229 = vsel %vm1214, %v797, %v902
    %v1230 = vsel %vm1214, %v902, %v797
    %v1231 = vsel %vm1214, %v1007, %v692
    %v1232 = vsel %vm1214, %v1112, %v587
    %v1233 = vsel %vm1214, %v1218, %v482
    %v1234 = vld [vmem:[#allocation2] sm:$0xff]
    %v1235 = vld [vmem:[#allocation2 + $0x8] sm:$0xff]
    %v1236 = vld [vmem:[#allocation2 + $0x10] sm:$0xff]
    %v1237 = vld [vmem:[#allocation2 + $0x18] sm:$0xff]
    %v1238 = vld [vmem:[#allocation2 + $0x20] sm:$0xff]
    %v1239 = vld [vmem:[#allocation2 + $0x28] sm:$0xff]
    %v1240 = vld [vmem:[#allocation2 + $0x30] sm:$0xff]
    %v1241 = vld [vmem:[#allocation2 + $0x38] sm:$0xff]
    %v1242 = vld [vmem:[#allocation2 + $0x40] sm:$0xff]
    %v1243 = vld [vmem:[#allocation2 + $0x48] sm:$0xff]
    %v1244 = vld [vmem:[#allocation2 + $0x50] sm:$0xff]
    %v1245 = vld [vmem:[#allocation2 + $0x58] sm:$0xff]
    %v1246 = vld [vmem:[#allocation2 + $0x60] sm:$0xff]
    %v1247 = vld [vmem:[#allocation2 + $0x68] sm:$0xff]
    %v1248 = vld [vmem:[#allocation2 + $0x70] sm:$0xff]
    %v1249 = vld [vmem:[#allocation2 + $0x78] sm:$0xff]
    %v1250 = vld [vmem:[#allocation4] sm:$0xff]
    %v1251 = vld [vmem:[#allocation4 + $0x8] sm:$0xff]
    %v1252 = vld [vmem:[#allocation4 + $0x10] sm:$0xff]
    %v1253 = vld [vmem:[#allocation4 + $0x18] sm:$0xff]
    %v1254 = vld [vmem:[#allocation4 + $0x20] sm:$0xff]
    %v1255 = vld [vmem:[#allocation4 + $0x28] sm:$0xff]
    %v1256 = vld [vmem:[#allocation4 + $0x30] sm:$0xff]
    %v1257 = vld [vmem:[#allocation4 + $0x38] sm:$0xff]
    %v1258 = vld [vmem:[#allocation4 + $0x40] sm:$0xff]
    %v1259 = vld [vmem:[#allocation4 + $0x48] sm:$0xff]
    %v1260 = vld [vmem:[#allocation4 + $0x50] sm:$0xff]
    %v1261 = vld [vmem:[#allocation4 + $0x58] sm:$0xff]
    %v1262 = vld [vmem:[#allocation4 + $0x60] sm:$0xff]
    %v1263 = vld [vmem:[#allocation4 + $0x68] sm:$0xff]
    %v1264 = vld [vmem:[#allocation4 + $0x70] sm:$0xff]
    %v1265 = vld [vmem:[#allocation4 + $0x78] sm:$0xff]
    %v1266 = vld [vmem:[#allocation6] sm:$0x3]
    %v1268 = vlaneseq
    %v1269 = vshrl.u32 %v1268, 7
    %v1270 = vsub.s32 0, %v1269
    %v1271 = vrot.slane %v1266, %v1270
    %v1272 = vlaneseq
    %v1273 = vshrl.u32 %v1272, 7
    %v1274 = vsub.s32 1, %v1273
    %v1275 = vrot.slane %v1266, %v1274
    %v1279 = vsel %vm376, %v1220, 0
    %v1282 = vsel %vm376, %v1223, 0
    %v1285 = vsel %vm376, %v1226, 0
    %v1288 = vsel %vm376, %v1229, 0
    %v1291 = vsel %vm376, %v1230, 0
    %v1294 = vsel %vm376, %v1231, 0
    %v1297 = vsel %vm376, %v1232, 0
    %v1300 = vsel %vm376, %v1233, 0
    %1302 = vmatprep.subr.mxu0 %v1235
    %1303 = vmatpush1.msra.mxu0 %v1234
    %1304 = vmatprep.subr.mxu0 %v1237
    %1305 = vmatpush1.msra.mxu0 %v1236
    %1306 = vmatprep.subr.mxu0 %v1239
    %1307 = vmatpush1.msra.mxu0 %v1238
    %1308 = vmatprep.subr.mxu0 %v1241
    %1309 = vmatpush1.msra.mxu0 %v1240
    %1310 = vmatprep.subr.mxu0 %v1243
    %1311 = vmatpush1.msra.mxu0 %v1242
    %1312 = vmatprep.subr.mxu0 %v1245
    %1313 = vmatpush1.msra.mxu0 %v1244
    %1314 = vmatprep.subr.mxu0 %v1247
    %1315 = vmatpush1.msra.mxu0 %v1246
    %1316 = vmatprep.subr.mxu0 %v1249
    %1317 = vmatpush1.msra.mxu0 %v1248
    %1318 = vmatprep.subr.mxu0 0.0
    %1319 = vmatpush1.msra.mxu0 0.0
    %1320 = vmatprep.subr.mxu0 0.0
    %1321 = vmatpush1.msra.mxu0 0.0
    %1322 = vmatprep.subr.mxu0 0.0
    %1323 = vmatpush1.msra.mxu0 0.0
    %1324 = vmatprep.subr.mxu0 0.0
    %1325 = vmatpush1.msra.mxu0 0.0
    %1326 = vmatprep.subr.mxu0 0.0
    %1327 = vmatpush1.msra.mxu0 0.0
    %1328 = vmatprep.subr.mxu0 0.0
    %1329 = vmatpush1.msra.mxu0 0.0
    %1330 = vmatprep.subr.mxu0 0.0
    %1331 = vmatpush1.msra.mxu0 0.0
    %1332 = vmatprep.subr.mxu0 0.0
    %1333 = vmatpush1.msra.mxu0 0.0
    %1334 = vmatprep.subr.mxu0 0.0
    %1335 = vmatpush1.msra.mxu0 0.0
    %1336 = vmatprep.subr.mxu0 0.0
    %1337 = vmatpush1.msra.mxu0 0.0
    %1338 = vmatprep.subr.mxu0 0.0
    %1339 = vmatpush1.msra.mxu0 0.0
    %1340 = vmatprep.subr.mxu0 0.0
    %1341 = vmatpush1.msra.mxu0 0.0
    %1342 = vmatprep.subr.mxu0 0.0
    %1343 = vmatpush1.msra.mxu0 0.0
    %1344 = vmatprep.subr.mxu0 0.0
    %1345 = vmatpush1.msra.mxu0 0.0
    %1346 = vmatprep.subr.mxu0 0.0
    %1347 = vmatpush1.msra.mxu0 0.0
    %1348 = vmatprep.subr.mxu0 0.0
    %1349 = vmatpush1.msra.mxu0 0.0
    %1350 = vmatprep.subr.mxu0 0.0
    %1351 = vmatpush1.msra.mxu0 0.0
    %1352 = vmatprep.subr.mxu0 0.0
    %1353 = vmatpush1.msra.mxu0 0.0
    %1354 = vmatprep.subr.mxu0 0.0
    %1355 = vmatpush1.msra.mxu0 0.0
    %1356 = vmatprep.subr.mxu0 0.0
    %1357 = vmatpush1.msra.mxu0 0.0
    %1358 = vmatprep.subr.mxu0 0.0
    %1359 = vmatpush1.msra.mxu0 0.0
    %1360 = vmatprep.subr.mxu0 0.0
    %1361 = vmatpush1.msra.mxu0 0.0
    %1362 = vmatprep.subr.mxu0 0.0
    %1363 = vmatpush1.msra.mxu0 0.0
    %1364 = vmatprep.subr.mxu0 0.0
    %1365 = vmatpush1.msra.mxu0 0.0
    %1366 = vmatprep.mubr.f32.mxu0 0.0
    %1367 = vmatmul.mubr.f32.gmra.mrb[0].mxu0 %v1279
    %v1368 = vpop.f32.mrb[0].mxu0
    %v1369 = vadd.f32 %v1271, %v1368
    %v1370 = vpop.f32.mrb[0].mxu0
    %v1371 = vadd.f32 %v1275, %v1370
    %1372 = vmatprep.mubr.f32.mxu0 0.0
    %1373 = vmatmul.mubr.f32.gmra.mrb[0].mxu0 %v1282
    %v1374 = vpop.f32.mrb[0].mxu0
    %v1375 = vadd.f32 %v1271, %v1374
    %v1376 = vpop.f32.mrb[0].mxu0
    %v1377 = vadd.f32 %v1275, %v1376
    %1378 = vmatprep.mubr.f32.mxu0 0.0
    %1379 = vmatmul.mubr.f32.gmra.mrb[0].mxu0 %v1285
    %v1380 = vpop.f32.mrb[0].mxu0
    %v1381 = vadd.f32 %v1271, %v1380
    %v1382 = vpop.f32.mrb[0].mxu0
    %v1383 = vadd.f32 %v1275, %v1382
    %1384 = vmatprep.mubr.f32.mxu0 0.0
    %1385 = vmatmul.mubr.f32.gmra.mrb[0].mxu0 %v1288
    %v1386 = vpop.f32.mrb[0].mxu0
    %v1387 = vadd.f32 %v1271, %v1386
    %v1388 = vpop.f32.mrb[0].mxu0
    %v1389 = vadd.f32 %v1275, %v1388
    %1390 = vmatprep.mubr.f32.mxu0 0.0
    %1391 = vmatmul.mubr.f32.gmra.mrb[0].mxu0 %v1291
    %v1392 = vpop.f32.mrb[0].mxu0
    %v1393 = vadd.f32 %v1271, %v1392
    %v1394 = vpop.f32.mrb[0].mxu0
    %v1395 = vadd.f32 %v1275, %v1394
    %1396 = vmatprep.mubr.f32.mxu0 0.0
    %1397 = vmatmul.mubr.f32.gmra.mrb[0].mxu0 %v1294
    %v1398 = vpop.f32.mrb[0].mxu0
    %v1399 = vadd.f32 %v1271, %v1398
    %v1400 = vpop.f32.mrb[0].mxu0
    %v1401 = vadd.f32 %v1275, %v1400
    %1402 = vmatprep.mubr.f32.mxu0 0.0
    %1403 = vmatmul.mubr.f32.gmra.mrb[0].mxu0 %v1297
    %v1404 = vpop.f32.mrb[0].mxu0
    %v1405 = vadd.f32 %v1271, %v1404
    %v1406 = vpop.f32.mrb[0].mxu0
    %v1407 = vadd.f32 %v1275, %v1406
    %1408 = vmatprep.mubr.f32.mxu0 0.0
    %1409 = vmatmul.mubr.f32.gmra.mrb[0].mxu0 %v1300
    %v1410 = vpop.f32.mrb[0].mxu0
    %v1411 = vadd.f32 %v1271, %v1410
    %v1412 = vpop.f32.mrb[0].mxu0
    %v1413 = vadd.f32 %v1275, %v1412
    %1414 = vdwg.mxu0
    %v1415 = vsel %vm372, %v1369, %v1411
    %v1416 = vsel %vm373, %v1371, %v1413
    %1417 = vmatprep.subr.mxu0 %v1251
    %1418 = vmatpush1.msra.mxu0 %v1250
    %1419 = vmatprep.subr.mxu0 %v1253
    %1420 = vmatpush1.msra.mxu0 %v1252
    %1421 = vmatprep.subr.mxu0 %v1255
    %1422 = vmatpush1.msra.mxu0 %v1254
    %1423 = vmatprep.subr.mxu0 %v1257
    %1424 = vmatpush1.msra.mxu0 %v1256
    %1425 = vmatprep.subr.mxu0 %v1259
    %1426 = vmatpush1.msra.mxu0 %v1258
    %1427 = vmatprep.subr.mxu0 %v1261
    %1428 = vmatpush1.msra.mxu0 %v1260
    %1429 = vmatprep.subr.mxu0 %v1263
    %1430 = vmatpush1.msra.mxu0 %v1262
    %1431 = vmatprep.subr.mxu0 %v1265
    %1432 = vmatpush1.msra.mxu0 %v1264
    %1433 = vmatprep.subr.mxu0 0.0
    %1434 = vmatpush1.msra.mxu0 0.0
    %1435 = vmatprep.subr.mxu0 0.0
    %1436 = vmatpush1.msra.mxu0 0.0
    %1437 = vmatprep.subr.mxu0 0.0
    %1438 = vmatpush1.msra.mxu0 0.0
    %1439 = vmatprep.subr.mxu0 0.0
    %1440 = vmatpush1.msra.mxu0 0.0
    %1441 = vmatprep.subr.mxu0 0.0
    %1442 = vmatpush1.msra.mxu0 0.0
    %1443 = vmatprep.subr.mxu0 0.0
    %1444 = vmatpush1.msra.mxu0 0.0
    %1445 = vmatprep.subr.mxu0 0.0
    %1446 = vmatpush1.msra.mxu0 0.0
    %1447 = vmatprep.subr.mxu0 0.0
    %1448 = vmatpush1.msra.mxu0 0.0
    %1449 = vmatprep.subr.mxu0 0.0
    %1450 = vmatpush1.msra.mxu0 0.0
    %1451 = vmatprep.subr.mxu0 0.0
    %1452 = vmatpush1.msra.mxu0 0.0
    %1453 = vmatprep.subr.mxu0 0.0
    %1454 = vmatpush1.msra.mxu0 0.0
    %1455 = vmatprep.subr.mxu0 0.0
    %1456 = vmatpush1.msra.mxu0 0.0
    %1457 = vmatprep.subr.mxu0 0.0
    %1458 = vmatpush1.msra.mxu0 0.0
    %1459 = vmatprep.subr.mxu0 0.0
    %1460 = vmatpush1.msra.mxu0 0.0
    %1461 = vmatprep.subr.mxu0 0.0
    %1462 = vmatpush1.msra.mxu0 0.0
    %1463 = vmatprep.subr.mxu0 0.0
    %1464 = vmatpush1.msra.mxu0 0.0
    %1465 = vmatprep.subr.mxu0 0.0
    %1466 = vmatpush1.msra.mxu0 0.0
    %1467 = vmatprep.subr.mxu0 0.0
    %1468 = vmatpush1.msra.mxu0 0.0
    %1469 = vmatprep.subr.mxu0 0.0
    %1470 = vmatpush1.msra.mxu0 0.0
    %1471 = vmatprep.subr.mxu0 0.0
    %1472 = vmatpush1.msra.mxu0 0.0
    %1473 = vmatprep.subr.mxu0 0.0
    %1474 = vmatpush1.msra.mxu0 0.0
    %1475 = vmatprep.subr.mxu0 0.0
    %1476 = vmatpush1.msra.mxu0 0.0
    %1477 = vmatprep.subr.mxu0 0.0
    %1478 = vmatpush1.msra.mxu0 0.0
    %1479 = vmatprep.subr.mxu0 0.0
    %1480 = vmatpush1.msra.mxu0 0.0
    %1481 = vmatprep.mubr.f32.mxu0 0.0
    %1482 = vmatmul.mubr.f32.gmra.mrb[0].mxu0 %v378
    %v1483 = vpop.f32.mrb[0].mxu0
    %v1484 = vadd.f32 0.0, %v1483
    %v1485 = vpop.f32.mrb[0].mxu0
    %v1486 = vadd.f32 0.0, %v1485
    %1487 = vdwg.mxu0
    %v1488 = vadd.f32 %v1415, %v1484
    %v1489 = vadd.f32 %v1416, %v1486
    %v1490 = vmul.f32 %v1488, %v181
    %v1491 = vmul.f32 %v1489, %v182
    %v1492 = vxor.u32 %v1490, 2147483648
    %v1493 = vxor.u32 %v1491, 2147483648
    %v1494 = vmul.f32 %v1492, 1.442695
    %v1495 = vpow.pop %v1494
    %v1496 = vmul.f32 %v1493, 1.442695
    %v1497 = vpow.pop %v1496
    %v1498 = vadd.f32 %v1495, 1.0
    %v1499 = vadd.f32 %v1497, 1.0
    %v1500 = vrcp.pop %v1498
    %v1501 = vmul.f32 1.0, %v1500
    %v1502 = vrcp.pop %v1499
    %v1503 = vmul.f32 1.0, %v1502
    %v1504 = vmul.f32 %v1503, 2.0
    %v1505 = vsub.f32 %v1504, 1.0
    %v1506 = vmul.f32 %v1501, 0.0
    %v1507 = vmul.f32 %v1501, %v1505
    %1509 = vrot.lane.b32.xlu0 %v1507, 64
    %v1510 = vpop.permute.xlu0 %1509
    %v1512 = vadd.f32 %v1506, %v1510
    %v1513 = vtanh.pop %v1512
    %v1514 = vmul.f32 %v1503, %v1513
    %v1515 = vsel %vm372, %v1375, %v1405
    %v1516 = vsel %vm373, %v1377, %v1407
    %1518 = vrot.lane.b32.xlu0 %v1514, 64
    %v1519 = vpop.permute.xlu0 %1518
    %v1520 = vsel %vm376, %v1519, 0
    %1522 = vmatprep.subr.mxu0 %v1251
    %1523 = vmatpush1.msra.mxu0 %v1250
    %1524 = vmatprep.subr.mxu0 %v1253
    %1525 = vmatpush1.msra.mxu0 %v1252
    %1526 = vmatprep.subr.mxu0 %v1255
    %1527 = vmatpush1.msra.mxu0 %v1254
    %1528 = vmatprep.subr.mxu0 %v1257
    %1529 = vmatpush1.msra.mxu0 %v1256
    %1530 = vmatprep.subr.mxu0 %v1259
    %1531 = vmatpush1.msra.mxu0 %v1258
    %1532 = vmatprep.subr.mxu0 %v1261
    %1533 = vmatpush1.msra.mxu0 %v1260
    %1534 = vmatprep.subr.mxu0 %v1263
    %1535 = vmatpush1.msra.mxu0 %v1262
    %1536 = vmatprep.subr.mxu0 %v1265
    %1537 = vmatpush1.msra.mxu0 %v1264
    %1538 = vmatprep.subr.mxu0 0.0
    %1539 = vmatpush1.msra.mxu0 0.0
    %1540 = vmatprep.subr.mxu0 0.0
    %1541 = vmatpush1.msra.mxu0 0.0
    %1542 = vmatprep.subr.mxu0 0.0
    %1543 = vmatpush1.msra.mxu0 0.0
    %1544 = vmatprep.subr.mxu0 0.0
    %1545 = vmatpush1.msra.mxu0 0.0
    %1546 = vmatprep.subr.mxu0 0.0
    %1547 = vmatpush1.msra.mxu0 0.0
    %1548 = vmatprep.subr.mxu0 0.0
    %1549 = vmatpush1.msra.mxu0 0.0
    %1550 = vmatprep.subr.mxu0 0.0
    %1551 = vmatpush1.msra.mxu0 0.0
    %1552 = vmatprep.subr.mxu0 0.0
    %1553 = vmatpush1.msra.mxu0 0.0
    %1554 = vmatprep.subr.mxu0 0.0
    %1555 = vmatpush1.msra.mxu0 0.0
    %1556 = vmatprep.subr.mxu0 0.0
    %1557 = vmatpush1.msra.mxu0 0.0
    %1558 = vmatprep.subr.mxu0 0.0
    %1559 = vmatpush1.msra.mxu0 0.0
    %1560 = vmatprep.subr.mxu0 0.0
    %1561 = vmatpush1.msra.mxu0 0.0
    %1562 = vmatprep.subr.mxu0 0.0
    %1563 = vmatpush1.msra.mxu0 0.0
    %1564 = vmatprep.subr.mxu0 0.0
    %1565 = vmatpush1.msra.mxu0 0.0
    %1566 = vmatprep.subr.mxu0 0.0
    %1567 = vmatpush1.msra.mxu0 0.0
    %1568 = vmatprep.subr.mxu0 0.0
    %1569 = vmatpush1.msra.mxu0 0.0
    %1570 = vmatprep.subr.mxu0 0.0
    %1571 = vmatpush1.msra.mxu0 0.0
    %1572 = vmatprep.subr.mxu0 0.0
    %1573 = vmatpush1.msra.mxu0 0.0
    %1574 = vmatprep.subr.mxu0 0.0
    %1575 = vmatpush1.msra.mxu0 0.0
    %1576 = vmatprep.subr.mxu0 0.0
    %1577 = vmatpush1.msra.mxu0 0.0
    %1578 = vmatprep.subr.mxu0 0.0
    %1579 = vmatpush1.msra.mxu0 0.0
    %1580 = vmatprep.subr.mxu0 0.0
    %1581 = vmatpush1.msra.mxu0 0.0
    %1582 = vmatprep.subr.mxu0 0.0
    %1583 = vmatpush1.msra.mxu0 0.0
    %1584 = vmatprep.subr.mxu0 0.0
    %1585 = vmatpush1.msra.mxu0 0.0
    %1586 = vmatprep.mubr.f32.mxu0 0.0
    %1587 = vmatmul.mubr.f32.gmra.mrb[0].mxu0 %v1520
    %v1588 = vpop.f32.mrb[0].mxu0
    %v1589 = vadd.f32 0.0, %v1588
    %v1590 = vpop.f32.mrb[0].mxu0
    %v1591 = vadd.f32 0.0, %v1590
    %1592 = vdwg.mxu0
    %v1593 = vadd.f32 %v1515, %v1589
    %v1594 = vadd.f32 %v1516, %v1591
    %v1595 = vmul.f32 %v1593, %v181
    %v1596 = vmul.f32 %v1594, %v182
    %v1597 = vxor.u32 %v1595, 2147483648
    %v1598 = vxor.u32 %v1596, 2147483648
    %v1599 = vmul.f32 %v1597, 1.442695
    %v1600 = vpow.pop %v1599
    %v1601 = vmul.f32 %v1598, 1.442695
    %v1602 = vpow.pop %v1601
    %v1603 = vadd.f32 %v1600, 1.0
    %v1604 = vadd.f32 %v1602, 1.0
    %v1605 = vrcp.pop %v1603
    %v1606 = vmul.f32 1.0, %v1605
    %v1607 = vrcp.pop %v1604
    %v1608 = vmul.f32 1.0, %v1607
    %v1609 = vmul.f32 %v1608, 2.0
    %v1610 = vsub.f32 %v1609, 1.0
    %v1611 = vmul.f32 %v1606, %v1512
    %v1612 = vmul.f32 %v1606, %v1610
    %1614 = vrot.lane.b32.xlu0 %v1612, 64
    %v1615 = vpop.permute.xlu0 %1614
    %v1617 = vadd.f32 %v1611, %v1615
    %v1618 = vtanh.pop %v1617
    %v1619 = vmul.f32 %v1608, %v1618
    %v1620 = vsel %vm372, %v1381, %v1399
    %v1621 = vsel %vm373, %v1383, %v1401
    %1623 = vrot.lane.b32.xlu0 %v1619, 64
    %v1624 = vpop.permute.xlu0 %1623
    %v1625 = vsel %vm376, %v1624, 0
    %1627 = vmatprep.subr.mxu0 %v1251
    %1628 = vmatpush1.msra.mxu0 %v1250
    %1629 = vmatprep.subr.mxu0 %v1253
    %1630 = vmatpush1.msra.mxu0 %v1252
    %1631 = vmatprep.subr.mxu0 %v1255
    %1632 = vmatpush1.msra.mxu0 %v1254
    %1633 = vmatprep.subr.mxu0 %v1257
    %1634 = vmatpush1.msra.mxu0 %v1256
    %1635 = vmatprep.subr.mxu0 %v1259
    %1636 = vmatpush1.msra.mxu0 %v1258
    %1637 = vmatprep.subr.mxu0 %v1261
    %1638 = vmatpush1.msra.mxu0 %v1260
    %1639 = vmatprep.subr.mxu0 %v1263
    %1640 = vmatpush1.msra.mxu0 %v1262
    %1641 = vmatprep.subr.mxu0 %v1265
    %1642 = vmatpush1.msra.mxu0 %v1264
    %1643 = vmatprep.subr.mxu0 0.0
    %1644 = vmatpush1.msra.mxu0 0.0
    %1645 = vmatprep.subr.mxu0 0.0
    %1646 = vmatpush1.msra.mxu0 0.0
    %1647 = vmatprep.subr.mxu0 0.0
    %1648 = vmatpush1.msra.mxu0 0.0
    %1649 = vmatprep.subr.mxu0 0.0
    %1650 = vmatpush1.msra.mxu0 0.0
    %1651 = vmatprep.subr.mxu0 0.0
    %1652 = vmatpush1.msra.mxu0 0.0
    %1653 = vmatprep.subr.mxu0 0.0
    %1654 = vmatpush1.msra.mxu0 0.0
    %1655 = vmatprep.subr.mxu0 0.0
    %1656 = vmatpush1.msra.mxu0 0.0
    %1657 = vmatprep.subr.mxu0 0.0
    %1658 = vmatpush1.msra.mxu0 0.0
    %1659 = vmatprep.subr.mxu0 0.0
    %1660 = vmatpush1.msra.mxu0 0.0
    %1661 = vmatprep.subr.mxu0 0.0
    %1662 = vmatpush1.msra.mxu0 0.0
    %1663 = vmatprep.subr.mxu0 0.0
    %1664 = vmatpush1.msra.mxu0 0.0
    %1665 = vmatprep.subr.mxu0 0.0
    %1666 = vmatpush1.msra.mxu0 0.0
    %1667 = vmatprep.subr.mxu0 0.0
    %1668 = vmatpush1.msra.mxu0 0.0
    %1669 = vmatprep.subr.mxu0 0.0
    %1670 = vmatpush1.msra.mxu0 0.0
    %1671 = vmatprep.subr.mxu0 0.0
    %1672 = vmatpush1.msra.mxu0 0.0
    %1673 = vmatprep.subr.mxu0 0.0
    %1674 = vmatpush1.msra.mxu0 0.0
    %1675 = vmatprep.subr.mxu0 0.0
    %1676 = vmatpush1.msra.mxu0 0.0
    %1677 = vmatprep.subr.mxu0 0.0
    %1678 = vmatpush1.msra.mxu0 0.0
    %1679 = vmatprep.subr.mxu0 0.0
    %1680 = vmatpush1.msra.mxu0 0.0
    %1681 = vmatprep.subr.mxu0 0.0
    %1682 = vmatpush1.msra.mxu0 0.0
    %1683 = vmatprep.subr.mxu0 0.0
    %1684 = vmatpush1.msra.mxu0 0.0
    %1685 = vmatprep.subr.mxu0 0.0
    %1686 = vmatpush1.msra.mxu0 0.0
    %1687 = vmatprep.subr.mxu0 0.0
    %1688 = vmatpush1.msra.mxu0 0.0
    %1689 = vmatprep.subr.mxu0 0.0
    %1690 = vmatpush1.msra.mxu0 0.0
    %1691 = vmatprep.mubr.f32.mxu0 0.0
    %1692 = vmatmul.mubr.f32.gmra.mrb[0].mxu0 %v1625
    %v1693 = vpop.f32.mrb[0].mxu0
    %v1694 = vadd.f32 0.0, %v1693
    %v1695 = vpop.f32.mrb[0].mxu0
    %v1696 = vadd.f32 0.0, %v1695
    %1697 = vdwg.mxu0
    %v1698 = vadd.f32 %v1620, %v1694
    %v1699 = vadd.f32 %v1621, %v1696
    %v1700 = vmul.f32 %v1698, %v181
    %v1701 = vmul.f32 %v1699, %v182
    %v1702 = vxor.u32 %v1700, 2147483648
    %v1703 = vxor.u32 %v1701, 2147483648
    %v1704 = vmul.f32 %v1702, 1.442695
    %v1705 = vpow.pop %v1704
    %v1706 = vmul.f32 %v1703, 1.442695
    %v1707 = vpow.pop %v1706
    %v1708 = vadd.f32 %v1705, 1.0
    %v1709 = vadd.f32 %v1707, 1.0
    %v1710 = vrcp.pop %v1708
    %v1711 = vmul.f32 1.0, %v1710
    %v1712 = vrcp.pop %v1709
    %v1713 = vmul.f32 1.0, %v1712
    %v1714 = vmul.f32 %v1713, 2.0
    %v1715 = vsub.f32 %v1714, 1.0
    %v1716 = vmul.f32 %v1711, %v1617
    %v1717 = vmul.f32 %v1711, %v1715
    %1719 = vrot.lane.b32.xlu0 %v1717, 64
    %v1720 = vpop.permute.xlu0 %1719
    %v1722 = vadd.f32 %v1716, %v1720
    %v1723 = vtanh.pop %v1722
    %v1724 = vmul.f32 %v1713, %v1723
    %v1725 = vsel %vm372, %v1387, %v1393
    %v1726 = vsel %vm373, %v1389, %v1395
    %1728 = vrot.lane.b32.xlu0 %v1724, 64
    %v1729 = vpop.permute.xlu0 %1728
    %v1730 = vsel %vm376, %v1729, 0
    %1732 = vmatprep.subr.mxu0 %v1251
    %1733 = vmatpush1.msra.mxu0 %v1250
    %1734 = vmatprep.subr.mxu0 %v1253
    %1735 = vmatpush1.msra.mxu0 %v1252
    %1736 = vmatprep.subr.mxu0 %v1255
    %1737 = vmatpush1.msra.mxu0 %v1254
    %1738 = vmatprep.subr.mxu0 %v1257
    %1739 = vmatpush1.msra.mxu0 %v1256
    %1740 = vmatprep.subr.mxu0 %v1259
    %1741 = vmatpush1.msra.mxu0 %v1258
    %1742 = vmatprep.subr.mxu0 %v1261
    %1743 = vmatpush1.msra.mxu0 %v1260
    %1744 = vmatprep.subr.mxu0 %v1263
    %1745 = vmatpush1.msra.mxu0 %v1262
    %1746 = vmatprep.subr.mxu0 %v1265
    %1747 = vmatpush1.msra.mxu0 %v1264
    %1748 = vmatprep.subr.mxu0 0.0
    %1749 = vmatpush1.msra.mxu0 0.0
    %1750 = vmatprep.subr.mxu0 0.0
    %1751 = vmatpush1.msra.mxu0 0.0
    %1752 = vmatprep.subr.mxu0 0.0
    %1753 = vmatpush1.msra.mxu0 0.0
    %1754 = vmatprep.subr.mxu0 0.0
    %1755 = vmatpush1.msra.mxu0 0.0
    %1756 = vmatprep.subr.mxu0 0.0
    %1757 = vmatpush1.msra.mxu0 0.0
    %1758 = vmatprep.subr.mxu0 0.0
    %1759 = vmatpush1.msra.mxu0 0.0
    %1760 = vmatprep.subr.mxu0 0.0
    %1761 = vmatpush1.msra.mxu0 0.0
    %1762 = vmatprep.subr.mxu0 0.0
    %1763 = vmatpush1.msra.mxu0 0.0
    %1764 = vmatprep.subr.mxu0 0.0
    %1765 = vmatpush1.msra.mxu0 0.0
    %1766 = vmatprep.subr.mxu0 0.0
    %1767 = vmatpush1.msra.mxu0 0.0
    %1768 = vmatprep.subr.mxu0 0.0
    %1769 = vmatpush1.msra.mxu0 0.0
    %1770 = vmatprep.subr.mxu0 0.0
    %1771 = vmatpush1.msra.mxu0 0.0
    %1772 = vmatprep.subr.mxu0 0.0
    %1773 = vmatpush1.msra.mxu0 0.0
    %1774 = vmatprep.subr.mxu0 0.0
    %1775 = vmatpush1.msra.mxu0 0.0
    %1776 = vmatprep.subr.mxu0 0.0
    %1777 = vmatpush1.msra.mxu0 0.0
    %1778 = vmatprep.subr.mxu0 0.0
    %1779 = vmatpush1.msra.mxu0 0.0
    %1780 = vmatprep.subr.mxu0 0.0
    %1781 = vmatpush1.msra.mxu0 0.0
    %1782 = vmatprep.subr.mxu0 0.0
    %1783 = vmatpush1.msra.mxu0 0.0
    %1784 = vmatprep.subr.mxu0 0.0
    %1785 = vmatpush1.msra.mxu0 0.0
    %1786 = vmatprep.subr.mxu0 0.0
    %1787 = vmatpush1.msra.mxu0 0.0
    %1788 = vmatprep.subr.mxu0 0.0
    %1789 = vmatpush1.msra.mxu0 0.0
    %1790 = vmatprep.subr.mxu0 0.0
    %1791 = vmatpush1.msra.mxu0 0.0
    %1792 = vmatprep.subr.mxu0 0.0
    %1793 = vmatpush1.msra.mxu0 0.0
    %1794 = vmatprep.subr.mxu0 0.0
    %1795 = vmatpush1.msra.mxu0 0.0
    %1796 = vmatprep.mubr.f32.mxu0 0.0
    %1797 = vmatmul.mubr.f32.gmra.mrb[0].mxu0 %v1730
    %v1798 = vpop.f32.mrb[0].mxu0
    %v1799 = vadd.f32 0.0, %v1798
    %v1800 = vpop.f32.mrb[0].mxu0
    %v1801 = vadd.f32 0.0, %v1800
    %1802 = vdwg.mxu0
    %v1803 = vadd.f32 %v1725, %v1799
    %v1804 = vadd.f32 %v1726, %v1801
    %v1805 = vmul.f32 %v1803, %v181
    %v1806 = vmul.f32 %v1804, %v182
    %v1807 = vxor.u32 %v1805, 2147483648
    %v1808 = vxor.u32 %v1806, 2147483648
    %v1809 = vmul.f32 %v1807, 1.442695
    %v1810 = vpow.pop %v1809
    %v1811 = vmul.f32 %v1808, 1.442695
    %v1812 = vpow.pop %v1811
    %v1813 = vadd.f32 %v1810, 1.0
    %v1814 = vadd.f32 %v1812, 1.0
    %v1815 = vrcp.pop %v1813
    %v1816 = vmul.f32 1.0, %v1815
    %v1817 = vrcp.pop %v1814
    %v1818 = vmul.f32 1.0, %v1817
    %v1819 = vmul.f32 %v1818, 2.0
    %v1820 = vsub.f32 %v1819, 1.0
    %v1821 = vmul.f32 %v1816, %v1722
    %v1822 = vmul.f32 %v1816, %v1820
    %1824 = vrot.lane.b32.xlu0 %v1822, 64
    %v1825 = vpop.permute.xlu0 %1824
    %v1827 = vadd.f32 %v1821, %v1825
    %v1828 = vtanh.pop %v1827
    %v1829 = vmul.f32 %v1818, %v1828
    %v1830 = vsel %vm372, %v1393, %v1387
    %v1831 = vsel %vm373, %v1395, %v1389
    %1833 = vrot.lane.b32.xlu0 %v1829, 64
    %v1834 = vpop.permute.xlu0 %1833
    %v1835 = vsel %vm376, %v1834, 0
    %1837 = vmatprep.subr.mxu0 %v1251
    %1838 = vmatpush1.msra.mxu0 %v1250
    %1839 = vmatprep.subr.mxu0 %v1253
    %1840 = vmatpush1.msra.mxu0 %v1252
    %1841 = vmatprep.subr.mxu0 %v1255
    %1842 = vmatpush1.msra.mxu0 %v1254
    %1843 = vmatprep.subr.mxu0 %v1257
    %1844 = vmatpush1.msra.mxu0 %v1256
    %1845 = vmatprep.subr.mxu0 %v1259
    %1846 = vmatpush1.msra.mxu0 %v1258
    %1847 = vmatprep.subr.mxu0 %v1261
    %1848 = vmatpush1.msra.mxu0 %v1260
    %1849 = vmatprep.subr.mxu0 %v1263
    %1850 = vmatpush1.msra.mxu0 %v1262
    %1851 = vmatprep.subr.mxu0 %v1265
    %1852 = vmatpush1.msra.mxu0 %v1264
    %1853 = vmatprep.subr.mxu0 0.0
    %1854 = vmatpush1.msra.mxu0 0.0
    %1855 = vmatprep.subr.mxu0 0.0
    %1856 = vmatpush1.msra.mxu0 0.0
    %1857 = vmatprep.subr.mxu0 0.0
    %1858 = vmatpush1.msra.mxu0 0.0
    %1859 = vmatprep.subr.mxu0 0.0
    %1860 = vmatpush1.msra.mxu0 0.0
    %1861 = vmatprep.subr.mxu0 0.0
    %1862 = vmatpush1.msra.mxu0 0.0
    %1863 = vmatprep.subr.mxu0 0.0
    %1864 = vmatpush1.msra.mxu0 0.0
    %1865 = vmatprep.subr.mxu0 0.0
    %1866 = vmatpush1.msra.mxu0 0.0
    %1867 = vmatprep.subr.mxu0 0.0
    %1868 = vmatpush1.msra.mxu0 0.0
    %1869 = vmatprep.subr.mxu0 0.0
    %1870 = vmatpush1.msra.mxu0 0.0
    %1871 = vmatprep.subr.mxu0 0.0
    %1872 = vmatpush1.msra.mxu0 0.0
    %1873 = vmatprep.subr.mxu0 0.0
    %1874 = vmatpush1.msra.mxu0 0.0
    %1875 = vmatprep.subr.mxu0 0.0
    %1876 = vmatpush1.msra.mxu0 0.0
    %1877 = vmatprep.subr.mxu0 0.0
    %1878 = vmatpush1.msra.mxu0 0.0
    %1879 = vmatprep.subr.mxu0 0.0
    %1880 = vmatpush1.msra.mxu0 0.0
    %1881 = vmatprep.subr.mxu0 0.0
    %1882 = vmatpush1.msra.mxu0 0.0
    %1883 = vmatprep.subr.mxu0 0.0
    %1884 = vmatpush1.msra.mxu0 0.0
    %1885 = vmatprep.subr.mxu0 0.0
    %1886 = vmatpush1.msra.mxu0 0.0
    %1887 = vmatprep.subr.mxu0 0.0
    %1888 = vmatpush1.msra.mxu0 0.0
    %1889 = vmatprep.subr.mxu0 0.0
    %1890 = vmatpush1.msra.mxu0 0.0
    %1891 = vmatprep.subr.mxu0 0.0
    %1892 = vmatpush1.msra.mxu0 0.0
    %1893 = vmatprep.subr.mxu0 0.0
    %1894 = vmatpush1.msra.mxu0 0.0
    %1895 = vmatprep.subr.mxu0 0.0
    %1896 = vmatpush1.msra.mxu0 0.0
    %1897 = vmatprep.subr.mxu0 0.0
    %1898 = vmatpush1.msra.mxu0 0.0
    %1899 = vmatprep.subr.mxu0 0.0
    %1900 = vmatpush1.msra.mxu0 0.0
    %1901 = vmatprep.mubr.f32.mxu0 0.0
    %1902 = vmatmul.mubr.f32.gmra.mrb[0].mxu0 %v1835
    %v1903 = vpop.f32.mrb[0].mxu0
    %v1904 = vadd.f32 0.0, %v1903
    %v1905 = vpop.f32.mrb[0].mxu0
    %v1906 = vadd.f32 0.0, %v1905
    %1907 = vdwg.mxu0
    %v1908 = vadd.f32 %v1830, %v1904
    %v1909 = vadd.f32 %v1831, %v1906
    %v1910 = vmul.f32 %v1908, %v181
    %v1911 = vmul.f32 %v1909, %v182
    %v1912 = vxor.u32 %v1910, 2147483648
    %v1913 = vxor.u32 %v1911, 2147483648
    %v1914 = vmul.f32 %v1912, 1.442695
    %v1915 = vpow.pop %v1914
    %v1916 = vmul.f32 %v1913, 1.442695
    %v1917 = vpow.pop %v1916
    %v1918 = vadd.f32 %v1915, 1.0
    %v1919 = vadd.f32 %v1917, 1.0
    %v1920 = vrcp.pop %v1918
    %v1921 = vmul.f32 1.0, %v1920
    %v1922 = vrcp.pop %v1919
    %v1923 = vmul.f32 1.0, %v1922
    %v1924 = vmul.f32 %v1923, 2.0
    %v1925 = vsub.f32 %v1924, 1.0
    %v1926 = vmul.f32 %v1921, %v1827
    %v1927 = vmul.f32 %v1921, %v1925
    %1929 = vrot.lane.b32.xlu0 %v1927, 64
    %v1930 = vpop.permute.xlu0 %1929
    %v1932 = vadd.f32 %v1926, %v1930
    %v1933 = vtanh.pop %v1932
    %v1934 = vmul.f32 %v1923, %v1933
    %v1935 = vsel %vm372, %v1399, %v1381
    %v1936 = vsel %vm373, %v1401, %v1383
    %1938 = vrot.lane.b32.xlu0 %v1934, 64
    %v1939 = vpop.permute.xlu0 %1938
    %v1940 = vsel %vm376, %v1939, 0
    %1942 = vmatprep.subr.mxu0 %v1251
    %1943 = vmatpush1.msra.mxu0 %v1250
    %1944 = vmatprep.subr.mxu0 %v1253
    %1945 = vmatpush1.msra.mxu0 %v1252
    %1946 = vmatprep.subr.mxu0 %v1255
    %1947 = vmatpush1.msra.mxu0 %v1254
    %1948 = vmatprep.subr.mxu0 %v1257
    %1949 = vmatpush1.msra.mxu0 %v1256
    %1950 = vmatprep.subr.mxu0 %v1259
    %1951 = vmatpush1.msra.mxu0 %v1258
    %1952 = vmatprep.subr.mxu0 %v1261
    %1953 = vmatpush1.msra.mxu0 %v1260
    %1954 = vmatprep.subr.mxu0 %v1263
    %1955 = vmatpush1.msra.mxu0 %v1262
    %1956 = vmatprep.subr.mxu0 %v1265
    %1957 = vmatpush1.msra.mxu0 %v1264
    %1958 = vmatprep.subr.mxu0 0.0
    %1959 = vmatpush1.msra.mxu0 0.0
    %1960 = vmatprep.subr.mxu0 0.0
    %1961 = vmatpush1.msra.mxu0 0.0
    %1962 = vmatprep.subr.mxu0 0.0
    %1963 = vmatpush1.msra.mxu0 0.0
    %1964 = vmatprep.subr.mxu0 0.0
    %1965 = vmatpush1.msra.mxu0 0.0
    %1966 = vmatprep.subr.mxu0 0.0
    %1967 = vmatpush1.msra.mxu0 0.0
    %1968 = vmatprep.subr.mxu0 0.0
    %1969 = vmatpush1.msra.mxu0 0.0
    %1970 = vmatprep.subr.mxu0 0.0
    %1971 = vmatpush1.msra.mxu0 0.0
    %1972 = vmatprep.subr.mxu0 0.0
    %1973 = vmatpush1.msra.mxu0 0.0
    %1974 = vmatprep.subr.mxu0 0.0
    %1975 = vmatpush1.msra.mxu0 0.0
    %1976 = vmatprep.subr.mxu0 0.0
    %1977 = vmatpush1.msra.mxu0 0.0
    %1978 = vmatprep.subr.mxu0 0.0
    %1979 = vmatpush1.msra.mxu0 0.0
    %1980 = vmatprep.subr.mxu0 0.0
    %1981 = vmatpush1.msra.mxu0 0.0
    %1982 = vmatprep.subr.mxu0 0.0
    %1983 = vmatpush1.msra.mxu0 0.0
    %1984 = vmatprep.subr.mxu0 0.0
    %1985 = vmatpush1.msra.mxu0 0.0
    %1986 = vmatprep.subr.mxu0 0.0
    %1987 = vmatpush1.msra.mxu0 0.0
    %1988 = vmatprep.subr.mxu0 0.0
    %1989 = vmatpush1.msra.mxu0 0.0
    %1990 = vmatprep.subr.mxu0 0.0
    %1991 = vmatpush1.msra.mxu0 0.0
    %1992 = vmatprep.subr.mxu0 0.0
    %1993 = vmatpush1.msra.mxu0 0.0
    %1994 = vmatprep.subr.mxu0 0.0
    %1995 = vmatpush1.msra.mxu0 0.0
    %1996 = vmatprep.subr.mxu0 0.0
    %1997 = vmatpush1.msra.mxu0 0.0
    %1998 = vmatprep.subr.mxu0 0.0
    %1999 = vmatpush1.msra.mxu0 0.0
    %2000 = vmatprep.subr.mxu0 0.0
    %2001 = vmatpush1.msra.mxu0 0.0
    %2002 = vmatprep.subr.mxu0 0.0
    %2003 = vmatpush1.msra.mxu0 0.0
    %2004 = vmatprep.subr.mxu0 0.0
    %2005 = vmatpush1.msra.mxu0 0.0
    %2006 = vmatprep.mubr.f32.mxu0 0.0
    %2007 = vmatmul.mubr.f32.gmra.mrb[0].mxu0 %v1940
    %v2008 = vpop.f32.mrb[0].mxu0
    %v2009 = vadd.f32 0.0, %v2008
    %v2010 = vpop.f32.mrb[0].mxu0
    %v2011 = vadd.f32 0.0, %v2010
    %2012 = vdwg.mxu0
    %v2013 = vadd.f32 %v1935, %v2009
    %v2014 = vadd.f32 %v1936, %v2011
    %v2015 = vmul.f32 %v2013, %v181
    %v2016 = vmul.f32 %v2014, %v182
    %v2017 = vxor.u32 %v2015, 2147483648
    %v2018 = vxor.u32 %v2016, 2147483648
    %v2019 = vmul.f32 %v2017, 1.442695
    %v2020 = vpow.pop %v2019
    %v2021 = vmul.f32 %v2018, 1.442695
    %v2022 = vpow.pop %v2021
    %v2023 = vadd.f32 %v2020, 1.0
    %v2024 = vadd.f32 %v2022, 1.0
    %v2025 = vrcp.pop %v2023
    %v2026 = vmul.f32 1.0, %v2025
    %v2027 = vrcp.pop %v2024
    %v2028 = vmul.f32 1.0, %v2027
    %v2029 = vmul.f32 %v2028, 2.0
    %v2030 = vsub.f32 %v2029, 1.0
    %v2031 = vmul.f32 %v2026, %v1932
    %v2032 = vmul.f32 %v2026, %v2030
    %2034 = vrot.lane.b32.xlu0 %v2032, 64
    %v2035 = vpop.permute.xlu0 %2034
    %v2037 = vadd.f32 %v2031, %v2035
    %v2038 = vtanh.pop %v2037
    %v2039 = vmul.f32 %v2028, %v2038
    %v2040 = vsel %vm372, %v1405, %v1375
    %v2041 = vsel %vm373, %v1407, %v1377
    %2043 = vrot.lane.b32.xlu0 %v2039, 64
    %v2044 = vpop.permute.xlu0 %2043
    %v2045 = vsel %vm376, %v2044, 0
    %2047 = vmatprep.subr.mxu0 %v1251
    %2048 = vmatpush1.msra.mxu0 %v1250
    %2049 = vmatprep.subr.mxu0 %v1253
    %2050 = vmatpush1.msra.mxu0 %v1252
    %2051 = vmatprep.subr.mxu0 %v1255
    %2052 = vmatpush1.msra.mxu0 %v1254
    %2053 = vmatprep.subr.mxu0 %v1257
    %2054 = vmatpush1.msra.mxu0 %v1256
    %2055 = vmatprep.subr.mxu0 %v1259
    %2056 = vmatpush1.msra.mxu0 %v1258
    %2057 = vmatprep.subr.mxu0 %v1261
    %2058 = vmatpush1.msra.mxu0 %v1260
    %2059 = vmatprep.subr.mxu0 %v1263
    %2060 = vmatpush1.msra.mxu0 %v1262
    %2061 = vmatprep.subr.mxu0 %v1265
    %2062 = vmatpush1.msra.mxu0 %v1264
    %2063 = vmatprep.subr.mxu0 0.0
    %2064 = vmatpush1.msra.mxu0 0.0
    %2065 = vmatprep.subr.mxu0 0.0
    %2066 = vmatpush1.msra.mxu0 0.0
    %2067 = vmatprep.subr.mxu0 0.0
    %2068 = vmatpush1.msra.mxu0 0.0
    %2069 = vmatprep.subr.mxu0 0.0
    %2070 = vmatpush1.msra.mxu0 0.0
    %2071 = vmatprep.subr.mxu0 0.0
    %2072 = vmatpush1.msra.mxu0 0.0
    %2073 = vmatprep.subr.mxu0 0.0
    %2074 = vmatpush1.msra.mxu0 0.0
    %2075 = vmatprep.subr.mxu0 0.0
    %2076 = vmatpush1.msra.mxu0 0.0
    %2077 = vmatprep.subr.mxu0 0.0
    %2078 = vmatpush1.msra.mxu0 0.0
    %2079 = vmatprep.subr.mxu0 0.0
    %2080 = vmatpush1.msra.mxu0 0.0
    %2081 = vmatprep.subr.mxu0 0.0
    %2082 = vmatpush1.msra.mxu0 0.0
    %2083 = vmatprep.subr.mxu0 0.0
    %2084 = vmatpush1.msra.mxu0 0.0
    %2085 = vmatprep.subr.mxu0 0.0
    %2086 = vmatpush1.msra.mxu0 0.0
    %2087 = vmatprep.subr.mxu0 0.0
    %2088 = vmatpush1.msra.mxu0 0.0
    %2089 = vmatprep.subr.mxu0 0.0
    %2090 = vmatpush1.msra.mxu0 0.0
    %2091 = vmatprep.subr.mxu0 0.0
    %2092 = vmatpush1.msra.mxu0 0.0
    %2093 = vmatprep.subr.mxu0 0.0
    %2094 = vmatpush1.msra.mxu0 0.0
    %2095 = vmatprep.subr.mxu0 0.0
    %2096 = vmatpush1.msra.mxu0 0.0
    %2097 = vmatprep.subr.mxu0 0.0
    %2098 = vmatpush1.msra.mxu0 0.0
    %2099 = vmatprep.subr.mxu0 0.0
    %2100 = vmatpush1.msra.mxu0 0.0
    %2101 = vmatprep.subr.mxu0 0.0
    %2102 = vmatpush1.msra.mxu0 0.0
    %2103 = vmatprep.subr.mxu0 0.0
    %2104 = vmatpush1.msra.mxu0 0.0
    %2105 = vmatprep.subr.mxu0 0.0
    %2106 = vmatpush1.msra.mxu0 0.0
    %2107 = vmatprep.subr.mxu0 0.0
    %2108 = vmatpush1.msra.mxu0 0.0
    %2109 = vmatprep.subr.mxu0 0.0
    %2110 = vmatpush1.msra.mxu0 0.0
    %2111 = vmatprep.mubr.f32.mxu0 0.0
    %2112 = vmatmul.mubr.f32.gmra.mrb[0].mxu0 %v2045
    %v2113 = vpop.f32.mrb[0].mxu0
    %v2114 = vadd.f32 0.0, %v2113
    %v2115 = vpop.f32.mrb[0].mxu0
    %v2116 = vadd.f32 0.0, %v2115
    %2117 = vdwg.mxu0
    %v2118 = vadd.f32 %v2040, %v2114
    %v2119 = vadd.f32 %v2041, %v2116
    %v2120 = vmul.f32 %v2118, %v181
    %v2121 = vmul.f32 %v2119, %v182
    %v2122 = vxor.u32 %v2120, 2147483648
    %v2123 = vxor.u32 %v2121, 2147483648
    %v2124 = vmul.f32 %v2122, 1.442695
    %v2125 = vpow.pop %v2124
    %v2126 = vmul.f32 %v2123, 1.442695
    %v2127 = vpow.pop %v2126
    %v2128 = vadd.f32 %v2125, 1.0
    %v2129 = vadd.f32 %v2127, 1.0
    %v2130 = vrcp.pop %v2128
    %v2131 = vmul.f32 1.0, %v2130
    %v2132 = vrcp.pop %v2129
    %v2133 = vmul.f32 1.0, %v2132
    %v2134 = vmul.f32 %v2133, 2.0
    %v2135 = vsub.f32 %v2134, 1.0
    %v2136 = vmul.f32 %v2131, %v2037
    %v2137 = vmul.f32 %v2131, %v2135
    %2139 = vrot.lane.b32.xlu0 %v2137, 64
    %v2140 = vpop.permute.xlu0 %2139
    %v2142 = vadd.f32 %v2136, %v2140
    %v2143 = vtanh.pop %v2142
    %v2144 = vmul.f32 %v2133, %v2143
    %v2145 = vsel %vm372, %v1411, %v1369
    %v2146 = vsel %vm373, %v1413, %v1371
    %2148 = vrot.lane.b32.xlu0 %v2144, 64
    %v2149 = vpop.permute.xlu0 %2148
    %v2150 = vsel %vm376, %v2149, 0
    %2152 = vmatprep.subr.mxu0 %v1251
    %2153 = vmatpush1.msra.mxu0 %v1250
    %2154 = vmatprep.subr.mxu0 %v1253
    %2155 = vmatpush1.msra.mxu0 %v1252
    %2156 = vmatprep.subr.mxu0 %v1255
    %2157 = vmatpush1.msra.mxu0 %v1254
    %2158 = vmatprep.subr.mxu0 %v1257
    %2159 = vmatpush1.msra.mxu0 %v1256
    %2160 = vmatprep.subr.mxu0 %v1259
    %2161 = vmatpush1.msra.mxu0 %v1258
    %2162 = vmatprep.subr.mxu0 %v1261
    %2163 = vmatpush1.msra.mxu0 %v1260
    %2164 = vmatprep.subr.mxu0 %v1263
    %2165 = vmatpush1.msra.mxu0 %v1262
    %2166 = vmatprep.subr.mxu0 %v1265
    %2167 = vmatpush1.msra.mxu0 %v1264
    %2168 = vmatprep.subr.mxu0 0.0
    %2169 = vmatpush1.msra.mxu0 0.0
    %2170 = vmatprep.subr.mxu0 0.0
    %2171 = vmatpush1.msra.mxu0 0.0
    %2172 = vmatprep.subr.mxu0 0.0
    %2173 = vmatpush1.msra.mxu0 0.0
    %2174 = vmatprep.subr.mxu0 0.0
    %2175 = vmatpush1.msra.mxu0 0.0
    %2176 = vmatprep.subr.mxu0 0.0
    %2177 = vmatpush1.msra.mxu0 0.0
    %2178 = vmatprep.subr.mxu0 0.0
    %2179 = vmatpush1.msra.mxu0 0.0
    %2180 = vmatprep.subr.mxu0 0.0
    %2181 = vmatpush1.msra.mxu0 0.0
    %2182 = vmatprep.subr.mxu0 0.0
    %2183 = vmatpush1.msra.mxu0 0.0
    %2184 = vmatprep.subr.mxu0 0.0
    %2185 = vmatpush1.msra.mxu0 0.0
    %2186 = vmatprep.subr.mxu0 0.0
    %2187 = vmatpush1.msra.mxu0 0.0
    %2188 = vmatprep.subr.mxu0 0.0
    %2189 = vmatpush1.msra.mxu0 0.0
    %2190 = vmatprep.subr.mxu0 0.0
    %2191 = vmatpush1.msra.mxu0 0.0
    %2192 = vmatprep.subr.mxu0 0.0
    %2193 = vmatpush1.msra.mxu0 0.0
    %2194 = vmatprep.subr.mxu0 0.0
    %2195 = vmatpush1.msra.mxu0 0.0
    %2196 = vmatprep.subr.mxu0 0.0
    %2197 = vmatpush1.msra.mxu0 0.0
    %2198 = vmatprep.subr.mxu0 0.0
    %2199 = vmatpush1.msra.mxu0 0.0
    %2200 = vmatprep.subr.mxu0 0.0
    %2201 = vmatpush1.msra.mxu0 0.0
    %2202 = vmatprep.subr.mxu0 0.0
    %2203 = vmatpush1.msra.mxu0 0.0
    %2204 = vmatprep.subr.mxu0 0.0
    %2205 = vmatpush1.msra.mxu0 0.0
    %2206 = vmatprep.subr.mxu0 0.0
    %2207 = vmatpush1.msra.mxu0 0.0
    %2208 = vmatprep.subr.mxu0 0.0
    %2209 = vmatpush1.msra.mxu0 0.0
    %2210 = vmatprep.subr.mxu0 0.0
    %2211 = vmatpush1.msra.mxu0 0.0
    %2212 = vmatprep.subr.mxu0 0.0
    %2213 = vmatpush1.msra.mxu0 0.0
    %2214 = vmatprep.subr.mxu0 0.0
    %2215 = vmatpush1.msra.mxu0 0.0
    %2216 = vmatprep.mubr.f32.mxu0 0.0
    %2217 = vmatmul.mubr.f32.gmra.mrb[0].mxu0 %v2150
    %v2218 = vpop.f32.mrb[0].mxu0
    %v2219 = vadd.f32 0.0, %v2218
    %v2220 = vpop.f32.mrb[0].mxu0
    %v2221 = vadd.f32 0.0, %v2220
    %2222 = vdwg.mxu0
    %v2223 = vadd.f32 %v2145, %v2219
    %v2224 = vadd.f32 %v2146, %v2221
    %v2225 = vmul.f32 %v2223, %v181
    %v2226 = vmul.f32 %v2224, %v182
    %v2227 = vxor.u32 %v2225, 2147483648
    %v2228 = vxor.u32 %v2226, 2147483648
    %v2229 = vmul.f32 %v2227, 1.442695
    %v2230 = vpow.pop %v2229
    %v2231 = vmul.f32 %v2228, 1.442695
    %v2232 = vpow.pop %v2231
    %v2233 = vadd.f32 %v2230, 1.0
    %v2234 = vadd.f32 %v2232, 1.0
    %v2235 = vrcp.pop %v2233
    %v2236 = vmul.f32 1.0, %v2235
    %v2237 = vrcp.pop %v2234
    %v2238 = vmul.f32 1.0, %v2237
    %v2239 = vmul.f32 %v2238, 2.0
    %v2240 = vsub.f32 %v2239, 1.0
    %v2241 = vmul.f32 %v2236, %v2142
    %v2242 = vmul.f32 %v2236, %v2240
    %2244 = vrot.lane.b32.xlu0 %v2242, 64
    %v2245 = vpop.permute.xlu0 %2244
    %v2247 = vadd.f32 %v2241, %v2245
    %v2248 = vtanh.pop %v2247
    %v2249 = vmul.f32 %v2238, %v2248
    %2252 = vrot.lane.b32.xlu0 %v2249, 64
    %v2253 = vpop.permute.xlu0 %2252
    %v2255 = vsel %vm1214, %v1519, %v2253
    %v2258 = vsel %vm1214, %v1624, %v2149
    %v2261 = vsel %vm1214, %v1729, %v2044
    %v2264 = vsel %vm1214, %v1834, %v1939
    %v2265 = vsel %vm1214, %v1939, %v1834
    %v2266 = vsel %vm1214, %v2044, %v1729
    %v2267 = vsel %vm1214, %v2149, %v1624
    %v2268 = vsel %vm1214, %v2253, %v1519
    %s2269 = scalar_lea.vmem [#allocation2], 128
    %v2270 = vld [vmem:[%s2269] sm:$0xff]
    %v2271 = vld [vmem:[%s2269 + $0x8] sm:$0xff]
    %v2272 = vld [vmem:[%s2269 + $0x10] sm:$0xff]
    %v2273 = vld [vmem:[%s2269 + $0x18] sm:$0xff]
    %v2274 = vld [vmem:[%s2269 + $0x20] sm:$0xff]
    %v2275 = vld [vmem:[%s2269 + $0x28] sm:$0xff]
    %v2276 = vld [vmem:[%s2269 + $0x30] sm:$0xff]
    %v2277 = vld [vmem:[%s2269 + $0x38] sm:$0xff]
    %v2278 = vld [vmem:[%s2269 + $0x40] sm:$0xff]
    %v2279 = vld [vmem:[%s2269 + $0x48] sm:$0xff]
    %v2280 = vld [vmem:[%s2269 + $0x50] sm:$0xff]
    %v2281 = vld [vmem:[%s2269 + $0x58] sm:$0xff]
    %v2282 = vld [vmem:[%s2269 + $0x60] sm:$0xff]
    %v2283 = vld [vmem:[%s2269 + $0x68] sm:$0xff]
    %v2284 = vld [vmem:[%s2269 + $0x70] sm:$0xff]
    %v2285 = vld [vmem:[%s2269 + $0x78] sm:$0xff]
    %s2286 = scalar_lea.vmem [#allocation4], 128
    %v2287 = vld [vmem:[%s2286] sm:$0xff]
    %v2288 = vld [vmem:[%s2286 + $0x8] sm:$0xff]
    %v2289 = vld [vmem:[%s2286 + $0x10] sm:$0xff]
    %v2290 = vld [vmem:[%s2286 + $0x18] sm:$0xff]
    %v2291 = vld [vmem:[%s2286 + $0x20] sm:$0xff]
    %v2292 = vld [vmem:[%s2286 + $0x28] sm:$0xff]
    %v2293 = vld [vmem:[%s2286 + $0x30] sm:$0xff]
    %v2294 = vld [vmem:[%s2286 + $0x38] sm:$0xff]
    %v2295 = vld [vmem:[%s2286 + $0x40] sm:$0xff]
    %v2296 = vld [vmem:[%s2286 + $0x48] sm:$0xff]
    %v2297 = vld [vmem:[%s2286 + $0x50] sm:$0xff]
    %v2298 = vld [vmem:[%s2286 + $0x58] sm:$0xff]
    %v2299 = vld [vmem:[%s2286 + $0x60] sm:$0xff]
    %v2300 = vld [vmem:[%s2286 + $0x68] sm:$0xff]
    %v2301 = vld [vmem:[%s2286 + $0x70] sm:$0xff]
    %v2302 = vld [vmem:[%s2286 + $0x78] sm:$0xff]
    %s2303 = scalar_lea.vmem [#allocation6], 2
    %v2304 = vld [vmem:[%s2303] sm:$0x3]
    %v2306 = vlaneseq
    %v2307 = vshrl.u32 %v2306, 7
    %v2308 = vsub.s32 0, %v2307
    %v2309 = vrot.slane %v2304, %v2308
    %v2310 = vlaneseq
    %v2311 = vshrl.u32 %v2310, 7
    %v2312 = vsub.s32 1, %v2311
    %v2313 = vrot.slane %v2304, %v2312
    %v2317 = vsel %vm376, %v2255, 0
    %v2320 = vsel %vm376, %v2258, 0
    %v2323 = vsel %vm376, %v2261, 0
    %v2326 = vsel %vm376, %v2264, 0
    %v2329 = vsel %vm376, %v2265, 0
    %v2332 = vsel %vm376, %v2266, 0
    %v2335 = vsel %vm376, %v2267, 0
    %v2338 = vsel %vm376, %v2268, 0
    %2340 = vmatprep.subr.mxu0 %v2271
    %2341 = vmatpush1.msra.mxu0 %v2270
    %2342 = vmatprep.subr.mxu0 %v2273
    %2343 = vmatpush1.msra.mxu0 %v2272
    %2344 = vmatprep.subr.mxu0 %v2275
    %2345 = vmatpush1.msra.mxu0 %v2274
    %2346 = vmatprep.subr.mxu0 %v2277
    %2347 = vmatpush1.msra.mxu0 %v2276
    %2348 = vmatprep.subr.mxu0 %v2279
    %2349 = vmatpush1.msra.mxu0 %v2278
    %2350 = vmatprep.subr.mxu0 %v2281
    %2351 = vmatpush1.msra.mxu0 %v2280
    %2352 = vmatprep.subr.mxu0 %v2283
    %2353 = vmatpush1.msra.mxu0 %v2282
    %2354 = vmatprep.subr.mxu0 %v2285
    %2355 = vmatpush1.msra.mxu0 %v2284
    %2356 = vmatprep.subr.mxu0 0.0
    %2357 = vmatpush1.msra.mxu0 0.0
    %2358 = vmatprep.subr.mxu0 0.0
    %2359 = vmatpush1.msra.mxu0 0.0
    %2360 = vmatprep.subr.mxu0 0.0
    %2361 = vmatpush1.msra.mxu0 0.0
    %2362 = vmatprep.subr.mxu0 0.0
    %2363 = vmatpush1.msra.mxu0 0.0
    %2364 = vmatprep.subr.mxu0 0.0
    %2365 = vmatpush1.msra.mxu0 0.0
    %2366 = vmatprep.subr.mxu0 0.0
    %2367 = vmatpush1.msra.mxu0 0.0
    %2368 = vmatprep.subr.mxu0 0.0
    %2369 = vmatpush1.msra.mxu0 0.0
    %2370 = vmatprep.subr.mxu0 0.0
    %2371 = vmatpush1.msra.mxu0 0.0
    %2372 = vmatprep.subr.mxu0 0.0
    %2373 = vmatpush1.msra.mxu0 0.0
    %2374 = vmatprep.subr.mxu0 0.0
    %2375 = vmatpush1.msra.mxu0 0.0
    %2376 = vmatprep.subr.mxu0 0.0
    %2377 = vmatpush1.msra.mxu0 0.0
    %2378 = vmatprep.subr.mxu0 0.0
    %2379 = vmatpush1.msra.mxu0 0.0
    %2380 = vmatprep.subr.mxu0 0.0
    %2381 = vmatpush1.msra.mxu0 0.0
    %2382 = vmatprep.subr.mxu0 0.0
    %2383 = vmatpush1.msra.mxu0 0.0
    %2384 = vmatprep.subr.mxu0 0.0
    %2385 = vmatpush1.msra.mxu0 0.0
    %2386 = vmatprep.subr.mxu0 0.0
    %2387 = vmatpush1.msra.mxu0 0.0
    %2388 = vmatprep.subr.mxu0 0.0
    %2389 = vmatpush1.msra.mxu0 0.0
    %2390 = vmatprep.subr.mxu0 0.0
    %2391 = vmatpush1.msra.mxu0 0.0
    %2392 = vmatprep.subr.mxu0 0.0
    %2393 = vmatpush1.msra.mxu0 0.0
    %2394 = vmatprep.subr.mxu0 0.0
    %2395 = vmatpush1.msra.mxu0 0.0
    %2396 = vmatprep.subr.mxu0 0.0
    %2397 = vmatpush1.msra.mxu0 0.0
    %2398 = vmatprep.subr.mxu0 0.0
    %2399 = vmatpush1.msra.mxu0 0.0
    %2400 = vmatprep.subr.mxu0 0.0
    %2401 = vmatpush1.msra.mxu0 0.0
    %2402 = vmatprep.subr.mxu0 0.0
    %2403 = vmatpush1.msra.mxu0 0.0
    %2404 = vmatprep.mubr.f32.mxu0 0.0
    %2405 = vmatmul.mubr.f32.gmra.mrb[0].mxu0 %v2317
    %v2406 = vpop.f32.mrb[0].mxu0
    %v2407 = vadd.f32 %v2309, %v2406
    %v2408 = vpop.f32.mrb[0].mxu0
    %v2409 = vadd.f32 %v2313, %v2408
    %2410 = vmatprep.mubr.f32.mxu0 0.0
    %2411 = vmatmul.mubr.f32.gmra.mrb[0].mxu0 %v2320
    %v2412 = vpop.f32.mrb[0].mxu0
    %v2413 = vadd.f32 %v2309, %v2412
    %v2414 = vpop.f32.mrb[0].mxu0
    %v2415 = vadd.f32 %v2313, %v2414
    %2416 = vmatprep.mubr.f32.mxu0 0.0
    %2417 = vmatmul.mubr.f32.gmra.mrb[0].mxu0 %v2323
    %v2418 = vpop.f32.mrb[0].mxu0
    %v2419 = vadd.f32 %v2309, %v2418
    %v2420 = vpop.f32.mrb[0].mxu0
    %v2421 = vadd.f32 %v2313, %v2420
    %2422 = vmatprep.mubr.f32.mxu0 0.0
    %2423 = vmatmul.mubr.f32.gmra.mrb[0].mxu0 %v2326
    %v2424 = vpop.f32.mrb[0].mxu0
    %v2425 = vadd.f32 %v2309, %v2424
    %v2426 = vpop.f32.mrb[0].mxu0
    %v2427 = vadd.f32 %v2313, %v2426
    %2428 = vmatprep.mubr.f32.mxu0 0.0
    %2429 = vmatmul.mubr.f32.gmra.mrb[0].mxu0 %v2329
    %v2430 = vpop.f32.mrb[0].mxu0
    %v2431 = vadd.f32 %v2309, %v2430
    %v2432 = vpop.f32.mrb[0].mxu0
    %v2433 = vadd.f32 %v2313, %v2432
    %2434 = vmatprep.mubr.f32.mxu0 0.0
    %2435 = vmatmul.mubr.f32.gmra.mrb[0].mxu0 %v2332
    %v2436 = vpop.f32.mrb[0].mxu0
    %v2437 = vadd.f32 %v2309, %v2436
    %v2438 = vpop.f32.mrb[0].mxu0
    %v2439 = vadd.f32 %v2313, %v2438
    %2440 = vmatprep.mubr.f32.mxu0 0.0
    %2441 = vmatmul.mubr.f32.gmra.mrb[0].mxu0 %v2335
    %v2442 = vpop.f32.mrb[0].mxu0
    %v2443 = vadd.f32 %v2309, %v2442
    %v2444 = vpop.f32.mrb[0].mxu0
    %v2445 = vadd.f32 %v2313, %v2444
    %2446 = vmatprep.mubr.f32.mxu0 0.0
    %2447 = vmatmul.mubr.f32.gmra.mrb[0].mxu0 %v2338
    %v2448 = vpop.f32.mrb[0].mxu0
    %v2449 = vadd.f32 %v2309, %v2448
    %v2450 = vpop.f32.mrb[0].mxu0
    %v2451 = vadd.f32 %v2313, %v2450
    %2452 = vdwg.mxu0
    %v2453 = vsel %vm372, %v2407, %v2449
    %v2454 = vsel %vm373, %v2409, %v2451
    %2455 = vmatprep.subr.mxu0 %v2288
    %2456 = vmatpush1.msra.mxu0 %v2287
    %2457 = vmatprep.subr.mxu0 %v2290
    %2458 = vmatpush1.msra.mxu0 %v2289
    %2459 = vmatprep.subr.mxu0 %v2292
    %2460 = vmatpush1.msra.mxu0 %v2291
    %2461 = vmatprep.subr.mxu0 %v2294
    %2462 = vmatpush1.msra.mxu0 %v2293
    %2463 = vmatprep.subr.mxu0 %v2296
    %2464 = vmatpush1.msra.mxu0 %v2295
    %2465 = vmatprep.subr.mxu0 %v2298
    %2466 = vmatpush1.msra.mxu0 %v2297
    %2467 = vmatprep.subr.mxu0 %v2300
    %2468 = vmatpush1.msra.mxu0 %v2299
    %2469 = vmatprep.subr.mxu0 %v2302
    %2470 = vmatpush1.msra.mxu0 %v2301
    %2471 = vmatprep.subr.mxu0 0.0
    %2472 = vmatpush1.msra.mxu0 0.0
    %2473 = vmatprep.subr.mxu0 0.0
    %2474 = vmatpush1.msra.mxu0 0.0
    %2475 = vmatprep.subr.mxu0 0.0
    %2476 = vmatpush1.msra.mxu0 0.0
    %2477 = vmatprep.subr.mxu0 0.0
    %2478 = vmatpush1.msra.mxu0 0.0
    %2479 = vmatprep.subr.mxu0 0.0
    %2480 = vmatpush1.msra.mxu0 0.0
    %2481 = vmatprep.subr.mxu0 0.0
    %2482 = vmatpush1.msra.mxu0 0.0
    %2483 = vmatprep.subr.mxu0 0.0
    %2484 = vmatpush1.msra.mxu0 0.0
    %2485 = vmatprep.subr.mxu0 0.0
    %2486 = vmatpush1.msra.mxu0 0.0
    %2487 = vmatprep.subr.mxu0 0.0
    %2488 = vmatpush1.msra.mxu0 0.0
    %2489 = vmatprep.subr.mxu0 0.0
    %2490 = vmatpush1.msra.mxu0 0.0
    %2491 = vmatprep.subr.mxu0 0.0
    %2492 = vmatpush1.msra.mxu0 0.0
    %2493 = vmatprep.subr.mxu0 0.0
    %2494 = vmatpush1.msra.mxu0 0.0
    %2495 = vmatprep.subr.mxu0 0.0
    %2496 = vmatpush1.msra.mxu0 0.0
    %2497 = vmatprep.subr.mxu0 0.0
    %2498 = vmatpush1.msra.mxu0 0.0
    %2499 = vmatprep.subr.mxu0 0.0
    %2500 = vmatpush1.msra.mxu0 0.0
    %2501 = vmatprep.subr.mxu0 0.0
    %2502 = vmatpush1.msra.mxu0 0.0
    %2503 = vmatprep.subr.mxu0 0.0
    %2504 = vmatpush1.msra.mxu0 0.0
    %2505 = vmatprep.subr.mxu0 0.0
    %2506 = vmatpush1.msra.mxu0 0.0
    %2507 = vmatprep.subr.mxu0 0.0
    %2508 = vmatpush1.msra.mxu0 0.0
    %2509 = vmatprep.subr.mxu0 0.0
    %2510 = vmatpush1.msra.mxu0 0.0
    %2511 = vmatprep.subr.mxu0 0.0
    %2512 = vmatpush1.msra.mxu0 0.0
    %2513 = vmatprep.subr.mxu0 0.0
    %2514 = vmatpush1.msra.mxu0 0.0
    %2515 = vmatprep.subr.mxu0 0.0
    %2516 = vmatpush1.msra.mxu0 0.0
    %2517 = vmatprep.subr.mxu0 0.0
    %2518 = vmatpush1.msra.mxu0 0.0
    %2519 = vmatprep.mubr.f32.mxu0 0.0
    %2520 = vmatmul.mubr.f32.gmra.mrb[0].mxu0 %v378
    %v2521 = vpop.f32.mrb[0].mxu0
    %v2522 = vadd.f32 0.0, %v2521
    %v2523 = vpop.f32.mrb[0].mxu0
    %v2524 = vadd.f32 0.0, %v2523
    %2525 = vdwg.mxu0
    %v2526 = vadd.f32 %v2453, %v2522
    %v2527 = vadd.f32 %v2454, %v2524
    %v2528 = vmul.f32 %v2526, %v181
    %v2529 = vmul.f32 %v2527, %v182
    %v2530 = vxor.u32 %v2528, 2147483648
    %v2531 = vxor.u32 %v2529, 2147483648
    %v2532 = vmul.f32 %v2530, 1.442695
    %v2533 = vpow.pop %v2532
    %v2534 = vmul.f32 %v2531, 1.442695
    %v2535 = vpow.pop %v2534
    %v2536 = vadd.f32 %v2533, 1.0
    %v2537 = vadd.f32 %v2535, 1.0
    %v2538 = vrcp.pop %v2536
    %v2539 = vmul.f32 1.0, %v2538
    %v2540 = vrcp.pop %v2537
    %v2541 = vmul.f32 1.0, %v2540
    %v2542 = vmul.f32 %v2541, 2.0
    %v2543 = vsub.f32 %v2542, 1.0
    %v2544 = vmul.f32 %v2539, 0.0
    %v2545 = vmul.f32 %v2539, %v2543
    %2547 = vrot.lane.b32.xlu0 %v2545, 64
    %v2548 = vpop.permute.xlu0 %2547
    %v2550 = vadd.f32 %v2544, %v2548
    %v2551 = vtanh.pop %v2550
    %v2552 = vmul.f32 %v2541, %v2551
    %v2553 = vsel %vm372, %v2413, %v2443
    %v2554 = vsel %vm373, %v2415, %v2445
    %2556 = vrot.lane.b32.xlu0 %v2552, 64
    %v2557 = vpop.permute.xlu0 %2556
    %v2558 = vsel %vm376, %v2557, 0
    %2560 = vmatprep.subr.mxu0 %v2288
    %2561 = vmatpush1.msra.mxu0 %v2287
    %2562 = vmatprep.subr.mxu0 %v2290
    %2563 = vmatpush1.msra.mxu0 %v2289
    %2564 = vmatprep.subr.mxu0 %v2292
    %2565 = vmatpush1.msra.mxu0 %v2291
    %2566 = vmatprep.subr.mxu0 %v2294
    %2567 = vmatpush1.msra.mxu0 %v2293
    %2568 = vmatprep.subr.mxu0 %v2296
    %2569 = vmatpush1.msra.mxu0 %v2295
    %2570 = vmatprep.subr.mxu0 %v2298
    %2571 = vmatpush1.msra.mxu0 %v2297
    %2572 = vmatprep.subr.mxu0 %v2300
    %2573 = vmatpush1.msra.mxu0 %v2299
    %2574 = vmatprep.subr.mxu0 %v2302
    %2575 = vmatpush1.msra.mxu0 %v2301
    %2576 = vmatprep.subr.mxu0 0.0
    %2577 = vmatpush1.msra.mxu0 0.0
    %2578 = vmatprep.subr.mxu0 0.0
    %2579 = vmatpush1.msra.mxu0 0.0
    %2580 = vmatprep.subr.mxu0 0.0
    %2581 = vmatpush1.msra.mxu0 0.0
    %2582 = vmatprep.subr.mxu0 0.0
    %2583 = vmatpush1.msra.mxu0 0.0
    %2584 = vmatprep.subr.mxu0 0.0
    %2585 = vmatpush1.msra.mxu0 0.0
    %2586 = vmatprep.subr.mxu0 0.0
    %2587 = vmatpush1.msra.mxu0 0.0
    %2588 = vmatprep.subr.mxu0 0.0
    %2589 = vmatpush1.msra.mxu0 0.0
    %2590 = vmatprep.subr.mxu0 0.0
    %2591 = vmatpush1.msra.mxu0 0.0
    %2592 = vmatprep.subr.mxu0 0.0
    %2593 = vmatpush1.msra.mxu0 0.0
    %2594 = vmatprep.subr.mxu0 0.0
    %2595 = vmatpush1.msra.mxu0 0.0
    %2596 = vmatprep.subr.mxu0 0.0
    %2597 = vmatpush1.msra.mxu0 0.0
    %2598 = vmatprep.subr.mxu0 0.0
    %2599 = vmatpush1.msra.mxu0 0.0
    %2600 = vmatprep.subr.mxu0 0.0
    %2601 = vmatpush1.msra.mxu0 0.0
    %2602 = vmatprep.subr.mxu0 0.0
    %2603 = vmatpush1.msra.mxu0 0.0
    %2604 = vmatprep.subr.mxu0 0.0
    %2605 = vmatpush1.msra.mxu0 0.0
    %2606 = vmatprep.subr.mxu0 0.0
    %2607 = vmatpush1.msra.mxu0 0.0
    %2608 = vmatprep.subr.mxu0 0.0
    %2609 = vmatpush1.msra.mxu0 0.0
    %2610 = vmatprep.subr.mxu0 0.0
    %2611 = vmatpush1.msra.mxu0 0.0
    %2612 = vmatprep.subr.mxu0 0.0
    %2613 = vmatpush1.msra.mxu0 0.0
    %2614 = vmatprep.subr.mxu0 0.0
    %2615 = vmatpush1.msra.mxu0 0.0
    %2616 = vmatprep.subr.mxu0 0.0
    %2617 = vmatpush1.msra.mxu0 0.0
    %2618 = vmatprep.subr.mxu0 0.0
    %2619 = vmatpush1.msra.mxu0 0.0
    %2620 = vmatprep.subr.mxu0 0.0
    %2621 = vmatpush1.msra.mxu0 0.0
    %2622 = vmatprep.subr.mxu0 0.0
    %2623 = vmatpush1.msra.mxu0 0.0
    %2624 = vmatprep.mubr.f32.mxu0 0.0
    %2625 = vmatmul.mubr.f32.gmra.mrb[0].mxu0 %v2558
    %v2626 = vpop.f32.mrb[0].mxu0
    %v2627 = vadd.f32 0.0, %v2626
    %v2628 = vpop.f32.mrb[0].mxu0
    %v2629 = vadd.f32 0.0, %v2628
    %2630 = vdwg.mxu0
    %v2631 = vadd.f32 %v2553, %v2627
    %v2632 = vadd.f32 %v2554, %v2629
    %v2633 = vmul.f32 %v2631, %v181
    %v2634 = vmul.f32 %v2632, %v182
    %v2635 = vxor.u32 %v2633, 2147483648
    %v2636 = vxor.u32 %v2634, 2147483648
    %v2637 = vmul.f32 %v2635, 1.442695
    %v2638 = vpow.pop %v2637
    %v2639 = vmul.f32 %v2636, 1.442695
    %v2640 = vpow.pop %v2639
    %v2641 = vadd.f32 %v2638, 1.0
    %v2642 = vadd.f32 %v2640, 1.0
    %v2643 = vrcp.pop %v2641
    %v2644 = vmul.f32 1.0, %v2643
    %v2645 = vrcp.pop %v2642
    %v2646 = vmul.f32 1.0, %v2645
    %v2647 = vmul.f32 %v2646, 2.0
    %v2648 = vsub.f32 %v2647, 1.0
    %v2649 = vmul.f32 %v2644, %v2550
    %v2650 = vmul.f32 %v2644, %v2648
    %2652 = vrot.lane.b32.xlu0 %v2650, 64
    %v2653 = vpop.permute.xlu0 %2652
    %v2655 = vadd.f32 %v2649, %v2653
    %v2656 = vtanh.pop %v2655
    %v2657 = vmul.f32 %v2646, %v2656
    %v2658 = vsel %vm372, %v2419, %v2437
    %v2659 = vsel %vm373, %v2421, %v2439
    %2661 = vrot.lane.b32.xlu0 %v2657, 64
    %v2662 = vpop.permute.xlu0 %2661
    %v2663 = vsel %vm376, %v2662, 0
    %2665 = vmatprep.subr.mxu0 %v2288
    %2666 = vmatpush1.msra.mxu0 %v2287
    %2667 = vmatprep.subr.mxu0 %v2290
    %2668 = vmatpush1.msra.mxu0 %v2289
    %2669 = vmatprep.subr.mxu0 %v2292
    %2670 = vmatpush1.msra.mxu0 %v2291
    %2671 = vmatprep.subr.mxu0 %v2294
    %2672 = vmatpush1.msra.mxu0 %v2293
    %2673 = vmatprep.subr.mxu0 %v2296
    %2674 = vmatpush1.msra.mxu0 %v2295
    %2675 = vmatprep.subr.mxu0 %v2298
    %2676 = vmatpush1.msra.mxu0 %v2297
    %2677 = vmatprep.subr.mxu0 %v2300
    %2678 = vmatpush1.msra.mxu0 %v2299
    %2679 = vmatprep.subr.mxu0 %v2302
    %2680 = vmatpush1.msra.mxu0 %v2301
    %2681 = vmatprep.subr.mxu0 0.0
    %2682 = vmatpush1.msra.mxu0 0.0
    %2683 = vmatprep.subr.mxu0 0.0
    %2684 = vmatpush1.msra.mxu0 0.0
    %2685 = vmatprep.subr.mxu0 0.0
    %2686 = vmatpush1.msra.mxu0 0.0
    %2687 = vmatprep.subr.mxu0 0.0
    %2688 = vmatpush1.msra.mxu0 0.0
    %2689 = vmatprep.subr.mxu0 0.0
    %2690 = vmatpush1.msra.mxu0 0.0
    %2691 = vmatprep.subr.mxu0 0.0
    %2692 = vmatpush1.msra.mxu0 0.0
    %2693 = vmatprep.subr.mxu0 0.0
    %2694 = vmatpush1.msra.mxu0 0.0
    %2695 = vmatprep.subr.mxu0 0.0
    %2696 = vmatpush1.msra.mxu0 0.0
    %2697 = vmatprep.subr.mxu0 0.0
    %2698 = vmatpush1.msra.mxu0 0.0
    %2699 = vmatprep.subr.mxu0 0.0
    %2700 = vmatpush1.msra.mxu0 0.0
    %2701 = vmatprep.subr.mxu0 0.0
    %2702 = vmatpush1.msra.mxu0 0.0
    %2703 = vmatprep.subr.mxu0 0.0
    %2704 = vmatpush1.msra.mxu0 0.0
    %2705 = vmatprep.subr.mxu0 0.0
    %2706 = vmatpush1.msra.mxu0 0.0
    %2707 = vmatprep.subr.mxu0 0.0
    %2708 = vmatpush1.msra.mxu0 0.0
    %2709 = vmatprep.subr.mxu0 0.0
    %2710 = vmatpush1.msra.mxu0 0.0
    %2711 = vmatprep.subr.mxu0 0.0
    %2712 = vmatpush1.msra.mxu0 0.0
    %2713 = vmatprep.subr.mxu0 0.0
    %2714 = vmatpush1.msra.mxu0 0.0
    %2715 = vmatprep.subr.mxu0 0.0
    %2716 = vmatpush1.msra.mxu0 0.0
    %2717 = vmatprep.subr.mxu0 0.0
    %2718 = vmatpush1.msra.mxu0 0.0
    %2719 = vmatprep.subr.mxu0 0.0
    %2720 = vmatpush1.msra.mxu0 0.0
    %2721 = vmatprep.subr.mxu0 0.0
    %2722 = vmatpush1.msra.mxu0 0.0
    %2723 = vmatprep.subr.mxu0 0.0
    %2724 = vmatpush1.msra.mxu0 0.0
    %2725 = vmatprep.subr.mxu0 0.0
    %2726 = vmatpush1.msra.mxu0 0.0
    %2727 = vmatprep.subr.mxu0 0.0
    %2728 = vmatpush1.msra.mxu0 0.0
    %2729 = vmatprep.mubr.f32.mxu0 0.0
    %2730 = vmatmul.mubr.f32.gmra.mrb[0].mxu0 %v2663
    %v2731 = vpop.f32.mrb[0].mxu0
    %v2732 = vadd.f32 0.0, %v2731
    %v2733 = vpop.f32.mrb[0].mxu0
    %v2734 = vadd.f32 0.0, %v2733
    %2735 = vdwg.mxu0
    %v2736 = vadd.f32 %v2658, %v2732
    %v2737 = vadd.f32 %v2659, %v2734
    %v2738 = vmul.f32 %v2736, %v181
    %v2739 = vmul.f32 %v2737, %v182
    %v2740 = vxor.u32 %v2738, 2147483648
    %v2741 = vxor.u32 %v2739, 2147483648
    %v2742 = vmul.f32 %v2740, 1.442695
    %v2743 = vpow.pop %v2742
    %v2744 = vmul.f32 %v2741, 1.442695
    %v2745 = vpow.pop %v2744
    %v2746 = vadd.f32 %v2743, 1.0
    %v2747 = vadd.f32 %v2745, 1.0
    %v2748 = vrcp.pop %v2746
    %v2749 = vmul.f32 1.0, %v2748
    %v2750 = vrcp.pop %v2747
    %v2751 = vmul.f32 1.0, %v2750
    %v2752 = vmul.f32 %v2751, 2.0
    %v2753 = vsub.f32 %v2752, 1.0
    %v2754 = vmul.f32 %v2749, %v2655
    %v2755 = vmul.f32 %v2749, %v2753
    %2757 = vrot.lane.b32.xlu0 %v2755, 64
    %v2758 = vpop.permute.xlu0 %2757
    %v2760 = vadd.f32 %v2754, %v2758
    %v2761 = vtanh.pop %v2760
    %v2762 = vmul.f32 %v2751, %v2761
    %v2763 = vsel %vm372, %v2425, %v2431
    %v2764 = vsel %vm373, %v2427, %v2433
    %2766 = vrot.lane.b32.xlu0 %v2762, 64
    %v2767 = vpop.permute.xlu0 %2766
    %v2768 = vsel %vm376, %v2767, 0
    %2770 = vmatprep.subr.mxu0 %v2288
    %2771 = vmatpush1.msra.mxu0 %v2287
    %2772 = vmatprep.subr.mxu0 %v2290
    %2773 = vmatpush1.msra.mxu0 %v2289
    %2774 = vmatprep.subr.mxu0 %v2292
    %2775 = vmatpush1.msra.mxu0 %v2291
    %2776 = vmatprep.subr.mxu0 %v2294
    %2777 = vmatpush1.msra.mxu0 %v2293
    %2778 = vmatprep.subr.mxu0 %v2296
    %2779 = vmatpush1.msra.mxu0 %v2295
    %2780 = vmatprep.subr.mxu0 %v2298
    %2781 = vmatpush1.msra.mxu0 %v2297
    %2782 = vmatprep.subr.mxu0 %v2300
    %2783 = vmatpush1.msra.mxu0 %v2299
    %2784 = vmatprep.subr.mxu0 %v2302
    %2785 = vmatpush1.msra.mxu0 %v2301
    %2786 = vmatprep.subr.mxu0 0.0
    %2787 = vmatpush1.msra.mxu0 0.0
    %2788 = vmatprep.subr.mxu0 0.0
    %2789 = vmatpush1.msra.mxu0 0.0
    %2790 = vmatprep.subr.mxu0 0.0
    %2791 = vmatpush1.msra.mxu0 0.0
    %2792 = vmatprep.subr.mxu0 0.0
    %2793 = vmatpush1.msra.mxu0 0.0
    %2794 = vmatprep.subr.mxu0 0.0
    %2795 = vmatpush1.msra.mxu0 0.0
    %2796 = vmatprep.subr.mxu0 0.0
    %2797 = vmatpush1.msra.mxu0 0.0
    %2798 = vmatprep.subr.mxu0 0.0
    %2799 = vmatpush1.msra.mxu0 0.0
    %2800 = vmatprep.subr.mxu0 0.0
    %2801 = vmatpush1.msra.mxu0 0.0
    %2802 = vmatprep.subr.mxu0 0.0
    %2803 = vmatpush1.msra.mxu0 0.0
    %2804 = vmatprep.subr.mxu0 0.0
    %2805 = vmatpush1.msra.mxu0 0.0
    %2806 = vmatprep.subr.mxu0 0.0
    %2807 = vmatpush1.msra.mxu0 0.0
    %2808 = vmatprep.subr.mxu0 0.0
    %2809 = vmatpush1.msra.mxu0 0.0
    %2810 = vmatprep.subr.mxu0 0.0
    %2811 = vmatpush1.msra.mxu0 0.0
    %2812 = vmatprep.subr.mxu0 0.0
    %2813 = vmatpush1.msra.mxu0 0.0
    %2814 = vmatprep.subr.mxu0 0.0
    %2815 = vmatpush1.msra.mxu0 0.0
    %2816 = vmatprep.subr.mxu0 0.0
    %2817 = vmatpush1.msra.mxu0 0.0
    %2818 = vmatprep.subr.mxu0 0.0
    %2819 = vmatpush1.msra.mxu0 0.0
    %2820 = vmatprep.subr.mxu0 0.0
    %2821 = vmatpush1.msra.mxu0 0.0
    %2822 = vmatprep.subr.mxu0 0.0
    %2823 = vmatpush1.msra.mxu0 0.0
    %2824 = vmatprep.subr.mxu0 0.0
    %2825 = vmatpush1.msra.mxu0 0.0
    %2826 = vmatprep.subr.mxu0 0.0
    %2827 = vmatpush1.msra.mxu0 0.0
    %2828 = vmatprep.subr.mxu0 0.0
    %2829 = vmatpush1.msra.mxu0 0.0
    %2830 = vmatprep.subr.mxu0 0.0
    %2831 = vmatpush1.msra.mxu0 0.0
    %2832 = vmatprep.subr.mxu0 0.0
    %2833 = vmatpush1.msra.mxu0 0.0
    %2834 = vmatprep.mubr.f32.mxu0 0.0
    %2835 = vmatmul.mubr.f32.gmra.mrb[0].mxu0 %v2768
    %v2836 = vpop.f32.mrb[0].mxu0
    %v2837 = vadd.f32 0.0, %v2836
    %v2838 = vpop.f32.mrb[0].mxu0
    %v2839 = vadd.f32 0.0, %v2838
    %2840 = vdwg.mxu0
    %v2841 = vadd.f32 %v2763, %v2837
    %v2842 = vadd.f32 %v2764, %v2839
    %v2843 = vmul.f32 %v2841, %v181
    %v2844 = vmul.f32 %v2842, %v182
    %v2845 = vxor.u32 %v2843, 2147483648
    %v2846 = vxor.u32 %v2844, 2147483648
    %v2847 = vmul.f32 %v2845, 1.442695
    %v2848 = vpow.pop %v2847
    %v2849 = vmul.f32 %v2846, 1.442695
    %v2850 = vpow.pop %v2849
    %v2851 = vadd.f32 %v2848, 1.0
    %v2852 = vadd.f32 %v2850, 1.0
    %v2853 = vrcp.pop %v2851
    %v2854 = vmul.f32 1.0, %v2853
    %v2855 = vrcp.pop %v2852
    %v2856 = vmul.f32 1.0, %v2855
    %v2857 = vmul.f32 %v2856, 2.0
    %v2858 = vsub.f32 %v2857, 1.0
    %v2859 = vmul.f32 %v2854, %v2760
    %v2860 = vmul.f32 %v2854, %v2858
    %2862 = vrot.lane.b32.xlu0 %v2860, 64
    %v2863 = vpop.permute.xlu0 %2862
    %v2865 = vadd.f32 %v2859, %v2863
    %v2866 = vtanh.pop %v2865
    %v2867 = vmul.f32 %v2856, %v2866
    %v2868 = vsel %vm372, %v2431, %v2425
    %v2869 = vsel %vm373, %v2433, %v2427
    %2871 = vrot.lane.b32.xlu0 %v2867, 64
    %v2872 = vpop.permute.xlu0 %2871
    %v2873 = vsel %vm376, %v2872, 0
    %2875 = vmatprep.subr.mxu0 %v2288
    %2876 = vmatpush1.msra.mxu0 %v2287
    %2877 = vmatprep.subr.mxu0 %v2290
    %2878 = vmatpush1.msra.mxu0 %v2289
    %2879 = vmatprep.subr.mxu0 %v2292
    %2880 = vmatpush1.msra.mxu0 %v2291
    %2881 = vmatprep.subr.mxu0 %v2294
    %2882 = vmatpush1.msra.mxu0 %v2293
    %2883 = vmatprep.subr.mxu0 %v2296
    %2884 = vmatpush1.msra.mxu0 %v2295
    %2885 = vmatprep.subr.mxu0 %v2298
    %2886 = vmatpush1.msra.mxu0 %v2297
    %2887 = vmatprep.subr.mxu0 %v2300
    %2888 = vmatpush1.msra.mxu0 %v2299
    %2889 = vmatprep.subr.mxu0 %v2302
    %2890 = vmatpush1.msra.mxu0 %v2301
    %2891 = vmatprep.subr.mxu0 0.0
    %2892 = vmatpush1.msra.mxu0 0.0
    %2893 = vmatprep.subr.mxu0 0.0
    %2894 = vmatpush1.msra.mxu0 0.0
    %2895 = vmatprep.subr.mxu0 0.0
    %2896 = vmatpush1.msra.mxu0 0.0
    %2897 = vmatprep.subr.mxu0 0.0
    %2898 = vmatpush1.msra.mxu0 0.0
    %2899 = vmatprep.subr.mxu0 0.0
    %2900 = vmatpush1.msra.mxu0 0.0
    %2901 = vmatprep.subr.mxu0 0.0
    %2902 = vmatpush1.msra.mxu0 0.0
    %2903 = vmatprep.subr.mxu0 0.0
    %2904 = vmatpush1.msra.mxu0 0.0
    %2905 = vmatprep.subr.mxu0 0.0
    %2906 = vmatpush1.msra.mxu0 0.0
    %2907 = vmatprep.subr.mxu0 0.0
    %2908 = vmatpush1.msra.mxu0 0.0
    %2909 = vmatprep.subr.mxu0 0.0
    %2910 = vmatpush1.msra.mxu0 0.0
    %2911 = vmatprep.subr.mxu0 0.0
    %2912 = vmatpush1.msra.mxu0 0.0
    %2913 = vmatprep.subr.mxu0 0.0
    %2914 = vmatpush1.msra.mxu0 0.0
    %2915 = vmatprep.subr.mxu0 0.0
    %2916 = vmatpush1.msra.mxu0 0.0
    %2917 = vmatprep.subr.mxu0 0.0
    %2918 = vmatpush1.msra.mxu0 0.0
    %2919 = vmatprep.subr.mxu0 0.0
    %2920 = vmatpush1.msra.mxu0 0.0
    %2921 = vmatprep.subr.mxu0 0.0
    %2922 = vmatpush1.msra.mxu0 0.0
    %2923 = vmatprep.subr.mxu0 0.0
    %2924 = vmatpush1.msra.mxu0 0.0
    %2925 = vmatprep.subr.mxu0 0.0
    %2926 = vmatpush1.msra.mxu0 0.0
    %2927 = vmatprep.subr.mxu0 0.0
    %2928 = vmatpush1.msra.mxu0 0.0
    %2929 = vmatprep.subr.mxu0 0.0
    %2930 = vmatpush1.msra.mxu0 0.0
    %2931 = vmatprep.subr.mxu0 0.0
    %2932 = vmatpush1.msra.mxu0 0.0
    %2933 = vmatprep.subr.mxu0 0.0
    %2934 = vmatpush1.msra.mxu0 0.0
    %2935 = vmatprep.subr.mxu0 0.0
    %2936 = vmatpush1.msra.mxu0 0.0
    %2937 = vmatprep.subr.mxu0 0.0
    %2938 = vmatpush1.msra.mxu0 0.0
    %2939 = vmatprep.mubr.f32.mxu0 0.0
    %2940 = vmatmul.mubr.f32.gmra.mrb[0].mxu0 %v2873
    %v2941 = vpop.f32.mrb[0].mxu0
    %v2942 = vadd.f32 0.0, %v2941
    %v2943 = vpop.f32.mrb[0].mxu0
    %v2944 = vadd.f32 0.0, %v2943
    %2945 = vdwg.mxu0
    %v2946 = vadd.f32 %v2868, %v2942
    %v2947 = vadd.f32 %v2869, %v2944
    %v2948 = vmul.f32 %v2946, %v181
    %v2949 = vmul.f32 %v2947, %v182
    %v2950 = vxor.u32 %v2948, 2147483648
    %v2951 = vxor.u32 %v2949, 2147483648
    %v2952 = vmul.f32 %v2950, 1.442695
    %v2953 = vpow.pop %v2952
    %v2954 = vmul.f32 %v2951, 1.442695
    %v2955 = vpow.pop %v2954
    %v2956 = vadd.f32 %v2953, 1.0
    %v2957 = vadd.f32 %v2955, 1.0
    %v2958 = vrcp.pop %v2956
    %v2959 = vmul.f32 1.0, %v2958
    %v2960 = vrcp.pop %v2957
    %v2961 = vmul.f32 1.0, %v2960
    %v2962 = vmul.f32 %v2961, 2.0
    %v2963 = vsub.f32 %v2962, 1.0
    %v2964 = vmul.f32 %v2959, %v2865
    %v2965 = vmul.f32 %v2959, %v2963
    %2967 = vrot.lane.b32.xlu0 %v2965, 64
    %v2968 = vpop.permute.xlu0 %2967
    %v2970 = vadd.f32 %v2964, %v2968
    %v2971 = vtanh.pop %v2970
    %v2972 = vmul.f32 %v2961, %v2971
    %v2973 = vsel %vm372, %v2437, %v2419
    %v2974 = vsel %vm373, %v2439, %v2421
    %2976 = vrot.lane.b32.xlu0 %v2972, 64
    %v2977 = vpop.permute.xlu0 %2976
    %v2978 = vsel %vm376, %v2977, 0
    %2980 = vmatprep.subr.mxu0 %v2288
    %2981 = vmatpush1.msra.mxu0 %v2287
    %2982 = vmatprep.subr.mxu0 %v2290
    %2983 = vmatpush1.msra.mxu0 %v2289
    %2984 = vmatprep.subr.mxu0 %v2292
    %2985 = vmatpush1.msra.mxu0 %v2291
    %2986 = vmatprep.subr.mxu0 %v2294
    %2987 = vmatpush1.msra.mxu0 %v2293
    %2988 = vmatprep.subr.mxu0 %v2296
    %2989 = vmatpush1.msra.mxu0 %v2295
    %2990 = vmatprep.subr.mxu0 %v2298
    %2991 = vmatpush1.msra.mxu0 %v2297
    %2992 = vmatprep.subr.mxu0 %v2300
    %2993 = vmatpush1.msra.mxu0 %v2299
    %2994 = vmatprep.subr.mxu0 %v2302
    %2995 = vmatpush1.msra.mxu0 %v2301
    %2996 = vmatprep.subr.mxu0 0.0
    %2997 = vmatpush1.msra.mxu0 0.0
    %2998 = vmatprep.subr.mxu0 0.0
    %2999 = vmatpush1.msra.mxu0 0.0
    %3000 = vmatprep.subr.mxu0 0.0
    %3001 = vmatpush1.msra.mxu0 0.0
    %3002 = vmatprep.subr.mxu0 0.0
    %3003 = vmatpush1.msra.mxu0 0.0
    %3004 = vmatprep.subr.mxu0 0.0
    %3005 = vmatpush1.msra.mxu0 0.0
    %3006 = vmatprep.subr.mxu0 0.0
    %3007 = vmatpush1.msra.mxu0 0.0
    %3008 = vmatprep.subr.mxu0 0.0
    %3009 = vmatpush1.msra.mxu0 0.0
    %3010 = vmatprep.subr.mxu0 0.0
    %3011 = vmatpush1.msra.mxu0 0.0
    %3012 = vmatprep.subr.mxu0 0.0
    %3013 = vmatpush1.msra.mxu0 0.0
    %3014 = vmatprep.subr.mxu0 0.0
    %3015 = vmatpush1.msra.mxu0 0.0
    %3016 = vmatprep.subr.mxu0 0.0
    %3017 = vmatpush1.msra.mxu0 0.0
    %3018 = vmatprep.subr.mxu0 0.0
    %3019 = vmatpush1.msra.mxu0 0.0
    %3020 = vmatprep.subr.mxu0 0.0
    %3021 = vmatpush1.msra.mxu0 0.0
    %3022 = vmatprep.subr.mxu0 0.0
    %3023 = vmatpush1.msra.mxu0 0.0
    %3024 = vmatprep.subr.mxu0 0.0
    %3025 = vmatpush1.msra.mxu0 0.0
    %3026 = vmatprep.subr.mxu0 0.0
    %3027 = vmatpush1.msra.mxu0 0.0
    %3028 = vmatprep.subr.mxu0 0.0
    %3029 = vmatpush1.msra.mxu0 0.0
    %3030 = vmatprep.subr.mxu0 0.0
    %3031 = vmatpush1.msra.mxu0 0.0
    %3032 = vmatprep.subr.mxu0 0.0
    %3033 = vmatpush1.msra.mxu0 0.0
    %3034 = vmatprep.subr.mxu0 0.0
    %3035 = vmatpush1.msra.mxu0 0.0
    %3036 = vmatprep.subr.mxu0 0.0
    %3037 = vmatpush1.msra.mxu0 0.0
    %3038 = vmatprep.subr.mxu0 0.0
    %3039 = vmatpush1.msra.mxu0 0.0
    %3040 = vmatprep.subr.mxu0 0.0
    %3041 = vmatpush1.msra.mxu0 0.0
    %3042 = vmatprep.subr.mxu0 0.0
    %3043 = vmatpush1.msra.mxu0 0.0
    %3044 = vmatprep.mubr.f32.mxu0 0.0
    %3045 = vmatmul.mubr.f32.gmra.mrb[0].mxu0 %v2978
    %v3046 = vpop.f32.mrb[0].mxu0
    %v3047 = vadd.f32 0.0, %v3046
    %v3048 = vpop.f32.mrb[0].mxu0
    %v3049 = vadd.f32 0.0, %v3048
    %3050 = vdwg.mxu0
    %v3051 = vadd.f32 %v2973, %v3047
    %v3052 = vadd.f32 %v2974, %v3049
    %v3053 = vmul.f32 %v3051, %v181
    %v3054 = vmul.f32 %v3052, %v182
    %v3055 = vxor.u32 %v3053, 2147483648
    %v3056 = vxor.u32 %v3054, 2147483648
    %v3057 = vmul.f32 %v3055, 1.442695
    %v3058 = vpow.pop %v3057
    %v3059 = vmul.f32 %v3056, 1.442695
    %v3060 = vpow.pop %v3059
    %v3061 = vadd.f32 %v3058, 1.0
    %v3062 = vadd.f32 %v3060, 1.0
    %v3063 = vrcp.pop %v3061
    %v3064 = vmul.f32 1.0, %v3063
    %v3065 = vrcp.pop %v3062
    %v3066 = vmul.f32 1.0, %v3065
    %v3067 = vmul.f32 %v3066, 2.0
    %v3068 = vsub.f32 %v3067, 1.0
    %v3069 = vmul.f32 %v3064, %v2970
    %v3070 = vmul.f32 %v3064, %v3068
    %3072 = vrot.lane.b32.xlu0 %v3070, 64
    %v3073 = vpop.permute.xlu0 %3072
    %v3075 = vadd.f32 %v3069, %v3073
    %v3076 = vtanh.pop %v3075
    %v3077 = vmul.f32 %v3066, %v3076
    %v3078 = vsel %vm372, %v2443, %v2413
    %v3079 = vsel %vm373, %v2445, %v2415
    %3081 = vrot.lane.b32.xlu0 %v3077, 64
    %v3082 = vpop.permute.xlu0 %3081
    %v3083 = vsel %vm376, %v3082, 0
    %3085 = vmatprep.subr.mxu0 %v2288
    %3086 = vmatpush1.msra.mxu0 %v2287
    %3087 = vmatprep.subr.mxu0 %v2290
    %3088 = vmatpush1.msra.mxu0 %v2289
    %3089 = vmatprep.subr.mxu0 %v2292
    %3090 = vmatpush1.msra.mxu0 %v2291
    %3091 = vmatprep.subr.mxu0 %v2294
    %3092 = vmatpush1.msra.mxu0 %v2293
    %3093 = vmatprep.subr.mxu0 %v2296
    %3094 = vmatpush1.msra.mxu0 %v2295
    %3095 = vmatprep.subr.mxu0 %v2298
    %3096 = vmatpush1.msra.mxu0 %v2297
    %3097 = vmatprep.subr.mxu0 %v2300
    %3098 = vmatpush1.msra.mxu0 %v2299
    %3099 = vmatprep.subr.mxu0 %v2302
    %3100 = vmatpush1.msra.mxu0 %v2301
    %3101 = vmatprep.subr.mxu0 0.0
    %3102 = vmatpush1.msra.mxu0 0.0
    %3103 = vmatprep.subr.mxu0 0.0
    %3104 = vmatpush1.msra.mxu0 0.0
    %3105 = vmatprep.subr.mxu0 0.0
    %3106 = vmatpush1.msra.mxu0 0.0
    %3107 = vmatprep.subr.mxu0 0.0
    %3108 = vmatpush1.msra.mxu0 0.0
    %3109 = vmatprep.subr.mxu0 0.0
    %3110 = vmatpush1.msra.mxu0 0.0
    %3111 = vmatprep.subr.mxu0 0.0
    %3112 = vmatpush1.msra.mxu0 0.0
    %3113 = vmatprep.subr.mxu0 0.0
    %3114 = vmatpush1.msra.mxu0 0.0
    %3115 = vmatprep.subr.mxu0 0.0
    %3116 = vmatpush1.msra.mxu0 0.0
    %3117 = vmatprep.subr.mxu0 0.0
    %3118 = vmatpush1.msra.mxu0 0.0
    %3119 = vmatprep.subr.mxu0 0.0
    %3120 = vmatpush1.msra.mxu0 0.0
    %3121 = vmatprep.subr.mxu0 0.0
    %3122 = vmatpush1.msra.mxu0 0.0
    %3123 = vmatprep.subr.mxu0 0.0
    %3124 = vmatpush1.msra.mxu0 0.0
    %3125 = vmatprep.subr.mxu0 0.0
    %3126 = vmatpush1.msra.mxu0 0.0
    %3127 = vmatprep.subr.mxu0 0.0
    %3128 = vmatpush1.msra.mxu0 0.0
    %3129 = vmatprep.subr.mxu0 0.0
    %3130 = vmatpush1.msra.mxu0 0.0
    %3131 = vmatprep.subr.mxu0 0.0
    %3132 = vmatpush1.msra.mxu0 0.0
    %3133 = vmatprep.subr.mxu0 0.0
    %3134 = vmatpush1.msra.mxu0 0.0
    %3135 = vmatprep.subr.mxu0 0.0
    %3136 = vmatpush1.msra.mxu0 0.0
    %3137 = vmatprep.subr.mxu0 0.0
    %3138 = vmatpush1.msra.mxu0 0.0
    %3139 = vmatprep.subr.mxu0 0.0
    %3140 = vmatpush1.msra.mxu0 0.0
    %3141 = vmatprep.subr.mxu0 0.0
    %3142 = vmatpush1.msra.mxu0 0.0
    %3143 = vmatprep.subr.mxu0 0.0
    %3144 = vmatpush1.msra.mxu0 0.0
    %3145 = vmatprep.subr.mxu0 0.0
    %3146 = vmatpush1.msra.mxu0 0.0
    %3147 = vmatprep.subr.mxu0 0.0
    %3148 = vmatpush1.msra.mxu0 0.0
    %3149 = vmatprep.mubr.f32.mxu0 0.0
    %3150 = vmatmul.mubr.f32.gmra.mrb[0].mxu0 %v3083
    %v3151 = vpop.f32.mrb[0].mxu0
    %v3152 = vadd.f32 0.0, %v3151
    %v3153 = vpop.f32.mrb[0].mxu0
    %v3154 = vadd.f32 0.0, %v3153
    %3155 = vdwg.mxu0
    %v3156 = vadd.f32 %v3078, %v3152
    %v3157 = vadd.f32 %v3079, %v3154
    %v3158 = vmul.f32 %v3156, %v181
    %v3159 = vmul.f32 %v3157, %v182
    %v3160 = vxor.u32 %v3158, 2147483648
    %v3161 = vxor.u32 %v3159, 2147483648
    %v3162 = vmul.f32 %v3160, 1.442695
    %v3163 = vpow.pop %v3162
    %v3164 = vmul.f32 %v3161, 1.442695
    %v3165 = vpow.pop %v3164
    %v3166 = vadd.f32 %v3163, 1.0
    %v3167 = vadd.f32 %v3165, 1.0
    %v3168 = vrcp.pop %v3166
    %v3169 = vmul.f32 1.0, %v3168
    %v3170 = vrcp.pop %v3167
    %v3171 = vmul.f32 1.0, %v3170
    %v3172 = vmul.f32 %v3171, 2.0
    %v3173 = vsub.f32 %v3172, 1.0
    %v3174 = vmul.f32 %v3169, %v3075
    %v3175 = vmul.f32 %v3169, %v3173
    %3177 = vrot.lane.b32.xlu0 %v3175, 64
    %v3178 = vpop.permute.xlu0 %3177
    %v3180 = vadd.f32 %v3174, %v3178
    %v3181 = vtanh.pop %v3180
    %v3182 = vmul.f32 %v3171, %v3181
    %v3183 = vsel %vm372, %v2449, %v2407
    %v3184 = vsel %vm373, %v2451, %v2409
    %3186 = vrot.lane.b32.xlu0 %v3182, 64
    %v3187 = vpop.permute.xlu0 %3186
    %v3188 = vsel %vm376, %v3187, 0
    %3190 = vmatprep.subr.mxu0 %v2288
    %3191 = vmatpush1.msra.mxu0 %v2287
    %3192 = vmatprep.subr.mxu0 %v2290
    %3193 = vmatpush1.msra.mxu0 %v2289
    %3194 = vmatprep.subr.mxu0 %v2292
    %3195 = vmatpush1.msra.mxu0 %v2291
    %3196 = vmatprep.subr.mxu0 %v2294
    %3197 = vmatpush1.msra.mxu0 %v2293
    %3198 = vmatprep.subr.mxu0 %v2296
    %3199 = vmatpush1.msra.mxu0 %v2295
    %3200 = vmatprep.subr.mxu0 %v2298
    %3201 = vmatpush1.msra.mxu0 %v2297
    %3202 = vmatprep.subr.mxu0 %v2300
    %3203 = vmatpush1.msra.mxu0 %v2299
    %3204 = vmatprep.subr.mxu0 %v2302
    %3205 = vmatpush1.msra.mxu0 %v2301
    %3206 = vmatprep.subr.mxu0 0.0
    %3207 = vmatpush1.msra.mxu0 0.0
    %3208 = vmatprep.subr.mxu0 0.0
    %3209 = vmatpush1.msra.mxu0 0.0
    %3210 = vmatprep.subr.mxu0 0.0
    %3211 = vmatpush1.msra.mxu0 0.0
    %3212 = vmatprep.subr.mxu0 0.0
    %3213 = vmatpush1.msra.mxu0 0.0
    %3214 = vmatprep.subr.mxu0 0.0
    %3215 = vmatpush1.msra.mxu0 0.0
    %3216 = vmatprep.subr.mxu0 0.0
    %3217 = vmatpush1.msra.mxu0 0.0
    %3218 = vmatprep.subr.mxu0 0.0
    %3219 = vmatpush1.msra.mxu0 0.0
    %3220 = vmatprep.subr.mxu0 0.0
    %3221 = vmatpush1.msra.mxu0 0.0
    %3222 = vmatprep.subr.mxu0 0.0
    %3223 = vmatpush1.msra.mxu0 0.0
    %3224 = vmatprep.subr.mxu0 0.0
    %3225 = vmatpush1.msra.mxu0 0.0
    %3226 = vmatprep.subr.mxu0 0.0
    %3227 = vmatpush1.msra.mxu0 0.0
    %3228 = vmatprep.subr.mxu0 0.0
    %3229 = vmatpush1.msra.mxu0 0.0
    %3230 = vmatprep.subr.mxu0 0.0
    %3231 = vmatpush1.msra.mxu0 0.0
    %3232 = vmatprep.subr.mxu0 0.0
    %3233 = vmatpush1.msra.mxu0 0.0
    %3234 = vmatprep.subr.mxu0 0.0
    %3235 = vmatpush1.msra.mxu0 0.0
    %3236 = vmatprep.subr.mxu0 0.0
    %3237 = vmatpush1.msra.mxu0 0.0
    %3238 = vmatprep.subr.mxu0 0.0
    %3239 = vmatpush1.msra.mxu0 0.0
    %3240 = vmatprep.subr.mxu0 0.0
    %3241 = vmatpush1.msra.mxu0 0.0
    %3242 = vmatprep.subr.mxu0 0.0
    %3243 = vmatpush1.msra.mxu0 0.0
    %3244 = vmatprep.subr.mxu0 0.0
    %3245 = vmatpush1.msra.mxu0 0.0
    %3246 = vmatprep.subr.mxu0 0.0
    %3247 = vmatpush1.msra.mxu0 0.0
    %3248 = vmatprep.subr.mxu0 0.0
    %3249 = vmatpush1.msra.mxu0 0.0
    %3250 = vmatprep.subr.mxu0 0.0
    %3251 = vmatpush1.msra.mxu0 0.0
    %3252 = vmatprep.subr.mxu0 0.0
    %3253 = vmatpush1.msra.mxu0 0.0
    %3254 = vmatprep.mubr.f32.mxu0 0.0
    %3255 = vmatmul.mubr.f32.gmra.mrb[0].mxu0 %v3188
    %v3256 = vpop.f32.mrb[0].mxu0
    %v3257 = vadd.f32 0.0, %v3256
    %v3258 = vpop.f32.mrb[0].mxu0
    %v3259 = vadd.f32 0.0, %v3258
    %3260 = vdwg.mxu0
    %v3261 = vadd.f32 %v3183, %v3257
    %v3262 = vadd.f32 %v3184, %v3259
    %v3263 = vmul.f32 %v3261, %v181
    %v3264 = vmul.f32 %v3262, %v182
    %v3265 = vxor.u32 %v3263, 2147483648
    %v3266 = vxor.u32 %v3264, 2147483648
    %v3267 = vmul.f32 %v3265, 1.442695
    %v3268 = vpow.pop %v3267
    %v3269 = vmul.f32 %v3266, 1.442695
    %v3270 = vpow.pop %v3269
    %v3271 = vadd.f32 %v3268, 1.0
    %v3272 = vadd.f32 %v3270, 1.0
    %v3273 = vrcp.pop %v3271
    %v3274 = vmul.f32 1.0, %v3273
    %v3275 = vrcp.pop %v3272
    %v3276 = vmul.f32 1.0, %v3275
    %v3277 = vmul.f32 %v3276, 2.0
    %v3278 = vsub.f32 %v3277, 1.0
    %v3279 = vmul.f32 %v3274, %v3180
    %v3280 = vmul.f32 %v3274, %v3278
    %3282 = vrot.lane.b32.xlu0 %v3280, 64
    %v3283 = vpop.permute.xlu0 %3282
    %v3285 = vadd.f32 %v3279, %v3283
    %v3286 = vtanh.pop %v3285
    %v3287 = vmul.f32 %v3276, %v3286
    %3290 = vrot.lane.b32.xlu0 %v3287, 64
    %v3291 = vpop.permute.xlu0 %3290
    %v3293 = vsel %vm1214, %v2557, %v3291
    %v3296 = vsel %vm1214, %v2662, %v3187
    %v3299 = vsel %vm1214, %v2767, %v3082
    %v3302 = vsel %vm1214, %v2872, %v2977
    %v3303 = vsel %vm1214, %v2977, %v2872
    %v3304 = vsel %vm1214, %v3082, %v2767
    %v3305 = vsel %vm1214, %v3187, %v2662
    %v3306 = vsel %vm1214, %v3291, %v2557
    %s3307 = scalar_lea.vmem [#allocation2], 256
    %v3308 = vld [vmem:[%s3307] sm:$0xff]
    %v3309 = vld [vmem:[%s3307 + $0x8] sm:$0xff]
    %v3310 = vld [vmem:[%s3307 + $0x10] sm:$0xff]
    %v3311 = vld [vmem:[%s3307 + $0x18] sm:$0xff]
    %v3312 = vld [vmem:[%s3307 + $0x20] sm:$0xff]
    %v3313 = vld [vmem:[%s3307 + $0x28] sm:$0xff]
    %v3314 = vld [vmem:[%s3307 + $0x30] sm:$0xff]
    %v3315 = vld [vmem:[%s3307 + $0x38] sm:$0xff]
    %v3316 = vld [vmem:[%s3307 + $0x40] sm:$0xff]
    %v3317 = vld [vmem:[%s3307 + $0x48] sm:$0xff]
    %v3318 = vld [vmem:[%s3307 + $0x50] sm:$0xff]
    %v3319 = vld [vmem:[%s3307 + $0x58] sm:$0xff]
    %v3320 = vld [vmem:[%s3307 + $0x60] sm:$0xff]
    %v3321 = vld [vmem:[%s3307 + $0x68] sm:$0xff]
    %v3322 = vld [vmem:[%s3307 + $0x70] sm:$0xff]
    %v3323 = vld [vmem:[%s3307 + $0x78] sm:$0xff]
    %s3324 = scalar_lea.vmem [#allocation4], 256
    %v3325 = vld [vmem:[%s3324] sm:$0xff]
    %v3326 = vld [vmem:[%s3324 + $0x8] sm:$0xff]
    %v3327 = vld [vmem:[%s3324 + $0x10] sm:$0xff]
    %v3328 = vld [vmem:[%s3324 + $0x18] sm:$0xff]
    %v3329 = vld [vmem:[%s3324 + $0x20] sm:$0xff]
    %v3330 = vld [vmem:[%s3324 + $0x28] sm:$0xff]
    %v3331 = vld [vmem:[%s3324 + $0x30] sm:$0xff]
    %v3332 = vld [vmem:[%s3324 + $0x38] sm:$0xff]
    %v3333 = vld [vmem:[%s3324 + $0x40] sm:$0xff]
    %v3334 = vld [vmem:[%s3324 + $0x48] sm:$0xff]
    %v3335 = vld [vmem:[%s3324 + $0x50] sm:$0xff]
    %v3336 = vld [vmem:[%s3324 + $0x58] sm:$0xff]
    %v3337 = vld [vmem:[%s3324 + $0x60] sm:$0xff]
    %v3338 = vld [vmem:[%s3324 + $0x68] sm:$0xff]
    %v3339 = vld [vmem:[%s3324 + $0x70] sm:$0xff]
    %v3340 = vld [vmem:[%s3324 + $0x78] sm:$0xff]
    %s3341 = scalar_lea.vmem [#allocation6], 4
    %v3342 = vld [vmem:[%s3341] sm:$0x3]
    %v3344 = vlaneseq
    %v3345 = vshrl.u32 %v3344, 7
    %v3346 = vsub.s32 0, %v3345
    %v3347 = vrot.slane %v3342, %v3346
    %v3348 = vlaneseq
    %v3349 = vshrl.u32 %v3348, 7
    %v3350 = vsub.s32 1, %v3349
    %v3351 = vrot.slane %v3342, %v3350
    %v3355 = vsel %vm376, %v3293, 0
    %v3358 = vsel %vm376, %v3296, 0
    %v3361 = vsel %vm376, %v3299, 0
    %v3364 = vsel %vm376, %v3302, 0
    %v3367 = vsel %vm376, %v3303, 0
    %v3370 = vsel %vm376, %v3304, 0
    %v3373 = vsel %vm376, %v3305, 0
    %v3376 = vsel %vm376, %v3306, 0
    %3378 = vmatprep.subr.mxu0 %v3309
    %3379 = vmatpush1.msra.mxu0 %v3308
    %3380 = vmatprep.subr.mxu0 %v3311
    %3381 = vmatpush1.msra.mxu0 %v3310
    %3382 = vmatprep.subr.mxu0 %v3313
    %3383 = vmatpush1.msra.mxu0 %v3312
    %3384 = vmatprep.subr.mxu0 %v3315
    %3385 = vmatpush1.msra.mxu0 %v3314
    %3386 = vmatprep.subr.mxu0 %v3317
    %3387 = vmatpush1.msra.mxu0 %v3316
    %3388 = vmatprep.subr.mxu0 %v3319
    %3389 = vmatpush1.msra.mxu0 %v3318
    %3390 = vmatprep.subr.mxu0 %v3321
    %3391 = vmatpush1.msra.mxu0 %v3320
    %3392 = vmatprep.subr.mxu0 %v3323
    %3393 = vmatpush1.msra.mxu0 %v3322
    %3394 = vmatprep.subr.mxu0 0.0
    %3395 = vmatpush1.msra.mxu0 0.0
    %3396 = vmatprep.subr.mxu0 0.0
    %3397 = vmatpush1.msra.mxu0 0.0
    %3398 = vmatprep.subr.mxu0 0.0
    %3399 = vmatpush1.msra.mxu0 0.0
    %3400 = vmatprep.subr.mxu0 0.0
    %3401 = vmatpush1.msra.mxu0 0.0
    %3402 = vmatprep.subr.mxu0 0.0
    %3403 = vmatpush1.msra.mxu0 0.0
    %3404 = vmatprep.subr.mxu0 0.0
    %3405 = vmatpush1.msra.mxu0 0.0
    %3406 = vmatprep.subr.mxu0 0.0
    %3407 = vmatpush1.msra.mxu0 0.0
    %3408 = vmatprep.subr.mxu0 0.0
    %3409 = vmatpush1.msra.mxu0 0.0
    %3410 = vmatprep.subr.mxu0 0.0
    %3411 = vmatpush1.msra.mxu0 0.0
    %3412 = vmatprep.subr.mxu0 0.0
    %3413 = vmatpush1.msra.mxu0 0.0
    %3414 = vmatprep.subr.mxu0 0.0
    %3415 = vmatpush1.msra.mxu0 0.0
    %3416 = vmatprep.subr.mxu0 0.0
    %3417 = vmatpush1.msra.mxu0 0.0
    %3418 = vmatprep.subr.mxu0 0.0
    %3419 = vmatpush1.msra.mxu0 0.0
    %3420 = vmatprep.subr.mxu0 0.0
    %3421 = vmatpush1.msra.mxu0 0.0
    %3422 = vmatprep.subr.mxu0 0.0
    %3423 = vmatpush1.msra.mxu0 0.0
    %3424 = vmatprep.subr.mxu0 0.0
    %3425 = vmatpush1.msra.mxu0 0.0
    %3426 = vmatprep.subr.mxu0 0.0
    %3427 = vmatpush1.msra.mxu0 0.0
    %3428 = vmatprep.subr.mxu0 0.0
    %3429 = vmatpush1.msra.mxu0 0.0
    %3430 = vmatprep.subr.mxu0 0.0
    %3431 = vmatpush1.msra.mxu0 0.0
    %3432 = vmatprep.subr.mxu0 0.0
    %3433 = vmatpush1.msra.mxu0 0.0
    %3434 = vmatprep.subr.mxu0 0.0
    %3435 = vmatpush1.msra.mxu0 0.0
    %3436 = vmatprep.subr.mxu0 0.0
    %3437 = vmatpush1.msra.mxu0 0.0
    %3438 = vmatprep.subr.mxu0 0.0
    %3439 = vmatpush1.msra.mxu0 0.0
    %3440 = vmatprep.subr.mxu0 0.0
    %3441 = vmatpush1.msra.mxu0 0.0
    %3442 = vmatprep.mubr.f32.mxu0 0.0
    %3443 = vmatmul.mubr.f32.gmra.mrb[0].mxu0 %v3355
    %v3444 = vpop.f32.mrb[0].mxu0
    %v3445 = vadd.f32 %v3347, %v3444
    %v3446 = vpop.f32.mrb[0].mxu0
    %v3447 = vadd.f32 %v3351, %v3446
    %3448 = vmatprep.mubr.f32.mxu0 0.0
    %3449 = vmatmul.mubr.f32.gmra.mrb[0].mxu0 %v3358
    %v3450 = vpop.f32.mrb[0].mxu0
    %v3451 = vadd.f32 %v3347, %v3450
    %v3452 = vpop.f32.mrb[0].mxu0
    %v3453 = vadd.f32 %v3351, %v3452
    %3454 = vmatprep.mubr.f32.mxu0 0.0
    %3455 = vmatmul.mubr.f32.gmra.mrb[0].mxu0 %v3361
    %v3456 = vpop.f32.mrb[0].mxu0
    %v3457 = vadd.f32 %v3347, %v3456
    %v3458 = vpop.f32.mrb[0].mxu0
    %v3459 = vadd.f32 %v3351, %v3458
    %3460 = vmatprep.mubr.f32.mxu0 0.0
    %3461 = vmatmul.mubr.f32.gmra.mrb[0].mxu0 %v3364
    %v3462 = vpop.f32.mrb[0].mxu0
    %v3463 = vadd.f32 %v3347, %v3462
    %v3464 = vpop.f32.mrb[0].mxu0
    %v3465 = vadd.f32 %v3351, %v3464
    %3466 = vmatprep.mubr.f32.mxu0 0.0
    %3467 = vmatmul.mubr.f32.gmra.mrb[0].mxu0 %v3367
    %v3468 = vpop.f32.mrb[0].mxu0
    %v3469 = vadd.f32 %v3347, %v3468
    %v3470 = vpop.f32.mrb[0].mxu0
    %v3471 = vadd.f32 %v3351, %v3470
    %3472 = vmatprep.mubr.f32.mxu0 0.0
    %3473 = vmatmul.mubr.f32.gmra.mrb[0].mxu0 %v3370
    %v3474 = vpop.f32.mrb[0].mxu0
    %v3475 = vadd.f32 %v3347, %v3474
    %v3476 = vpop.f32.mrb[0].mxu0
    %v3477 = vadd.f32 %v3351, %v3476
    %3478 = vmatprep.mubr.f32.mxu0 0.0
    %3479 = vmatmul.mubr.f32.gmra.mrb[0].mxu0 %v3373
    %v3480 = vpop.f32.mrb[0].mxu0
    %v3481 = vadd.f32 %v3347, %v3480
    %v3482 = vpop.f32.mrb[0].mxu0
    %v3483 = vadd.f32 %v3351, %v3482
    %3484 = vmatprep.mubr.f32.mxu0 0.0
    %3485 = vmatmul.mubr.f32.gmra.mrb[0].mxu0 %v3376
    %v3486 = vpop.f32.mrb[0].mxu0
    %v3487 = vadd.f32 %v3347, %v3486
    %v3488 = vpop.f32.mrb[0].mxu0
    %v3489 = vadd.f32 %v3351, %v3488
    %3490 = vdwg.mxu0
    %v3491 = vsel %vm372, %v3445, %v3487
    %v3492 = vsel %vm373, %v3447, %v3489
    %3493 = vmatprep.subr.mxu0 %v3326
    %3494 = vmatpush1.msra.mxu0 %v3325
    %3495 = vmatprep.subr.mxu0 %v3328
    %3496 = vmatpush1.msra.mxu0 %v3327
    %3497 = vmatprep.subr.mxu0 %v3330
    %3498 = vmatpush1.msra.mxu0 %v3329
    %3499 = vmatprep.subr.mxu0 %v3332
    %3500 = vmatpush1.msra.mxu0 %v3331
    %3501 = vmatprep.subr.mxu0 %v3334
    %3502 = vmatpush1.msra.mxu0 %v3333
    %3503 = vmatprep.subr.mxu0 %v3336
    %3504 = vmatpush1.msra.mxu0 %v3335
    %3505 = vmatprep.subr.mxu0 %v3338
    %3506 = vmatpush1.msra.mxu0 %v3337
    %3507 = vmatprep.subr.mxu0 %v3340
    %3508 = vmatpush1.msra.mxu0 %v3339
    %3509 = vmatprep.subr.mxu0 0.0
    %3510 = vmatpush1.msra.mxu0 0.0
    %3511 = vmatprep.subr.mxu0 0.0
    %3512 = vmatpush1.msra.mxu0 0.0
    %3513 = vmatprep.subr.mxu0 0.0
    %3514 = vmatpush1.msra.mxu0 0.0
    %3515 = vmatprep.subr.mxu0 0.0
    %3516 = vmatpush1.msra.mxu0 0.0
    %3517 = vmatprep.subr.mxu0 0.0
    %3518 = vmatpush1.msra.mxu0 0.0
    %3519 = vmatprep.subr.mxu0 0.0
    %3520 = vmatpush1.msra.mxu0 0.0
    %3521 = vmatprep.subr.mxu0 0.0
    %3522 = vmatpush1.msra.mxu0 0.0
    %3523 = vmatprep.subr.mxu0 0.0
    %3524 = vmatpush1.msra.mxu0 0.0
    %3525 = vmatprep.subr.mxu0 0.0
    %3526 = vmatpush1.msra.mxu0 0.0
    %3527 = vmatprep.subr.mxu0 0.0
    %3528 = vmatpush1.msra.mxu0 0.0
    %3529 = vmatprep.subr.mxu0 0.0
    %3530 = vmatpush1.msra.mxu0 0.0
    %3531 = vmatprep.subr.mxu0 0.0
    %3532 = vmatpush1.msra.mxu0 0.0
    %3533 = vmatprep.subr.mxu0 0.0
    %3534 = vmatpush1.msra.mxu0 0.0
    %3535 = vmatprep.subr.mxu0 0.0
    %3536 = vmatpush1.msra.mxu0 0.0
    %3537 = vmatprep.subr.mxu0 0.0
    %3538 = vmatpush1.msra.mxu0 0.0
    %3539 = vmatprep.subr.mxu0 0.0
    %3540 = vmatpush1.msra.mxu0 0.0
    %3541 = vmatprep.subr.mxu0 0.0
    %3542 = vmatpush1.msra.mxu0 0.0
    %3543 = vmatprep.subr.mxu0 0.0
    %3544 = vmatpush1.msra.mxu0 0.0
    %3545 = vmatprep.subr.mxu0 0.0
    %3546 = vmatpush1.msra.mxu0 0.0
    %3547 = vmatprep.subr.mxu0 0.0
    %3548 = vmatpush1.msra.mxu0 0.0
    %3549 = vmatprep.subr.mxu0 0.0
    %3550 = vmatpush1.msra.mxu0 0.0
    %3551 = vmatprep.subr.mxu0 0.0
    %3552 = vmatpush1.msra.mxu0 0.0
    %3553 = vmatprep.subr.mxu0 0.0
    %3554 = vmatpush1.msra.mxu0 0.0
    %3555 = vmatprep.subr.mxu0 0.0
    %3556 = vmatpush1.msra.mxu0 0.0
    %3557 = vmatprep.mubr.f32.mxu0 0.0
    %3558 = vmatmul.mubr.f32.gmra.mrb[0].mxu0 %v378
    %v3559 = vpop.f32.mrb[0].mxu0
    %v3560 = vadd.f32 0.0, %v3559
    %v3561 = vpop.f32.mrb[0].mxu0
    %v3562 = vadd.f32 0.0, %v3561
    %3563 = vdwg.mxu0
    %v3564 = vadd.f32 %v3491, %v3560
    %v3565 = vadd.f32 %v3492, %v3562
    %v3566 = vmul.f32 %v3564, %v181
    %v3567 = vmul.f32 %v3565, %v182
    %v3568 = vxor.u32 %v3566, 2147483648
    %v3569 = vxor.u32 %v3567, 2147483648
    %v3570 = vmul.f32 %v3568, 1.442695
    %v3571 = vpow.pop %v3570
    %v3572 = vmul.f32 %v3569, 1.442695
    %v3573 = vpow.pop %v3572
    %v3574 = vadd.f32 %v3571, 1.0
    %v3575 = vadd.f32 %v3573, 1.0
    %v3576 = vrcp.pop %v3574
    %v3577 = vmul.f32 1.0, %v3576
    %v3578 = vrcp.pop %v3575
    %v3579 = vmul.f32 1.0, %v3578
    %v3580 = vmul.f32 %v3579, 2.0
    %v3581 = vsub.f32 %v3580, 1.0
    %v3582 = vmul.f32 %v3577, 0.0
    %v3583 = vmul.f32 %v3577, %v3581
    %3585 = vrot.lane.b32.xlu0 %v3583, 64
    %v3586 = vpop.permute.xlu0 %3585
    %v3588 = vadd.f32 %v3582, %v3586
    %v3589 = vtanh.pop %v3588
    %v3590 = vmul.f32 %v3579, %v3589
    %v3591 = vsel %vm372, %v3451, %v3481
    %v3592 = vsel %vm373, %v3453, %v3483
    %3594 = vrot.lane.b32.xlu0 %v3590, 64
    %v3595 = vpop.permute.xlu0 %3594
    %v3596 = vsel %vm376, %v3595, 0
    %3598 = vmatprep.subr.mxu0 %v3326
    %3599 = vmatpush1.msra.mxu0 %v3325
    %3600 = vmatprep.subr.mxu0 %v3328
    %3601 = vmatpush1.msra.mxu0 %v3327
    %3602 = vmatprep.subr.mxu0 %v3330
    %3603 = vmatpush1.msra.mxu0 %v3329
    %3604 = vmatprep.subr.mxu0 %v3332
    %3605 = vmatpush1.msra.mxu0 %v3331
    %3606 = vmatprep.subr.mxu0 %v3334
    %3607 = vmatpush1.msra.mxu0 %v3333
    %3608 = vmatprep.subr.mxu0 %v3336
    %3609 = vmatpush1.msra.mxu0 %v3335
    %3610 = vmatprep.subr.mxu0 %v3338
    %3611 = vmatpush1.msra.mxu0 %v3337
    %3612 = vmatprep.subr.mxu0 %v3340
    %3613 = vmatpush1.msra.mxu0 %v3339
    %3614 = vmatprep.subr.mxu0 0.0
    %3615 = vmatpush1.msra.mxu0 0.0
    %3616 = vmatprep.subr.mxu0 0.0
    %3617 = vmatpush1.msra.mxu0 0.0
    %3618 = vmatprep.subr.mxu0 0.0
    %3619 = vmatpush1.msra.mxu0 0.0
    %3620 = vmatprep.subr.mxu0 0.0
    %3621 = vmatpush1.msra.mxu0 0.0
    %3622 = vmatprep.subr.mxu0 0.0
    %3623 = vmatpush1.msra.mxu0 0.0
    %3624 = vmatprep.subr.mxu0 0.0
    %3625 = vmatpush1.msra.mxu0 0.0
    %3626 = vmatprep.subr.mxu0 0.0
    %3627 = vmatpush1.msra.mxu0 0.0
    %3628 = vmatprep.subr.mxu0 0.0
    %3629 = vmatpush1.msra.mxu0 0.0
    %3630 = vmatprep.subr.mxu0 0.0
    %3631 = vmatpush1.msra.mxu0 0.0
    %3632 = vmatprep.subr.mxu0 0.0
    %3633 = vmatpush1.msra.mxu0 0.0
    %3634 = vmatprep.subr.mxu0 0.0
    %3635 = vmatpush1.msra.mxu0 0.0
    %3636 = vmatprep.subr.mxu0 0.0
    %3637 = vmatpush1.msra.mxu0 0.0
    %3638 = vmatprep.subr.mxu0 0.0
    %3639 = vmatpush1.msra.mxu0 0.0
    %3640 = vmatprep.subr.mxu0 0.0
    %3641 = vmatpush1.msra.mxu0 0.0
    %3642 = vmatprep.subr.mxu0 0.0
    %3643 = vmatpush1.msra.mxu0 0.0
    %3644 = vmatprep.subr.mxu0 0.0
    %3645 = vmatpush1.msra.mxu0 0.0
    %3646 = vmatprep.subr.mxu0 0.0
    %3647 = vmatpush1.msra.mxu0 0.0
    %3648 = vmatprep.subr.mxu0 0.0
    %3649 = vmatpush1.msra.mxu0 0.0
    %3650 = vmatprep.subr.mxu0 0.0
    %3651 = vmatpush1.msra.mxu0 0.0
    %3652 = vmatprep.subr.mxu0 0.0
    %3653 = vmatpush1.msra.mxu0 0.0
    %3654 = vmatprep.subr.mxu0 0.0
    %3655 = vmatpush1.msra.mxu0 0.0
    %3656 = vmatprep.subr.mxu0 0.0
    %3657 = vmatpush1.msra.mxu0 0.0
    %3658 = vmatprep.subr.mxu0 0.0
    %3659 = vmatpush1.msra.mxu0 0.0
    %3660 = vmatprep.subr.mxu0 0.0
    %3661 = vmatpush1.msra.mxu0 0.0
    %3662 = vmatprep.mubr.f32.mxu0 0.0
    %3663 = vmatmul.mubr.f32.gmra.mrb[0].mxu0 %v3596
    %v3664 = vpop.f32.mrb[0].mxu0
    %v3665 = vadd.f32 0.0, %v3664
    %v3666 = vpop.f32.mrb[0].mxu0
    %v3667 = vadd.f32 0.0, %v3666
    %3668 = vdwg.mxu0
    %v3669 = vadd.f32 %v3591, %v3665
    %v3670 = vadd.f32 %v3592, %v3667
    %v3671 = vmul.f32 %v3669, %v181
    %v3672 = vmul.f32 %v3670, %v182
    %v3673 = vxor.u32 %v3671, 2147483648
    %v3674 = vxor.u32 %v3672, 2147483648
    %v3675 = vmul.f32 %v3673, 1.442695
    %v3676 = vpow.pop %v3675
    %v3677 = vmul.f32 %v3674, 1.442695
    %v3678 = vpow.pop %v3677
    %v3679 = vadd.f32 %v3676, 1.0
    %v3680 = vadd.f32 %v3678, 1.0
    %v3681 = vrcp.pop %v3679
    %v3682 = vmul.f32 1.0, %v3681
    %v3683 = vrcp.pop %v3680
    %v3684 = vmul.f32 1.0, %v3683
    %v3685 = vmul.f32 %v3684, 2.0
    %v3686 = vsub.f32 %v3685, 1.0
    %v3687 = vmul.f32 %v3682, %v3588
    %v3688 = vmul.f32 %v3682, %v3686
    %3690 = vrot.lane.b32.xlu0 %v3688, 64
    %v3691 = vpop.permute.xlu0 %3690
    %v3693 = vadd.f32 %v3687, %v3691
    %v3694 = vtanh.pop %v3693
    %v3695 = vmul.f32 %v3684, %v3694
    %v3696 = vsel %vm372, %v3457, %v3475
    %v3697 = vsel %vm373, %v3459, %v3477
    %3699 = vrot.lane.b32.xlu0 %v3695, 64
    %v3700 = vpop.permute.xlu0 %3699
    %v3701 = vsel %vm376, %v3700, 0
    %3703 = vmatprep.subr.mxu0 %v3326
    %3704 = vmatpush1.msra.mxu0 %v3325
    %3705 = vmatprep.subr.mxu0 %v3328
    %3706 = vmatpush1.msra.mxu0 %v3327
    %3707 = vmatprep.subr.mxu0 %v3330
    %3708 = vmatpush1.msra.mxu0 %v3329
    %3709 = vmatprep.subr.mxu0 %v3332
    %3710 = vmatpush1.msra.mxu0 %v3331
    %3711 = vmatprep.subr.mxu0 %v3334
    %3712 = vmatpush1.msra.mxu0 %v3333
    %3713 = vmatprep.subr.mxu0 %v3336
    %3714 = vmatpush1.msra.mxu0 %v3335
    %3715 = vmatprep.subr.mxu0 %v3338
    %3716 = vmatpush1.msra.mxu0 %v3337
    %3717 = vmatprep.subr.mxu0 %v3340
    %3718 = vmatpush1.msra.mxu0 %v3339
    %3719 = vmatprep.subr.mxu0 0.0
    %3720 = vmatpush1.msra.mxu0 0.0
    %3721 = vmatprep.subr.mxu0 0.0
    %3722 = vmatpush1.msra.mxu0 0.0
    %3723 = vmatprep.subr.mxu0 0.0
    %3724 = vmatpush1.msra.mxu0 0.0
    %3725 = vmatprep.subr.mxu0 0.0
    %3726 = vmatpush1.msra.mxu0 0.0
    %3727 = vmatprep.subr.mxu0 0.0
    %3728 = vmatpush1.msra.mxu0 0.0
    %3729 = vmatprep.subr.mxu0 0.0
    %3730 = vmatpush1.msra.mxu0 0.0
    %3731 = vmatprep.subr.mxu0 0.0
    %3732 = vmatpush1.msra.mxu0 0.0
    %3733 = vmatprep.subr.mxu0 0.0
    %3734 = vmatpush1.msra.mxu0 0.0
    %3735 = vmatprep.subr.mxu0 0.0
    %3736 = vmatpush1.msra.mxu0 0.0
    %3737 = vmatprep.subr.mxu0 0.0
    %3738 = vmatpush1.msra.mxu0 0.0
    %3739 = vmatprep.subr.mxu0 0.0
    %3740 = vmatpush1.msra.mxu0 0.0
    %3741 = vmatprep.subr.mxu0 0.0
    %3742 = vmatpush1.msra.mxu0 0.0
    %3743 = vmatprep.subr.mxu0 0.0
    %3744 = vmatpush1.msra.mxu0 0.0
    %3745 = vmatprep.subr.mxu0 0.0
    %3746 = vmatpush1.msra.mxu0 0.0
    %3747 = vmatprep.subr.mxu0 0.0
    %3748 = vmatpush1.msra.mxu0 0.0
    %3749 = vmatprep.subr.mxu0 0.0
    %3750 = vmatpush1.msra.mxu0 0.0
    %3751 = vmatprep.subr.mxu0 0.0
    %3752 = vmatpush1.msra.mxu0 0.0
    %3753 = vmatprep.subr.mxu0 0.0
    %3754 = vmatpush1.msra.mxu0 0.0
    %3755 = vmatprep.subr.mxu0 0.0
    %3756 = vmatpush1.msra.mxu0 0.0
    %3757 = vmatprep.subr.mxu0 0.0
    %3758 = vmatpush1.msra.mxu0 0.0
    %3759 = vmatprep.subr.mxu0 0.0
    %3760 = vmatpush1.msra.mxu0 0.0
    %3761 = vmatprep.subr.mxu0 0.0
    %3762 = vmatpush1.msra.mxu0 0.0
    %3763 = vmatprep.subr.mxu0 0.0
    %3764 = vmatpush1.msra.mxu0 0.0
    %3765 = vmatprep.subr.mxu0 0.0
    %3766 = vmatpush1.msra.mxu0 0.0
    %3767 = vmatprep.mubr.f32.mxu0 0.0
    %3768 = vmatmul.mubr.f32.gmra.mrb[0].mxu0 %v3701
    %v3769 = vpop.f32.mrb[0].mxu0
    %v3770 = vadd.f32 0.0, %v3769
    %v3771 = vpop.f32.mrb[0].mxu0
    %v3772 = vadd.f32 0.0, %v3771
    %3773 = vdwg.mxu0
    %v3774 = vadd.f32 %v3696, %v3770
    %v3775 = vadd.f32 %v3697, %v3772
    %v3776 = vmul.f32 %v3774, %v181
    %v3777 = vmul.f32 %v3775, %v182
    %v3778 = vxor.u32 %v3776, 2147483648
    %v3779 = vxor.u32 %v3777, 2147483648
    %v3780 = vmul.f32 %v3778, 1.442695
    %v3781 = vpow.pop %v3780
    %v3782 = vmul.f32 %v3779, 1.442695
    %v3783 = vpow.pop %v3782
    %v3784 = vadd.f32 %v3781, 1.0
    %v3785 = vadd.f32 %v3783, 1.0
    %v3786 = vrcp.pop %v3784
    %v3787 = vmul.f32 1.0, %v3786
    %v3788 = vrcp.pop %v3785
    %v3789 = vmul.f32 1.0, %v3788
    %v3790 = vmul.f32 %v3789, 2.0
    %v3791 = vsub.f32 %v3790, 1.0
    %v3792 = vmul.f32 %v3787, %v3693
    %v3793 = vmul.f32 %v3787, %v3791
    %3795 = vrot.lane.b32.xlu0 %v3793, 64
    %v3796 = vpop.permute.xlu0 %3795
    %v3798 = vadd.f32 %v3792, %v3796
    %v3799 = vtanh.pop %v3798
    %v3800 = vmul.f32 %v3789, %v3799
    %v3801 = vsel %vm372, %v3463, %v3469
    %v3802 = vsel %vm373, %v3465, %v3471
    %3804 = vrot.lane.b32.xlu0 %v3800, 64
    %v3805 = vpop.permute.xlu0 %3804
    %v3806 = vsel %vm376, %v3805, 0
    %3808 = vmatprep.subr.mxu0 %v3326
    %3809 = vmatpush1.msra.mxu0 %v3325
    %3810 = vmatprep.subr.mxu0 %v3328
    %3811 = vmatpush1.msra.mxu0 %v3327
    %3812 = vmatprep.subr.mxu0 %v3330
    %3813 = vmatpush1.msra.mxu0 %v3329
    %3814 = vmatprep.subr.mxu0 %v3332
    %3815 = vmatpush1.msra.mxu0 %v3331
    %3816 = vmatprep.subr.mxu0 %v3334
    %3817 = vmatpush1.msra.mxu0 %v3333
    %3818 = vmatprep.subr.mxu0 %v3336
    %3819 = vmatpush1.msra.mxu0 %v3335
    %3820 = vmatprep.subr.mxu0 %v3338
    %3821 = vmatpush1.msra.mxu0 %v3337
    %3822 = vmatprep.subr.mxu0 %v3340
    %3823 = vmatpush1.msra.mxu0 %v3339
    %3824 = vmatprep.subr.mxu0 0.0
    %3825 = vmatpush1.msra.mxu0 0.0
    %3826 = vmatprep.subr.mxu0 0.0
    %3827 = vmatpush1.msra.mxu0 0.0
    %3828 = vmatprep.subr.mxu0 0.0
    %3829 = vmatpush1.msra.mxu0 0.0
    %3830 = vmatprep.subr.mxu0 0.0
    %3831 = vmatpush1.msra.mxu0 0.0
    %3832 = vmatprep.subr.mxu0 0.0
    %3833 = vmatpush1.msra.mxu0 0.0
    %3834 = vmatprep.subr.mxu0 0.0
    %3835 = vmatpush1.msra.mxu0 0.0
    %3836 = vmatprep.subr.mxu0 0.0
    %3837 = vmatpush1.msra.mxu0 0.0
    %3838 = vmatprep.subr.mxu0 0.0
    %3839 = vmatpush1.msra.mxu0 0.0
    %3840 = vmatprep.subr.mxu0 0.0
    %3841 = vmatpush1.msra.mxu0 0.0
    %3842 = vmatprep.subr.mxu0 0.0
    %3843 = vmatpush1.msra.mxu0 0.0
    %3844 = vmatprep.subr.mxu0 0.0
    %3845 = vmatpush1.msra.mxu0 0.0
    %3846 = vmatprep.subr.mxu0 0.0
    %3847 = vmatpush1.msra.mxu0 0.0
    %3848 = vmatprep.subr.mxu0 0.0
    %3849 = vmatpush1.msra.mxu0 0.0
    %3850 = vmatprep.subr.mxu0 0.0
    %3851 = vmatpush1.msra.mxu0 0.0
    %3852 = vmatprep.subr.mxu0 0.0
    %3853 = vmatpush1.msra.mxu0 0.0
    %3854 = vmatprep.subr.mxu0 0.0
    %3855 = vmatpush1.msra.mxu0 0.0
    %3856 = vmatprep.subr.mxu0 0.0
    %3857 = vmatpush1.msra.mxu0 0.0
    %3858 = vmatprep.subr.mxu0 0.0
    %3859 = vmatpush1.msra.mxu0 0.0
    %3860 = vmatprep.subr.mxu0 0.0
    %3861 = vmatpush1.msra.mxu0 0.0
    %3862 = vmatprep.subr.mxu0 0.0
    %3863 = vmatpush1.msra.mxu0 0.0
    %3864 = vmatprep.subr.mxu0 0.0
    %3865 = vmatpush1.msra.mxu0 0.0
    %3866 = vmatprep.subr.mxu0 0.0
    %3867 = vmatpush1.msra.mxu0 0.0
    %3868 = vmatprep.subr.mxu0 0.0
    %3869 = vmatpush1.msra.mxu0 0.0
    %3870 = vmatprep.subr.mxu0 0.0
    %3871 = vmatpush1.msra.mxu0 0.0
    %3872 = vmatprep.mubr.f32.mxu0 0.0
    %3873 = vmatmul.mubr.f32.gmra.mrb[0].mxu0 %v3806
    %v3874 = vpop.f32.mrb[0].mxu0
    %v3875 = vadd.f32 0.0, %v3874
    %v3876 = vpop.f32.mrb[0].mxu0
    %v3877 = vadd.f32 0.0, %v3876
    %3878 = vdwg.mxu0
    %v3879 = vadd.f32 %v3801, %v3875
    %v3880 = vadd.f32 %v3802, %v3877
    %v3881 = vmul.f32 %v3879, %v181
    %v3882 = vmul.f32 %v3880, %v182
    %v3883 = vxor.u32 %v3881, 2147483648
    %v3884 = vxor.u32 %v3882, 2147483648
    %v3885 = vmul.f32 %v3883, 1.442695
    %v3886 = vpow.pop %v3885
    %v3887 = vmul.f32 %v3884, 1.442695
    %v3888 = vpow.pop %v3887
    %v3889 = vadd.f32 %v3886, 1.0
    %v3890 = vadd.f32 %v3888, 1.0
    %v3891 = vrcp.pop %v3889
    %v3892 = vmul.f32 1.0, %v3891
    %v3893 = vrcp.pop %v3890
    %v3894 = vmul.f32 1.0, %v3893
    %v3895 = vmul.f32 %v3894, 2.0
    %v3896 = vsub.f32 %v3895, 1.0
    %v3897 = vmul.f32 %v3892, %v3798
    %v3898 = vmul.f32 %v3892, %v3896
    %3900 = vrot.lane.b32.xlu0 %v3898, 64
    %v3901 = vpop.permute.xlu0 %3900
    %v3903 = vadd.f32 %v3897, %v3901
    %v3904 = vtanh.pop %v3903
    %v3905 = vmul.f32 %v3894, %v3904
    %v3906 = vsel %vm372, %v3469, %v3463
    %v3907 = vsel %vm373, %v3471, %v3465
    %3909 = vrot.lane.b32.xlu0 %v3905, 64
    %v3910 = vpop.permute.xlu0 %3909
    %v3911 = vsel %vm376, %v3910, 0
    %3913 = vmatprep.subr.mxu0 %v3326
    %3914 = vmatpush1.msra.mxu0 %v3325
    %3915 = vmatprep.subr.mxu0 %v3328
    %3916 = vmatpush1.msra.mxu0 %v3327
    %3917 = vmatprep.subr.mxu0 %v3330
    %3918 = vmatpush1.msra.mxu0 %v3329
    %3919 = vmatprep.subr.mxu0 %v3332
    %3920 = vmatpush1.msra.mxu0 %v3331
    %3921 = vmatprep.subr.mxu0 %v3334
    %3922 = vmatpush1.msra.mxu0 %v3333
    %3923 = vmatprep.subr.mxu0 %v3336
    %3924 = vmatpush1.msra.mxu0 %v3335
    %3925 = vmatprep.subr.mxu0 %v3338
    %3926 = vmatpush1.msra.mxu0 %v3337
    %3927 = vmatprep.subr.mxu0 %v3340
    %3928 = vmatpush1.msra.mxu0 %v3339
    %3929 = vmatprep.subr.mxu0 0.0
    %3930 = vmatpush1.msra.mxu0 0.0
    %3931 = vmatprep.subr.mxu0 0.0
    %3932 = vmatpush1.msra.mxu0 0.0
    %3933 = vmatprep.subr.mxu0 0.0
    %3934 = vmatpush1.msra.mxu0 0.0
    %3935 = vmatprep.subr.mxu0 0.0
    %3936 = vmatpush1.msra.mxu0 0.0
    %3937 = vmatprep.subr.mxu0 0.0
    %3938 = vmatpush1.msra.mxu0 0.0
    %3939 = vmatprep.subr.mxu0 0.0
    %3940 = vmatpush1.msra.mxu0 0.0
    %3941 = vmatprep.subr.mxu0 0.0
    %3942 = vmatpush1.msra.mxu0 0.0
    %3943 = vmatprep.subr.mxu0 0.0
    %3944 = vmatpush1.msra.mxu0 0.0
    %3945 = vmatprep.subr.mxu0 0.0
    %3946 = vmatpush1.msra.mxu0 0.0
    %3947 = vmatprep.subr.mxu0 0.0
    %3948 = vmatpush1.msra.mxu0 0.0
    %3949 = vmatprep.subr.mxu0 0.0
    %3950 = vmatpush1.msra.mxu0 0.0
    %3951 = vmatprep.subr.mxu0 0.0
    %3952 = vmatpush1.msra.mxu0 0.0
    %3953 = vmatprep.subr.mxu0 0.0
    %3954 = vmatpush1.msra.mxu0 0.0
    %3955 = vmatprep.subr.mxu0 0.0
    %3956 = vmatpush1.msra.mxu0 0.0
    %3957 = vmatprep.subr.mxu0 0.0
    %3958 = vmatpush1.msra.mxu0 0.0
    %3959 = vmatprep.subr.mxu0 0.0
    %3960 = vmatpush1.msra.mxu0 0.0
    %3961 = vmatprep.subr.mxu0 0.0
    %3962 = vmatpush1.msra.mxu0 0.0
    %3963 = vmatprep.subr.mxu0 0.0
    %3964 = vmatpush1.msra.mxu0 0.0
    %3965 = vmatprep.subr.mxu0 0.0
    %3966 = vmatpush1.msra.mxu0 0.0
    %3967 = vmatprep.subr.mxu0 0.0
    %3968 = vmatpush1.msra.mxu0 0.0
    %3969 = vmatprep.subr.mxu0 0.0
    %3970 = vmatpush1.msra.mxu0 0.0
    %3971 = vmatprep.subr.mxu0 0.0
    %3972 = vmatpush1.msra.mxu0 0.0
    %3973 = vmatprep.subr.mxu0 0.0
    %3974 = vmatpush1.msra.mxu0 0.0
    %3975 = vmatprep.subr.mxu0 0.0
    %3976 = vmatpush1.msra.mxu0 0.0
    %3977 = vmatprep.mubr.f32.mxu0 0.0
    %3978 = vmatmul.mubr.f32.gmra.mrb[0].mxu0 %v3911
    %v3979 = vpop.f32.mrb[0].mxu0
    %v3980 = vadd.f32 0.0, %v3979
    %v3981 = vpop.f32.mrb[0].mxu0
    %v3982 = vadd.f32 0.0, %v3981
    %3983 = vdwg.mxu0
    %v3984 = vadd.f32 %v3906, %v3980
    %v3985 = vadd.f32 %v3907, %v3982
    %v3986 = vmul.f32 %v3984, %v181
    %v3987 = vmul.f32 %v3985, %v182
    %v3988 = vxor.u32 %v3986, 2147483648
    %v3989 = vxor.u32 %v3987, 2147483648
    %v3990 = vmul.f32 %v3988, 1.442695
    %v3991 = vpow.pop %v3990
    %v3992 = vmul.f32 %v3989, 1.442695
    %v3993 = vpow.pop %v3992
    %v3994 = vadd.f32 %v3991, 1.0
    %v3995 = vadd.f32 %v3993, 1.0
    %v3996 = vrcp.pop %v3994
    %v3997 = vmul.f32 1.0, %v3996
    %v3998 = vrcp.pop %v3995
    %v3999 = vmul.f32 1.0, %v3998
    %v4000 = vmul.f32 %v3999, 2.0
    %v4001 = vsub.f32 %v4000, 1.0
    %v4002 = vmul.f32 %v3997, %v3903
    %v4003 = vmul.f32 %v3997, %v4001
    %4005 = vrot.lane.b32.xlu0 %v4003, 64
    %v4006 = vpop.permute.xlu0 %4005
    %v4008 = vadd.f32 %v4002, %v4006
    %v4009 = vtanh.pop %v4008
    %v4010 = vmul.f32 %v3999, %v4009
    %v4011 = vsel %vm372, %v3475, %v3457
    %v4012 = vsel %vm373, %v3477, %v3459
    %4014 = vrot.lane.b32.xlu0 %v4010, 64
    %v4015 = vpop.permute.xlu0 %4014
    %v4016 = vsel %vm376, %v4015, 0
    %4018 = vmatprep.subr.mxu0 %v3326
    %4019 = vmatpush1.msra.mxu0 %v3325
    %4020 = vmatprep.subr.mxu0 %v3328
    %4021 = vmatpush1.msra.mxu0 %v3327
    %4022 = vmatprep.subr.mxu0 %v3330
    %4023 = vmatpush1.msra.mxu0 %v3329
    %4024 = vmatprep.subr.mxu0 %v3332
    %4025 = vmatpush1.msra.mxu0 %v3331
    %4026 = vmatprep.subr.mxu0 %v3334
    %4027 = vmatpush1.msra.mxu0 %v3333
    %4028 = vmatprep.subr.mxu0 %v3336
    %4029 = vmatpush1.msra.mxu0 %v3335
    %4030 = vmatprep.subr.mxu0 %v3338
    %4031 = vmatpush1.msra.mxu0 %v3337
    %4032 = vmatprep.subr.mxu0 %v3340
    %4033 = vmatpush1.msra.mxu0 %v3339
    %4034 = vmatprep.subr.mxu0 0.0
    %4035 = vmatpush1.msra.mxu0 0.0
    %4036 = vmatprep.subr.mxu0 0.0
    %4037 = vmatpush1.msra.mxu0 0.0
    %4038 = vmatprep.subr.mxu0 0.0
    %4039 = vmatpush1.msra.mxu0 0.0
    %4040 = vmatprep.subr.mxu0 0.0
    %4041 = vmatpush1.msra.mxu0 0.0
    %4042 = vmatprep.subr.mxu0 0.0
    %4043 = vmatpush1.msra.mxu0 0.0
    %4044 = vmatprep.subr.mxu0 0.0
    %4045 = vmatpush1.msra.mxu0 0.0
    %4046 = vmatprep.subr.mxu0 0.0
    %4047 = vmatpush1.msra.mxu0 0.0
    %4048 = vmatprep.subr.mxu0 0.0
    %4049 = vmatpush1.msra.mxu0 0.0
    %4050 = vmatprep.subr.mxu0 0.0
    %4051 = vmatpush1.msra.mxu0 0.0
    %4052 = vmatprep.subr.mxu0 0.0
    %4053 = vmatpush1.msra.mxu0 0.0
    %4054 = vmatprep.subr.mxu0 0.0
    %4055 = vmatpush1.msra.mxu0 0.0
    %4056 = vmatprep.subr.mxu0 0.0
    %4057 = vmatpush1.msra.mxu0 0.0
    %4058 = vmatprep.subr.mxu0 0.0
    %4059 = vmatpush1.msra.mxu0 0.0
    %4060 = vmatprep.subr.mxu0 0.0
    %4061 = vmatpush1.msra.mxu0 0.0
    %4062 = vmatprep.subr.mxu0 0.0
    %4063 = vmatpush1.msra.mxu0 0.0
    %4064 = vmatprep.subr.mxu0 0.0
    %4065 = vmatpush1.msra.mxu0 0.0
    %4066 = vmatprep.subr.mxu0 0.0
    %4067 = vmatpush1.msra.mxu0 0.0
    %4068 = vmatprep.subr.mxu0 0.0
    %4069 = vmatpush1.msra.mxu0 0.0
    %4070 = vmatprep.subr.mxu0 0.0
    %4071 = vmatpush1.msra.mxu0 0.0
    %4072 = vmatprep.subr.mxu0 0.0
    %4073 = vmatpush1.msra.mxu0 0.0
    %4074 = vmatprep.subr.mxu0 0.0
    %4075 = vmatpush1.msra.mxu0 0.0
    %4076 = vmatprep.subr.mxu0 0.0
    %4077 = vmatpush1.msra.mxu0 0.0
    %4078 = vmatprep.subr.mxu0 0.0
    %4079 = vmatpush1.msra.mxu0 0.0
    %4080 = vmatprep.subr.mxu0 0.0
    %4081 = vmatpush1.msra.mxu0 0.0
    %4082 = vmatprep.mubr.f32.mxu0 0.0
    %4083 = vmatmul.mubr.f32.gmra.mrb[0].mxu0 %v4016
    %v4084 = vpop.f32.mrb[0].mxu0
    %v4085 = vadd.f32 0.0, %v4084
    %v4086 = vpop.f32.mrb[0].mxu0
    %v4087 = vadd.f32 0.0, %v4086
    %4088 = vdwg.mxu0
    %v4089 = vadd.f32 %v4011, %v4085
    %v4090 = vadd.f32 %v4012, %v4087
    %v4091 = vmul.f32 %v4089, %v181
    %v4092 = vmul.f32 %v4090, %v182
    %v4093 = vxor.u32 %v4091, 2147483648
    %v4094 = vxor.u32 %v4092, 2147483648
    %v4095 = vmul.f32 %v4093, 1.442695
    %v4096 = vpow.pop %v4095
    %v4097 = vmul.f32 %v4094, 1.442695
    %v4098 = vpow.pop %v4097
    %v4099 = vadd.f32 %v4096, 1.0
    %v4100 = vadd.f32 %v4098, 1.0
    %v4101 = vrcp.pop %v4099
    %v4102 = vmul.f32 1.0, %v4101
    %v4103 = vrcp.pop %v4100
    %v4104 = vmul.f32 1.0, %v4103
    %v4105 = vmul.f32 %v4104, 2.0
    %v4106 = vsub.f32 %v4105, 1.0
    %v4107 = vmul.f32 %v4102, %v4008
    %v4108 = vmul.f32 %v4102, %v4106
    %4110 = vrot.lane.b32.xlu0 %v4108, 64
    %v4111 = vpop.permute.xlu0 %4110
    %v4113 = vadd.f32 %v4107, %v4111
    %v4114 = vtanh.pop %v4113
    %v4115 = vmul.f32 %v4104, %v4114
    %v4116 = vsel %vm372, %v3481, %v3451
    %v4117 = vsel %vm373, %v3483, %v3453
    %4119 = vrot.lane.b32.xlu0 %v4115, 64
    %v4120 = vpop.permute.xlu0 %4119
    %v4121 = vsel %vm376, %v4120, 0
    %4123 = vmatprep.subr.mxu0 %v3326
    %4124 = vmatpush1.msra.mxu0 %v3325
    %4125 = vmatprep.subr.mxu0 %v3328
    %4126 = vmatpush1.msra.mxu0 %v3327
    %4127 = vmatprep.subr.mxu0 %v3330
    %4128 = vmatpush1.msra.mxu0 %v3329
    %4129 = vmatprep.subr.mxu0 %v3332
    %4130 = vmatpush1.msra.mxu0 %v3331
    %4131 = vmatprep.subr.mxu0 %v3334
    %4132 = vmatpush1.msra.mxu0 %v3333
    %4133 = vmatprep.subr.mxu0 %v3336
    %4134 = vmatpush1.msra.mxu0 %v3335
    %4135 = vmatprep.subr.mxu0 %v3338
    %4136 = vmatpush1.msra.mxu0 %v3337
    %4137 = vmatprep.subr.mxu0 %v3340
    %4138 = vmatpush1.msra.mxu0 %v3339
    %4139 = vmatprep.subr.mxu0 0.0
    %4140 = vmatpush1.msra.mxu0 0.0
    %4141 = vmatprep.subr.mxu0 0.0
    %4142 = vmatpush1.msra.mxu0 0.0
    %4143 = vmatprep.subr.mxu0 0.0
    %4144 = vmatpush1.msra.mxu0 0.0
    %4145 = vmatprep.subr.mxu0 0.0
    %4146 = vmatpush1.msra.mxu0 0.0
    %4147 = vmatprep.subr.mxu0 0.0
    %4148 = vmatpush1.msra.mxu0 0.0
    %4149 = vmatprep.subr.mxu0 0.0
    %4150 = vmatpush1.msra.mxu0 0.0
    %4151 = vmatprep.subr.mxu0 0.0
    %4152 = vmatpush1.msra.mxu0 0.0
    %4153 = vmatprep.subr.mxu0 0.0
    %4154 = vmatpush1.msra.mxu0 0.0
    %4155 = vmatprep.subr.mxu0 0.0
    %4156 = vmatpush1.msra.mxu0 0.0
    %4157 = vmatprep.subr.mxu0 0.0
    %4158 = vmatpush1.msra.mxu0 0.0
    %4159 = vmatprep.subr.mxu0 0.0
    %4160 = vmatpush1.msra.mxu0 0.0
    %4161 = vmatprep.subr.mxu0 0.0
    %4162 = vmatpush1.msra.mxu0 0.0
    %4163 = vmatprep.subr.mxu0 0.0
    %4164 = vmatpush1.msra.mxu0 0.0
    %4165 = vmatprep.subr.mxu0 0.0
    %4166 = vmatpush1.msra.mxu0 0.0
    %4167 = vmatprep.subr.mxu0 0.0
    %4168 = vmatpush1.msra.mxu0 0.0
    %4169 = vmatprep.subr.mxu0 0.0
    %4170 = vmatpush1.msra.mxu0 0.0
    %4171 = vmatprep.subr.mxu0 0.0
    %4172 = vmatpush1.msra.mxu0 0.0
    %4173 = vmatprep.subr.mxu0 0.0
    %4174 = vmatpush1.msra.mxu0 0.0
    %4175 = vmatprep.subr.mxu0 0.0
    %4176 = vmatpush1.msra.mxu0 0.0
    %4177 = vmatprep.subr.mxu0 0.0
    %4178 = vmatpush1.msra.mxu0 0.0
    %4179 = vmatprep.subr.mxu0 0.0
    %4180 = vmatpush1.msra.mxu0 0.0
    %4181 = vmatprep.subr.mxu0 0.0
    %4182 = vmatpush1.msra.mxu0 0.0
    %4183 = vmatprep.subr.mxu0 0.0
    %4184 = vmatpush1.msra.mxu0 0.0
    %4185 = vmatprep.subr.mxu0 0.0
    %4186 = vmatpush1.msra.mxu0 0.0
    %4187 = vmatprep.mubr.f32.mxu0 0.0
    %4188 = vmatmul.mubr.f32.gmra.mrb[0].mxu0 %v4121
    %v4189 = vpop.f32.mrb[0].mxu0
    %v4190 = vadd.f32 0.0, %v4189
    %v4191 = vpop.f32.mrb[0].mxu0
    %v4192 = vadd.f32 0.0, %v4191
    %4193 = vdwg.mxu0
    %v4194 = vadd.f32 %v4116, %v4190
    %v4195 = vadd.f32 %v4117, %v4192
    %v4196 = vmul.f32 %v4194, %v181
    %v4197 = vmul.f32 %v4195, %v182
    %v4198 = vxor.u32 %v4196, 2147483648
    %v4199 = vxor.u32 %v4197, 2147483648
    %v4200 = vmul.f32 %v4198, 1.442695
    %v4201 = vpow.pop %v4200
    %v4202 = vmul.f32 %v4199, 1.442695
    %v4203 = vpow.pop %v4202
    %v4204 = vadd.f32 %v4201, 1.0
    %v4205 = vadd.f32 %v4203, 1.0
    %v4206 = vrcp.pop %v4204
    %v4207 = vmul.f32 1.0, %v4206
    %v4208 = vrcp.pop %v4205
    %v4209 = vmul.f32 1.0, %v4208
    %v4210 = vmul.f32 %v4209, 2.0
    %v4211 = vsub.f32 %v4210, 1.0
    %v4212 = vmul.f32 %v4207, %v4113
    %v4213 = vmul.f32 %v4207, %v4211
    %4215 = vrot.lane.b32.xlu0 %v4213, 64
    %v4216 = vpop.permute.xlu0 %4215
    %v4218 = vadd.f32 %v4212, %v4216
    %v4219 = vtanh.pop %v4218
    %v4220 = vmul.f32 %v4209, %v4219
    %v4221 = vsel %vm372, %v3487, %v3445
    %v4222 = vsel %vm373, %v3489, %v3447
    %4224 = vrot.lane.b32.xlu0 %v4220, 64
    %v4225 = vpop.permute.xlu0 %4224
    %v4226 = vsel %vm376, %v4225, 0
    %4228 = vmatprep.subr.mxu0 %v3326
    %4229 = vmatpush1.msra.mxu0 %v3325
    %4230 = vmatprep.subr.mxu0 %v3328
    %4231 = vmatpush1.msra.mxu0 %v3327
    %4232 = vmatprep.subr.mxu0 %v3330
    %4233 = vmatpush1.msra.mxu0 %v3329
    %4234 = vmatprep.subr.mxu0 %v3332
    %4235 = vmatpush1.msra.mxu0 %v3331
    %4236 = vmatprep.subr.mxu0 %v3334
    %4237 = vmatpush1.msra.mxu0 %v3333
    %4238 = vmatprep.subr.mxu0 %v3336
    %4239 = vmatpush1.msra.mxu0 %v3335
    %4240 = vmatprep.subr.mxu0 %v3338
    %4241 = vmatpush1.msra.mxu0 %v3337
    %4242 = vmatprep.subr.mxu0 %v3340
    %4243 = vmatpush1.msra.mxu0 %v3339
    %4244 = vmatprep.subr.mxu0 0.0
    %4245 = vmatpush1.msra.mxu0 0.0
    %4246 = vmatprep.subr.mxu0 0.0
    %4247 = vmatpush1.msra.mxu0 0.0
    %4248 = vmatprep.subr.mxu0 0.0
    %4249 = vmatpush1.msra.mxu0 0.0
    %4250 = vmatprep.subr.mxu0 0.0
    %4251 = vmatpush1.msra.mxu0 0.0
    %4252 = vmatprep.subr.mxu0 0.0
    %4253 = vmatpush1.msra.mxu0 0.0
    %4254 = vmatprep.subr.mxu0 0.0
    %4255 = vmatpush1.msra.mxu0 0.0
    %4256 = vmatprep.subr.mxu0 0.0
    %4257 = vmatpush1.msra.mxu0 0.0
    %4258 = vmatprep.subr.mxu0 0.0
    %4259 = vmatpush1.msra.mxu0 0.0
    %4260 = vmatprep.subr.mxu0 0.0
    %4261 = vmatpush1.msra.mxu0 0.0
    %4262 = vmatprep.subr.mxu0 0.0
    %4263 = vmatpush1.msra.mxu0 0.0
    %4264 = vmatprep.subr.mxu0 0.0
    %4265 = vmatpush1.msra.mxu0 0.0
    %4266 = vmatprep.subr.mxu0 0.0
    %4267 = vmatpush1.msra.mxu0 0.0
    %4268 = vmatprep.subr.mxu0 0.0
    %4269 = vmatpush1.msra.mxu0 0.0
    %4270 = vmatprep.subr.mxu0 0.0
    %4271 = vmatpush1.msra.mxu0 0.0
    %4272 = vmatprep.subr.mxu0 0.0
    %4273 = vmatpush1.msra.mxu0 0.0
    %4274 = vmatprep.subr.mxu0 0.0
    %4275 = vmatpush1.msra.mxu0 0.0
    %4276 = vmatprep.subr.mxu0 0.0
    %4277 = vmatpush1.msra.mxu0 0.0
    %4278 = vmatprep.subr.mxu0 0.0
    %4279 = vmatpush1.msra.mxu0 0.0
    %4280 = vmatprep.subr.mxu0 0.0
    %4281 = vmatpush1.msra.mxu0 0.0
    %4282 = vmatprep.subr.mxu0 0.0
    %4283 = vmatpush1.msra.mxu0 0.0
    %4284 = vmatprep.subr.mxu0 0.0
    %4285 = vmatpush1.msra.mxu0 0.0
    %4286 = vmatprep.subr.mxu0 0.0
    %4287 = vmatpush1.msra.mxu0 0.0
    %4288 = vmatprep.subr.mxu0 0.0
    %4289 = vmatpush1.msra.mxu0 0.0
    %4290 = vmatprep.subr.mxu0 0.0
    %4291 = vmatpush1.msra.mxu0 0.0
    %4292 = vmatprep.mubr.f32.mxu0 0.0
    %4293 = vmatmul.mubr.f32.gmra.mrb[0].mxu0 %v4226
    %v4294 = vpop.f32.mrb[0].mxu0
    %v4295 = vadd.f32 0.0, %v4294
    %v4296 = vpop.f32.mrb[0].mxu0
    %v4297 = vadd.f32 0.0, %v4296
    %4298 = vdwg.mxu0
    %v4299 = vadd.f32 %v4221, %v4295
    %v4300 = vadd.f32 %v4222, %v4297
    %v4301 = vmul.f32 %v4299, %v181
    %v4302 = vmul.f32 %v4300, %v182
    %v4303 = vxor.u32 %v4301, 2147483648
    %v4304 = vxor.u32 %v4302, 2147483648
    %v4305 = vmul.f32 %v4303, 1.442695
    %v4306 = vpow.pop %v4305
    %v4307 = vmul.f32 %v4304, 1.442695
    %v4308 = vpow.pop %v4307
    %v4309 = vadd.f32 %v4306, 1.0
    %v4310 = vadd.f32 %v4308, 1.0
    %v4311 = vrcp.pop %v4309
    %v4312 = vmul.f32 1.0, %v4311
    %v4313 = vrcp.pop %v4310
    %v4314 = vmul.f32 1.0, %v4313
    %v4315 = vmul.f32 %v4314, 2.0
    %v4316 = vsub.f32 %v4315, 1.0
    %v4317 = vmul.f32 %v4312, %v4218
    %v4318 = vmul.f32 %v4312, %v4316
    %4320 = vrot.lane.b32.xlu0 %v4318, 64
    %v4321 = vpop.permute.xlu0 %4320
    %v4323 = vadd.f32 %v4317, %v4321
    %v4324 = vtanh.pop %v4323
    %v4325 = vmul.f32 %v4314, %v4324
    %4328 = vrot.lane.b32.xlu0 %v4325, 64
    %v4329 = vpop.permute.xlu0 %4328
    %v4331 = vsel %vm1214, %v3595, %v4329
    %v4334 = vsel %vm1214, %v3700, %v4225
    %v4337 = vsel %vm1214, %v3805, %v4120
    %v4340 = vsel %vm1214, %v3910, %v4015
    %v4341 = vsel %vm1214, %v4015, %v3910
    %v4342 = vsel %vm1214, %v4120, %v3805
    %v4343 = vsel %vm1214, %v4225, %v3700
    %v4344 = vsel %vm1214, %v4329, %v3595
    %v4345 = vld [vmem:[#allocation9] sm:$0xff]
    %v4346 = vld [vmem:[#allocation9 + $0x8] sm:$0xff]
    %v4347 = vld [vmem:[#allocation9 + $0x10] sm:$0xff]
    %v4348 = vld [vmem:[#allocation9 + $0x18] sm:$0xff]
    %v4349 = vld [vmem:[#allocation12] sm:$0xff]
    %v4350 = vld [vmem:[#allocation12 + $0x8] sm:$0xff]
    %v4351 = vld [vmem:[#allocation12 + $0x10] sm:$0xff]
    %v4352 = vld [vmem:[#allocation12 + $0x18] sm:$0xff]
    %v4353 = vld [vmem:[#allocation13] sm:$0x1]
    %v4354 = vld [vmem:[#allocation7] sm:$0xff]
    %v4355 = vld [vmem:[#allocation7 + $0x8] sm:$0xff]
    %v4356 = vld [vmem:[#allocation7 + $0x10] sm:$0xff]
    %v4357 = vld [vmem:[#allocation7 + $0x18] sm:$0xff]
    %v4358 = vld [vmem:[#allocation7 + $0x20] sm:$0xff]
    %v4359 = vld [vmem:[#allocation7 + $0x28] sm:$0xff]
    %v4360 = vld [vmem:[#allocation7 + $0x30] sm:$0xff]
    %v4361 = vld [vmem:[#allocation7 + $0x38] sm:$0xff]
    %v4362 = vld [vmem:[#allocation10] sm:$0x1]
    %v4364 = vlaneseq
    %v4365 = vshrl.u32 %v4364, 7
    %v4366 = vsub.s32 0, %v4365
    %v4367 = vrot.slane %v4362, %v4366
    %v4370 = vsel %vm376, %v4331, 0
    %v4373 = vsel %vm376, %v4334, 0
    %v4376 = vsel %vm376, %v4337, 0
    %v4379 = vsel %vm376, %v4340, 0
    %v4382 = vsel %vm376, %v4341, 0
    %v4385 = vsel %vm376, %v4342, 0
    %v4388 = vsel %vm376, %v4343, 0
    %v4391 = vsel %vm376, %v4344, 0
    %4393 = vmatprep.subr.mxu0 0.0
    %4394 = vmatpush1.msra.mxu0 %v4354
    %4395 = vmatprep.subr.mxu0 0.0
    %4396 = vmatpush1.msra.mxu0 %v4355
    %4397 = vmatprep.subr.mxu0 0.0
    %4398 = vmatpush1.msra.mxu0 %v4356
    %4399 = vmatprep.subr.mxu0 0.0
    %4400 = vmatpush1.msra.mxu0 %v4357
    %4401 = vmatprep.subr.mxu0 0.0
    %4402 = vmatpush1.msra.mxu0 %v4358
    %4403 = vmatprep.subr.mxu0 0.0
    %4404 = vmatpush1.msra.mxu0 %v4359
    %4405 = vmatprep.subr.mxu0 0.0
    %4406 = vmatpush1.msra.mxu0 %v4360
    %4407 = vmatprep.subr.mxu0 0.0
    %4408 = vmatpush1.msra.mxu0 %v4361
    %4409 = vmatprep.subr.mxu0 0.0
    %4410 = vmatpush1.msra.mxu0 0.0
    %4411 = vmatprep.subr.mxu0 0.0
    %4412 = vmatpush1.msra.mxu0 0.0
    %4413 = vmatprep.subr.mxu0 0.0
    %4414 = vmatpush1.msra.mxu0 0.0
    %4415 = vmatprep.subr.mxu0 0.0
    %4416 = vmatpush1.msra.mxu0 0.0
    %4417 = vmatprep.subr.mxu0 0.0
    %4418 = vmatpush1.msra.mxu0 0.0
    %4419 = vmatprep.subr.mxu0 0.0
    %4420 = vmatpush1.msra.mxu0 0.0
    %4421 = vmatprep.subr.mxu0 0.0
    %4422 = vmatpush1.msra.mxu0 0.0
    %4423 = vmatprep.subr.mxu0 0.0
    %4424 = vmatpush1.msra.mxu0 0.0
    %4425 = vmatprep.subr.mxu0 0.0
    %4426 = vmatpush1.msra.mxu0 0.0
    %4427 = vmatprep.subr.mxu0 0.0
    %4428 = vmatpush1.msra.mxu0 0.0
    %4429 = vmatprep.subr.mxu0 0.0
    %4430 = vmatpush1.msra.mxu0 0.0
    %4431 = vmatprep.subr.mxu0 0.0
    %4432 = vmatpush1.msra.mxu0 0.0
    %4433 = vmatprep.subr.mxu0 0.0
    %4434 = vmatpush1.msra.mxu0 0.0
    %4435 = vmatprep.subr.mxu0 0.0
    %4436 = vmatpush1.msra.mxu0 0.0
    %4437 = vmatprep.subr.mxu0 0.0
    %4438 = vmatpush1.msra.mxu0 0.0
    %4439 = vmatprep.subr.mxu0 0.0
    %4440 = vmatpush1.msra.mxu0 0.0
    %4441 = vmatprep.subr.mxu0 0.0
    %4442 = vmatpush1.msra.mxu0 0.0
    %4443 = vmatprep.subr.mxu0 0.0
    %4444 = vmatpush1.msra.mxu0 0.0
    %4445 = vmatprep.subr.mxu0 0.0
    %4446 = vmatpush1.msra.mxu0 0.0
    %4447 = vmatprep.subr.mxu0 0.0
    %4448 = vmatpush1.msra.mxu0 0.0
    %4449 = vmatprep.subr.mxu0 0.0
    %4450 = vmatpush1.msra.mxu0 0.0
    %4451 = vmatprep.subr.mxu0 0.0
    %4452 = vmatpush1.msra.mxu0 0.0
    %4453 = vmatprep.subr.mxu0 0.0
    %4454 = vmatpush1.msra.mxu0 0.0
    %4455 = vmatprep.subr.mxu0 0.0
    %4456 = vmatpush1.msra.mxu0 0.0
    %4457 = vmatprep.mubr.f32.mxu0 0.0
    %4458 = vmatmul.mubr.f32.gmra.mrb[0].mxu0 %v4370
    %v4459 = vpop.f32.mrb[0].mxu0
    %v4460 = vadd.f32 %v4367, %v4459
    %v4461 = vpop.f32.mrb[0].mxu0
    %4462 = vmatprep.mubr.f32.mxu0 0.0
    %4463 = vmatmul.mubr.f32.gmra.mrb[0].mxu0 %v4373
    %v4464 = vpop.f32.mrb[0].mxu0
    %v4465 = vadd.f32 %v4367, %v4464
    %v4466 = vpop.f32.mrb[0].mxu0
    %4467 = vmatprep.mubr.f32.mxu0 0.0
    %4468 = vmatmul.mubr.f32.gmra.mrb[0].mxu0 %v4376
    %v4469 = vpop.f32.mrb[0].mxu0
    %v4470 = vadd.f32 %v4367, %v4469
    %v4471 = vpop.f32.mrb[0].mxu0
    %4472 = vmatprep.mubr.f32.mxu0 0.0
    %4473 = vmatmul.mubr.f32.gmra.mrb[0].mxu0 %v4379
    %v4474 = vpop.f32.mrb[0].mxu0
    %v4475 = vadd.f32 %v4367, %v4474
    %v4476 = vpop.f32.mrb[0].mxu0
    %4477 = vmatprep.mubr.f32.mxu0 0.0
    %4478 = vmatmul.mubr.f32.gmra.mrb[0].mxu0 %v4382
    %v4479 = vpop.f32.mrb[0].mxu0
    %v4480 = vadd.f32 %v4367, %v4479
    %v4481 = vpop.f32.mrb[0].mxu0
    %4482 = vmatprep.mubr.f32.mxu0 0.0
    %4483 = vmatmul.mubr.f32.gmra.mrb[0].mxu0 %v4385
    %v4484 = vpop.f32.mrb[0].mxu0
    %v4485 = vadd.f32 %v4367, %v4484
    %v4486 = vpop.f32.mrb[0].mxu0
    %4487 = vmatprep.mubr.f32.mxu0 0.0
    %4488 = vmatmul.mubr.f32.gmra.mrb[0].mxu0 %v4388
    %v4489 = vpop.f32.mrb[0].mxu0
    %v4490 = vadd.f32 %v4367, %v4489
    %v4491 = vpop.f32.mrb[0].mxu0
    %4492 = vmatprep.mubr.f32.mxu0 0.0
    %4493 = vmatmul.mubr.f32.gmra.mrb[0].mxu0 %v4391
    %v4494 = vpop.f32.mrb[0].mxu0
    %v4495 = vadd.f32 %v4367, %v4494
    %v4496 = vpop.f32.mrb[0].mxu0
    %4497 = vdwg.mxu0
    %vm4498 = vcmask 261120
    %v4499 = vsel %vm4498, 0.0, 0
    %4501 = vmatprep.subr.mxu0 0.0
    %4502 = vmatpush1.msra.mxu0 %v4345
    %4503 = vmatprep.subr.mxu0 0.0
    %4504 = vmatpush1.msra.mxu0 %v4346
    %4505 = vmatprep.subr.mxu0 0.0
    %4506 = vmatpush1.msra.mxu0 %v4347
    %4507 = vmatprep.subr.mxu0 0.0
    %4508 = vmatpush1.msra.mxu0 %v4348
    %4509 = vmatprep.subr.mxu0 0.0
    %4510 = vmatpush1.msra.mxu0 0.0
    %4511 = vmatprep.subr.mxu0 0.0
    %4512 = vmatpush1.msra.mxu0 0.0
    %4513 = vmatprep.subr.mxu0 0.0
    %4514 = vmatpush1.msra.mxu0 0.0
    %4515 = vmatprep.subr.mxu0 0.0
    %4516 = vmatpush1.msra.mxu0 0.0
    %4517 = vmatprep.subr.mxu0 0.0
    %4518 = vmatpush1.msra.mxu0 0.0
    %4519 = vmatprep.subr.mxu0 0.0
    %4520 = vmatpush1.msra.mxu0 0.0
    %4521 = vmatprep.subr.mxu0 0.0
    %4522 = vmatpush1.msra.mxu0 0.0
    %4523 = vmatprep.subr.mxu0 0.0
    %4524 = vmatpush1.msra.mxu0 0.0
    %4525 = vmatprep.subr.mxu0 0.0
    %4526 = vmatpush1.msra.mxu0 0.0
    %4527 = vmatprep.subr.mxu0 0.0
    %4528 = vmatpush1.msra.mxu0 0.0
    %4529 = vmatprep.subr.mxu0 0.0
    %4530 = vmatpush1.msra.mxu0 0.0
    %4531 = vmatprep.subr.mxu0 0.0
    %4532 = vmatpush1.msra.mxu0 0.0
    %4533 = vmatprep.subr.mxu0 0.0
    %4534 = vmatpush1.msra.mxu0 0.0
    %4535 = vmatprep.subr.mxu0 0.0
    %4536 = vmatpush1.msra.mxu0 0.0
    %4537 = vmatprep.subr.mxu0 0.0
    %4538 = vmatpush1.msra.mxu0 0.0
    %4539 = vmatprep.subr.mxu0 0.0
    %4540 = vmatpush1.msra.mxu0 0.0
    %4541 = vmatprep.subr.mxu0 0.0
    %4542 = vmatpush1.msra.mxu0 0.0
    %4543 = vmatprep.subr.mxu0 0.0
    %4544 = vmatpush1.msra.mxu0 0.0
    %4545 = vmatprep.subr.mxu0 0.0
    %4546 = vmatpush1.msra.mxu0 0.0
    %4547 = vmatprep.subr.mxu0 0.0
    %4548 = vmatpush1.msra.mxu0 0.0
    %4549 = vmatprep.subr.mxu0 0.0
    %4550 = vmatpush1.msra.mxu0 0.0
    %4551 = vmatprep.subr.mxu0 0.0
    %4552 = vmatpush1.msra.mxu0 0.0
    %4553 = vmatprep.subr.mxu0 0.0
    %4554 = vmatpush1.msra.mxu0 0.0
    %4555 = vmatprep.subr.mxu0 0.0
    %4556 = vmatpush1.msra.mxu0 0.0
    %4557 = vmatprep.subr.mxu0 0.0
    %4558 = vmatpush1.msra.mxu0 0.0
    %4559 = vmatprep.subr.mxu0 0.0
    %4560 = vmatpush1.msra.mxu0 0.0
    %4561 = vmatprep.subr.mxu0 0.0
    %4562 = vmatpush1.msra.mxu0 0.0
    %4563 = vmatprep.subr.mxu0 0.0
    %4564 = vmatpush1.msra.mxu0 0.0
    %4565 = vmatprep.mubr.f32.mxu0 0.0
    %4566 = vmatmul.mubr.f32.gmra.mrb[0].mxu0 %v4499
    %v4567 = vpop.f32.mrb[0].mxu0
    %v4568 = vadd.f32 0.0, %v4567
    %v4569 = vpop.f32.mrb[0].mxu0
    %4570 = vdwg.mxu0
    %v4571 = vadd.f32 %v4495, %v4568
    %v4572 = vmul.f32 %v4571, %v186
    %v4573 = vxor.u32 %v4572, 2147483648
    %v4574 = vmul.f32 %v4573, 1.442695
    %v4575 = vpow.pop %v4574
    %v4576 = vadd.f32 %v4575, 1.0
    %v4577 = vrcp.pop %v4576
    %v4578 = vmul.f32 1.0, %v4577
    %v4579 = vmul.f32 %v4578, 2.0
    %v4580 = vsub.f32 %v4579, 1.0
    %v4581 = vmul.f32 %v4578, 0.0
    %4583 = vrot.lane.b32.xlu0 %v4580, 64
    %v4584 = vpop.permute.xlu0 %4583
    %v4586 = vmul.f32 %v4578, %v4584
    %4588 = vrot.lane.b32.xlu0 %v4586, 32
    %v4589 = vpop.permute.xlu0 %4588
    %v4591 = vadd.f32 %v4581, %v4589
    %v4592 = vtanh.pop %v4591
    %4594 = vrot.lane.b32.xlu0 %v4592, 64
    %v4595 = vpop.permute.xlu0 %4594
    %v4597 = vmul.f32 %v4578, %v4595
    %v4599 = vlaneseq
    %v4600 = vshrl.u32 %v4599, 7
    %v4601 = vsub.s32 0, %v4600
    %v4602 = vrot.slane %v4353, %v4601
    %4605 = vrot.lane.b32.xlu0 %v4597, 32
    %v4606 = vpop.permute.xlu0 %4605
    %v4607 = vsel %vm4498, %v4606, 0
    %4609 = vmatprep.subr.mxu0 0.0
    %4610 = vmatpush1.msra.mxu0 %v4349
    %4611 = vmatprep.subr.mxu0 0.0
    %4612 = vmatpush1.msra.mxu0 %v4350
    %4613 = vmatprep.subr.mxu0 0.0
    %4614 = vmatpush1.msra.mxu0 %v4351
    %4615 = vmatprep.subr.mxu0 0.0
    %4616 = vmatpush1.msra.mxu0 %v4352
    %4617 = vmatprep.subr.mxu0 0.0
    %4618 = vmatpush1.msra.mxu0 0.0
    %4619 = vmatprep.subr.mxu0 0.0
    %4620 = vmatpush1.msra.mxu0 0.0
    %4621 = vmatprep.subr.mxu0 0.0
    %4622 = vmatpush1.msra.mxu0 0.0
    %4623 = vmatprep.subr.mxu0 0.0
    %4624 = vmatpush1.msra.mxu0 0.0
    %4625 = vmatprep.subr.mxu0 0.0
    %4626 = vmatpush1.msra.mxu0 0.0
    %4627 = vmatprep.subr.mxu0 0.0
    %4628 = vmatpush1.msra.mxu0 0.0
    %4629 = vmatprep.subr.mxu0 0.0
    %4630 = vmatpush1.msra.mxu0 0.0
    %4631 = vmatprep.subr.mxu0 0.0
    %4632 = vmatpush1.msra.mxu0 0.0
    %4633 = vmatprep.subr.mxu0 0.0
    %4634 = vmatpush1.msra.mxu0 0.0
    %4635 = vmatprep.subr.mxu0 0.0
    %4636 = vmatpush1.msra.mxu0 0.0
    %4637 = vmatprep.subr.mxu0 0.0
    %4638 = vmatpush1.msra.mxu0 0.0
    %4639 = vmatprep.subr.mxu0 0.0
    %4640 = vmatpush1.msra.mxu0 0.0
    %4641 = vmatprep.subr.mxu0 0.0
    %4642 = vmatpush1.msra.mxu0 0.0
    %4643 = vmatprep.subr.mxu0 0.0
    %4644 = vmatpush1.msra.mxu0 0.0
    %4645 = vmatprep.subr.mxu0 0.0
    %4646 = vmatpush1.msra.mxu0 0.0
    %4647 = vmatprep.subr.mxu0 0.0
    %4648 = vmatpush1.msra.mxu0 0.0
    %4649 = vmatprep.subr.mxu0 0.0
    %4650 = vmatpush1.msra.mxu0 0.0
    %4651 = vmatprep.subr.mxu0 0.0
    %4652 = vmatpush1.msra.mxu0 0.0
    %4653 = vmatprep.subr.mxu0 0.0
    %4654 = vmatpush1.msra.mxu0 0.0
    %4655 = vmatprep.subr.mxu0 0.0
    %4656 = vmatpush1.msra.mxu0 0.0
    %4657 = vmatprep.subr.mxu0 0.0
    %4658 = vmatpush1.msra.mxu0 0.0
    %4659 = vmatprep.subr.mxu0 0.0
    %4660 = vmatpush1.msra.mxu0 0.0
    %4661 = vmatprep.subr.mxu0 0.0
    %4662 = vmatpush1.msra.mxu0 0.0
    %4663 = vmatprep.subr.mxu0 0.0
    %4664 = vmatpush1.msra.mxu0 0.0
    %4665 = vmatprep.subr.mxu0 0.0
    %4666 = vmatpush1.msra.mxu0 0.0
    %4667 = vmatprep.subr.mxu0 0.0
    %4668 = vmatpush1.msra.mxu0 0.0
    %4669 = vmatprep.subr.mxu0 0.0
    %4670 = vmatpush1.msra.mxu0 0.0
    %4671 = vmatprep.subr.mxu0 0.0
    %4672 = vmatpush1.msra.mxu0 0.0
    %4673 = vmatprep.mubr.f32.mxu0 0.0
    %4674 = vmatmul.mubr.f32.gmra.mrb[0].mxu0 %v4607
    %v4675 = vpop.f32.mrb[0].mxu0
    %v4676 = vadd.f32 %v4602, %v4675
    %v4677 = vpop.f32.mrb[0].mxu0
    %4678 = vdwg.mxu0
    %v4679 = vmax.f32 %v4676, 0.0
    %4680 = vmatprep.subr.mxu0 0.0
    %4681 = vmatpush1.msra.mxu0 %v4345
    %4682 = vmatprep.subr.mxu0 0.0
    %4683 = vmatpush1.msra.mxu0 %v4346
    %4684 = vmatprep.subr.mxu0 0.0
    %4685 = vmatpush1.msra.mxu0 %v4347
    %4686 = vmatprep.subr.mxu0 0.0
    %4687 = vmatpush1.msra.mxu0 %v4348
    %4688 = vmatprep.subr.mxu0 0.0
    %4689 = vmatpush1.msra.mxu0 0.0
    %4690 = vmatprep.subr.mxu0 0.0
    %4691 = vmatpush1.msra.mxu0 0.0
    %4692 = vmatprep.subr.mxu0 0.0
    %4693 = vmatpush1.msra.mxu0 0.0
    %4694 = vmatprep.subr.mxu0 0.0
    %4695 = vmatpush1.msra.mxu0 0.0
    %4696 = vmatprep.subr.mxu0 0.0
    %4697 = vmatpush1.msra.mxu0 0.0
    %4698 = vmatprep.subr.mxu0 0.0
    %4699 = vmatpush1.msra.mxu0 0.0
    %4700 = vmatprep.subr.mxu0 0.0
    %4701 = vmatpush1.msra.mxu0 0.0
    %4702 = vmatprep.subr.mxu0 0.0
    %4703 = vmatpush1.msra.mxu0 0.0
    %4704 = vmatprep.subr.mxu0 0.0
    %4705 = vmatpush1.msra.mxu0 0.0
    %4706 = vmatprep.subr.mxu0 0.0
    %4707 = vmatpush1.msra.mxu0 0.0
    %4708 = vmatprep.subr.mxu0 0.0
    %4709 = vmatpush1.msra.mxu0 0.0
    %4710 = vmatprep.subr.mxu0 0.0
    %4711 = vmatpush1.msra.mxu0 0.0
    %4712 = vmatprep.subr.mxu0 0.0
    %4713 = vmatpush1.msra.mxu0 0.0
    %4714 = vmatprep.subr.mxu0 0.0
    %4715 = vmatpush1.msra.mxu0 0.0
    %4716 = vmatprep.subr.mxu0 0.0
    %4717 = vmatpush1.msra.mxu0 0.0
    %4718 = vmatprep.subr.mxu0 0.0
    %4719 = vmatpush1.msra.mxu0 0.0
    %4720 = vmatprep.subr.mxu0 0.0
    %4721 = vmatpush1.msra.mxu0 0.0
    %4722 = vmatprep.subr.mxu0 0.0
    %4723 = vmatpush1.msra.mxu0 0.0
    %4724 = vmatprep.subr.mxu0 0.0
    %4725 = vmatpush1.msra.mxu0 0.0
    %4726 = vmatprep.subr.mxu0 0.0
    %4727 = vmatpush1.msra.mxu0 0.0
    %4728 = vmatprep.subr.mxu0 0.0
    %4729 = vmatpush1.msra.mxu0 0.0
    %4730 = vmatprep.subr.mxu0 0.0
    %4731 = vmatpush1.msra.mxu0 0.0
    %4732 = vmatprep.subr.mxu0 0.0
    %4733 = vmatpush1.msra.mxu0 0.0
    %4734 = vmatprep.subr.mxu0 0.0
    %4735 = vmatpush1.msra.mxu0 0.0
    %4736 = vmatprep.subr.mxu0 0.0
    %4737 = vmatpush1.msra.mxu0 0.0
    %4738 = vmatprep.subr.mxu0 0.0
    %4739 = vmatpush1.msra.mxu0 0.0
    %4740 = vmatprep.subr.mxu0 0.0
    %4741 = vmatpush1.msra.mxu0 0.0
    %4742 = vmatprep.subr.mxu0 0.0
    %4743 = vmatpush1.msra.mxu0 0.0
    %4744 = vmatprep.mubr.f32.mxu0 0.0
    %4745 = vmatmul.mubr.f32.gmra.mrb[0].mxu0 %v4607
    %v4746 = vpop.f32.mrb[0].mxu0
    %v4747 = vadd.f32 0.0, %v4746
    %v4748 = vpop.f32.mrb[0].mxu0
    %4749 = vdwg.mxu0
    %v4750 = vadd.f32 %v4490, %v4747
    %v4751 = vmul.f32 %v4750, %v186
    %v4752 = vxor.u32 %v4751, 2147483648
    %v4753 = vmul.f32 %v4752, 1.442695
    %v4754 = vpow.pop %v4753
    %v4755 = vadd.f32 %v4754, 1.0
    %v4756 = vrcp.pop %v4755
    %v4757 = vmul.f32 1.0, %v4756
    %v4758 = vmul.f32 %v4757, 2.0
    %v4759 = vsub.f32 %v4758, 1.0
    %v4760 = vmul.f32 %v4757, %v4591
    %4762 = vrot.lane.b32.xlu0 %v4759, 64
    %v4763 = vpop.permute.xlu0 %4762
    %v4765 = vmul.f32 %v4757, %v4763
    %4767 = vrot.lane.b32.xlu0 %v4765, 32
    %v4768 = vpop.permute.xlu0 %4767
    %v4770 = vadd.f32 %v4760, %v4768
    %v4771 = vtanh.pop %v4770
    %4773 = vrot.lane.b32.xlu0 %v4771, 64
    %v4774 = vpop.permute.xlu0 %4773
    %v4776 = vmul.f32 %v4757, %v4774
    %4778 = vrot.lane.b32.xlu0 %v4776, 32
    %v4779 = vpop.permute.xlu0 %4778
    %v4780 = vsel %vm4498, %v4779, 0
    %4782 = vmatprep.subr.mxu0 0.0
    %4783 = vmatpush1.msra.mxu0 %v4349
    %4784 = vmatprep.subr.mxu0 0.0
    %4785 = vmatpush1.msra.mxu0 %v4350
    %4786 = vmatprep.subr.mxu0 0.0
    %4787 = vmatpush1.msra.mxu0 %v4351
    %4788 = vmatprep.subr.mxu0 0.0
    %4789 = vmatpush1.msra.mxu0 %v4352
    %4790 = vmatprep.subr.mxu0 0.0
    %4791 = vmatpush1.msra.mxu0 0.0
    %4792 = vmatprep.subr.mxu0 0.0
    %4793 = vmatpush1.msra.mxu0 0.0
    %4794 = vmatprep.subr.mxu0 0.0
    %4795 = vmatpush1.msra.mxu0 0.0
    %4796 = vmatprep.subr.mxu0 0.0
    %4797 = vmatpush1.msra.mxu0 0.0
    %4798 = vmatprep.subr.mxu0 0.0
    %4799 = vmatpush1.msra.mxu0 0.0
    %4800 = vmatprep.subr.mxu0 0.0
    %4801 = vmatpush1.msra.mxu0 0.0
    %4802 = vmatprep.subr.mxu0 0.0
    %4803 = vmatpush1.msra.mxu0 0.0
    %4804 = vmatprep.subr.mxu0 0.0
    %4805 = vmatpush1.msra.mxu0 0.0
    %4806 = vmatprep.subr.mxu0 0.0
    %4807 = vmatpush1.msra.mxu0 0.0
    %4808 = vmatprep.subr.mxu0 0.0
    %4809 = vmatpush1.msra.mxu0 0.0
    %4810 = vmatprep.subr.mxu0 0.0
    %4811 = vmatpush1.msra.mxu0 0.0
    %4812 = vmatprep.subr.mxu0 0.0
    %4813 = vmatpush1.msra.mxu0 0.0
    %4814 = vmatprep.subr.mxu0 0.0
    %4815 = vmatpush1.msra.mxu0 0.0
    %4816 = vmatprep.subr.mxu0 0.0
    %4817 = vmatpush1.msra.mxu0 0.0
    %4818 = vmatprep.subr.mxu0 0.0
    %4819 = vmatpush1.msra.mxu0 0.0
    %4820 = vmatprep.subr.mxu0 0.0
    %4821 = vmatpush1.msra.mxu0 0.0
    %4822 = vmatprep.subr.mxu0 0.0
    %4823 = vmatpush1.msra.mxu0 0.0
    %4824 = vmatprep.subr.mxu0 0.0
    %4825 = vmatpush1.msra.mxu0 0.0
    %4826 = vmatprep.subr.mxu0 0.0
    %4827 = vmatpush1.msra.mxu0 0.0
    %4828 = vmatprep.subr.mxu0 0.0
    %4829 = vmatpush1.msra.mxu0 0.0
    %4830 = vmatprep.subr.mxu0 0.0
    %4831 = vmatpush1.msra.mxu0 0.0
    %4832 = vmatprep.subr.mxu0 0.0
    %4833 = vmatpush1.msra.mxu0 0.0
    %4834 = vmatprep.subr.mxu0 0.0
    %4835 = vmatpush1.msra.mxu0 0.0
    %4836 = vmatprep.subr.mxu0 0.0
    %4837 = vmatpush1.msra.mxu0 0.0
    %4838 = vmatprep.subr.mxu0 0.0
    %4839 = vmatpush1.msra.mxu0 0.0
    %4840 = vmatprep.subr.mxu0 0.0
    %4841 = vmatpush1.msra.mxu0 0.0
    %4842 = vmatprep.subr.mxu0 0.0
    %4843 = vmatpush1.msra.mxu0 0.0
    %4844 = vmatprep.subr.mxu0 0.0
    %4845 = vmatpush1.msra.mxu0 0.0
    %4846 = vmatprep.mubr.f32.mxu0 0.0
    %4847 = vmatmul.mubr.f32.gmra.mrb[0].mxu0 %v4780
    %v4848 = vpop.f32.mrb[0].mxu0
    %v4849 = vadd.f32 %v4602, %v4848
    %v4850 = vpop.f32.mrb[0].mxu0
    %4851 = vdwg.mxu0
    %v4852 = vmax.f32 %v4849, 0.0
    %4853 = vmatprep.subr.mxu0 0.0
    %4854 = vmatpush1.msra.mxu0 %v4345
    %4855 = vmatprep.subr.mxu0 0.0
    %4856 = vmatpush1.msra.mxu0 %v4346
    %4857 = vmatprep.subr.mxu0 0.0
    %4858 = vmatpush1.msra.mxu0 %v4347
    %4859 = vmatprep.subr.mxu0 0.0
    %4860 = vmatpush1.msra.mxu0 %v4348
    %4861 = vmatprep.subr.mxu0 0.0
    %4862 = vmatpush1.msra.mxu0 0.0
    %4863 = vmatprep.subr.mxu0 0.0
    %4864 = vmatpush1.msra.mxu0 0.0
    %4865 = vmatprep.subr.mxu0 0.0
    %4866 = vmatpush1.msra.mxu0 0.0
    %4867 = vmatprep.subr.mxu0 0.0
    %4868 = vmatpush1.msra.mxu0 0.0
    %4869 = vmatprep.subr.mxu0 0.0
    %4870 = vmatpush1.msra.mxu0 0.0
    %4871 = vmatprep.subr.mxu0 0.0
    %4872 = vmatpush1.msra.mxu0 0.0
    %4873 = vmatprep.subr.mxu0 0.0
    %4874 = vmatpush1.msra.mxu0 0.0
    %4875 = vmatprep.subr.mxu0 0.0
    %4876 = vmatpush1.msra.mxu0 0.0
    %4877 = vmatprep.subr.mxu0 0.0
    %4878 = vmatpush1.msra.mxu0 0.0
    %4879 = vmatprep.subr.mxu0 0.0
    %4880 = vmatpush1.msra.mxu0 0.0
    %4881 = vmatprep.subr.mxu0 0.0
    %4882 = vmatpush1.msra.mxu0 0.0
    %4883 = vmatprep.subr.mxu0 0.0
    %4884 = vmatpush1.msra.mxu0 0.0
    %4885 = vmatprep.subr.mxu0 0.0
    %4886 = vmatpush1.msra.mxu0 0.0
    %4887 = vmatprep.subr.mxu0 0.0
    %4888 = vmatpush1.msra.mxu0 0.0
    %4889 = vmatprep.subr.mxu0 0.0
    %4890 = vmatpush1.msra.mxu0 0.0
    %4891 = vmatprep.subr.mxu0 0.0
    %4892 = vmatpush1.msra.mxu0 0.0
    %4893 = vmatprep.subr.mxu0 0.0
    %4894 = vmatpush1.msra.mxu0 0.0
    %4895 = vmatprep.subr.mxu0 0.0
    %4896 = vmatpush1.msra.mxu0 0.0
    %4897 = vmatprep.subr.mxu0 0.0
    %4898 = vmatpush1.msra.mxu0 0.0
    %4899 = vmatprep.subr.mxu0 0.0
    %4900 = vmatpush1.msra.mxu0 0.0
    %4901 = vmatprep.subr.mxu0 0.0
    %4902 = vmatpush1.msra.mxu0 0.0
    %4903 = vmatprep.subr.mxu0 0.0
    %4904 = vmatpush1.msra.mxu0 0.0
    %4905 = vmatprep.subr.mxu0 0.0
    %4906 = vmatpush1.msra.mxu0 0.0
    %4907 = vmatprep.subr.mxu0 0.0
    %4908 = vmatpush1.msra.mxu0 0.0
    %4909 = vmatprep.subr.mxu0 0.0
    %4910 = vmatpush1.msra.mxu0 0.0
    %4911 = vmatprep.subr.mxu0 0.0
    %4912 = vmatpush1.msra.mxu0 0.0
    %4913 = vmatprep.subr.mxu0 0.0
    %4914 = vmatpush1.msra.mxu0 0.0
    %4915 = vmatprep.subr.mxu0 0.0
    %4916 = vmatpush1.msra.mxu0 0.0
    %4917 = vmatprep.mubr.f32.mxu0 0.0
    %4918 = vmatmul.mubr.f32.gmra.mrb[0].mxu0 %v4780
    %v4919 = vpop.f32.mrb[0].mxu0
    %v4920 = vadd.f32 0.0, %v4919
    %v4921 = vpop.f32.mrb[0].mxu0
    %4922 = vdwg.mxu0
    %v4923 = vadd.f32 %v4485, %v4920
    %v4924 = vmul.f32 %v4923, %v186
    %v4925 = vxor.u32 %v4924, 2147483648
    %v4926 = vmul.f32 %v4925, 1.442695
    %v4927 = vpow.pop %v4926
    %v4928 = vadd.f32 %v4927, 1.0
    %v4929 = vrcp.pop %v4928
    %v4930 = vmul.f32 1.0, %v4929
    %v4931 = vmul.f32 %v4930, 2.0
    %v4932 = vsub.f32 %v4931, 1.0
    %v4933 = vmul.f32 %v4930, %v4770
    %4935 = vrot.lane.b32.xlu0 %v4932, 64
    %v4936 = vpop.permute.xlu0 %4935
    %v4938 = vmul.f32 %v4930, %v4936
    %4940 = vrot.lane.b32.xlu0 %v4938, 32
    %v4941 = vpop.permute.xlu0 %4940
    %v4943 = vadd.f32 %v4933, %v4941
    %v4944 = vtanh.pop %v4943
    %4946 = vrot.lane.b32.xlu0 %v4944, 64
    %v4947 = vpop.permute.xlu0 %4946
    %v4949 = vmul.f32 %v4930, %v4947
    %4951 = vrot.lane.b32.xlu0 %v4949, 32
    %v4952 = vpop.permute.xlu0 %4951
    %v4953 = vsel %vm4498, %v4952, 0
    %4955 = vmatprep.subr.mxu0 0.0
    %4956 = vmatpush1.msra.mxu0 %v4349
    %4957 = vmatprep.subr.mxu0 0.0
    %4958 = vmatpush1.msra.mxu0 %v4350
    %4959 = vmatprep.subr.mxu0 0.0
    %4960 = vmatpush1.msra.mxu0 %v4351
    %4961 = vmatprep.subr.mxu0 0.0
    %4962 = vmatpush1.msra.mxu0 %v4352
    %4963 = vmatprep.subr.mxu0 0.0
    %4964 = vmatpush1.msra.mxu0 0.0
    %4965 = vmatprep.subr.mxu0 0.0
    %4966 = vmatpush1.msra.mxu0 0.0
    %4967 = vmatprep.subr.mxu0 0.0
    %4968 = vmatpush1.msra.mxu0 0.0
    %4969 = vmatprep.subr.mxu0 0.0
    %4970 = vmatpush1.msra.mxu0 0.0
    %4971 = vmatprep.subr.mxu0 0.0
    %4972 = vmatpush1.msra.mxu0 0.0
    %4973 = vmatprep.subr.mxu0 0.0
    %4974 = vmatpush1.msra.mxu0 0.0
    %4975 = vmatprep.subr.mxu0 0.0
    %4976 = vmatpush1.msra.mxu0 0.0
    %4977 = vmatprep.subr.mxu0 0.0
    %4978 = vmatpush1.msra.mxu0 0.0
    %4979 = vmatprep.subr.mxu0 0.0
    %4980 = vmatpush1.msra.mxu0 0.0
    %4981 = vmatprep.subr.mxu0 0.0
    %4982 = vmatpush1.msra.mxu0 0.0
    %4983 = vmatprep.subr.mxu0 0.0
    %4984 = vmatpush1.msra.mxu0 0.0
    %4985 = vmatprep.subr.mxu0 0.0
    %4986 = vmatpush1.msra.mxu0 0.0
    %4987 = vmatprep.subr.mxu0 0.0
    %4988 = vmatpush1.msra.mxu0 0.0
    %4989 = vmatprep.subr.mxu0 0.0
    %4990 = vmatpush1.msra.mxu0 0.0
    %4991 = vmatprep.subr.mxu0 0.0
    %4992 = vmatpush1.msra.mxu0 0.0
    %4993 = vmatprep.subr.mxu0 0.0
    %4994 = vmatpush1.msra.mxu0 0.0
    %4995 = vmatprep.subr.mxu0 0.0
    %4996 = vmatpush1.msra.mxu0 0.0
    %4997 = vmatprep.subr.mxu0 0.0
    %4998 = vmatpush1.msra.mxu0 0.0
    %4999 = vmatprep.subr.mxu0 0.0
    %5000 = vmatpush1.msra.mxu0 0.0
    %5001 = vmatprep.subr.mxu0 0.0
    %5002 = vmatpush1.msra.mxu0 0.0
    %5003 = vmatprep.subr.mxu0 0.0
    %5004 = vmatpush1.msra.mxu0 0.0
    %5005 = vmatprep.subr.mxu0 0.0
    %5006 = vmatpush1.msra.mxu0 0.0
    %5007 = vmatprep.subr.mxu0 0.0
    %5008 = vmatpush1.msra.mxu0 0.0
    %5009 = vmatprep.subr.mxu0 0.0
    %5010 = vmatpush1.msra.mxu0 0.0
    %5011 = vmatprep.subr.mxu0 0.0
    %5012 = vmatpush1.msra.mxu0 0.0
    %5013 = vmatprep.subr.mxu0 0.0
    %5014 = vmatpush1.msra.mxu0 0.0
    %5015 = vmatprep.subr.mxu0 0.0
    %5016 = vmatpush1.msra.mxu0 0.0
    %5017 = vmatprep.subr.mxu0 0.0
    %5018 = vmatpush1.msra.mxu0 0.0
    %5019 = vmatprep.mubr.f32.mxu0 0.0
    %5020 = vmatmul.mubr.f32.gmra.mrb[0].mxu0 %v4953
    %v5021 = vpop.f32.mrb[0].mxu0
    %v5022 = vadd.f32 %v4602, %v5021
    %v5023 = vpop.f32.mrb[0].mxu0
    %5024 = vdwg.mxu0
    %v5025 = vmax.f32 %v5022, 0.0
    %5026 = vmatprep.subr.mxu0 0.0
    %5027 = vmatpush1.msra.mxu0 %v4345
    %5028 = vmatprep.subr.mxu0 0.0
    %5029 = vmatpush1.msra.mxu0 %v4346
    %5030 = vmatprep.subr.mxu0 0.0
    %5031 = vmatpush1.msra.mxu0 %v4347
    %5032 = vmatprep.subr.mxu0 0.0
    %5033 = vmatpush1.msra.mxu0 %v4348
    %5034 = vmatprep.subr.mxu0 0.0
    %5035 = vmatpush1.msra.mxu0 0.0
    %5036 = vmatprep.subr.mxu0 0.0
    %5037 = vmatpush1.msra.mxu0 0.0
    %5038 = vmatprep.subr.mxu0 0.0
    %5039 = vmatpush1.msra.mxu0 0.0
    %5040 = vmatprep.subr.mxu0 0.0
    %5041 = vmatpush1.msra.mxu0 0.0
    %5042 = vmatprep.subr.mxu0 0.0
    %5043 = vmatpush1.msra.mxu0 0.0
    %5044 = vmatprep.subr.mxu0 0.0
    %5045 = vmatpush1.msra.mxu0 0.0
    %5046 = vmatprep.subr.mxu0 0.0
    %5047 = vmatpush1.msra.mxu0 0.0
    %5048 = vmatprep.subr.mxu0 0.0
    %5049 = vmatpush1.msra.mxu0 0.0
    %5050 = vmatprep.subr.mxu0 0.0
    %5051 = vmatpush1.msra.mxu0 0.0
    %5052 = vmatprep.subr.mxu0 0.0
    %5053 = vmatpush1.msra.mxu0 0.0
    %5054 = vmatprep.subr.mxu0 0.0
    %5055 = vmatpush1.msra.mxu0 0.0
    %5056 = vmatprep.subr.mxu0 0.0
    %5057 = vmatpush1.msra.mxu0 0.0
    %5058 = vmatprep.subr.mxu0 0.0
    %5059 = vmatpush1.msra.mxu0 0.0
    %5060 = vmatprep.subr.mxu0 0.0
    %5061 = vmatpush1.msra.mxu0 0.0
    %5062 = vmatprep.subr.mxu0 0.0
    %5063 = vmatpush1.msra.mxu0 0.0
    %5064 = vmatprep.subr.mxu0 0.0
    %5065 = vmatpush1.msra.mxu0 0.0
    %5066 = vmatprep.subr.mxu0 0.0
    %5067 = vmatpush1.msra.mxu0 0.0
    %5068 = vmatprep.subr.mxu0 0.0
    %5069 = vmatpush1.msra.mxu0 0.0
    %5070 = vmatprep.subr.mxu0 0.0
    %5071 = vmatpush1.msra.mxu0 0.0
    %5072 = vmatprep.subr.mxu0 0.0
    %5073 = vmatpush1.msra.mxu0 0.0
    %5074 = vmatprep.subr.mxu0 0.0
    %5075 = vmatpush1.msra.mxu0 0.0
    %5076 = vmatprep.subr.mxu0 0.0
    %5077 = vmatpush1.msra.mxu0 0.0
    %5078 = vmatprep.subr.mxu0 0.0
    %5079 = vmatpush1.msra.mxu0 0.0
    %5080 = vmatprep.subr.mxu0 0.0
    %5081 = vmatpush1.msra.mxu0 0.0
    %5082 = vmatprep.subr.mxu0 0.0
    %5083 = vmatpush1.msra.mxu0 0.0
    %5084 = vmatprep.subr.mxu0 0.0
    %5085 = vmatpush1.msra.mxu0 0.0
    %5086 = vmatprep.subr.mxu0 0.0
    %5087 = vmatpush1.msra.mxu0 0.0
    %5088 = vmatprep.subr.mxu0 0.0
    %5089 = vmatpush1.msra.mxu0 0.0
    %5090 = vmatprep.mubr.f32.mxu0 0.0
    %5091 = vmatmul.mubr.f32.gmra.mrb[0].mxu0 %v4953
    %v5092 = vpop.f32.mrb[0].mxu0
    %v5093 = vadd.f32 0.0, %v5092
    %v5094 = vpop.f32.mrb[0].mxu0
    %5095 = vdwg.mxu0
    %v5096 = vadd.f32 %v4480, %v5093
    %v5097 = vmul.f32 %v5096, %v186
    %v5098 = vxor.u32 %v5097, 2147483648
    %v5099 = vmul.f32 %v5098, 1.442695
    %v5100 = vpow.pop %v5099
    %v5101 = vadd.f32 %v5100, 1.0
    %v5102 = vrcp.pop %v5101
    %v5103 = vmul.f32 1.0, %v5102
    %v5104 = vmul.f32 %v5103, 2.0
    %v5105 = vsub.f32 %v5104, 1.0
    %v5106 = vmul.f32 %v5103, %v4943
    %5108 = vrot.lane.b32.xlu0 %v5105, 64
    %v5109 = vpop.permute.xlu0 %5108
    %v5111 = vmul.f32 %v5103, %v5109
    %5113 = vrot.lane.b32.xlu0 %v5111, 32
    %v5114 = vpop.permute.xlu0 %5113
    %v5116 = vadd.f32 %v5106, %v5114
    %v5117 = vtanh.pop %v5116
    %5119 = vrot.lane.b32.xlu0 %v5117, 64
    %v5120 = vpop.permute.xlu0 %5119
    %v5122 = vmul.f32 %v5103, %v5120
    %5124 = vrot.lane.b32.xlu0 %v5122, 32
    %v5125 = vpop.permute.xlu0 %5124
    %v5126 = vsel %vm4498, %v5125, 0
    %5128 = vmatprep.subr.mxu0 0.0
    %5129 = vmatpush1.msra.mxu0 %v4349
    %5130 = vmatprep.subr.mxu0 0.0
    %5131 = vmatpush1.msra.mxu0 %v4350
    %5132 = vmatprep.subr.mxu0 0.0
    %5133 = vmatpush1.msra.mxu0 %v4351
    %5134 = vmatprep.subr.mxu0 0.0
    %5135 = vmatpush1.msra.mxu0 %v4352
    %5136 = vmatprep.subr.mxu0 0.0
    %5137 = vmatpush1.msra.mxu0 0.0
    %5138 = vmatprep.subr.mxu0 0.0
    %5139 = vmatpush1.msra.mxu0 0.0
    %5140 = vmatprep.subr.mxu0 0.0
    %5141 = vmatpush1.msra.mxu0 0.0
    %5142 = vmatprep.subr.mxu0 0.0
    %5143 = vmatpush1.msra.mxu0 0.0
    %5144 = vmatprep.subr.mxu0 0.0
    %5145 = vmatpush1.msra.mxu0 0.0
    %5146 = vmatprep.subr.mxu0 0.0
    %5147 = vmatpush1.msra.mxu0 0.0
    %5148 = vmatprep.subr.mxu0 0.0
    %5149 = vmatpush1.msra.mxu0 0.0
    %5150 = vmatprep.subr.mxu0 0.0
    %5151 = vmatpush1.msra.mxu0 0.0
    %5152 = vmatprep.subr.mxu0 0.0
    %5153 = vmatpush1.msra.mxu0 0.0
    %5154 = vmatprep.subr.mxu0 0.0
    %5155 = vmatpush1.msra.mxu0 0.0
    %5156 = vmatprep.subr.mxu0 0.0
    %5157 = vmatpush1.msra.mxu0 0.0
    %5158 = vmatprep.subr.mxu0 0.0
    %5159 = vmatpush1.msra.mxu0 0.0
    %5160 = vmatprep.subr.mxu0 0.0
    %5161 = vmatpush1.msra.mxu0 0.0
    %5162 = vmatprep.subr.mxu0 0.0
    %5163 = vmatpush1.msra.mxu0 0.0
    %5164 = vmatprep.subr.mxu0 0.0
    %5165 = vmatpush1.msra.mxu0 0.0
    %5166 = vmatprep.subr.mxu0 0.0
    %5167 = vmatpush1.msra.mxu0 0.0
    %5168 = vmatprep.subr.mxu0 0.0
    %5169 = vmatpush1.msra.mxu0 0.0
    %5170 = vmatprep.subr.mxu0 0.0
    %5171 = vmatpush1.msra.mxu0 0.0
    %5172 = vmatprep.subr.mxu0 0.0
    %5173 = vmatpush1.msra.mxu0 0.0
    %5174 = vmatprep.subr.mxu0 0.0
    %5175 = vmatpush1.msra.mxu0 0.0
    %5176 = vmatprep.subr.mxu0 0.0
    %5177 = vmatpush1.msra.mxu0 0.0
    %5178 = vmatprep.subr.mxu0 0.0
    %5179 = vmatpush1.msra.mxu0 0.0
    %5180 = vmatprep.subr.mxu0 0.0
    %5181 = vmatpush1.msra.mxu0 0.0
    %5182 = vmatprep.subr.mxu0 0.0
    %5183 = vmatpush1.msra.mxu0 0.0
    %5184 = vmatprep.subr.mxu0 0.0
    %5185 = vmatpush1.msra.mxu0 0.0
    %5186 = vmatprep.subr.mxu0 0.0
    %5187 = vmatpush1.msra.mxu0 0.0
    %5188 = vmatprep.subr.mxu0 0.0
    %5189 = vmatpush1.msra.mxu0 0.0
    %5190 = vmatprep.subr.mxu0 0.0
    %5191 = vmatpush1.msra.mxu0 0.0
    %5192 = vmatprep.mubr.f32.mxu0 0.0
    %5193 = vmatmul.mubr.f32.gmra.mrb[0].mxu0 %v5126
    %v5194 = vpop.f32.mrb[0].mxu0
    %v5195 = vadd.f32 %v4602, %v5194
    %v5196 = vpop.f32.mrb[0].mxu0
    %5197 = vdwg.mxu0
    %v5198 = vmax.f32 %v5195, 0.0
    %5199 = vmatprep.subr.mxu0 0.0
    %5200 = vmatpush1.msra.mxu0 %v4345
    %5201 = vmatprep.subr.mxu0 0.0
    %5202 = vmatpush1.msra.mxu0 %v4346
    %5203 = vmatprep.subr.mxu0 0.0
    %5204 = vmatpush1.msra.mxu0 %v4347
    %5205 = vmatprep.subr.mxu0 0.0
    %5206 = vmatpush1.msra.mxu0 %v4348
    %5207 = vmatprep.subr.mxu0 0.0
    %5208 = vmatpush1.msra.mxu0 0.0
    %5209 = vmatprep.subr.mxu0 0.0
    %5210 = vmatpush1.msra.mxu0 0.0
    %5211 = vmatprep.subr.mxu0 0.0
    %5212 = vmatpush1.msra.mxu0 0.0
    %5213 = vmatprep.subr.mxu0 0.0
    %5214 = vmatpush1.msra.mxu0 0.0
    %5215 = vmatprep.subr.mxu0 0.0
    %5216 = vmatpush1.msra.mxu0 0.0
    %5217 = vmatprep.subr.mxu0 0.0
    %5218 = vmatpush1.msra.mxu0 0.0
    %5219 = vmatprep.subr.mxu0 0.0
    %5220 = vmatpush1.msra.mxu0 0.0
    %5221 = vmatprep.subr.mxu0 0.0
    %5222 = vmatpush1.msra.mxu0 0.0
    %5223 = vmatprep.subr.mxu0 0.0
    %5224 = vmatpush1.msra.mxu0 0.0
    %5225 = vmatprep.subr.mxu0 0.0
    %5226 = vmatpush1.msra.mxu0 0.0
    %5227 = vmatprep.subr.mxu0 0.0
    %5228 = vmatpush1.msra.mxu0 0.0
    %5229 = vmatprep.subr.mxu0 0.0
    %5230 = vmatpush1.msra.mxu0 0.0
    %5231 = vmatprep.subr.mxu0 0.0
    %5232 = vmatpush1.msra.mxu0 0.0
    %5233 = vmatprep.subr.mxu0 0.0
    %5234 = vmatpush1.msra.mxu0 0.0
    %5235 = vmatprep.subr.mxu0 0.0
    %5236 = vmatpush1.msra.mxu0 0.0
    %5237 = vmatprep.subr.mxu0 0.0
    %5238 = vmatpush1.msra.mxu0 0.0
    %5239 = vmatprep.subr.mxu0 0.0
    %5240 = vmatpush1.msra.mxu0 0.0
    %5241 = vmatprep.subr.mxu0 0.0
    %5242 = vmatpush1.msra.mxu0 0.0
    %5243 = vmatprep.subr.mxu0 0.0
    %5244 = vmatpush1.msra.mxu0 0.0
    %5245 = vmatprep.subr.mxu0 0.0
    %5246 = vmatpush1.msra.mxu0 0.0
    %5247 = vmatprep.subr.mxu0 0.0
    %5248 = vmatpush1.msra.mxu0 0.0
    %5249 = vmatprep.subr.mxu0 0.0
    %5250 = vmatpush1.msra.mxu0 0.0
    %5251 = vmatprep.subr.mxu0 0.0
    %5252 = vmatpush1.msra.mxu0 0.0
    %5253 = vmatprep.subr.mxu0 0.0
    %5254 = vmatpush1.msra.mxu0 0.0
    %5255 = vmatprep.subr.mxu0 0.0
    %5256 = vmatpush1.msra.mxu0 0.0
    %5257 = vmatprep.subr.mxu0 0.0
    %5258 = vmatpush1.msra.mxu0 0.0
    %5259 = vmatprep.subr.mxu0 0.0
    %5260 = vmatpush1.msra.mxu0 0.0
    %5261 = vmatprep.subr.mxu0 0.0
    %5262 = vmatpush1.msra.mxu0 0.0
    %5263 = vmatprep.mubr.f32.mxu0 0.0
    %5264 = vmatmul.mubr.f32.gmra.mrb[0].mxu0 %v5126
    %v5265 = vpop.f32.mrb[0].mxu0
    %v5266 = vadd.f32 0.0, %v5265
    %v5267 = vpop.f32.mrb[0].mxu0
    %5268 = vdwg.mxu0
    %v5269 = vadd.f32 %v4475, %v5266
    %v5270 = vmul.f32 %v5269, %v186
    %v5271 = vxor.u32 %v5270, 2147483648
    %v5272 = vmul.f32 %v5271, 1.442695
    %v5273 = vpow.pop %v5272
    %v5274 = vadd.f32 %v5273, 1.0
    %v5275 = vrcp.pop %v5274
    %v5276 = vmul.f32 1.0, %v5275
    %v5277 = vmul.f32 %v5276, 2.0
    %v5278 = vsub.f32 %v5277, 1.0
    %v5279 = vmul.f32 %v5276, %v5116
    %5281 = vrot.lane.b32.xlu0 %v5278, 64
    %v5282 = vpop.permute.xlu0 %5281
    %v5284 = vmul.f32 %v5276, %v5282
    %5286 = vrot.lane.b32.xlu0 %v5284, 32
    %v5287 = vpop.permute.xlu0 %5286
    %v5289 = vadd.f32 %v5279, %v5287
    %v5290 = vtanh.pop %v5289
    %5292 = vrot.lane.b32.xlu0 %v5290, 64
    %v5293 = vpop.permute.xlu0 %5292
    %v5295 = vmul.f32 %v5276, %v5293
    %5297 = vrot.lane.b32.xlu0 %v5295, 32
    %v5298 = vpop.permute.xlu0 %5297
    %v5299 = vsel %vm4498, %v5298, 0
    %5301 = vmatprep.subr.mxu0 0.0
    %5302 = vmatpush1.msra.mxu0 %v4349
    %5303 = vmatprep.subr.mxu0 0.0
    %5304 = vmatpush1.msra.mxu0 %v4350
    %5305 = vmatprep.subr.mxu0 0.0
    %5306 = vmatpush1.msra.mxu0 %v4351
    %5307 = vmatprep.subr.mxu0 0.0
    %5308 = vmatpush1.msra.mxu0 %v4352
    %5309 = vmatprep.subr.mxu0 0.0
    %5310 = vmatpush1.msra.mxu0 0.0
    %5311 = vmatprep.subr.mxu0 0.0
    %5312 = vmatpush1.msra.mxu0 0.0
    %5313 = vmatprep.subr.mxu0 0.0
    %5314 = vmatpush1.msra.mxu0 0.0
    %5315 = vmatprep.subr.mxu0 0.0
    %5316 = vmatpush1.msra.mxu0 0.0
    %5317 = vmatprep.subr.mxu0 0.0
    %5318 = vmatpush1.msra.mxu0 0.0
    %5319 = vmatprep.subr.mxu0 0.0
    %5320 = vmatpush1.msra.mxu0 0.0
    %5321 = vmatprep.subr.mxu0 0.0
    %5322 = vmatpush1.msra.mxu0 0.0
    %5323 = vmatprep.subr.mxu0 0.0
    %5324 = vmatpush1.msra.mxu0 0.0
    %5325 = vmatprep.subr.mxu0 0.0
    %5326 = vmatpush1.msra.mxu0 0.0
    %5327 = vmatprep.subr.mxu0 0.0
    %5328 = vmatpush1.msra.mxu0 0.0
    %5329 = vmatprep.subr.mxu0 0.0
    %5330 = vmatpush1.msra.mxu0 0.0
    %5331 = vmatprep.subr.mxu0 0.0
    %5332 = vmatpush1.msra.mxu0 0.0
    %5333 = vmatprep.subr.mxu0 0.0
    %5334 = vmatpush1.msra.mxu0 0.0
    %5335 = vmatprep.subr.mxu0 0.0
    %5336 = vmatpush1.msra.mxu0 0.0
    %5337 = vmatprep.subr.mxu0 0.0
    %5338 = vmatpush1.msra.mxu0 0.0
    %5339 = vmatprep.subr.mxu0 0.0
    %5340 = vmatpush1.msra.mxu0 0.0
    %5341 = vmatprep.subr.mxu0 0.0
    %5342 = vmatpush1.msra.mxu0 0.0
    %5343 = vmatprep.subr.mxu0 0.0
    %5344 = vmatpush1.msra.mxu0 0.0
    %5345 = vmatprep.subr.mxu0 0.0
    %5346 = vmatpush1.msra.mxu0 0.0
    %5347 = vmatprep.subr.mxu0 0.0
    %5348 = vmatpush1.msra.mxu0 0.0
    %5349 = vmatprep.subr.mxu0 0.0
    %5350 = vmatpush1.msra.mxu0 0.0
    %5351 = vmatprep.subr.mxu0 0.0
    %5352 = vmatpush1.msra.mxu0 0.0
    %5353 = vmatprep.subr.mxu0 0.0
    %5354 = vmatpush1.msra.mxu0 0.0
    %5355 = vmatprep.subr.mxu0 0.0
    %5356 = vmatpush1.msra.mxu0 0.0
    %5357 = vmatprep.subr.mxu0 0.0
    %5358 = vmatpush1.msra.mxu0 0.0
    %5359 = vmatprep.subr.mxu0 0.0
    %5360 = vmatpush1.msra.mxu0 0.0
    %5361 = vmatprep.subr.mxu0 0.0
    %5362 = vmatpush1.msra.mxu0 0.0
    %5363 = vmatprep.subr.mxu0 0.0
    %5364 = vmatpush1.msra.mxu0 0.0
    %5365 = vmatprep.mubr.f32.mxu0 0.0
    %5366 = vmatmul.mubr.f32.gmra.mrb[0].mxu0 %v5299
    %v5367 = vpop.f32.mrb[0].mxu0
    %v5368 = vadd.f32 %v4602, %v5367
    %v5369 = vpop.f32.mrb[0].mxu0
    %5370 = vdwg.mxu0
    %v5371 = vmax.f32 %v5368, 0.0
    %5372 = vmatprep.subr.mxu0 0.0
    %5373 = vmatpush1.msra.mxu0 %v4345
    %5374 = vmatprep.subr.mxu0 0.0
    %5375 = vmatpush1.msra.mxu0 %v4346
    %5376 = vmatprep.subr.mxu0 0.0
    %5377 = vmatpush1.msra.mxu0 %v4347
    %5378 = vmatprep.subr.mxu0 0.0
    %5379 = vmatpush1.msra.mxu0 %v4348
    %5380 = vmatprep.subr.mxu0 0.0
    %5381 = vmatpush1.msra.mxu0 0.0
    %5382 = vmatprep.subr.mxu0 0.0
    %5383 = vmatpush1.msra.mxu0 0.0
    %5384 = vmatprep.subr.mxu0 0.0
    %5385 = vmatpush1.msra.mxu0 0.0
    %5386 = vmatprep.subr.mxu0 0.0
    %5387 = vmatpush1.msra.mxu0 0.0
    %5388 = vmatprep.subr.mxu0 0.0
    %5389 = vmatpush1.msra.mxu0 0.0
    %5390 = vmatprep.subr.mxu0 0.0
    %5391 = vmatpush1.msra.mxu0 0.0
    %5392 = vmatprep.subr.mxu0 0.0
    %5393 = vmatpush1.msra.mxu0 0.0
    %5394 = vmatprep.subr.mxu0 0.0
    %5395 = vmatpush1.msra.mxu0 0.0
    %5396 = vmatprep.subr.mxu0 0.0
    %5397 = vmatpush1.msra.mxu0 0.0
    %5398 = vmatprep.subr.mxu0 0.0
    %5399 = vmatpush1.msra.mxu0 0.0
    %5400 = vmatprep.subr.mxu0 0.0
    %5401 = vmatpush1.msra.mxu0 0.0
    %5402 = vmatprep.subr.mxu0 0.0
    %5403 = vmatpush1.msra.mxu0 0.0
    %5404 = vmatprep.subr.mxu0 0.0
    %5405 = vmatpush1.msra.mxu0 0.0
    %5406 = vmatprep.subr.mxu0 0.0
    %5407 = vmatpush1.msra.mxu0 0.0
    %5408 = vmatprep.subr.mxu0 0.0
    %5409 = vmatpush1.msra.mxu0 0.0
    %5410 = vmatprep.subr.mxu0 0.0
    %5411 = vmatpush1.msra.mxu0 0.0
    %5412 = vmatprep.subr.mxu0 0.0
    %5413 = vmatpush1.msra.mxu0 0.0
    %5414 = vmatprep.subr.mxu0 0.0
    %5415 = vmatpush1.msra.mxu0 0.0
    %5416 = vmatprep.subr.mxu0 0.0
    %5417 = vmatpush1.msra.mxu0 0.0
    %5418 = vmatprep.subr.mxu0 0.0
    %5419 = vmatpush1.msra.mxu0 0.0
    %5420 = vmatprep.subr.mxu0 0.0
    %5421 = vmatpush1.msra.mxu0 0.0
    %5422 = vmatprep.subr.mxu0 0.0
    %5423 = vmatpush1.msra.mxu0 0.0
    %5424 = vmatprep.subr.mxu0 0.0
    %5425 = vmatpush1.msra.mxu0 0.0
    %5426 = vmatprep.subr.mxu0 0.0
    %5427 = vmatpush1.msra.mxu0 0.0
    %5428 = vmatprep.subr.mxu0 0.0
    %5429 = vmatpush1.msra.mxu0 0.0
    %5430 = vmatprep.subr.mxu0 0.0
    %5431 = vmatpush1.msra.mxu0 0.0
    %5432 = vmatprep.subr.mxu0 0.0
    %5433 = vmatpush1.msra.mxu0 0.0
    %5434 = vmatprep.subr.mxu0 0.0
    %5435 = vmatpush1.msra.mxu0 0.0
    %5436 = vmatprep.mubr.f32.mxu0 0.0
    %5437 = vmatmul.mubr.f32.gmra.mrb[0].mxu0 %v5299
    %v5438 = vpop.f32.mrb[0].mxu0
    %v5439 = vadd.f32 0.0, %v5438
    %v5440 = vpop.f32.mrb[0].mxu0
    %5441 = vdwg.mxu0
    %v5442 = vadd.f32 %v4470, %v5439
    %v5443 = vmul.f32 %v5442, %v186
    %v5444 = vxor.u32 %v5443, 2147483648
    %v5445 = vmul.f32 %v5444, 1.442695
    %v5446 = vpow.pop %v5445
    %v5447 = vadd.f32 %v5446, 1.0
    %v5448 = vrcp.pop %v5447
    %v5449 = vmul.f32 1.0, %v5448
    %v5450 = vmul.f32 %v5449, 2.0
    %v5451 = vsub.f32 %v5450, 1.0
    %v5452 = vmul.f32 %v5449, %v5289
    %5454 = vrot.lane.b32.xlu0 %v5451, 64
    %v5455 = vpop.permute.xlu0 %5454
    %v5457 = vmul.f32 %v5449, %v5455
    %5459 = vrot.lane.b32.xlu0 %v5457, 32
    %v5460 = vpop.permute.xlu0 %5459
    %v5462 = vadd.f32 %v5452, %v5460
    %v5463 = vtanh.pop %v5462
    %5465 = vrot.lane.b32.xlu0 %v5463, 64
    %v5466 = vpop.permute.xlu0 %5465
    %v5468 = vmul.f32 %v5449, %v5466
    %5470 = vrot.lane.b32.xlu0 %v5468, 32
    %v5471 = vpop.permute.xlu0 %5470
    %v5472 = vsel %vm4498, %v5471, 0
    %5474 = vmatprep.subr.mxu0 0.0
    %5475 = vmatpush1.msra.mxu0 %v4349
    %5476 = vmatprep.subr.mxu0 0.0
    %5477 = vmatpush1.msra.mxu0 %v4350
    %5478 = vmatprep.subr.mxu0 0.0
    %5479 = vmatpush1.msra.mxu0 %v4351
    %5480 = vmatprep.subr.mxu0 0.0
    %5481 = vmatpush1.msra.mxu0 %v4352
    %5482 = vmatprep.subr.mxu0 0.0
    %5483 = vmatpush1.msra.mxu0 0.0
    %5484 = vmatprep.subr.mxu0 0.0
    %5485 = vmatpush1.msra.mxu0 0.0
    %5486 = vmatprep.subr.mxu0 0.0
    %5487 = vmatpush1.msra.mxu0 0.0
    %5488 = vmatprep.subr.mxu0 0.0
    %5489 = vmatpush1.msra.mxu0 0.0
    %5490 = vmatprep.subr.mxu0 0.0
    %5491 = vmatpush1.msra.mxu0 0.0
    %5492 = vmatprep.subr.mxu0 0.0
    %5493 = vmatpush1.msra.mxu0 0.0
    %5494 = vmatprep.subr.mxu0 0.0
    %5495 = vmatpush1.msra.mxu0 0.0
    %5496 = vmatprep.subr.mxu0 0.0
    %5497 = vmatpush1.msra.mxu0 0.0
    %5498 = vmatprep.subr.mxu0 0.0
    %5499 = vmatpush1.msra.mxu0 0.0
    %5500 = vmatprep.subr.mxu0 0.0
    %5501 = vmatpush1.msra.mxu0 0.0
    %5502 = vmatprep.subr.mxu0 0.0
    %5503 = vmatpush1.msra.mxu0 0.0
    %5504 = vmatprep.subr.mxu0 0.0
    %5505 = vmatpush1.msra.mxu0 0.0
    %5506 = vmatprep.subr.mxu0 0.0
    %5507 = vmatpush1.msra.mxu0 0.0
    %5508 = vmatprep.subr.mxu0 0.0
    %5509 = vmatpush1.msra.mxu0 0.0
    %5510 = vmatprep.subr.mxu0 0.0
    %5511 = vmatpush1.msra.mxu0 0.0
    %5512 = vmatprep.subr.mxu0 0.0
    %5513 = vmatpush1.msra.mxu0 0.0
    %5514 = vmatprep.subr.mxu0 0.0
    %5515 = vmatpush1.msra.mxu0 0.0
    %5516 = vmatprep.subr.mxu0 0.0
    %5517 = vmatpush1.msra.mxu0 0.0
    %5518 = vmatprep.subr.mxu0 0.0
    %5519 = vmatpush1.msra.mxu0 0.0
    %5520 = vmatprep.subr.mxu0 0.0
    %5521 = vmatpush1.msra.mxu0 0.0
    %5522 = vmatprep.subr.mxu0 0.0
    %5523 = vmatpush1.msra.mxu0 0.0
    %5524 = vmatprep.subr.mxu0 0.0
    %5525 = vmatpush1.msra.mxu0 0.0
    %5526 = vmatprep.subr.mxu0 0.0
    %5527 = vmatpush1.msra.mxu0 0.0
    %5528 = vmatprep.subr.mxu0 0.0
    %5529 = vmatpush1.msra.mxu0 0.0
    %5530 = vmatprep.subr.mxu0 0.0
    %5531 = vmatpush1.msra.mxu0 0.0
    %5532 = vmatprep.subr.mxu0 0.0
    %5533 = vmatpush1.msra.mxu0 0.0
    %5534 = vmatprep.subr.mxu0 0.0
    %5535 = vmatpush1.msra.mxu0 0.0
    %5536 = vmatprep.subr.mxu0 0.0
    %5537 = vmatpush1.msra.mxu0 0.0
    %5538 = vmatprep.mubr.f32.mxu0 0.0
    %5539 = vmatmul.mubr.f32.gmra.mrb[0].mxu0 %v5472
    %v5540 = vpop.f32.mrb[0].mxu0
    %v5541 = vadd.f32 %v4602, %v5540
    %v5542 = vpop.f32.mrb[0].mxu0
    %5543 = vdwg.mxu0
    %v5544 = vmax.f32 %v5541, 0.0
    %5545 = vmatprep.subr.mxu0 0.0
    %5546 = vmatpush1.msra.mxu0 %v4345
    %5547 = vmatprep.subr.mxu0 0.0
    %5548 = vmatpush1.msra.mxu0 %v4346
    %5549 = vmatprep.subr.mxu0 0.0
    %5550 = vmatpush1.msra.mxu0 %v4347
    %5551 = vmatprep.subr.mxu0 0.0
    %5552 = vmatpush1.msra.mxu0 %v4348
    %5553 = vmatprep.subr.mxu0 0.0
    %5554 = vmatpush1.msra.mxu0 0.0
    %5555 = vmatprep.subr.mxu0 0.0
    %5556 = vmatpush1.msra.mxu0 0.0
    %5557 = vmatprep.subr.mxu0 0.0
    %5558 = vmatpush1.msra.mxu0 0.0
    %5559 = vmatprep.subr.mxu0 0.0
    %5560 = vmatpush1.msra.mxu0 0.0
    %5561 = vmatprep.subr.mxu0 0.0
    %5562 = vmatpush1.msra.mxu0 0.0
    %5563 = vmatprep.subr.mxu0 0.0
    %5564 = vmatpush1.msra.mxu0 0.0
    %5565 = vmatprep.subr.mxu0 0.0
    %5566 = vmatpush1.msra.mxu0 0.0
    %5567 = vmatprep.subr.mxu0 0.0
    %5568 = vmatpush1.msra.mxu0 0.0
    %5569 = vmatprep.subr.mxu0 0.0
    %5570 = vmatpush1.msra.mxu0 0.0
    %5571 = vmatprep.subr.mxu0 0.0
    %5572 = vmatpush1.msra.mxu0 0.0
    %5573 = vmatprep.subr.mxu0 0.0
    %5574 = vmatpush1.msra.mxu0 0.0
    %5575 = vmatprep.subr.mxu0 0.0
    %5576 = vmatpush1.msra.mxu0 0.0
    %5577 = vmatprep.subr.mxu0 0.0
    %5578 = vmatpush1.msra.mxu0 0.0
    %5579 = vmatprep.subr.mxu0 0.0
    %5580 = vmatpush1.msra.mxu0 0.0
    %5581 = vmatprep.subr.mxu0 0.0
    %5582 = vmatpush1.msra.mxu0 0.0
    %5583 = vmatprep.subr.mxu0 0.0
    %5584 = vmatpush1.msra.mxu0 0.0
    %5585 = vmatprep.subr.mxu0 0.0
    %5586 = vmatpush1.msra.mxu0 0.0
    %5587 = vmatprep.subr.mxu0 0.0
    %5588 = vmatpush1.msra.mxu0 0.0
    %5589 = vmatprep.subr.mxu0 0.0
    %5590 = vmatpush1.msra.mxu0 0.0
    %5591 = vmatprep.subr.mxu0 0.0
    %5592 = vmatpush1.msra.mxu0 0.0
    %5593 = vmatprep.subr.mxu0 0.0
    %5594 = vmatpush1.msra.mxu0 0.0
    %5595 = vmatprep.subr.mxu0 0.0
    %5596 = vmatpush1.msra.mxu0 0.0
    %5597 = vmatprep.subr.mxu0 0.0
    %5598 = vmatpush1.msra.mxu0 0.0
    %5599 = vmatprep.subr.mxu0 0.0
    %5600 = vmatpush1.msra.mxu0 0.0
    %5601 = vmatprep.subr.mxu0 0.0
    %5602 = vmatpush1.msra.mxu0 0.0
    %5603 = vmatprep.subr.mxu0 0.0
    %5604 = vmatpush1.msra.mxu0 0.0
    %5605 = vmatprep.subr.mxu0 0.0
    %5606 = vmatpush1.msra.mxu0 0.0
    %5607 = vmatprep.subr.mxu0 0.0
    %5608 = vmatpush1.msra.mxu0 0.0
    %5609 = vmatprep.mubr.f32.mxu0 0.0
    %5610 = vmatmul.mubr.f32.gmra.mrb[0].mxu0 %v5472
    %v5611 = vpop.f32.mrb[0].mxu0
    %v5612 = vadd.f32 0.0, %v5611
    %v5613 = vpop.f32.mrb[0].mxu0
    %5614 = vdwg.mxu0
    %v5615 = vadd.f32 %v4465, %v5612
    %v5616 = vmul.f32 %v5615, %v186
    %v5617 = vxor.u32 %v5616, 2147483648
    %v5618 = vmul.f32 %v5617, 1.442695
    %v5619 = vpow.pop %v5618
    %v5620 = vadd.f32 %v5619, 1.0
    %v5621 = vrcp.pop %v5620
    %v5622 = vmul.f32 1.0, %v5621
    %v5623 = vmul.f32 %v5622, 2.0
    %v5624 = vsub.f32 %v5623, 1.0
    %v5625 = vmul.f32 %v5622, %v5462
    %5627 = vrot.lane.b32.xlu0 %v5624, 64
    %v5628 = vpop.permute.xlu0 %5627
    %v5630 = vmul.f32 %v5622, %v5628
    %5632 = vrot.lane.b32.xlu0 %v5630, 32
    %v5633 = vpop.permute.xlu0 %5632
    %v5635 = vadd.f32 %v5625, %v5633
    %v5636 = vtanh.pop %v5635
    %5638 = vrot.lane.b32.xlu0 %v5636, 64
    %v5639 = vpop.permute.xlu0 %5638
    %v5641 = vmul.f32 %v5622, %v5639
    %5643 = vrot.lane.b32.xlu0 %v5641, 32
    %v5644 = vpop.permute.xlu0 %5643
    %v5645 = vsel %vm4498, %v5644, 0
    %5647 = vmatprep.subr.mxu0 0.0
    %5648 = vmatpush1.msra.mxu0 %v4349
    %5649 = vmatprep.subr.mxu0 0.0
    %5650 = vmatpush1.msra.mxu0 %v4350
    %5651 = vmatprep.subr.mxu0 0.0
    %5652 = vmatpush1.msra.mxu0 %v4351
    %5653 = vmatprep.subr.mxu0 0.0
    %5654 = vmatpush1.msra.mxu0 %v4352
    %5655 = vmatprep.subr.mxu0 0.0
    %5656 = vmatpush1.msra.mxu0 0.0
    %5657 = vmatprep.subr.mxu0 0.0
    %5658 = vmatpush1.msra.mxu0 0.0
    %5659 = vmatprep.subr.mxu0 0.0
    %5660 = vmatpush1.msra.mxu0 0.0
    %5661 = vmatprep.subr.mxu0 0.0
    %5662 = vmatpush1.msra.mxu0 0.0
    %5663 = vmatprep.subr.mxu0 0.0
    %5664 = vmatpush1.msra.mxu0 0.0
    %5665 = vmatprep.subr.mxu0 0.0
    %5666 = vmatpush1.msra.mxu0 0.0
    %5667 = vmatprep.subr.mxu0 0.0
    %5668 = vmatpush1.msra.mxu0 0.0
    %5669 = vmatprep.subr.mxu0 0.0
    %5670 = vmatpush1.msra.mxu0 0.0
    %5671 = vmatprep.subr.mxu0 0.0
    %5672 = vmatpush1.msra.mxu0 0.0
    %5673 = vmatprep.subr.mxu0 0.0
    %5674 = vmatpush1.msra.mxu0 0.0
    %5675 = vmatprep.subr.mxu0 0.0
    %5676 = vmatpush1.msra.mxu0 0.0
    %5677 = vmatprep.subr.mxu0 0.0
    %5678 = vmatpush1.msra.mxu0 0.0
    %5679 = vmatprep.subr.mxu0 0.0
    %5680 = vmatpush1.msra.mxu0 0.0
    %5681 = vmatprep.subr.mxu0 0.0
    %5682 = vmatpush1.msra.mxu0 0.0
    %5683 = vmatprep.subr.mxu0 0.0
    %5684 = vmatpush1.msra.mxu0 0.0
    %5685 = vmatprep.subr.mxu0 0.0
    %5686 = vmatpush1.msra.mxu0 0.0
    %5687 = vmatprep.subr.mxu0 0.0
    %5688 = vmatpush1.msra.mxu0 0.0
    %5689 = vmatprep.subr.mxu0 0.0
    %5690 = vmatpush1.msra.mxu0 0.0
    %5691 = vmatprep.subr.mxu0 0.0
    %5692 = vmatpush1.msra.mxu0 0.0
    %5693 = vmatprep.subr.mxu0 0.0
    %5694 = vmatpush1.msra.mxu0 0.0
    %5695 = vmatprep.subr.mxu0 0.0
    %5696 = vmatpush1.msra.mxu0 0.0
    %5697 = vmatprep.subr.mxu0 0.0
    %5698 = vmatpush1.msra.mxu0 0.0
    %5699 = vmatprep.subr.mxu0 0.0
    %5700 = vmatpush1.msra.mxu0 0.0
    %5701 = vmatprep.subr.mxu0 0.0
    %5702 = vmatpush1.msra.mxu0 0.0
    %5703 = vmatprep.subr.mxu0 0.0
    %5704 = vmatpush1.msra.mxu0 0.0
    %5705 = vmatprep.subr.mxu0 0.0
    %5706 = vmatpush1.msra.mxu0 0.0
    %5707 = vmatprep.subr.mxu0 0.0
    %5708 = vmatpush1.msra.mxu0 0.0
    %5709 = vmatprep.subr.mxu0 0.0
    %5710 = vmatpush1.msra.mxu0 0.0
    %5711 = vmatprep.mubr.f32.mxu0 0.0
    %5712 = vmatmul.mubr.f32.gmra.mrb[0].mxu0 %v5645
    %v5713 = vpop.f32.mrb[0].mxu0
    %v5714 = vadd.f32 %v4602, %v5713
    %v5715 = vpop.f32.mrb[0].mxu0
    %5716 = vdwg.mxu0
    %v5717 = vmax.f32 %v5714, 0.0
    %5718 = vmatprep.subr.mxu0 0.0
    %5719 = vmatpush1.msra.mxu0 %v4345
    %5720 = vmatprep.subr.mxu0 0.0
    %5721 = vmatpush1.msra.mxu0 %v4346
    %5722 = vmatprep.subr.mxu0 0.0
    %5723 = vmatpush1.msra.mxu0 %v4347
    %5724 = vmatprep.subr.mxu0 0.0
    %5725 = vmatpush1.msra.mxu0 %v4348
    %5726 = vmatprep.subr.mxu0 0.0
    %5727 = vmatpush1.msra.mxu0 0.0
    %5728 = vmatprep.subr.mxu0 0.0
    %5729 = vmatpush1.msra.mxu0 0.0
    %5730 = vmatprep.subr.mxu0 0.0
    %5731 = vmatpush1.msra.mxu0 0.0
    %5732 = vmatprep.subr.mxu0 0.0
    %5733 = vmatpush1.msra.mxu0 0.0
    %5734 = vmatprep.subr.mxu0 0.0
    %5735 = vmatpush1.msra.mxu0 0.0
    %5736 = vmatprep.subr.mxu0 0.0
    %5737 = vmatpush1.msra.mxu0 0.0
    %5738 = vmatprep.subr.mxu0 0.0
    %5739 = vmatpush1.msra.mxu0 0.0
    %5740 = vmatprep.subr.mxu0 0.0
    %5741 = vmatpush1.msra.mxu0 0.0
    %5742 = vmatprep.subr.mxu0 0.0
    %5743 = vmatpush1.msra.mxu0 0.0
    %5744 = vmatprep.subr.mxu0 0.0
    %5745 = vmatpush1.msra.mxu0 0.0
    %5746 = vmatprep.subr.mxu0 0.0
    %5747 = vmatpush1.msra.mxu0 0.0
    %5748 = vmatprep.subr.mxu0 0.0
    %5749 = vmatpush1.msra.mxu0 0.0
    %5750 = vmatprep.subr.mxu0 0.0
    %5751 = vmatpush1.msra.mxu0 0.0
    %5752 = vmatprep.subr.mxu0 0.0
    %5753 = vmatpush1.msra.mxu0 0.0
    %5754 = vmatprep.subr.mxu0 0.0
    %5755 = vmatpush1.msra.mxu0 0.0
    %5756 = vmatprep.subr.mxu0 0.0
    %5757 = vmatpush1.msra.mxu0 0.0
    %5758 = vmatprep.subr.mxu0 0.0
    %5759 = vmatpush1.msra.mxu0 0.0
    %5760 = vmatprep.subr.mxu0 0.0
    %5761 = vmatpush1.msra.mxu0 0.0
    %5762 = vmatprep.subr.mxu0 0.0
    %5763 = vmatpush1.msra.mxu0 0.0
    %5764 = vmatprep.subr.mxu0 0.0
    %5765 = vmatpush1.msra.mxu0 0.0
    %5766 = vmatprep.subr.mxu0 0.0
    %5767 = vmatpush1.msra.mxu0 0.0
    %5768 = vmatprep.subr.mxu0 0.0
    %5769 = vmatpush1.msra.mxu0 0.0
    %5770 = vmatprep.subr.mxu0 0.0
    %5771 = vmatpush1.msra.mxu0 0.0
    %5772 = vmatprep.subr.mxu0 0.0
    %5773 = vmatpush1.msra.mxu0 0.0
    %5774 = vmatprep.subr.mxu0 0.0
    %5775 = vmatpush1.msra.mxu0 0.0
    %5776 = vmatprep.subr.mxu0 0.0
    %5777 = vmatpush1.msra.mxu0 0.0
    %5778 = vmatprep.subr.mxu0 0.0
    %5779 = vmatpush1.msra.mxu0 0.0
    %5780 = vmatprep.subr.mxu0 0.0
    %5781 = vmatpush1.msra.mxu0 0.0
    %5782 = vmatprep.mubr.f32.mxu0 0.0
    %5783 = vmatmul.mubr.f32.gmra.mrb[0].mxu0 %v5645
    %v5784 = vpop.f32.mrb[0].mxu0
    %v5785 = vadd.f32 0.0, %v5784
    %v5786 = vpop.f32.mrb[0].mxu0
    %5787 = vdwg.mxu0
    %v5788 = vadd.f32 %v4460, %v5785
    %v5789 = vmul.f32 %v5788, %v186
    %v5790 = vxor.u32 %v5789, 2147483648
    %v5791 = vmul.f32 %v5790, 1.442695
    %v5792 = vpow.pop %v5791
    %v5793 = vadd.f32 %v5792, 1.0
    %v5794 = vrcp.pop %v5793
    %v5795 = vmul.f32 1.0, %v5794
    %v5796 = vmul.f32 %v5795, 2.0
    %v5797 = vsub.f32 %v5796, 1.0
    %v5798 = vmul.f32 %v5795, %v5635
    %5800 = vrot.lane.b32.xlu0 %v5797, 64
    %v5801 = vpop.permute.xlu0 %5800
    %v5803 = vmul.f32 %v5795, %v5801
    %5805 = vrot.lane.b32.xlu0 %v5803, 32
    %v5806 = vpop.permute.xlu0 %5805
    %v5808 = vadd.f32 %v5798, %v5806
    %v5809 = vtanh.pop %v5808
    %5811 = vrot.lane.b32.xlu0 %v5809, 64
    %v5812 = vpop.permute.xlu0 %5811
    %v5814 = vmul.f32 %v5795, %v5812
    %5816 = vrot.lane.b32.xlu0 %v5814, 32
    %v5817 = vpop.permute.xlu0 %5816
    %v5818 = vsel %vm4498, %v5817, 0
    %5820 = vmatprep.subr.mxu0 0.0
    %5821 = vmatpush1.msra.mxu0 %v4349
    %5822 = vmatprep.subr.mxu0 0.0
    %5823 = vmatpush1.msra.mxu0 %v4350
    %5824 = vmatprep.subr.mxu0 0.0
    %5825 = vmatpush1.msra.mxu0 %v4351
    %5826 = vmatprep.subr.mxu0 0.0
    %5827 = vmatpush1.msra.mxu0 %v4352
    %5828 = vmatprep.subr.mxu0 0.0
    %5829 = vmatpush1.msra.mxu0 0.0
    %5830 = vmatprep.subr.mxu0 0.0
    %5831 = vmatpush1.msra.mxu0 0.0
    %5832 = vmatprep.subr.mxu0 0.0
    %5833 = vmatpush1.msra.mxu0 0.0
    %5834 = vmatprep.subr.mxu0 0.0
    %5835 = vmatpush1.msra.mxu0 0.0
    %5836 = vmatprep.subr.mxu0 0.0
    %5837 = vmatpush1.msra.mxu0 0.0
    %5838 = vmatprep.subr.mxu0 0.0
    %5839 = vmatpush1.msra.mxu0 0.0
    %5840 = vmatprep.subr.mxu0 0.0
    %5841 = vmatpush1.msra.mxu0 0.0
    %5842 = vmatprep.subr.mxu0 0.0
    %5843 = vmatpush1.msra.mxu0 0.0
    %5844 = vmatprep.subr.mxu0 0.0
    %5845 = vmatpush1.msra.mxu0 0.0
    %5846 = vmatprep.subr.mxu0 0.0
    %5847 = vmatpush1.msra.mxu0 0.0
    %5848 = vmatprep.subr.mxu0 0.0
    %5849 = vmatpush1.msra.mxu0 0.0
    %5850 = vmatprep.subr.mxu0 0.0
    %5851 = vmatpush1.msra.mxu0 0.0
    %5852 = vmatprep.subr.mxu0 0.0
    %5853 = vmatpush1.msra.mxu0 0.0
    %5854 = vmatprep.subr.mxu0 0.0
    %5855 = vmatpush1.msra.mxu0 0.0
    %5856 = vmatprep.subr.mxu0 0.0
    %5857 = vmatpush1.msra.mxu0 0.0
    %5858 = vmatprep.subr.mxu0 0.0
    %5859 = vmatpush1.msra.mxu0 0.0
    %5860 = vmatprep.subr.mxu0 0.0
    %5861 = vmatpush1.msra.mxu0 0.0
    %5862 = vmatprep.subr.mxu0 0.0
    %5863 = vmatpush1.msra.mxu0 0.0
    %5864 = vmatprep.subr.mxu0 0.0
    %5865 = vmatpush1.msra.mxu0 0.0
    %5866 = vmatprep.subr.mxu0 0.0
    %5867 = vmatpush1.msra.mxu0 0.0
    %5868 = vmatprep.subr.mxu0 0.0
    %5869 = vmatpush1.msra.mxu0 0.0
    %5870 = vmatprep.subr.mxu0 0.0
    %5871 = vmatpush1.msra.mxu0 0.0
    %5872 = vmatprep.subr.mxu0 0.0
    %5873 = vmatpush1.msra.mxu0 0.0
    %5874 = vmatprep.subr.mxu0 0.0
    %5875 = vmatpush1.msra.mxu0 0.0
    %5876 = vmatprep.subr.mxu0 0.0
    %5877 = vmatpush1.msra.mxu0 0.0
    %5878 = vmatprep.subr.mxu0 0.0
    %5879 = vmatpush1.msra.mxu0 0.0
    %5880 = vmatprep.subr.mxu0 0.0
    %5881 = vmatpush1.msra.mxu0 0.0
    %5882 = vmatprep.subr.mxu0 0.0
    %5883 = vmatpush1.msra.mxu0 0.0
    %5884 = vmatprep.mubr.f32.mxu0 0.0
    %5885 = vmatmul.mubr.f32.gmra.mrb[0].mxu0 %v5818
    %v5886 = vpop.f32.mrb[0].mxu0
    %v5887 = vadd.f32 %v4602, %v5886
    %v5888 = vpop.f32.mrb[0].mxu0
    %5889 = vdwg.mxu0
    %v5890 = vmax.f32 %v5887, 0.0
    %5891 = vst [vmem:[%s12] sm:$0xff] %v5890
    %5892 = vst [vmem:[%s12 + $0x8] sm:$0xff] %v5717
    %5893 = vst [vmem:[%s12 + $0x10] sm:$0xff] %v5544
    %5894 = vst [vmem:[%s12 + $0x18] sm:$0xff] %v5371
    %5895 = vst [vmem:[%s12 + $0x20] sm:$0xff] %v5198
    %5896 = vst [vmem:[%s12 + $0x28] sm:$0xff] %v5025
    %5897 = vst [vmem:[%s12 + $0x30] sm:$0xff] %v4852
    %5898 = vst [vmem:[%s12 + $0x38] sm:$0xff] %v4679
    // Predicated region
    $region82: #{curve_trace_forward.1} parent=1 // pred_check
      _
    $region83: #{curve_trace_forward.1} parent=1 // pred_check_branch
      %5900 = sbr.rel (0) target = $region85
    $region84: #{curve_trace_forward.1} parent=1 // pred_region
      _
    $region85: #{curve_trace_forward.1} parent=1 // pred_fallthru
      _
    // Predicated region
    $region86: #{curve_trace_forward.1} parent=1 // pred_check
      _
    $region87: #{curve_trace_forward.1} parent=1 // pred_check_branch
      %5902 = sbr.rel (0) target = $region89
    $region88: #{curve_trace_forward.1} parent=1 // pred_region
      _
    $region89: #{curve_trace_forward.1} parent=1 // pred_fallthru
      _
    %5903 = vsyncpa [#allocation3], 1
    %5904 = vsyncpa [#allocation5], 1
    %5905 = vsyncpa [#allocation8], 1
    %5906 = vsyncpa [#allocation11], 1
    %5907 = vsyncpa [#allocation14], 1

</llo_original>
